<compile_context>
chip_gen: v7x
topology: tpu7x:2x2x1
jax: 0.10.0
libtpu: 0.0.40
codegen_flags: <defaults>
</compile_context>

<pallas_src>
import math

import jax
import jax.numpy as jnp
import numpy as np
from jax.experimental import pallas as pl
from jax.experimental.pallas import tpu as pltpu

# ----------------------------- module constants -----------------------------
SAMPLE_RATE = 16000
N_FFT = 800
N_MELS = 128
HOP = int((2 * SAMPLE_RATE - N_FFT) // (N_MELS * 2 - 1))       # 122
N_FREQ = N_FFT // 2 + 1                                        # 401 (onesided)
N_FREQ_PAD = 512                                               # lane-aligned freq axis
TARGET_LEN = SAMPLE_RATE * 2                                   # 32000 samples
N_FRAMES = 1 + TARGET_LEN // HOP                               # 263 (center=True)
T_PAD = 264                                                    # 263 -> multiple of 8
OUT_T = 256                                                    # final time slice
CHUNK_PAD = 128                                                # lane-padded chunk width
N_CHUNKS_PER_FRAME = -(-N_FFT // HOP)                          # 7 chunks cover one frame
N_CHUNK_ROWS = ((T_PAD + N_CHUNKS_PER_FRAME - 1 + 7) // 8) * 8  # 272 chunk rows
SIG_PAD_LEN = N_CHUNK_ROWS * HOP                               # 33184 samples
TOP_DB = 80.0
AMIN = 1e-10          # torchaudio AmplitudeToDB amin
REF = 1.0             # torchaudio AmplitudeToDB ref_value
EPS = 1e-10           # module's min/max-normalisation eps
_DB_MULT = 10.0 / math.log(10.0)                               # 10 * log10(e)
_DB_OFFSET = 10.0 * math.log10(max(AMIN, REF))                 # = 0.0


# ------------------------- deterministic "parameters" -----------------------
def _mel_filterbank(n_freq, n_mels, sample_rate, f_min=0.0, f_max=None):
    # torchaudio melscale_fbanks, mel_scale='htk', norm=None
    if f_max is None:
        f_max = sample_rate / 2.0
    all_freqs = np.linspace(0.0, sample_rate / 2.0, n_freq)

    def hz_to_mel(f):
        return 2595.0 * np.log10(1.0 + f / 700.0)

    def mel_to_hz(m):
        return 700.0 * (10.0 ** (m / 2595.0) - 1.0)

    m_pts = np.linspace(hz_to_mel(f_min), hz_to_mel(f_max), n_mels + 2)
    f_pts = mel_to_hz(m_pts)
    f_diff = f_pts[1:] - f_pts[:-1]                        # (n_mels+1,)
    slopes = f_pts[None, :] - all_freqs[:, None]           # (n_freq, n_mels+2)
    down = -slopes[:, :-2] / f_diff[:-1]
    up = slopes[:, 2:] / f_diff[1:]
    fb = np.maximum(0.0, np.minimum(down, up))
    return fb.astype(np.float32)                           # (n_freq, n_mels)


def _build_constants():
    # Periodic Hann window folded directly into the DFT matrices.
    n = np.arange(N_FFT, dtype=np.float64)
    win = 0.5 * (1.0 - np.cos(2.0 * np.pi * n / N_FFT))    # torch.hann_window(periodic)
    k = np.arange(N_FREQ, dtype=np.float64)
    ang = 2.0 * np.pi * n[:, None] * k[None, :] / N_FFT
    cos_w = win[:, None] * np.cos(ang)                     # (800, 401)
    sin_w = win[:, None] * (-np.sin(ang))                  # (800, 401)

    # Fused, lane-aligned DFT matrix: [win*cos | win*(-sin)], padded to 1024 cols.
    dft = np.zeros((N_FFT, 2 * N_FREQ_PAD), dtype=np.float32)
    dft[:, :N_FREQ] = cos_w
    dft[:, N_FREQ_PAD:N_FREQ_PAD + N_FREQ] = sin_w

    # Rearrange DFT rows into the chunked frame layout used by the kernel:
    #   lhs[t, c*CHUNK_PAD + r]  = sig[(t + c)*HOP + r]    (r < HOP, zero otherwise)
    #   dft2[c*CHUNK_PAD + r, :] = dft[c*HOP + r, :]       (c*HOP + r < N_FFT)
    # so that  lhs @ dft2 == frames @ dft  exactly.
    dft2 = np.zeros((N_CHUNKS_PER_FRAME * CHUNK_PAD, 2 * N_FREQ_PAD), dtype=np.float32)
    for c in range(N_CHUNKS_PER_FRAME):
        lo = c * HOP
        hi = min(N_FFT, lo + HOP)
        dft2[c * CHUNK_PAD: c * CHUNK_PAD + (hi - lo), :] = dft[lo:hi, :]

    # Mel filterbank, zero-padded to 512 frequency rows (pad rows multiply zeros).
    fb = np.zeros((N_FREQ_PAD, N_MELS), dtype=np.float32)
    fb[:N_FREQ, :] = _mel_filterbank(N_FREQ, N_MELS, SAMPLE_RATE)
    return dft2, fb


_DFT2_NP, _FB_NP = _build_constants()
# Device-resident constants, created once (not per call).
_DFT2_BF16 = jnp.asarray(_DFT2_NP, dtype=jnp.bfloat16)     # (896, 1024)
_FB_F32 = jnp.asarray(_FB_NP, dtype=jnp.float32)           # (512, 128)


# --------------------------------- kernel -----------------------------------
def melspec_kernel(chunks_ref, dft_ref, fb_ref, out_ref):
    """chunks_ref: (272, 128) f32 HOP-sized signal chunks (cols >= HOP are zero).
    dft_ref: (896, 1024) bf16 chunk-layout windowed DFT.  fb_ref: (512, 128) f32.
    Writes the final normalised spectrogram image (128, 256) f32."""
    # --- in-VMEM framing: frame t is the concatenation of chunks t .. t+6 ----
    parts = []
    for c in range(N_CHUNKS_PER_FRAME):
        blk = chunks_ref[pl.ds(c, T_PAD), :]               # (264, 128) f32, sublane shift c
        parts.append(blk.astype(jnp.bfloat16))
    lhs = jnp.concatenate(parts, axis=1)                    # (264, 896) bf16

    # --- fused windowed DFT GEMM on the MXU (f32 accumulation) ---------------
    # bf16 inputs cost ~0.02-0.05 dB vs torch f32 STFT; acceptable here.
    y = jnp.dot(lhs, dft_ref[...], preferred_element_type=jnp.float32)  # (264, 1024)
    re = y[:, :N_FREQ_PAD]
    im = y[:, N_FREQ_PAD:]
    power = re * re + im * im                               # (264, 512) f32

    # --- mel projection -------------------------------------------------------
    mel = jnp.dot(power, fb_ref[...], preferred_element_type=jnp.float32)  # (264, 128)

    # --- AmplitudeToDB(stype='power', top_db=80) ------------------------------
    db = _DB_MULT * jnp.log(jnp.maximum(mel, AMIN)) - _DB_OFFSET

    # --- fused epilogue: global clamp + min/max norm over the 263 valid frames
    valid = jax.lax.broadcasted_iota(jnp.int32, (T_PAD, N_MELS), 0) < N_FRAMES
    db_max = jnp.max(jnp.where(valid, db, -jnp.inf))
    db = jnp.maximum(db, db_max - TOP_DB)
    db_min = jnp.min(jnp.where(valid, db, jnp.inf))
    norm = (db - db_min) / (db_max - db_min + EPS)          # (264, 128)

    # (T, M) -> slice time to 256 -> transpose to lane-dense (128, 256)
    out_ref[...] = jnp.transpose(norm[:OUT_T, :])


def _run_melspec_kernel(chunks_f32):
    bytes_accessed = (N_CHUNK_ROWS * CHUNK_PAD * 4
                      + N_CHUNKS_PER_FRAME * CHUNK_PAD * 2 * N_FREQ_PAD * 2
                      + N_FREQ_PAD * N_MELS * 4
                      + N_MELS * OUT_T * 4)
    flops = (2 * T_PAD * (N_CHUNKS_PER_FRAME * CHUNK_PAD) * (2 * N_FREQ_PAD)
             + 2 * T_PAD * N_FREQ_PAD * N_MELS)
    return pl.pallas_call(
        melspec_kernel,
        out_shape=jax.ShapeDtypeStruct((N_MELS, OUT_T), jnp.float32),
        # Single un-pipelined invocation: whole operands resident in VMEM once.
        in_specs=[
            pl.BlockSpec(memory_space=pltpu.MemorySpace.VMEM),
            pl.BlockSpec(memory_space=pltpu.MemorySpace.VMEM),
            pl.BlockSpec(memory_space=pltpu.MemorySpace.VMEM),
        ],
        out_specs=pl.BlockSpec(memory_space=pltpu.MemorySpace.VMEM),
        cost_estimate=pl.CostEstimate(
            flops=int(flops),
            transcendentals=int(T_PAD * N_MELS),
            bytes_accessed=int(bytes_accessed),
        ),
    )(chunks_f32, _DFT2_BF16, _FB_F32)


# --------------------------------- wrapper ----------------------------------
@jax.jit
def audio_to_spectrogram(audio_chunk):
    """Equivalent of AudioToSpectrogramTransformJit.forward. Returns (1,1,128,256) f32."""
    x = audio_chunk
    if x.ndim > 1:
        x = jnp.mean(x, axis=1)
    x = x.astype(jnp.float32).reshape(1, -1)

    n = x.shape[1]
    if n < TARGET_LEN:
        x = jnp.pad(x, ((0, 0), (0, TARGET_LEN - n)))
    x = x[:, :TARGET_LEN]
    sig = x[0]

    # torch.stft(center=True, pad_mode='reflect')
    sig = jnp.pad(sig, (N_FFT // 2, N_FFT // 2), mode="reflect")      # (32800,)

    # Tiny prologue: chop into HOP-sized, lane-padded chunks (~139 KiB f32).
    # All framing (overlap), windowing, DFT, mel, dB and normalisation happen
    # inside the Pallas kernel.
    sig = jnp.pad(sig, (0, SIG_PAD_LEN - sig.shape[0]))                # (33184,)
    chunks = sig.reshape(N_CHUNK_ROWS, HOP)                            # (272, 122)
    chunks = jnp.pad(chunks, ((0, 0), (0, CHUNK_PAD - HOP)))           # (272, 128)

    spec = _run_melspec_kernel(chunks)                                 # (128, 256)
    return spec[None, None, :, :]                                      # (1, 1, 128, 256)


# ----------------------------------- main ------------------------------------
if __name__ == "__main__":
    key = jax.random.PRNGKey(0)
    # small stereo audio chunk (samples, channels); shorter than 2 s -> gets zero-padded
    audio = jax.random.normal(key, (8000, 2), dtype=jnp.float32)

    out = audio_to_spectrogram(audio)
    out = jax.block_until_ready(out)

    assert out.shape == (1, 1, N_MELS, 256)
    assert bool(jnp.isfinite(out).all())
    assert float(jnp.min(out)) >= -1e-5 and float(jnp.max(out)) <= 1.0 + 1e-5
    print("KERNEL_OK")
</pallas_src>

<mosaic_0001>
module attributes {stable_mosaic.version = 11 : i64} {
  func.func @melspec_kernel(%arg0: memref<272x128xf32, #tpu.memory_space<vmem>>, %arg1: memref<896x1024xbf16, #tpu.memory_space<vmem>>, %arg2: memref<512x128xf32, #tpu.memory_space<vmem>>, %arg3: memref<128x256xf32, #tpu.memory_space<vmem>>) attributes {dimension_semantics = [], scalar_prefetch = 0 : i64, scratch_operands = 0 : i64, tpu.core_type = #tpu.core_type<tc>} {
    %c0 = arith.constant 0 : index
    %c0_0 = arith.constant 0 : index
    %0 = vector.load %arg0[%c0, %c0_0] : memref<272x128xf32, #tpu.memory_space<vmem>>, vector<264x128xf32>
    %1 = arith.truncf %0 : vector<264x128xf32> to vector<264x128xbf16>
    %c1 = arith.constant 1 : index
    %c0_1 = arith.constant 0 : index
    %2 = vector.load %arg0[%c1, %c0_1] : memref<272x128xf32, #tpu.memory_space<vmem>>, vector<264x128xf32>
    %3 = arith.truncf %2 : vector<264x128xf32> to vector<264x128xbf16>
    %c2 = arith.constant 2 : index
    %c0_2 = arith.constant 0 : index
    %4 = vector.load %arg0[%c2, %c0_2] : memref<272x128xf32, #tpu.memory_space<vmem>>, vector<264x128xf32>
    %5 = arith.truncf %4 : vector<264x128xf32> to vector<264x128xbf16>
    %c3 = arith.constant 3 : index
    %c0_3 = arith.constant 0 : index
    %6 = vector.load %arg0[%c3, %c0_3] : memref<272x128xf32, #tpu.memory_space<vmem>>, vector<264x128xf32>
    %7 = arith.truncf %6 : vector<264x128xf32> to vector<264x128xbf16>
    %c4 = arith.constant 4 : index
    %c0_4 = arith.constant 0 : index
    %8 = vector.load %arg0[%c4, %c0_4] : memref<272x128xf32, #tpu.memory_space<vmem>>, vector<264x128xf32>
    %9 = arith.truncf %8 : vector<264x128xf32> to vector<264x128xbf16>
    %c5 = arith.constant 5 : index
    %c0_5 = arith.constant 0 : index
    %10 = vector.load %arg0[%c5, %c0_5] : memref<272x128xf32, #tpu.memory_space<vmem>>, vector<264x128xf32>
    %11 = arith.truncf %10 : vector<264x128xf32> to vector<264x128xbf16>
    %c6 = arith.constant 6 : index
    %c0_6 = arith.constant 0 : index
    %12 = vector.load %arg0[%c6, %c0_6] : memref<272x128xf32, #tpu.memory_space<vmem>>, vector<264x128xf32>
    %13 = arith.truncf %12 : vector<264x128xf32> to vector<264x128xbf16>
    %14 = tpu.concatenate %1, %3, %5, %7, %9, %11, %13 in 1 : vector<264x128xbf16>, vector<264x128xbf16>, vector<264x128xbf16>, vector<264x128xbf16>, vector<264x128xbf16>, vector<264x128xbf16>, vector<264x128xbf16> -> vector<264x896xbf16>
    %c0_7 = arith.constant 0 : index
    %c0_8 = arith.constant 0 : index
    %15 = vector.load %arg1[%c0_7, %c0_8] : memref<896x1024xbf16, #tpu.memory_space<vmem>>, vector<896x1024xbf16>
    %cst = arith.constant dense<0.000000e+00> : vector<264x1024xf32>
    %16 = tpu.matmul %14, %15, %cst {dimension_numbers = #tpu.dot_dimension_numbers<[1], [0], [0], [1], [0, 0, 1, 1], [], []>} : vector<264x896xbf16>, vector<896x1024xbf16>, vector<264x1024xf32> -> vector<264x1024xf32>
    %17 = vector.extract_strided_slice %16 {offsets = [0, 0], sizes = [264, 512], strides = [1, 1]} : vector<264x1024xf32> to vector<264x512xf32>
    %18 = vector.extract_strided_slice %16 {offsets = [0, 512], sizes = [264, 512], strides = [1, 1]} : vector<264x1024xf32> to vector<264x512xf32>
    %19 = arith.mulf %17, %17 : vector<264x512xf32>
    %20 = arith.mulf %18, %18 : vector<264x512xf32>
    %21 = arith.addf %19, %20 : vector<264x512xf32>
    %c0_9 = arith.constant 0 : index
    %c0_10 = arith.constant 0 : index
    %22 = vector.load %arg2[%c0_9, %c0_10] : memref<512x128xf32, #tpu.memory_space<vmem>>, vector<512x128xf32>
    %cst_11 = arith.constant dense<0.000000e+00> : vector<264x128xf32>
    %23 = tpu.matmul %21, %22, %cst_11 {dimension_numbers = #tpu.dot_dimension_numbers<[1], [0], [0], [1], [0, 0, 1, 1], [], []>} : vector<264x512xf32>, vector<512x128xf32>, vector<264x128xf32> -> vector<264x128xf32>
    %cst_12 = arith.constant 1.000000e-10 : f32
    %24 = vector.broadcast %cst_12 : f32 to vector<264x128xf32>
    %25 = arith.maximumf %23, %24 : vector<264x128xf32>
    %26 = math.log %25 : vector<264x128xf32>
    %cst_13 = arith.constant 4.34294462 : f32
    %27 = vector.broadcast %cst_13 : f32 to vector<264x128xf32>
    %28 = arith.mulf %27, %26 : vector<264x128xf32>
    %cst_14 = arith.constant 0.000000e+00 : f32
    %29 = vector.broadcast %cst_14 : f32 to vector<264x128xf32>
    %30 = arith.subf %28, %29 : vector<264x128xf32>
    %31 = tpu.iota {dimensions = array<i32: 0>} : vector<264x128xi32>
    %c263_i32 = arith.constant 263 : i32
    %32 = vector.broadcast %c263_i32 : i32 to vector<264x128xi32>
    %33 = arith.cmpi slt, %31, %32 : vector<264x128xi32>
    %cst_15 = arith.constant 0xFF800000 : f32
    %34 = vector.broadcast %cst_15 : f32 to vector<264x128xf32>
    %35 = arith.select %33, %30, %34 : vector<264x128xi1>, vector<264x128xf32>
    %36 = vector.shape_cast %35 : vector<264x128xf32> to vector<1x264x128xf32>
    %cst_16 = arith.constant dense<0xFF800000> : vector<1xf32>
    %37 = vector.multi_reduction <maximumf>, %36, %cst_16 [1, 2] : vector<1x264x128xf32> to vector<1xf32>
    %38 = vector.shape_cast %37 : vector<1xf32> to vector<1x1x1xf32>
    %39 = vector.extract %38[0, 0, 0] : f32 from vector<1x1x1xf32>
    %cst_17 = arith.constant 8.000000e+01 : f32
    %40 = arith.subf %39, %cst_17 : f32
    %41 = vector.broadcast %40 : f32 to vector<264x128xf32>
    %42 = arith.maximumf %30, %41 : vector<264x128xf32>
    %cst_18 = arith.constant 0x7F800000 : f32
    %43 = vector.broadcast %cst_18 : f32 to vector<264x128xf32>
    %44 = arith.select %33, %42, %43 : vector<264x128xi1>, vector<264x128xf32>
    %45 = vector.shape_cast %44 : vector<264x128xf32> to vector<1x264x128xf32>
    %cst_19 = arith.constant dense<0x7F800000> : vector<1xf32>
    %46 = vector.multi_reduction <minimumf>, %45, %cst_19 [1, 2] : vector<1x264x128xf32> to vector<1xf32>
    %47 = vector.shape_cast %46 : vector<1xf32> to vector<1x1x1xf32>
    %48 = vector.extract %47[0, 0, 0] : f32 from vector<1x1x1xf32>
    %49 = vector.broadcast %48 : f32 to vector<264x128xf32>
    %50 = arith.subf %42, %49 : vector<264x128xf32>
    %51 = arith.subf %39, %48 : f32
    %cst_20 = arith.constant 1.000000e-10 : f32
    %52 = arith.addf %51, %cst_20 : f32
    %53 = vector.broadcast %52 : f32 to vector<264x128xf32>
    %54 = arith.divf %50, %53 : vector<264x128xf32>
    %55 = vector.extract_strided_slice %54 {offsets = [0, 0], sizes = [256, 128], strides = [1, 1]} : vector<264x128xf32> to vector<256x128xf32>
    %56 = tpu.transpose %55, [1, 0] : vector<256x128xf32> -> vector<128x256xf32>
    %c0_21 = arith.constant 0 : index
    %c0_22 = arith.constant 0 : index
    %57 = vector.load %arg3[%c0_21, %c0_22] : memref<128x256xf32, #tpu.memory_space<vmem>>, vector<128x256xf32>
    tpu.vector_store %arg3[%c0_21, %c0_22], %56 {strides = array<i32>} : memref<128x256xf32, #tpu.memory_space<vmem>>, vector<128x256xf32>,
    return
  }
}

</mosaic_0001>

<llo_original>
// kernel: reverse.1
$region0: #{reverse.1}
  %s0 = inlined_call_operand.vmem [shape: f32[512], index: 0, kind: input, shape index: {}]
  %s1 = inlined_call_operand.vmem [shape: f32[512], index: 1, kind: output, shape index: {}]
  %v2 = vlaneseq
  %v3 = vsub.s32 127, %v2
  %4 = vset.pattern.permute.xlu0 %v3
  $region1: #{reverse.1} parent=0
    #allocation0 [shape = 'u8[8192]{0}', space=vmem, size = 0x2000, scoped, tag = 'operand span for operand 0']
    #allocation1 [shape = 'u8[4096]{0}', space=vmem, size = 0x1000, scoped, tag = 'packed  for operand 0']
    #allocation2 [shape = 'u8[4096]{0}', space=vmem, size = 0x1000, scoped, tag = 'operand span for operand 1']
    #allocation3 [shape = 'u8[2048]{0}', space=vmem, size = 0x800, scoped, tag = 'packed  for operand 1']
    %s5 = scalar_lea.vmem [#allocation1], 4
    // Predicated region
    $region2: #{reverse.1} parent=1 // pred_check
      _
    $region3: #{reverse.1} parent=1 // pred_check_branch
      %7 = sbr.rel (0) target = $region5
    $region4: #{reverse.1} parent=1 // pred_region
      // Predicated region
      $region6: #{reverse.1} parent=4 // pred_check
        _
      $region7: #{reverse.1} parent=4 // pred_check_branch
        %9 = sbr.rel target = $region9
      $region8: #{reverse.1} parent=4 // pred_region
        // Predicated region
        $region21: #{reverse.1} parent=8 // pred_check
          _
        $region22: #{reverse.1} parent=8 // pred_check_branch
          %24 = sbr.rel (0) target = $region24
        $region23: #{reverse.1} parent=8 // pred_region
          loop: start=0, step=1, limit=1
          $region25: #{reverse.1} parent=23 // loop_pre_header
            _
          $region26: #{reverse.1} parent=23 // loop_header
            %s27 = sphi 0, %s31
            %p28 = scmp.ge.s32.totalorder %s27, 1
            %s32 = sphi %s0, %s0
            %s33 = sphi %s5, %s5
          $region27: #{reverse.1} parent=23 // loop_header_branch
            %30 = sbr.rel (%p28) target = $region31
          $region28: #{reverse.1} parent=23 // loop_body
            %v34 = vld [vmem:[%s32] sm:$0xf]
            %35 = vst [vmem:[%s33] sm:$0xf] %v34
          $region29: #{reverse.1} parent=23 // loop_footer
            %s31 = sadd.s32 1, %s27
          $region30: #{reverse.1} parent=23 // loop_footer_branch
            %26 = sbr.rel target = $region26
          $region31: #{reverse.1} parent=23 // loop_exit
            _
        $region24: #{reverse.1} parent=8 // pred_fallthru
          _
      $region9: #{reverse.1} parent=4 // pred_fallthru
        _
      // Predicated region
      $region10: #{reverse.1} parent=4 // pred_check
        _
      $region11: #{reverse.1} parent=4 // pred_check_branch
        %11 = sbr.rel (0) target = $region13
      $region12: #{reverse.1} parent=4 // pred_region
        loop: start=0, step=1, limit=1
        $region14: #{reverse.1} parent=12 // loop_pre_header
          _
        $region15: #{reverse.1} parent=12 // loop_header
          %s14 = sphi 0, %s18
          %p15 = scmp.ge.s32.totalorder %s14, 1
          %s19 = sphi %s0, %s0
          %s20 = sphi %s5, %s5
        $region16: #{reverse.1} parent=12 // loop_header_branch
          %17 = sbr.rel (%p15) target = $region20
        $region17: #{reverse.1} parent=12 // loop_body
          %v21 = vld [vmem:[%s19] sm:$0xf]
          %22 = vst [vmem:[%s20] sm:$0xf] %v21
        $region18: #{reverse.1} parent=12 // loop_footer
          %s18 = sadd.s32 1, %s14
        $region19: #{reverse.1} parent=12 // loop_footer_branch
          %13 = sbr.rel target = $region15
        $region20: #{reverse.1} parent=12 // loop_exit
          _
      $region13: #{reverse.1} parent=4 // pred_fallthru
        _
    $region5: #{reverse.1} parent=1 // pred_fallthru
      _
    %36 = vnop
    %s38 = sshllo.u32 0, 4
    %s39 = scalar_lea.vmem [#allocation1], 4
    %v40 = vld [vmem:[%s39] sm:%s38]
    %s41 = scalar_lea.vmem [#allocation0], 8
    %42 = vst [vmem:[%s41] sm:%s38] %v40
    %v43 = vld [vmem:[#allocation1] sm:%s38]
    %44 = vst [vmem:[#allocation0] sm:%s38] %v43
    %s45 = scalar_lea.vmem [#allocation0], 7
    %v46 = vld [vmem:[%s45] ss:$-1 sm:$0xff]
    %v47 = vrot.slane %v46, 4
    %48 = vperm.xlu0 %4, %v47
    %v49 = vpop.permute.xlu0 %48
    %50 = vst [vmem:[#allocation2] sm:$0xff] %v49
    %s51 = scalar_lea.vmem [#allocation0], 8
    %s52 = scalar_lea.vmem %s51, 7 [#allocation0]
    %v53 = vld [vmem:[%s52] ss:$-1 sm:$0xff]
    %v54 = vrot.slane %v53, 4
    %55 = vperm.xlu0 %4, %v54
    %v56 = vpop.permute.xlu0 %55
    %v57 = vlaneseq
    %v58 = vshrl.u32 %v57, 7
    %vm59 = vcmp.lt.s32.totalorder %v58, 4
    %60 = vst.msk [vmem:[#allocation2] sm:$0xff] %vm59, %v56
    %s62 = sshllo.u32 0, 4
    %v64 = vld [vmem:[#allocation2] sm:%s62]
    %s65 = sshllo.u32 0, 4
    %66 = vst [vmem:[#allocation3] sm:%s65] %v64
    // Predicated region
    $region32: #{reverse.1} parent=1 // pred_check
      _
    $region33: #{reverse.1} parent=1 // pred_check_branch
      %68 = sbr.rel (0) target = $region35
    $region34: #{reverse.1} parent=1 // pred_region
      // Predicated region
      $region36: #{reverse.1} parent=34 // pred_check
        _
      $region37: #{reverse.1} parent=34 // pred_check_branch
        %70 = sbr.rel target = $region39
      $region38: #{reverse.1} parent=34 // pred_region
        // Predicated region
        $region51: #{reverse.1} parent=38 // pred_check
          _
        $region52: #{reverse.1} parent=38 // pred_check_branch
          %85 = sbr.rel (0) target = $region54
        $region53: #{reverse.1} parent=38 // pred_region
          loop: start=0, step=1, limit=1
          $region55: #{reverse.1} parent=53 // loop_pre_header
            _
          $region56: #{reverse.1} parent=53 // loop_header
            %s88 = sphi 0, %s92
            %p89 = scmp.ge.s32.totalorder %s88, 1
            %s93 = sphi [#allocation3], [#allocation3]
            %s94 = sphi %s1, %s1
          $region57: #{reverse.1} parent=53 // loop_header_branch
            %91 = sbr.rel (%p89) target = $region61
          $region58: #{reverse.1} parent=53 // loop_body
            %v95 = vld [vmem:[%s93] sm:$0xf]
            %96 = vst [vmem:[%s94] sm:$0xf] %v95
          $region59: #{reverse.1} parent=53 // loop_footer
            %s92 = sadd.s32 1, %s88
          $region60: #{reverse.1} parent=53 // loop_footer_branch
            %87 = sbr.rel target = $region56
          $region61: #{reverse.1} parent=53 // loop_exit
            _
        $region54: #{reverse.1} parent=38 // pred_fallthru
          _
      $region39: #{reverse.1} parent=34 // pred_fallthru
        _
      // Predicated region
      $region40: #{reverse.1} parent=34 // pred_check
        _
      $region41: #{reverse.1} parent=34 // pred_check_branch
        %72 = sbr.rel (0) target = $region43
      $region42: #{reverse.1} parent=34 // pred_region
        loop: start=0, step=1, limit=1
        $region44: #{reverse.1} parent=42 // loop_pre_header
          _
        $region45: #{reverse.1} parent=42 // loop_header
          %s75 = sphi 0, %s79
          %p76 = scmp.ge.s32.totalorder %s75, 1
          %s80 = sphi [#allocation3], [#allocation3]
          %s81 = sphi %s1, %s1
        $region46: #{reverse.1} parent=42 // loop_header_branch
          %78 = sbr.rel (%p76) target = $region50
        $region47: #{reverse.1} parent=42 // loop_body
          %v82 = vld [vmem:[%s80] sm:$0xf]
          %83 = vst [vmem:[%s81] sm:$0xf] %v82
        $region48: #{reverse.1} parent=42 // loop_footer
          %s79 = sadd.s32 1, %s75
        $region49: #{reverse.1} parent=42 // loop_footer_branch
          %74 = sbr.rel target = $region45
        $region50: #{reverse.1} parent=42 // loop_exit
          _
      $region43: #{reverse.1} parent=34 // pred_fallthru
        _
    $region35: #{reverse.1} parent=1 // pred_fallthru
      _
    %97 = vnop

// kernel: audio_to_spectrogram.1
$region0: #{audio_to_spectrogram.1}
  #allocation0 [shape = 'u32[]', space=smem, size = 0x4, offset = 0x4, fixed_abs, tag = 'smem constant byte address 0x4 - core index']
  #allocation1 [shape = 'u32[144,128]{1,0:T(1,128)}', space=vmem, size = 0x12000, scoped, tag = 'internal scratch']
  %s0 = inlined_call_operand.vmem [shape: f32[272,128], index: 0, kind: input, shape index: {}]
  %s1 = inlined_call_operand.vmem [shape: bf16[896,1024], index: 1, kind: input, shape index: {}]
  %s2 = inlined_call_operand.vmem [shape: f32[512,128], index: 2, kind: input, shape index: {}]
  %s3 = inlined_call_operand.hbm [shape: f32[128,256], index: 3, kind: output, shape index: {}]
  %s4 = sld [smem:[#allocation0]]
  $region22: #{audio_to_spectrogram.1} parent=0
    _
  %s6 = ssub.s32 1, %s4
  %s7 = scalar_select 0, %s6, %s4
  $region1: #{audio_to_spectrogram.1} parent=0
    #allocation2 [shape = 'u8[131072]{0}', space=vmem, size = 0x20000, scoped, tag = 'output window, operand 0, single buffered']
    #allocation3 [shape = 's32[1]{0}', space=sflag, size = 0x4, scoped, tag = 'scoped memory for audio_to_spectrogram.1']
    %8 = vsyncpa [#allocation3], 0
    // Predicated region
    $region2: #{audio_to_spectrogram.1} parent=1 // pred_check
      _
    $region3: #{audio_to_spectrogram.1} parent=1 // pred_check_branch
      %10 = sbr.rel (0) target = $region5
    $region4: #{audio_to_spectrogram.1} parent=1 // pred_region
      _
    $region5: #{audio_to_spectrogram.1} parent=1 // pred_fallthru
      _
    // Predicated region
    $region6: #{audio_to_spectrogram.1} parent=1 // pred_check
      _
    $region7: #{audio_to_spectrogram.1} parent=1 // pred_check_branch
      %12 = sbr.rel (0) target = $region9
    $region8: #{audio_to_spectrogram.1} parent=1 // pred_region
      _
    $region9: #{audio_to_spectrogram.1} parent=1 // pred_fallthru
      _
    // Predicated region
    $region10: #{audio_to_spectrogram.1} parent=1 // pred_check
      _
    $region11: #{audio_to_spectrogram.1} parent=1 // pred_check_branch
      %14 = sbr.rel (0) target = $region13
    $region12: #{audio_to_spectrogram.1} parent=1 // pred_region
      _
    $region13: #{audio_to_spectrogram.1} parent=1 // pred_fallthru
      _
    %v16 = vld [vmem:[%s0] sm:$0xff]
    %v17 = vld [vmem:[%s0 + $0x8] sm:$0xff]
    %v18 = vld [vmem:[%s0 + $0x10] sm:$0xff]
    %v19 = vld [vmem:[%s0 + $0x18] sm:$0xff]
    %v20 = vld [vmem:[%s0 + $0x20] sm:$0xff]
    %v21 = vld [vmem:[%s0 + $0x28] sm:$0xff]
    %v22 = vld [vmem:[%s0 + $0x30] sm:$0xff]
    %v23 = vld [vmem:[%s0 + $0x38] sm:$0xff]
    %v24 = vld [vmem:[%s0 + $0x40] sm:$0xff]
    %v25 = vld [vmem:[%s0 + $0x48] sm:$0xff]
    %v26 = vld [vmem:[%s0 + $0x50] sm:$0xff]
    %v27 = vld [vmem:[%s0 + $0x58] sm:$0xff]
    %v28 = vld [vmem:[%s0 + $0x60] sm:$0xff]
    %v29 = vld [vmem:[%s0 + $0x68] sm:$0xff]
    %v30 = vld [vmem:[%s0 + $0x70] sm:$0xff]
    %v31 = vld [vmem:[%s0 + $0x78] sm:$0xff]
    %v32 = vld [vmem:[%s0 + $0x80] sm:$0xff]
    %v33 = vld [vmem:[%s0 + $0x88] sm:$0xff]
    %v34 = vld [vmem:[%s0 + $0x90] sm:$0xff]
    %v35 = vld [vmem:[%s0 + $0x98] sm:$0xff]
    %v36 = vld [vmem:[%s0 + $0xa0] sm:$0xff]
    %v37 = vld [vmem:[%s0 + $0xa8] sm:$0xff]
    %v38 = vld [vmem:[%s0 + $0xb0] sm:$0xff]
    %v39 = vld [vmem:[%s0 + $0xb8] sm:$0xff]
    %v40 = vld [vmem:[%s0 + $0xc0] sm:$0xff]
    %v41 = vld [vmem:[%s0 + $0xc8] sm:$0xff]
    %v42 = vld [vmem:[%s0 + $0xd0] sm:$0xff]
    %v43 = vld [vmem:[%s0 + $0xd8] sm:$0xff]
    %v44 = vld [vmem:[%s0 + $0xe0] sm:$0xff]
    %v45 = vld [vmem:[%s0 + $0xe8] sm:$0xff]
    %v46 = vld [vmem:[%s0 + $0xf0] sm:$0xff]
    %v47 = vld [vmem:[%s0 + $0xf8] sm:$0xff]
    %v48 = vld [vmem:[%s0 + $0x100] sm:$0xff]
    %v49 = vpack.c.bf16 %v17, %v16
    %v50 = vpack.c.bf16 %v19, %v18
    %v51 = vpack.c.bf16 %v21, %v20
    %v52 = vpack.c.bf16 %v23, %v22
    %v53 = vpack.c.bf16 %v25, %v24
    %v54 = vpack.c.bf16 %v27, %v26
    %v55 = vpack.c.bf16 %v29, %v28
    %v56 = vpack.c.bf16 %v31, %v30
    %v57 = vpack.c.bf16 %v33, %v32
    %v58 = vpack.c.bf16 %v35, %v34
    %v59 = vpack.c.bf16 %v37, %v36
    %v60 = vpack.c.bf16 %v39, %v38
    %v61 = vpack.c.bf16 %v41, %v40
    %v62 = vpack.c.bf16 %v43, %v42
    %v63 = vpack.c.bf16 %v45, %v44
    %v64 = vpack.c.bf16 %v47, %v46
    %v65 = vpack.c.bf16 %v48, %v48
    %v66 = vld [vmem:[%s0 + $0x1] sm:$0xff]
    %v67 = vld [vmem:[%s0 + $0x9] sm:$0xff]
    %v68 = vld [vmem:[%s0 + $0x11] sm:$0xff]
    %v69 = vld [vmem:[%s0 + $0x19] sm:$0xff]
    %v70 = vld [vmem:[%s0 + $0x21] sm:$0xff]
    %v71 = vld [vmem:[%s0 + $0x29] sm:$0xff]
    %v72 = vld [vmem:[%s0 + $0x31] sm:$0xff]
    %v73 = vld [vmem:[%s0 + $0x39] sm:$0xff]
    %v74 = vld [vmem:[%s0 + $0x41] sm:$0xff]
    %v75 = vld [vmem:[%s0 + $0x49] sm:$0xff]
    %v76 = vld [vmem:[%s0 + $0x51] sm:$0xff]
    %v77 = vld [vmem:[%s0 + $0x59] sm:$0xff]
    %v78 = vld [vmem:[%s0 + $0x61] sm:$0xff]
    %v79 = vld [vmem:[%s0 + $0x69] sm:$0xff]
    %v80 = vld [vmem:[%s0 + $0x71] sm:$0xff]
    %v81 = vld [vmem:[%s0 + $0x79] sm:$0xff]
    %v82 = vld [vmem:[%s0 + $0x81] sm:$0xff]
    %v83 = vld [vmem:[%s0 + $0x89] sm:$0xff]
    %v84 = vld [vmem:[%s0 + $0x91] sm:$0xff]
    %v85 = vld [vmem:[%s0 + $0x99] sm:$0xff]
    %v86 = vld [vmem:[%s0 + $0xa1] sm:$0xff]
    %v87 = vld [vmem:[%s0 + $0xa9] sm:$0xff]
    %v88 = vld [vmem:[%s0 + $0xb1] sm:$0xff]
    %v89 = vld [vmem:[%s0 + $0xb9] sm:$0xff]
    %v90 = vld [vmem:[%s0 + $0xc1] sm:$0xff]
    %v91 = vld [vmem:[%s0 + $0xc9] sm:$0xff]
    %v92 = vld [vmem:[%s0 + $0xd1] sm:$0xff]
    %v93 = vld [vmem:[%s0 + $0xd9] sm:$0xff]
    %v94 = vld [vmem:[%s0 + $0xe1] sm:$0xff]
    %v95 = vld [vmem:[%s0 + $0xe9] sm:$0xff]
    %v96 = vld [vmem:[%s0 + $0xf1] sm:$0xff]
    %v97 = vld [vmem:[%s0 + $0xf9] sm:$0xff]
    %v98 = vld [vmem:[%s0 + $0x101] sm:$0xff]
    %v99 = vpack.c.bf16 %v67, %v66
    %v100 = vpack.c.bf16 %v69, %v68
    %v101 = vpack.c.bf16 %v71, %v70
    %v102 = vpack.c.bf16 %v73, %v72
    %v103 = vpack.c.bf16 %v75, %v74
    %v104 = vpack.c.bf16 %v77, %v76
    %v105 = vpack.c.bf16 %v79, %v78
    %v106 = vpack.c.bf16 %v81, %v80
    %v107 = vpack.c.bf16 %v83, %v82
    %v108 = vpack.c.bf16 %v85, %v84
    %v109 = vpack.c.bf16 %v87, %v86
    %v110 = vpack.c.bf16 %v89, %v88
    %v111 = vpack.c.bf16 %v91, %v90
    %v112 = vpack.c.bf16 %v93, %v92
    %v113 = vpack.c.bf16 %v95, %v94
    %v114 = vpack.c.bf16 %v97, %v96
    %v115 = vpack.c.bf16 %v98, %v98
    %v116 = vld [vmem:[%s0 + $0x2] sm:$0xff]
    %v117 = vld [vmem:[%s0 + $0xa] sm:$0xff]
    %v118 = vld [vmem:[%s0 + $0x12] sm:$0xff]
    %v119 = vld [vmem:[%s0 + $0x1a] sm:$0xff]
    %v120 = vld [vmem:[%s0 + $0x22] sm:$0xff]
    %v121 = vld [vmem:[%s0 + $0x2a] sm:$0xff]
    %v122 = vld [vmem:[%s0 + $0x32] sm:$0xff]
    %v123 = vld [vmem:[%s0 + $0x3a] sm:$0xff]
    %v124 = vld [vmem:[%s0 + $0x42] sm:$0xff]
    %v125 = vld [vmem:[%s0 + $0x4a] sm:$0xff]
    %v126 = vld [vmem:[%s0 + $0x52] sm:$0xff]
    %v127 = vld [vmem:[%s0 + $0x5a] sm:$0xff]
    %v128 = vld [vmem:[%s0 + $0x62] sm:$0xff]
    %v129 = vld [vmem:[%s0 + $0x6a] sm:$0xff]
    %v130 = vld [vmem:[%s0 + $0x72] sm:$0xff]
    %v131 = vld [vmem:[%s0 + $0x7a] sm:$0xff]
    %v132 = vld [vmem:[%s0 + $0x82] sm:$0xff]
    %v133 = vld [vmem:[%s0 + $0x8a] sm:$0xff]
    %v134 = vld [vmem:[%s0 + $0x92] sm:$0xff]
    %v135 = vld [vmem:[%s0 + $0x9a] sm:$0xff]
    %v136 = vld [vmem:[%s0 + $0xa2] sm:$0xff]
    %v137 = vld [vmem:[%s0 + $0xaa] sm:$0xff]
    %v138 = vld [vmem:[%s0 + $0xb2] sm:$0xff]
    %v139 = vld [vmem:[%s0 + $0xba] sm:$0xff]
    %v140 = vld [vmem:[%s0 + $0xc2] sm:$0xff]
    %v141 = vld [vmem:[%s0 + $0xca] sm:$0xff]
    %v142 = vld [vmem:[%s0 + $0xd2] sm:$0xff]
    %v143 = vld [vmem:[%s0 + $0xda] sm:$0xff]
    %v144 = vld [vmem:[%s0 + $0xe2] sm:$0xff]
    %v145 = vld [vmem:[%s0 + $0xea] sm:$0xff]
    %v146 = vld [vmem:[%s0 + $0xf2] sm:$0xff]
    %v147 = vld [vmem:[%s0 + $0xfa] sm:$0xff]
    %v148 = vld [vmem:[%s0 + $0x102] sm:$0xff]
    %v149 = vpack.c.bf16 %v117, %v116
    %v150 = vpack.c.bf16 %v119, %v118
    %v151 = vpack.c.bf16 %v121, %v120
    %v152 = vpack.c.bf16 %v123, %v122
    %v153 = vpack.c.bf16 %v125, %v124
    %v154 = vpack.c.bf16 %v127, %v126
    %v155 = vpack.c.bf16 %v129, %v128
    %v156 = vpack.c.bf16 %v131, %v130
    %v157 = vpack.c.bf16 %v133, %v132
    %v158 = vpack.c.bf16 %v135, %v134
    %v159 = vpack.c.bf16 %v137, %v136
    %v160 = vpack.c.bf16 %v139, %v138
    %v161 = vpack.c.bf16 %v141, %v140
    %v162 = vpack.c.bf16 %v143, %v142
    %v163 = vpack.c.bf16 %v145, %v144
    %v164 = vpack.c.bf16 %v147, %v146
    %v165 = vpack.c.bf16 %v148, %v148
    %v166 = vld [vmem:[%s0 + $0x3] sm:$0xff]
    %v167 = vld [vmem:[%s0 + $0xb] sm:$0xff]
    %v168 = vld [vmem:[%s0 + $0x13] sm:$0xff]
    %v169 = vld [vmem:[%s0 + $0x1b] sm:$0xff]
    %v170 = vld [vmem:[%s0 + $0x23] sm:$0xff]
    %v171 = vld [vmem:[%s0 + $0x2b] sm:$0xff]
    %v172 = vld [vmem:[%s0 + $0x33] sm:$0xff]
    %v173 = vld [vmem:[%s0 + $0x3b] sm:$0xff]
    %v174 = vld [vmem:[%s0 + $0x43] sm:$0xff]
    %v175 = vld [vmem:[%s0 + $0x4b] sm:$0xff]
    %v176 = vld [vmem:[%s0 + $0x53] sm:$0xff]
    %v177 = vld [vmem:[%s0 + $0x5b] sm:$0xff]
    %v178 = vld [vmem:[%s0 + $0x63] sm:$0xff]
    %v179 = vld [vmem:[%s0 + $0x6b] sm:$0xff]
    %v180 = vld [vmem:[%s0 + $0x73] sm:$0xff]
    %v181 = vld [vmem:[%s0 + $0x7b] sm:$0xff]
    %v182 = vld [vmem:[%s0 + $0x83] sm:$0xff]
    %v183 = vld [vmem:[%s0 + $0x8b] sm:$0xff]
    %v184 = vld [vmem:[%s0 + $0x93] sm:$0xff]
    %v185 = vld [vmem:[%s0 + $0x9b] sm:$0xff]
    %v186 = vld [vmem:[%s0 + $0xa3] sm:$0xff]
    %v187 = vld [vmem:[%s0 + $0xab] sm:$0xff]
    %v188 = vld [vmem:[%s0 + $0xb3] sm:$0xff]
    %v189 = vld [vmem:[%s0 + $0xbb] sm:$0xff]
    %v190 = vld [vmem:[%s0 + $0xc3] sm:$0xff]
    %v191 = vld [vmem:[%s0 + $0xcb] sm:$0xff]
    %v192 = vld [vmem:[%s0 + $0xd3] sm:$0xff]
    %v193 = vld [vmem:[%s0 + $0xdb] sm:$0xff]
    %v194 = vld [vmem:[%s0 + $0xe3] sm:$0xff]
    %v195 = vld [vmem:[%s0 + $0xeb] sm:$0xff]
    %v196 = vld [vmem:[%s0 + $0xf3] sm:$0xff]
    %v197 = vld [vmem:[%s0 + $0xfb] sm:$0xff]
    %v198 = vld [vmem:[%s0 + $0x103] sm:$0xff]
    %v199 = vpack.c.bf16 %v167, %v166
    %v200 = vpack.c.bf16 %v169, %v168
    %v201 = vpack.c.bf16 %v171, %v170
    %v202 = vpack.c.bf16 %v173, %v172
    %v203 = vpack.c.bf16 %v175, %v174
    %v204 = vpack.c.bf16 %v177, %v176
    %v205 = vpack.c.bf16 %v179, %v178
    %v206 = vpack.c.bf16 %v181, %v180
    %v207 = vpack.c.bf16 %v183, %v182
    %v208 = vpack.c.bf16 %v185, %v184
    %v209 = vpack.c.bf16 %v187, %v186
    %v210 = vpack.c.bf16 %v189, %v188
    %v211 = vpack.c.bf16 %v191, %v190
    %v212 = vpack.c.bf16 %v193, %v192
    %v213 = vpack.c.bf16 %v195, %v194
    %v214 = vpack.c.bf16 %v197, %v196
    %v215 = vpack.c.bf16 %v198, %v198
    %v216 = vld [vmem:[%s0 + $0x4] sm:$0xff]
    %v217 = vld [vmem:[%s0 + $0xc] sm:$0xff]
    %v218 = vld [vmem:[%s0 + $0x14] sm:$0xff]
    %v219 = vld [vmem:[%s0 + $0x1c] sm:$0xff]
    %v220 = vld [vmem:[%s0 + $0x24] sm:$0xff]
    %v221 = vld [vmem:[%s0 + $0x2c] sm:$0xff]
    %v222 = vld [vmem:[%s0 + $0x34] sm:$0xff]
    %v223 = vld [vmem:[%s0 + $0x3c] sm:$0xff]
    %v224 = vld [vmem:[%s0 + $0x44] sm:$0xff]
    %v225 = vld [vmem:[%s0 + $0x4c] sm:$0xff]
    %v226 = vld [vmem:[%s0 + $0x54] sm:$0xff]
    %v227 = vld [vmem:[%s0 + $0x5c] sm:$0xff]
    %v228 = vld [vmem:[%s0 + $0x64] sm:$0xff]
    %v229 = vld [vmem:[%s0 + $0x6c] sm:$0xff]
    %v230 = vld [vmem:[%s0 + $0x74] sm:$0xff]
    %v231 = vld [vmem:[%s0 + $0x7c] sm:$0xff]
    %v232 = vld [vmem:[%s0 + $0x84] sm:$0xff]
    %v233 = vld [vmem:[%s0 + $0x8c] sm:$0xff]
    %v234 = vld [vmem:[%s0 + $0x94] sm:$0xff]
    %v235 = vld [vmem:[%s0 + $0x9c] sm:$0xff]
    %v236 = vld [vmem:[%s0 + $0xa4] sm:$0xff]
    %v237 = vld [vmem:[%s0 + $0xac] sm:$0xff]
    %v238 = vld [vmem:[%s0 + $0xb4] sm:$0xff]
    %v239 = vld [vmem:[%s0 + $0xbc] sm:$0xff]
    %v240 = vld [vmem:[%s0 + $0xc4] sm:$0xff]
    %v241 = vld [vmem:[%s0 + $0xcc] sm:$0xff]
    %v242 = vld [vmem:[%s0 + $0xd4] sm:$0xff]
    %v243 = vld [vmem:[%s0 + $0xdc] sm:$0xff]
    %v244 = vld [vmem:[%s0 + $0xe4] sm:$0xff]
    %v245 = vld [vmem:[%s0 + $0xec] sm:$0xff]
    %v246 = vld [vmem:[%s0 + $0xf4] sm:$0xff]
    %v247 = vld [vmem:[%s0 + $0xfc] sm:$0xff]
    %v248 = vld [vmem:[%s0 + $0x104] sm:$0xff]
    %v249 = vpack.c.bf16 %v217, %v216
    %v250 = vpack.c.bf16 %v219, %v218
    %v251 = vpack.c.bf16 %v221, %v220
    %v252 = vpack.c.bf16 %v223, %v222
    %v253 = vpack.c.bf16 %v225, %v224
    %v254 = vpack.c.bf16 %v227, %v226
    %v255 = vpack.c.bf16 %v229, %v228
    %v256 = vpack.c.bf16 %v231, %v230
    %v257 = vpack.c.bf16 %v233, %v232
    %v258 = vpack.c.bf16 %v235, %v234
    %v259 = vpack.c.bf16 %v237, %v236
    %v260 = vpack.c.bf16 %v239, %v238
    %v261 = vpack.c.bf16 %v241, %v240
    %v262 = vpack.c.bf16 %v243, %v242
    %v263 = vpack.c.bf16 %v245, %v244
    %v264 = vpack.c.bf16 %v247, %v246
    %v265 = vpack.c.bf16 %v248, %v248
    %v266 = vld [vmem:[%s0 + $0x5] sm:$0xff]
    %v267 = vld [vmem:[%s0 + $0xd] sm:$0xff]
    %v268 = vld [vmem:[%s0 + $0x15] sm:$0xff]
    %v269 = vld [vmem:[%s0 + $0x1d] sm:$0xff]
    %v270 = vld [vmem:[%s0 + $0x25] sm:$0xff]
    %v271 = vld [vmem:[%s0 + $0x2d] sm:$0xff]
    %v272 = vld [vmem:[%s0 + $0x35] sm:$0xff]
    %v273 = vld [vmem:[%s0 + $0x3d] sm:$0xff]
    %v274 = vld [vmem:[%s0 + $0x45] sm:$0xff]
    %v275 = vld [vmem:[%s0 + $0x4d] sm:$0xff]
    %v276 = vld [vmem:[%s0 + $0x55] sm:$0xff]
    %v277 = vld [vmem:[%s0 + $0x5d] sm:$0xff]
    %v278 = vld [vmem:[%s0 + $0x65] sm:$0xff]
    %v279 = vld [vmem:[%s0 + $0x6d] sm:$0xff]
    %v280 = vld [vmem:[%s0 + $0x75] sm:$0xff]
    %v281 = vld [vmem:[%s0 + $0x7d] sm:$0xff]
    %v282 = vld [vmem:[%s0 + $0x85] sm:$0xff]
    %v283 = vld [vmem:[%s0 + $0x8d] sm:$0xff]
    %v284 = vld [vmem:[%s0 + $0x95] sm:$0xff]
    %v285 = vld [vmem:[%s0 + $0x9d] sm:$0xff]
    %v286 = vld [vmem:[%s0 + $0xa5] sm:$0xff]
    %v287 = vld [vmem:[%s0 + $0xad] sm:$0xff]
    %v288 = vld [vmem:[%s0 + $0xb5] sm:$0xff]
    %v289 = vld [vmem:[%s0 + $0xbd] sm:$0xff]
    %v290 = vld [vmem:[%s0 + $0xc5] sm:$0xff]
    %v291 = vld [vmem:[%s0 + $0xcd] sm:$0xff]
    %v292 = vld [vmem:[%s0 + $0xd5] sm:$0xff]
    %v293 = vld [vmem:[%s0 + $0xdd] sm:$0xff]
    %v294 = vld [vmem:[%s0 + $0xe5] sm:$0xff]
    %v295 = vld [vmem:[%s0 + $0xed] sm:$0xff]
    %v296 = vld [vmem:[%s0 + $0xf5] sm:$0xff]
    %v297 = vld [vmem:[%s0 + $0xfd] sm:$0xff]
    %v298 = vld [vmem:[%s0 + $0x105] sm:$0xff]
    %v299 = vpack.c.bf16 %v267, %v266
    %v300 = vpack.c.bf16 %v269, %v268
    %v301 = vpack.c.bf16 %v271, %v270
    %v302 = vpack.c.bf16 %v273, %v272
    %v303 = vpack.c.bf16 %v275, %v274
    %v304 = vpack.c.bf16 %v277, %v276
    %v305 = vpack.c.bf16 %v279, %v278
    %v306 = vpack.c.bf16 %v281, %v280
    %v307 = vpack.c.bf16 %v283, %v282
    %v308 = vpack.c.bf16 %v285, %v284
    %v309 = vpack.c.bf16 %v287, %v286
    %v310 = vpack.c.bf16 %v289, %v288
    %v311 = vpack.c.bf16 %v291, %v290
    %v312 = vpack.c.bf16 %v293, %v292
    %v313 = vpack.c.bf16 %v295, %v294
    %v314 = vpack.c.bf16 %v297, %v296
    %v315 = vpack.c.bf16 %v298, %v298
    %v316 = vld [vmem:[%s0 + $0x6] sm:$0xff]
    %v317 = vld [vmem:[%s0 + $0xe] sm:$0xff]
    %v318 = vld [vmem:[%s0 + $0x16] sm:$0xff]
    %v319 = vld [vmem:[%s0 + $0x1e] sm:$0xff]
    %v320 = vld [vmem:[%s0 + $0x26] sm:$0xff]
    %v321 = vld [vmem:[%s0 + $0x2e] sm:$0xff]
    %v322 = vld [vmem:[%s0 + $0x36] sm:$0xff]
    %v323 = vld [vmem:[%s0 + $0x3e] sm:$0xff]
    %v324 = vld [vmem:[%s0 + $0x46] sm:$0xff]
    %v325 = vld [vmem:[%s0 + $0x4e] sm:$0xff]
    %v326 = vld [vmem:[%s0 + $0x56] sm:$0xff]
    %v327 = vld [vmem:[%s0 + $0x5e] sm:$0xff]
    %v328 = vld [vmem:[%s0 + $0x66] sm:$0xff]
    %v329 = vld [vmem:[%s0 + $0x6e] sm:$0xff]
    %v330 = vld [vmem:[%s0 + $0x76] sm:$0xff]
    %v331 = vld [vmem:[%s0 + $0x7e] sm:$0xff]
    %v332 = vld [vmem:[%s0 + $0x86] sm:$0xff]
    %v333 = vld [vmem:[%s0 + $0x8e] sm:$0xff]
    %v334 = vld [vmem:[%s0 + $0x96] sm:$0xff]
    %v335 = vld [vmem:[%s0 + $0x9e] sm:$0xff]
    %v336 = vld [vmem:[%s0 + $0xa6] sm:$0xff]
    %v337 = vld [vmem:[%s0 + $0xae] sm:$0xff]
    %v338 = vld [vmem:[%s0 + $0xb6] sm:$0xff]
    %v339 = vld [vmem:[%s0 + $0xbe] sm:$0xff]
    %v340 = vld [vmem:[%s0 + $0xc6] sm:$0xff]
    %v341 = vld [vmem:[%s0 + $0xce] sm:$0xff]
    %v342 = vld [vmem:[%s0 + $0xd6] sm:$0xff]
    %v343 = vld [vmem:[%s0 + $0xde] sm:$0xff]
    %v344 = vld [vmem:[%s0 + $0xe6] sm:$0xff]
    %v345 = vld [vmem:[%s0 + $0xee] sm:$0xff]
    %v346 = vld [vmem:[%s0 + $0xf6] sm:$0xff]
    %v347 = vld [vmem:[%s0 + $0xfe] sm:$0xff]
    %v348 = vld [vmem:[%s0 + $0x106] sm:$0xff]
    %v349 = vpack.c.bf16 %v317, %v316
    %v350 = vpack.c.bf16 %v319, %v318
    %v351 = vpack.c.bf16 %v321, %v320
    %v352 = vpack.c.bf16 %v323, %v322
    %v353 = vpack.c.bf16 %v325, %v324
    %v354 = vpack.c.bf16 %v327, %v326
    %v355 = vpack.c.bf16 %v329, %v328
    %v356 = vpack.c.bf16 %v331, %v330
    %v357 = vpack.c.bf16 %v333, %v332
    %v358 = vpack.c.bf16 %v335, %v334
    %v359 = vpack.c.bf16 %v337, %v336
    %v360 = vpack.c.bf16 %v339, %v338
    %v361 = vpack.c.bf16 %v341, %v340
    %v362 = vpack.c.bf16 %v343, %v342
    %v363 = vpack.c.bf16 %v345, %v344
    %v364 = vpack.c.bf16 %v347, %v346
    %v365 = vpack.c.bf16 %v348, %v348
    %v366 = vld [vmem:[%s1] sm:$0xff]
    %v367 = vld [vmem:[%s1 + $0x8] sm:$0xff]
    %v368 = vld [vmem:[%s1 + $0x10] sm:$0xff]
    %v369 = vld [vmem:[%s1 + $0x18] sm:$0xff]
    %v370 = vld [vmem:[%s1 + $0x20] sm:$0xff]
    %v371 = vld [vmem:[%s1 + $0x28] sm:$0xff]
    %v372 = vld [vmem:[%s1 + $0x30] sm:$0xff]
    %v373 = vld [vmem:[%s1 + $0x38] sm:$0xff]
    %v374 = vld [vmem:[%s1 + $0x40] sm:$0xff]
    %v375 = vld [vmem:[%s1 + $0x48] sm:$0xff]
    %v376 = vld [vmem:[%s1 + $0x50] sm:$0xff]
    %v377 = vld [vmem:[%s1 + $0x58] sm:$0xff]
    %v378 = vld [vmem:[%s1 + $0x60] sm:$0xff]
    %v379 = vld [vmem:[%s1 + $0x68] sm:$0xff]
    %v380 = vld [vmem:[%s1 + $0x70] sm:$0xff]
    %v381 = vld [vmem:[%s1 + $0x78] sm:$0xff]
    %v382 = vld [vmem:[%s1 + $0x80] sm:$0xff]
    %v383 = vld [vmem:[%s1 + $0x88] sm:$0xff]
    %v384 = vld [vmem:[%s1 + $0x90] sm:$0xff]
    %v385 = vld [vmem:[%s1 + $0x98] sm:$0xff]
    %v386 = vld [vmem:[%s1 + $0xa0] sm:$0xff]
    %v387 = vld [vmem:[%s1 + $0xa8] sm:$0xff]
    %v388 = vld [vmem:[%s1 + $0xb0] sm:$0xff]
    %v389 = vld [vmem:[%s1 + $0xb8] sm:$0xff]
    %v390 = vld [vmem:[%s1 + $0xc0] sm:$0xff]
    %v391 = vld [vmem:[%s1 + $0xc8] sm:$0xff]
    %v392 = vld [vmem:[%s1 + $0xd0] sm:$0xff]
    %v393 = vld [vmem:[%s1 + $0xd8] sm:$0xff]
    %v394 = vld [vmem:[%s1 + $0xe0] sm:$0xff]
    %v395 = vld [vmem:[%s1 + $0xe8] sm:$0xff]
    %v396 = vld [vmem:[%s1 + $0xf0] sm:$0xff]
    %v397 = vld [vmem:[%s1 + $0xf8] sm:$0xff]
    %v398 = vld [vmem:[%s1 + $0x100] sm:$0xff]
    %v399 = vld [vmem:[%s1 + $0x108] sm:$0xff]
    %v400 = vld [vmem:[%s1 + $0x110] sm:$0xff]
    %v401 = vld [vmem:[%s1 + $0x118] sm:$0xff]
    %v402 = vld [vmem:[%s1 + $0x120] sm:$0xff]
    %v403 = vld [vmem:[%s1 + $0x128] sm:$0xff]
    %v404 = vld [vmem:[%s1 + $0x130] sm:$0xff]
    %v405 = vld [vmem:[%s1 + $0x138] sm:$0xff]
    %v406 = vld [vmem:[%s1 + $0x140] sm:$0xff]
    %v407 = vld [vmem:[%s1 + $0x148] sm:$0xff]
    %v408 = vld [vmem:[%s1 + $0x150] sm:$0xff]
    %v409 = vld [vmem:[%s1 + $0x158] sm:$0xff]
    %v410 = vld [vmem:[%s1 + $0x160] sm:$0xff]
    %v411 = vld [vmem:[%s1 + $0x168] sm:$0xff]
    %v412 = vld [vmem:[%s1 + $0x170] sm:$0xff]
    %v413 = vld [vmem:[%s1 + $0x178] sm:$0xff]
    %v414 = vld [vmem:[%s1 + $0x180] sm:$0xff]
    %v415 = vld [vmem:[%s1 + $0x188] sm:$0xff]
    %v416 = vld [vmem:[%s1 + $0x190] sm:$0xff]
    %v417 = vld [vmem:[%s1 + $0x198] sm:$0xff]
    %v418 = vld [vmem:[%s1 + $0x1a0] sm:$0xff]
    %v419 = vld [vmem:[%s1 + $0x1a8] sm:$0xff]
    %v420 = vld [vmem:[%s1 + $0x1b0] sm:$0xff]
    %v421 = vld [vmem:[%s1 + $0x1b8] sm:$0xff]
    %v422 = vld [vmem:[%s1 + $0x1c0] sm:$0xff]
    %v423 = vld [vmem:[%s1 + $0x1c8] sm:$0xff]
    %v424 = vld [vmem:[%s1 + $0x1d0] sm:$0xff]
    %v425 = vld [vmem:[%s1 + $0x1d8] sm:$0xff]
    %v426 = vld [vmem:[%s1 + $0x1e0] sm:$0xff]
    %v427 = vld [vmem:[%s1 + $0x1e8] sm:$0xff]
    %v428 = vld [vmem:[%s1 + $0x1f0] sm:$0xff]
    %v429 = vld [vmem:[%s1 + $0x1f8] sm:$0xff]
    %v430 = vld [vmem:[%s1 + $0x200] sm:$0xff]
    %v431 = vld [vmem:[%s1 + $0x208] sm:$0xff]
    %v432 = vld [vmem:[%s1 + $0x210] sm:$0xff]
    %v433 = vld [vmem:[%s1 + $0x218] sm:$0xff]
    %v434 = vld [vmem:[%s1 + $0x220] sm:$0xff]
    %v435 = vld [vmem:[%s1 + $0x228] sm:$0xff]
    %v436 = vld [vmem:[%s1 + $0x230] sm:$0xff]
    %v437 = vld [vmem:[%s1 + $0x238] sm:$0xff]
    %v438 = vld [vmem:[%s1 + $0x240] sm:$0xff]
    %v439 = vld [vmem:[%s1 + $0x248] sm:$0xff]
    %v440 = vld [vmem:[%s1 + $0x250] sm:$0xff]
    %v441 = vld [vmem:[%s1 + $0x258] sm:$0xff]
    %v442 = vld [vmem:[%s1 + $0x260] sm:$0xff]
    %v443 = vld [vmem:[%s1 + $0x268] sm:$0xff]
    %v444 = vld [vmem:[%s1 + $0x270] sm:$0xff]
    %v445 = vld [vmem:[%s1 + $0x278] sm:$0xff]
    %v446 = vld [vmem:[%s1 + $0x280] sm:$0xff]
    %v447 = vld [vmem:[%s1 + $0x288] sm:$0xff]
    %v448 = vld [vmem:[%s1 + $0x290] sm:$0xff]
    %v449 = vld [vmem:[%s1 + $0x298] sm:$0xff]
    %v450 = vld [vmem:[%s1 + $0x2a0] sm:$0xff]
    %v451 = vld [vmem:[%s1 + $0x2a8] sm:$0xff]
    %v452 = vld [vmem:[%s1 + $0x2b0] sm:$0xff]
    %v453 = vld [vmem:[%s1 + $0x2b8] sm:$0xff]
    %v454 = vld [vmem:[%s1 + $0x2c0] sm:$0xff]
    %v455 = vld [vmem:[%s1 + $0x2c8] sm:$0xff]
    %v456 = vld [vmem:[%s1 + $0x2d0] sm:$0xff]
    %v457 = vld [vmem:[%s1 + $0x2d8] sm:$0xff]
    %v458 = vld [vmem:[%s1 + $0x2e0] sm:$0xff]
    %v459 = vld [vmem:[%s1 + $0x2e8] sm:$0xff]
    %v460 = vld [vmem:[%s1 + $0x2f0] sm:$0xff]
    %v461 = vld [vmem:[%s1 + $0x2f8] sm:$0xff]
    %v462 = vld [vmem:[%s1 + $0x300] sm:$0xff]
    %v463 = vld [vmem:[%s1 + $0x308] sm:$0xff]
    %v464 = vld [vmem:[%s1 + $0x310] sm:$0xff]
    %v465 = vld [vmem:[%s1 + $0x318] sm:$0xff]
    %v466 = vld [vmem:[%s1 + $0x320] sm:$0xff]
    %v467 = vld [vmem:[%s1 + $0x328] sm:$0xff]
    %v468 = vld [vmem:[%s1 + $0x330] sm:$0xff]
    %v469 = vld [vmem:[%s1 + $0x338] sm:$0xff]
    %v470 = vld [vmem:[%s1 + $0x340] sm:$0xff]
    %v471 = vld [vmem:[%s1 + $0x348] sm:$0xff]
    %v472 = vld [vmem:[%s1 + $0x350] sm:$0xff]
    %v473 = vld [vmem:[%s1 + $0x358] sm:$0xff]
    %v474 = vld [vmem:[%s1 + $0x360] sm:$0xff]
    %v475 = vld [vmem:[%s1 + $0x368] sm:$0xff]
    %v476 = vld [vmem:[%s1 + $0x370] sm:$0xff]
    %v477 = vld [vmem:[%s1 + $0x378] sm:$0xff]
    %v478 = vld [vmem:[%s1 + $0x380] sm:$0xff]
    %v479 = vld [vmem:[%s1 + $0x388] sm:$0xff]
    %v480 = vld [vmem:[%s1 + $0x390] sm:$0xff]
    %v481 = vld [vmem:[%s1 + $0x398] sm:$0xff]
    %v482 = vld [vmem:[%s1 + $0x3a0] sm:$0xff]
    %v483 = vld [vmem:[%s1 + $0x3a8] sm:$0xff]
    %v484 = vld [vmem:[%s1 + $0x3b0] sm:$0xff]
    %v485 = vld [vmem:[%s1 + $0x3b8] sm:$0xff]
    %v486 = vld [vmem:[%s1 + $0x3c0] sm:$0xff]
    %v487 = vld [vmem:[%s1 + $0x3c8] sm:$0xff]
    %v488 = vld [vmem:[%s1 + $0x3d0] sm:$0xff]
    %v489 = vld [vmem:[%s1 + $0x3d8] sm:$0xff]
    %v490 = vld [vmem:[%s1 + $0x3e0] sm:$0xff]
    %v491 = vld [vmem:[%s1 + $0x3e8] sm:$0xff]
    %v492 = vld [vmem:[%s1 + $0x3f0] sm:$0xff]
    %v493 = vld [vmem:[%s1 + $0x3f8] sm:$0xff]
    %v494 = vld [vmem:[%s1 + $0x400] sm:$0xff]
    %v495 = vld [vmem:[%s1 + $0x408] sm:$0xff]
    %v496 = vld [vmem:[%s1 + $0x410] sm:$0xff]
    %v497 = vld [vmem:[%s1 + $0x418] sm:$0xff]
    %v498 = vld [vmem:[%s1 + $0x420] sm:$0xff]
    %v499 = vld [vmem:[%s1 + $0x428] sm:$0xff]
    %v500 = vld [vmem:[%s1 + $0x430] sm:$0xff]
    %v501 = vld [vmem:[%s1 + $0x438] sm:$0xff]
    %v502 = vld [vmem:[%s1 + $0x440] sm:$0xff]
    %v503 = vld [vmem:[%s1 + $0x448] sm:$0xff]
    %v504 = vld [vmem:[%s1 + $0x450] sm:$0xff]
    %v505 = vld [vmem:[%s1 + $0x458] sm:$0xff]
    %v506 = vld [vmem:[%s1 + $0x460] sm:$0xff]
    %v507 = vld [vmem:[%s1 + $0x468] sm:$0xff]
    %v508 = vld [vmem:[%s1 + $0x470] sm:$0xff]
    %v509 = vld [vmem:[%s1 + $0x478] sm:$0xff]
    %v510 = vld [vmem:[%s1 + $0x480] sm:$0xff]
    %v511 = vld [vmem:[%s1 + $0x488] sm:$0xff]
    %v512 = vld [vmem:[%s1 + $0x490] sm:$0xff]
    %v513 = vld [vmem:[%s1 + $0x498] sm:$0xff]
    %v514 = vld [vmem:[%s1 + $0x4a0] sm:$0xff]
    %v515 = vld [vmem:[%s1 + $0x4a8] sm:$0xff]
    %v516 = vld [vmem:[%s1 + $0x4b0] sm:$0xff]
    %v517 = vld [vmem:[%s1 + $0x4b8] sm:$0xff]
    %v518 = vld [vmem:[%s1 + $0x4c0] sm:$0xff]
    %v519 = vld [vmem:[%s1 + $0x4c8] sm:$0xff]
    %v520 = vld [vmem:[%s1 + $0x4d0] sm:$0xff]
    %v521 = vld [vmem:[%s1 + $0x4d8] sm:$0xff]
    %v522 = vld [vmem:[%s1 + $0x4e0] sm:$0xff]
    %v523 = vld [vmem:[%s1 + $0x4e8] sm:$0xff]
    %v524 = vld [vmem:[%s1 + $0x4f0] sm:$0xff]
    %v525 = vld [vmem:[%s1 + $0x4f8] sm:$0xff]
    %v526 = vld [vmem:[%s1 + $0x500] sm:$0xff]
    %v527 = vld [vmem:[%s1 + $0x508] sm:$0xff]
    %v528 = vld [vmem:[%s1 + $0x510] sm:$0xff]
    %v529 = vld [vmem:[%s1 + $0x518] sm:$0xff]
    %v530 = vld [vmem:[%s1 + $0x520] sm:$0xff]
    %v531 = vld [vmem:[%s1 + $0x528] sm:$0xff]
    %v532 = vld [vmem:[%s1 + $0x530] sm:$0xff]
    %v533 = vld [vmem:[%s1 + $0x538] sm:$0xff]
    %v534 = vld [vmem:[%s1 + $0x540] sm:$0xff]
    %v535 = vld [vmem:[%s1 + $0x548] sm:$0xff]
    %v536 = vld [vmem:[%s1 + $0x550] sm:$0xff]
    %v537 = vld [vmem:[%s1 + $0x558] sm:$0xff]
    %v538 = vld [vmem:[%s1 + $0x560] sm:$0xff]
    %v539 = vld [vmem:[%s1 + $0x568] sm:$0xff]
    %v540 = vld [vmem:[%s1 + $0x570] sm:$0xff]
    %v541 = vld [vmem:[%s1 + $0x578] sm:$0xff]
    %v542 = vld [vmem:[%s1 + $0x580] sm:$0xff]
    %v543 = vld [vmem:[%s1 + $0x588] sm:$0xff]
    %v544 = vld [vmem:[%s1 + $0x590] sm:$0xff]
    %v545 = vld [vmem:[%s1 + $0x598] sm:$0xff]
    %v546 = vld [vmem:[%s1 + $0x5a0] sm:$0xff]
    %v547 = vld [vmem:[%s1 + $0x5a8] sm:$0xff]
    %v548 = vld [vmem:[%s1 + $0x5b0] sm:$0xff]
    %v549 = vld [vmem:[%s1 + $0x5b8] sm:$0xff]
    %v550 = vld [vmem:[%s1 + $0x5c0] sm:$0xff]
    %v551 = vld [vmem:[%s1 + $0x5c8] sm:$0xff]
    %v552 = vld [vmem:[%s1 + $0x5d0] sm:$0xff]
    %v553 = vld [vmem:[%s1 + $0x5d8] sm:$0xff]
    %v554 = vld [vmem:[%s1 + $0x5e0] sm:$0xff]
    %v555 = vld [vmem:[%s1 + $0x5e8] sm:$0xff]
    %v556 = vld [vmem:[%s1 + $0x5f0] sm:$0xff]
    %v557 = vld [vmem:[%s1 + $0x5f8] sm:$0xff]
    %v558 = vld [vmem:[%s1 + $0x600] sm:$0xff]
    %v559 = vld [vmem:[%s1 + $0x608] sm:$0xff]
    %v560 = vld [vmem:[%s1 + $0x610] sm:$0xff]
    %v561 = vld [vmem:[%s1 + $0x618] sm:$0xff]
    %v562 = vld [vmem:[%s1 + $0x620] sm:$0xff]
    %v563 = vld [vmem:[%s1 + $0x628] sm:$0xff]
    %v564 = vld [vmem:[%s1 + $0x630] sm:$0xff]
    %v565 = vld [vmem:[%s1 + $0x638] sm:$0xff]
    %v566 = vld [vmem:[%s1 + $0x640] sm:$0xff]
    %v567 = vld [vmem:[%s1 + $0x648] sm:$0xff]
    %v568 = vld [vmem:[%s1 + $0x650] sm:$0xff]
    %v569 = vld [vmem:[%s1 + $0x658] sm:$0xff]
    %v570 = vld [vmem:[%s1 + $0x660] sm:$0xff]
    %v571 = vld [vmem:[%s1 + $0x668] sm:$0xff]
    %v572 = vld [vmem:[%s1 + $0x670] sm:$0xff]
    %v573 = vld [vmem:[%s1 + $0x678] sm:$0xff]
    %v574 = vld [vmem:[%s1 + $0x680] sm:$0xff]
    %v575 = vld [vmem:[%s1 + $0x688] sm:$0xff]
    %v576 = vld [vmem:[%s1 + $0x690] sm:$0xff]
    %v577 = vld [vmem:[%s1 + $0x698] sm:$0xff]
    %v578 = vld [vmem:[%s1 + $0x6a0] sm:$0xff]
    %v579 = vld [vmem:[%s1 + $0x6a8] sm:$0xff]
    %v580 = vld [vmem:[%s1 + $0x6b0] sm:$0xff]
    %v581 = vld [vmem:[%s1 + $0x6b8] sm:$0xff]
    %v582 = vld [vmem:[%s1 + $0x6c0] sm:$0xff]
    %v583 = vld [vmem:[%s1 + $0x6c8] sm:$0xff]
    %v584 = vld [vmem:[%s1 + $0x6d0] sm:$0xff]
    %v585 = vld [vmem:[%s1 + $0x6d8] sm:$0xff]
    %v586 = vld [vmem:[%s1 + $0x6e0] sm:$0xff]
    %v587 = vld [vmem:[%s1 + $0x6e8] sm:$0xff]
    %v588 = vld [vmem:[%s1 + $0x6f0] sm:$0xff]
    %v589 = vld [vmem:[%s1 + $0x6f8] sm:$0xff]
    %v590 = vld [vmem:[%s1 + $0x700] sm:$0xff]
    %v591 = vld [vmem:[%s1 + $0x708] sm:$0xff]
    %v592 = vld [vmem:[%s1 + $0x710] sm:$0xff]
    %v593 = vld [vmem:[%s1 + $0x718] sm:$0xff]
    %v594 = vld [vmem:[%s1 + $0x720] sm:$0xff]
    %v595 = vld [vmem:[%s1 + $0x728] sm:$0xff]
    %v596 = vld [vmem:[%s1 + $0x730] sm:$0xff]
    %v597 = vld [vmem:[%s1 + $0x738] sm:$0xff]
    %v598 = vld [vmem:[%s1 + $0x740] sm:$0xff]
    %v599 = vld [vmem:[%s1 + $0x748] sm:$0xff]
    %v600 = vld [vmem:[%s1 + $0x750] sm:$0xff]
    %v601 = vld [vmem:[%s1 + $0x758] sm:$0xff]
    %v602 = vld [vmem:[%s1 + $0x760] sm:$0xff]
    %v603 = vld [vmem:[%s1 + $0x768] sm:$0xff]
    %v604 = vld [vmem:[%s1 + $0x770] sm:$0xff]
    %v605 = vld [vmem:[%s1 + $0x778] sm:$0xff]
    %v606 = vld [vmem:[%s1 + $0x780] sm:$0xff]
    %v607 = vld [vmem:[%s1 + $0x788] sm:$0xff]
    %v608 = vld [vmem:[%s1 + $0x790] sm:$0xff]
    %v609 = vld [vmem:[%s1 + $0x798] sm:$0xff]
    %v610 = vld [vmem:[%s1 + $0x7a0] sm:$0xff]
    %v611 = vld [vmem:[%s1 + $0x7a8] sm:$0xff]
    %v612 = vld [vmem:[%s1 + $0x7b0] sm:$0xff]
    %v613 = vld [vmem:[%s1 + $0x7b8] sm:$0xff]
    %v614 = vld [vmem:[%s1 + $0x7c0] sm:$0xff]
    %v615 = vld [vmem:[%s1 + $0x7c8] sm:$0xff]
    %v616 = vld [vmem:[%s1 + $0x7d0] sm:$0xff]
    %v617 = vld [vmem:[%s1 + $0x7d8] sm:$0xff]
    %v618 = vld [vmem:[%s1 + $0x7e0] sm:$0xff]
    %v619 = vld [vmem:[%s1 + $0x7e8] sm:$0xff]
    %v620 = vld [vmem:[%s1 + $0x7f0] sm:$0xff]
    %v621 = vld [vmem:[%s1 + $0x7f8] sm:$0xff]
    %v622 = vld [vmem:[%s1 + $0x800] sm:$0xff]
    %v623 = vld [vmem:[%s1 + $0x808] sm:$0xff]
    %v624 = vld [vmem:[%s1 + $0x810] sm:$0xff]
    %v625 = vld [vmem:[%s1 + $0x818] sm:$0xff]
    %v626 = vld [vmem:[%s1 + $0x820] sm:$0xff]
    %v627 = vld [vmem:[%s1 + $0x828] sm:$0xff]
    %v628 = vld [vmem:[%s1 + $0x830] sm:$0xff]
    %v629 = vld [vmem:[%s1 + $0x838] sm:$0xff]
    %v630 = vld [vmem:[%s1 + $0x840] sm:$0xff]
    %v631 = vld [vmem:[%s1 + $0x848] sm:$0xff]
    %v632 = vld [vmem:[%s1 + $0x850] sm:$0xff]
    %v633 = vld [vmem:[%s1 + $0x858] sm:$0xff]
    %v634 = vld [vmem:[%s1 + $0x860] sm:$0xff]
    %v635 = vld [vmem:[%s1 + $0x868] sm:$0xff]
    %v636 = vld [vmem:[%s1 + $0x870] sm:$0xff]
    %v637 = vld [vmem:[%s1 + $0x878] sm:$0xff]
    %v638 = vld [vmem:[%s1 + $0x880] sm:$0xff]
    %v639 = vld [vmem:[%s1 + $0x888] sm:$0xff]
    %v640 = vld [vmem:[%s1 + $0x890] sm:$0xff]
    %v641 = vld [vmem:[%s1 + $0x898] sm:$0xff]
    %v642 = vld [vmem:[%s1 + $0x8a0] sm:$0xff]
    %v643 = vld [vmem:[%s1 + $0x8a8] sm:$0xff]
    %v644 = vld [vmem:[%s1 + $0x8b0] sm:$0xff]
    %v645 = vld [vmem:[%s1 + $0x8b8] sm:$0xff]
    %v646 = vld [vmem:[%s1 + $0x8c0] sm:$0xff]
    %v647 = vld [vmem:[%s1 + $0x8c8] sm:$0xff]
    %v648 = vld [vmem:[%s1 + $0x8d0] sm:$0xff]
    %v649 = vld [vmem:[%s1 + $0x8d8] sm:$0xff]
    %v650 = vld [vmem:[%s1 + $0x8e0] sm:$0xff]
    %v651 = vld [vmem:[%s1 + $0x8e8] sm:$0xff]
    %v652 = vld [vmem:[%s1 + $0x8f0] sm:$0xff]
    %v653 = vld [vmem:[%s1 + $0x8f8] sm:$0xff]
    %v654 = vld [vmem:[%s1 + $0x900] sm:$0xff]
    %v655 = vld [vmem:[%s1 + $0x908] sm:$0xff]
    %v656 = vld [vmem:[%s1 + $0x910] sm:$0xff]
    %v657 = vld [vmem:[%s1 + $0x918] sm:$0xff]
    %v658 = vld [vmem:[%s1 + $0x920] sm:$0xff]
    %v659 = vld [vmem:[%s1 + $0x928] sm:$0xff]
    %v660 = vld [vmem:[%s1 + $0x930] sm:$0xff]
    %v661 = vld [vmem:[%s1 + $0x938] sm:$0xff]
    %v662 = vld [vmem:[%s1 + $0x940] sm:$0xff]
    %v663 = vld [vmem:[%s1 + $0x948] sm:$0xff]
    %v664 = vld [vmem:[%s1 + $0x950] sm:$0xff]
    %v665 = vld [vmem:[%s1 + $0x958] sm:$0xff]
    %v666 = vld [vmem:[%s1 + $0x960] sm:$0xff]
    %v667 = vld [vmem:[%s1 + $0x968] sm:$0xff]
    %v668 = vld [vmem:[%s1 + $0x970] sm:$0xff]
    %v669 = vld [vmem:[%s1 + $0x978] sm:$0xff]
    %v670 = vld [vmem:[%s1 + $0x980] sm:$0xff]
    %v671 = vld [vmem:[%s1 + $0x988] sm:$0xff]
    %v672 = vld [vmem:[%s1 + $0x990] sm:$0xff]
    %v673 = vld [vmem:[%s1 + $0x998] sm:$0xff]
    %v674 = vld [vmem:[%s1 + $0x9a0] sm:$0xff]
    %v675 = vld [vmem:[%s1 + $0x9a8] sm:$0xff]
    %v676 = vld [vmem:[%s1 + $0x9b0] sm:$0xff]
    %v677 = vld [vmem:[%s1 + $0x9b8] sm:$0xff]
    %v678 = vld [vmem:[%s1 + $0x9c0] sm:$0xff]
    %v679 = vld [vmem:[%s1 + $0x9c8] sm:$0xff]
    %v680 = vld [vmem:[%s1 + $0x9d0] sm:$0xff]
    %v681 = vld [vmem:[%s1 + $0x9d8] sm:$0xff]
    %v682 = vld [vmem:[%s1 + $0x9e0] sm:$0xff]
    %v683 = vld [vmem:[%s1 + $0x9e8] sm:$0xff]
    %v684 = vld [vmem:[%s1 + $0x9f0] sm:$0xff]
    %v685 = vld [vmem:[%s1 + $0x9f8] sm:$0xff]
    %v686 = vld [vmem:[%s1 + $0xa00] sm:$0xff]
    %v687 = vld [vmem:[%s1 + $0xa08] sm:$0xff]
    %v688 = vld [vmem:[%s1 + $0xa10] sm:$0xff]
    %v689 = vld [vmem:[%s1 + $0xa18] sm:$0xff]
    %v690 = vld [vmem:[%s1 + $0xa20] sm:$0xff]
    %v691 = vld [vmem:[%s1 + $0xa28] sm:$0xff]
    %v692 = vld [vmem:[%s1 + $0xa30] sm:$0xff]
    %v693 = vld [vmem:[%s1 + $0xa38] sm:$0xff]
    %v694 = vld [vmem:[%s1 + $0xa40] sm:$0xff]
    %v695 = vld [vmem:[%s1 + $0xa48] sm:$0xff]
    %v696 = vld [vmem:[%s1 + $0xa50] sm:$0xff]
    %v697 = vld [vmem:[%s1 + $0xa58] sm:$0xff]
    %v698 = vld [vmem:[%s1 + $0xa60] sm:$0xff]
    %v699 = vld [vmem:[%s1 + $0xa68] sm:$0xff]
    %v700 = vld [vmem:[%s1 + $0xa70] sm:$0xff]
    %v701 = vld [vmem:[%s1 + $0xa78] sm:$0xff]
    %v702 = vld [vmem:[%s1 + $0xa80] sm:$0xff]
    %v703 = vld [vmem:[%s1 + $0xa88] sm:$0xff]
    %v704 = vld [vmem:[%s1 + $0xa90] sm:$0xff]
    %v705 = vld [vmem:[%s1 + $0xa98] sm:$0xff]
    %v706 = vld [vmem:[%s1 + $0xaa0] sm:$0xff]
    %v707 = vld [vmem:[%s1 + $0xaa8] sm:$0xff]
    %v708 = vld [vmem:[%s1 + $0xab0] sm:$0xff]
    %v709 = vld [vmem:[%s1 + $0xab8] sm:$0xff]
    %v710 = vld [vmem:[%s1 + $0xac0] sm:$0xff]
    %v711 = vld [vmem:[%s1 + $0xac8] sm:$0xff]
    %v712 = vld [vmem:[%s1 + $0xad0] sm:$0xff]
    %v713 = vld [vmem:[%s1 + $0xad8] sm:$0xff]
    %v714 = vld [vmem:[%s1 + $0xae0] sm:$0xff]
    %v715 = vld [vmem:[%s1 + $0xae8] sm:$0xff]
    %v716 = vld [vmem:[%s1 + $0xaf0] sm:$0xff]
    %v717 = vld [vmem:[%s1 + $0xaf8] sm:$0xff]
    %v718 = vld [vmem:[%s1 + $0xb00] sm:$0xff]
    %v719 = vld [vmem:[%s1 + $0xb08] sm:$0xff]
    %v720 = vld [vmem:[%s1 + $0xb10] sm:$0xff]
    %v721 = vld [vmem:[%s1 + $0xb18] sm:$0xff]
    %v722 = vld [vmem:[%s1 + $0xb20] sm:$0xff]
    %v723 = vld [vmem:[%s1 + $0xb28] sm:$0xff]
    %v724 = vld [vmem:[%s1 + $0xb30] sm:$0xff]
    %v725 = vld [vmem:[%s1 + $0xb38] sm:$0xff]
    %v726 = vld [vmem:[%s1 + $0xb40] sm:$0xff]
    %v727 = vld [vmem:[%s1 + $0xb48] sm:$0xff]
    %v728 = vld [vmem:[%s1 + $0xb50] sm:$0xff]
    %v729 = vld [vmem:[%s1 + $0xb58] sm:$0xff]
    %v730 = vld [vmem:[%s1 + $0xb60] sm:$0xff]
    %v731 = vld [vmem:[%s1 + $0xb68] sm:$0xff]
    %v732 = vld [vmem:[%s1 + $0xb70] sm:$0xff]
    %v733 = vld [vmem:[%s1 + $0xb78] sm:$0xff]
    %v734 = vld [vmem:[%s1 + $0xb80] sm:$0xff]
    %v735 = vld [vmem:[%s1 + $0xb88] sm:$0xff]
    %v736 = vld [vmem:[%s1 + $0xb90] sm:$0xff]
    %v737 = vld [vmem:[%s1 + $0xb98] sm:$0xff]
    %v738 = vld [vmem:[%s1 + $0xba0] sm:$0xff]
    %v739 = vld [vmem:[%s1 + $0xba8] sm:$0xff]
    %v740 = vld [vmem:[%s1 + $0xbb0] sm:$0xff]
    %v741 = vld [vmem:[%s1 + $0xbb8] sm:$0xff]
    %v742 = vld [vmem:[%s1 + $0xbc0] sm:$0xff]
    %v743 = vld [vmem:[%s1 + $0xbc8] sm:$0xff]
    %v744 = vld [vmem:[%s1 + $0xbd0] sm:$0xff]
    %v745 = vld [vmem:[%s1 + $0xbd8] sm:$0xff]
    %v746 = vld [vmem:[%s1 + $0xbe0] sm:$0xff]
    %v747 = vld [vmem:[%s1 + $0xbe8] sm:$0xff]
    %v748 = vld [vmem:[%s1 + $0xbf0] sm:$0xff]
    %v749 = vld [vmem:[%s1 + $0xbf8] sm:$0xff]
    %v750 = vld [vmem:[%s1 + $0xc00] sm:$0xff]
    %v751 = vld [vmem:[%s1 + $0xc08] sm:$0xff]
    %v752 = vld [vmem:[%s1 + $0xc10] sm:$0xff]
    %v753 = vld [vmem:[%s1 + $0xc18] sm:$0xff]
    %v754 = vld [vmem:[%s1 + $0xc20] sm:$0xff]
    %v755 = vld [vmem:[%s1 + $0xc28] sm:$0xff]
    %v756 = vld [vmem:[%s1 + $0xc30] sm:$0xff]
    %v757 = vld [vmem:[%s1 + $0xc38] sm:$0xff]
    %v758 = vld [vmem:[%s1 + $0xc40] sm:$0xff]
    %v759 = vld [vmem:[%s1 + $0xc48] sm:$0xff]
    %v760 = vld [vmem:[%s1 + $0xc50] sm:$0xff]
    %v761 = vld [vmem:[%s1 + $0xc58] sm:$0xff]
    %v762 = vld [vmem:[%s1 + $0xc60] sm:$0xff]
    %v763 = vld [vmem:[%s1 + $0xc68] sm:$0xff]
    %v764 = vld [vmem:[%s1 + $0xc70] sm:$0xff]
    %v765 = vld [vmem:[%s1 + $0xc78] sm:$0xff]
    %v766 = vld [vmem:[%s1 + $0xc80] sm:$0xff]
    %v767 = vld [vmem:[%s1 + $0xc88] sm:$0xff]
    %v768 = vld [vmem:[%s1 + $0xc90] sm:$0xff]
    %v769 = vld [vmem:[%s1 + $0xc98] sm:$0xff]
    %v770 = vld [vmem:[%s1 + $0xca0] sm:$0xff]
    %v771 = vld [vmem:[%s1 + $0xca8] sm:$0xff]
    %v772 = vld [vmem:[%s1 + $0xcb0] sm:$0xff]
    %v773 = vld [vmem:[%s1 + $0xcb8] sm:$0xff]
    %v774 = vld [vmem:[%s1 + $0xcc0] sm:$0xff]
    %v775 = vld [vmem:[%s1 + $0xcc8] sm:$0xff]
    %v776 = vld [vmem:[%s1 + $0xcd0] sm:$0xff]
    %v777 = vld [vmem:[%s1 + $0xcd8] sm:$0xff]
    %v778 = vld [vmem:[%s1 + $0xce0] sm:$0xff]
    %v779 = vld [vmem:[%s1 + $0xce8] sm:$0xff]
    %v780 = vld [vmem:[%s1 + $0xcf0] sm:$0xff]
    %v781 = vld [vmem:[%s1 + $0xcf8] sm:$0xff]
    %v782 = vld [vmem:[%s1 + $0xd00] sm:$0xff]
    %v783 = vld [vmem:[%s1 + $0xd08] sm:$0xff]
    %v784 = vld [vmem:[%s1 + $0xd10] sm:$0xff]
    %v785 = vld [vmem:[%s1 + $0xd18] sm:$0xff]
    %v786 = vld [vmem:[%s1 + $0xd20] sm:$0xff]
    %v787 = vld [vmem:[%s1 + $0xd28] sm:$0xff]
    %v788 = vld [vmem:[%s1 + $0xd30] sm:$0xff]
    %v789 = vld [vmem:[%s1 + $0xd38] sm:$0xff]
    %v790 = vld [vmem:[%s1 + $0xd40] sm:$0xff]
    %v791 = vld [vmem:[%s1 + $0xd48] sm:$0xff]
    %v792 = vld [vmem:[%s1 + $0xd50] sm:$0xff]
    %v793 = vld [vmem:[%s1 + $0xd58] sm:$0xff]
    %v794 = vld [vmem:[%s1 + $0xd60] sm:$0xff]
    %v795 = vld [vmem:[%s1 + $0xd68] sm:$0xff]
    %v796 = vld [vmem:[%s1 + $0xd70] sm:$0xff]
    %v797 = vld [vmem:[%s1 + $0xd78] sm:$0xff]
    %v798 = vld [vmem:[%s1 + $0xd80] sm:$0xff]
    %v799 = vld [vmem:[%s1 + $0xd88] sm:$0xff]
    %v800 = vld [vmem:[%s1 + $0xd90] sm:$0xff]
    %v801 = vld [vmem:[%s1 + $0xd98] sm:$0xff]
    %v802 = vld [vmem:[%s1 + $0xda0] sm:$0xff]
    %v803 = vld [vmem:[%s1 + $0xda8] sm:$0xff]
    %v804 = vld [vmem:[%s1 + $0xdb0] sm:$0xff]
    %v805 = vld [vmem:[%s1 + $0xdb8] sm:$0xff]
    %v806 = vld [vmem:[%s1 + $0xdc0] sm:$0xff]
    %v807 = vld [vmem:[%s1 + $0xdc8] sm:$0xff]
    %v808 = vld [vmem:[%s1 + $0xdd0] sm:$0xff]
    %v809 = vld [vmem:[%s1 + $0xdd8] sm:$0xff]
    %v810 = vld [vmem:[%s1 + $0xde0] sm:$0xff]
    %v811 = vld [vmem:[%s1 + $0xde8] sm:$0xff]
    %v812 = vld [vmem:[%s1 + $0xdf0] sm:$0xff]
    %v813 = vld [vmem:[%s1 + $0xdf8] sm:$0xff]
    %v1262 = vunpack.c.l.b16 %v366
    %v1263 = vunpack.c.h.b16 %v366
    %v1264 = vunpack.c.l.b16 %v367
    %v1265 = vunpack.c.h.b16 %v367
    %v1266 = vunpack.c.l.b16 %v368
    %v1267 = vunpack.c.h.b16 %v368
    %v1268 = vunpack.c.l.b16 %v369
    %v1269 = vunpack.c.h.b16 %v369
    %v1270 = vunpack.c.l.b16 %v370
    %v1271 = vunpack.c.h.b16 %v370
    %v1272 = vunpack.c.l.b16 %v371
    %v1273 = vunpack.c.h.b16 %v371
    %v1274 = vunpack.c.l.b16 %v372
    %v1275 = vunpack.c.h.b16 %v372
    %v1276 = vunpack.c.l.b16 %v373
    %v1277 = vunpack.c.h.b16 %v373
    %v1278 = vunpack.c.l.b16 %v374
    %v1279 = vunpack.c.h.b16 %v374
    %v1280 = vunpack.c.l.b16 %v375
    %v1281 = vunpack.c.h.b16 %v375
    %v1282 = vunpack.c.l.b16 %v376
    %v1283 = vunpack.c.h.b16 %v376
    %v1284 = vunpack.c.l.b16 %v377
    %v1285 = vunpack.c.h.b16 %v377
    %v1286 = vunpack.c.l.b16 %v378
    %v1287 = vunpack.c.h.b16 %v378
    %v1288 = vunpack.c.l.b16 %v379
    %v1289 = vunpack.c.h.b16 %v379
    %v1290 = vunpack.c.l.b16 %v380
    %v1291 = vunpack.c.h.b16 %v380
    %v1292 = vunpack.c.l.b16 %v381
    %v1293 = vunpack.c.h.b16 %v381
    %v1294 = vunpack.c.l.b16 %v382
    %v1295 = vunpack.c.h.b16 %v382
    %v1296 = vunpack.c.l.b16 %v383
    %v1297 = vunpack.c.h.b16 %v383
    %v1298 = vunpack.c.l.b16 %v384
    %v1299 = vunpack.c.h.b16 %v384
    %v1300 = vunpack.c.l.b16 %v385
    %v1301 = vunpack.c.h.b16 %v385
    %v1302 = vunpack.c.l.b16 %v386
    %v1303 = vunpack.c.h.b16 %v386
    %v1304 = vunpack.c.l.b16 %v387
    %v1305 = vunpack.c.h.b16 %v387
    %v1306 = vunpack.c.l.b16 %v388
    %v1307 = vunpack.c.h.b16 %v388
    %v1308 = vunpack.c.l.b16 %v389
    %v1309 = vunpack.c.h.b16 %v389
    %v1310 = vunpack.c.l.b16 %v390
    %v1311 = vunpack.c.h.b16 %v390
    %v1312 = vunpack.c.l.b16 %v391
    %v1313 = vunpack.c.h.b16 %v391
    %v1314 = vunpack.c.l.b16 %v392
    %v1315 = vunpack.c.h.b16 %v392
    %v1316 = vunpack.c.l.b16 %v393
    %v1317 = vunpack.c.h.b16 %v393
    %v1318 = vunpack.c.l.b16 %v394
    %v1319 = vunpack.c.h.b16 %v394
    %v1320 = vunpack.c.l.b16 %v395
    %v1321 = vunpack.c.h.b16 %v395
    %v1322 = vunpack.c.l.b16 %v396
    %v1323 = vunpack.c.h.b16 %v396
    %v1324 = vunpack.c.l.b16 %v397
    %v1325 = vunpack.c.h.b16 %v397
    %v1326 = vunpack.c.l.b16 %v398
    %v1327 = vunpack.c.h.b16 %v398
    %v1328 = vunpack.c.l.b16 %v399
    %v1329 = vunpack.c.h.b16 %v399
    %v1330 = vunpack.c.l.b16 %v400
    %v1331 = vunpack.c.h.b16 %v400
    %v1332 = vunpack.c.l.b16 %v401
    %v1333 = vunpack.c.h.b16 %v401
    %v1334 = vunpack.c.l.b16 %v402
    %v1335 = vunpack.c.h.b16 %v402
    %v1336 = vunpack.c.l.b16 %v403
    %v1337 = vunpack.c.h.b16 %v403
    %v1338 = vunpack.c.l.b16 %v404
    %v1339 = vunpack.c.h.b16 %v404
    %v1340 = vunpack.c.l.b16 %v405
    %v1341 = vunpack.c.h.b16 %v405
    %v1342 = vunpack.c.l.b16 %v406
    %v1343 = vunpack.c.h.b16 %v406
    %v1344 = vunpack.c.l.b16 %v407
    %v1345 = vunpack.c.h.b16 %v407
    %v1346 = vunpack.c.l.b16 %v408
    %v1347 = vunpack.c.h.b16 %v408
    %v1348 = vunpack.c.l.b16 %v409
    %v1349 = vunpack.c.h.b16 %v409
    %v1350 = vunpack.c.l.b16 %v410
    %v1351 = vunpack.c.h.b16 %v410
    %v1352 = vunpack.c.l.b16 %v411
    %v1353 = vunpack.c.h.b16 %v411
    %v1354 = vunpack.c.l.b16 %v412
    %v1355 = vunpack.c.h.b16 %v412
    %v1356 = vunpack.c.l.b16 %v413
    %v1357 = vunpack.c.h.b16 %v413
    %v1358 = vunpack.c.l.b16 %v414
    %v1359 = vunpack.c.h.b16 %v414
    %v1360 = vunpack.c.l.b16 %v415
    %v1361 = vunpack.c.h.b16 %v415
    %v1362 = vunpack.c.l.b16 %v416
    %v1363 = vunpack.c.h.b16 %v416
    %v1364 = vunpack.c.l.b16 %v417
    %v1365 = vunpack.c.h.b16 %v417
    %v1366 = vunpack.c.l.b16 %v418
    %v1367 = vunpack.c.h.b16 %v418
    %v1368 = vunpack.c.l.b16 %v419
    %v1369 = vunpack.c.h.b16 %v419
    %v1370 = vunpack.c.l.b16 %v420
    %v1371 = vunpack.c.h.b16 %v420
    %v1372 = vunpack.c.l.b16 %v421
    %v1373 = vunpack.c.h.b16 %v421
    %v1374 = vunpack.c.l.b16 %v422
    %v1375 = vunpack.c.h.b16 %v422
    %v1376 = vunpack.c.l.b16 %v423
    %v1377 = vunpack.c.h.b16 %v423
    %v1378 = vunpack.c.l.b16 %v424
    %v1379 = vunpack.c.h.b16 %v424
    %v1380 = vunpack.c.l.b16 %v425
    %v1381 = vunpack.c.h.b16 %v425
    %v1382 = vunpack.c.l.b16 %v426
    %v1383 = vunpack.c.h.b16 %v426
    %v1384 = vunpack.c.l.b16 %v427
    %v1385 = vunpack.c.h.b16 %v427
    %v1386 = vunpack.c.l.b16 %v428
    %v1387 = vunpack.c.h.b16 %v428
    %v1388 = vunpack.c.l.b16 %v429
    %v1389 = vunpack.c.h.b16 %v429
    %v1390 = vunpack.c.l.b16 %v430
    %v1391 = vunpack.c.h.b16 %v430
    %v1392 = vunpack.c.l.b16 %v431
    %v1393 = vunpack.c.h.b16 %v431
    %v1394 = vunpack.c.l.b16 %v432
    %v1395 = vunpack.c.h.b16 %v432
    %v1396 = vunpack.c.l.b16 %v433
    %v1397 = vunpack.c.h.b16 %v433
    %v1398 = vunpack.c.l.b16 %v434
    %v1399 = vunpack.c.h.b16 %v434
    %v1400 = vunpack.c.l.b16 %v435
    %v1401 = vunpack.c.h.b16 %v435
    %v1402 = vunpack.c.l.b16 %v436
    %v1403 = vunpack.c.h.b16 %v436
    %v1404 = vunpack.c.l.b16 %v437
    %v1405 = vunpack.c.h.b16 %v437
    %v1406 = vunpack.c.l.b16 %v438
    %v1407 = vunpack.c.h.b16 %v438
    %v1408 = vunpack.c.l.b16 %v439
    %v1409 = vunpack.c.h.b16 %v439
    %v1410 = vunpack.c.l.b16 %v440
    %v1411 = vunpack.c.h.b16 %v440
    %v1412 = vunpack.c.l.b16 %v441
    %v1413 = vunpack.c.h.b16 %v441
    %v1414 = vunpack.c.l.b16 %v442
    %v1415 = vunpack.c.h.b16 %v442
    %v1416 = vunpack.c.l.b16 %v443
    %v1417 = vunpack.c.h.b16 %v443
    %v1418 = vunpack.c.l.b16 %v444
    %v1419 = vunpack.c.h.b16 %v444
    %v1420 = vunpack.c.l.b16 %v445
    %v1421 = vunpack.c.h.b16 %v445
    %v1422 = vunpack.c.l.b16 %v446
    %v1423 = vunpack.c.h.b16 %v446
    %v1424 = vunpack.c.l.b16 %v447
    %v1425 = vunpack.c.h.b16 %v447
    %v1426 = vunpack.c.l.b16 %v448
    %v1427 = vunpack.c.h.b16 %v448
    %v1428 = vunpack.c.l.b16 %v449
    %v1429 = vunpack.c.h.b16 %v449
    %v1430 = vunpack.c.l.b16 %v450
    %v1431 = vunpack.c.h.b16 %v450
    %v1432 = vunpack.c.l.b16 %v451
    %v1433 = vunpack.c.h.b16 %v451
    %v1434 = vunpack.c.l.b16 %v452
    %v1435 = vunpack.c.h.b16 %v452
    %v1436 = vunpack.c.l.b16 %v453
    %v1437 = vunpack.c.h.b16 %v453
    %v1438 = vunpack.c.l.b16 %v454
    %v1439 = vunpack.c.h.b16 %v454
    %v1440 = vunpack.c.l.b16 %v455
    %v1441 = vunpack.c.h.b16 %v455
    %v1442 = vunpack.c.l.b16 %v456
    %v1443 = vunpack.c.h.b16 %v456
    %v1444 = vunpack.c.l.b16 %v457
    %v1445 = vunpack.c.h.b16 %v457
    %v1446 = vunpack.c.l.b16 %v458
    %v1447 = vunpack.c.h.b16 %v458
    %v1448 = vunpack.c.l.b16 %v459
    %v1449 = vunpack.c.h.b16 %v459
    %v1450 = vunpack.c.l.b16 %v460
    %v1451 = vunpack.c.h.b16 %v460
    %v1452 = vunpack.c.l.b16 %v461
    %v1453 = vunpack.c.h.b16 %v461
    %v1454 = vunpack.c.l.b16 %v462
    %v1455 = vunpack.c.h.b16 %v462
    %v1456 = vunpack.c.l.b16 %v463
    %v1457 = vunpack.c.h.b16 %v463
    %v1458 = vunpack.c.l.b16 %v464
    %v1459 = vunpack.c.h.b16 %v464
    %v1460 = vunpack.c.l.b16 %v465
    %v1461 = vunpack.c.h.b16 %v465
    %v1462 = vunpack.c.l.b16 %v466
    %v1463 = vunpack.c.h.b16 %v466
    %v1464 = vunpack.c.l.b16 %v467
    %v1465 = vunpack.c.h.b16 %v467
    %v1466 = vunpack.c.l.b16 %v468
    %v1467 = vunpack.c.h.b16 %v468
    %v1468 = vunpack.c.l.b16 %v469
    %v1469 = vunpack.c.h.b16 %v469
    %v1470 = vunpack.c.l.b16 %v470
    %v1471 = vunpack.c.h.b16 %v470
    %v1472 = vunpack.c.l.b16 %v471
    %v1473 = vunpack.c.h.b16 %v471
    %v1474 = vunpack.c.l.b16 %v472
    %v1475 = vunpack.c.h.b16 %v472
    %v1476 = vunpack.c.l.b16 %v473
    %v1477 = vunpack.c.h.b16 %v473
    %v1478 = vunpack.c.l.b16 %v474
    %v1479 = vunpack.c.h.b16 %v474
    %v1480 = vunpack.c.l.b16 %v475
    %v1481 = vunpack.c.h.b16 %v475
    %v1482 = vunpack.c.l.b16 %v476
    %v1483 = vunpack.c.h.b16 %v476
    %v1484 = vunpack.c.l.b16 %v477
    %v1485 = vunpack.c.h.b16 %v477
    %v1486 = vunpack.c.l.b16 %v478
    %v1487 = vunpack.c.h.b16 %v478
    %v1488 = vunpack.c.l.b16 %v479
    %v1489 = vunpack.c.h.b16 %v479
    %v1490 = vunpack.c.l.b16 %v480
    %v1491 = vunpack.c.h.b16 %v480
    %v1492 = vunpack.c.l.b16 %v481
    %v1493 = vunpack.c.h.b16 %v481
    %v1494 = vunpack.c.l.b16 %v482
    %v1495 = vunpack.c.h.b16 %v482
    %v1496 = vunpack.c.l.b16 %v483
    %v1497 = vunpack.c.h.b16 %v483
    %v1498 = vunpack.c.l.b16 %v484
    %v1499 = vunpack.c.h.b16 %v484
    %v1500 = vunpack.c.l.b16 %v485
    %v1501 = vunpack.c.h.b16 %v485
    %v1502 = vunpack.c.l.b16 %v486
    %v1503 = vunpack.c.h.b16 %v486
    %v1504 = vunpack.c.l.b16 %v487
    %v1505 = vunpack.c.h.b16 %v487
    %v1506 = vunpack.c.l.b16 %v488
    %v1507 = vunpack.c.h.b16 %v488
    %v1508 = vunpack.c.l.b16 %v489
    %v1509 = vunpack.c.h.b16 %v489
    %v1510 = vunpack.c.l.b16 %v490
    %v1511 = vunpack.c.h.b16 %v490
    %v1512 = vunpack.c.l.b16 %v491
    %v1513 = vunpack.c.h.b16 %v491
    %v1514 = vunpack.c.l.b16 %v492
    %v1515 = vunpack.c.h.b16 %v492
    %v1516 = vunpack.c.l.b16 %v493
    %v1517 = vunpack.c.h.b16 %v493
    %v1518 = vunpack.c.l.b16 %v494
    %v1519 = vunpack.c.h.b16 %v494
    %v1520 = vunpack.c.l.b16 %v495
    %v1521 = vunpack.c.h.b16 %v495
    %v1522 = vunpack.c.l.b16 %v496
    %v1523 = vunpack.c.h.b16 %v496
    %v1524 = vunpack.c.l.b16 %v497
    %v1525 = vunpack.c.h.b16 %v497
    %v1526 = vunpack.c.l.b16 %v498
    %v1527 = vunpack.c.h.b16 %v498
    %v1528 = vunpack.c.l.b16 %v499
    %v1529 = vunpack.c.h.b16 %v499
    %v1530 = vunpack.c.l.b16 %v500
    %v1531 = vunpack.c.h.b16 %v500
    %v1532 = vunpack.c.l.b16 %v501
    %v1533 = vunpack.c.h.b16 %v501
    %v1534 = vunpack.c.l.b16 %v502
    %v1535 = vunpack.c.h.b16 %v502
    %v1536 = vunpack.c.l.b16 %v503
    %v1537 = vunpack.c.h.b16 %v503
    %v1538 = vunpack.c.l.b16 %v504
    %v1539 = vunpack.c.h.b16 %v504
    %v1540 = vunpack.c.l.b16 %v505
    %v1541 = vunpack.c.h.b16 %v505
    %v1542 = vunpack.c.l.b16 %v506
    %v1543 = vunpack.c.h.b16 %v506
    %v1544 = vunpack.c.l.b16 %v507
    %v1545 = vunpack.c.h.b16 %v507
    %v1546 = vunpack.c.l.b16 %v508
    %v1547 = vunpack.c.h.b16 %v508
    %v1548 = vunpack.c.l.b16 %v509
    %v1549 = vunpack.c.h.b16 %v509
    %v1550 = vunpack.c.l.b16 %v510
    %v1551 = vunpack.c.h.b16 %v510
    %v1552 = vunpack.c.l.b16 %v511
    %v1553 = vunpack.c.h.b16 %v511
    %v1554 = vunpack.c.l.b16 %v512
    %v1555 = vunpack.c.h.b16 %v512
    %v1556 = vunpack.c.l.b16 %v513
    %v1557 = vunpack.c.h.b16 %v513
    %v1558 = vunpack.c.l.b16 %v514
    %v1559 = vunpack.c.h.b16 %v514
    %v1560 = vunpack.c.l.b16 %v515
    %v1561 = vunpack.c.h.b16 %v515
    %v1562 = vunpack.c.l.b16 %v516
    %v1563 = vunpack.c.h.b16 %v516
    %v1564 = vunpack.c.l.b16 %v517
    %v1565 = vunpack.c.h.b16 %v517
    %v1566 = vunpack.c.l.b16 %v518
    %v1567 = vunpack.c.h.b16 %v518
    %v1568 = vunpack.c.l.b16 %v519
    %v1569 = vunpack.c.h.b16 %v519
    %v1570 = vunpack.c.l.b16 %v520
    %v1571 = vunpack.c.h.b16 %v520
    %v1572 = vunpack.c.l.b16 %v521
    %v1573 = vunpack.c.h.b16 %v521
    %v1574 = vunpack.c.l.b16 %v522
    %v1575 = vunpack.c.h.b16 %v522
    %v1576 = vunpack.c.l.b16 %v523
    %v1577 = vunpack.c.h.b16 %v523
    %v1578 = vunpack.c.l.b16 %v524
    %v1579 = vunpack.c.h.b16 %v524
    %v1580 = vunpack.c.l.b16 %v525
    %v1581 = vunpack.c.h.b16 %v525
    %v1582 = vunpack.c.l.b16 %v526
    %v1583 = vunpack.c.h.b16 %v526
    %v1584 = vunpack.c.l.b16 %v527
    %v1585 = vunpack.c.h.b16 %v527
    %v1586 = vunpack.c.l.b16 %v528
    %v1587 = vunpack.c.h.b16 %v528
    %v1588 = vunpack.c.l.b16 %v529
    %v1589 = vunpack.c.h.b16 %v529
    %v1590 = vunpack.c.l.b16 %v530
    %v1591 = vunpack.c.h.b16 %v530
    %v1592 = vunpack.c.l.b16 %v531
    %v1593 = vunpack.c.h.b16 %v531
    %v1594 = vunpack.c.l.b16 %v532
    %v1595 = vunpack.c.h.b16 %v532
    %v1596 = vunpack.c.l.b16 %v533
    %v1597 = vunpack.c.h.b16 %v533
    %v1598 = vunpack.c.l.b16 %v534
    %v1599 = vunpack.c.h.b16 %v534
    %v1600 = vunpack.c.l.b16 %v535
    %v1601 = vunpack.c.h.b16 %v535
    %v1602 = vunpack.c.l.b16 %v536
    %v1603 = vunpack.c.h.b16 %v536
    %v1604 = vunpack.c.l.b16 %v537
    %v1605 = vunpack.c.h.b16 %v537
    %v1606 = vunpack.c.l.b16 %v538
    %v1607 = vunpack.c.h.b16 %v538
    %v1608 = vunpack.c.l.b16 %v539
    %v1609 = vunpack.c.h.b16 %v539
    %v1610 = vunpack.c.l.b16 %v540
    %v1611 = vunpack.c.h.b16 %v540
    %v1612 = vunpack.c.l.b16 %v541
    %v1613 = vunpack.c.h.b16 %v541
    %v1614 = vunpack.c.l.b16 %v542
    %v1615 = vunpack.c.h.b16 %v542
    %v1616 = vunpack.c.l.b16 %v543
    %v1617 = vunpack.c.h.b16 %v543
    %v1618 = vunpack.c.l.b16 %v544
    %v1619 = vunpack.c.h.b16 %v544
    %v1620 = vunpack.c.l.b16 %v545
    %v1621 = vunpack.c.h.b16 %v545
    %v1622 = vunpack.c.l.b16 %v546
    %v1623 = vunpack.c.h.b16 %v546
    %v1624 = vunpack.c.l.b16 %v547
    %v1625 = vunpack.c.h.b16 %v547
    %v1626 = vunpack.c.l.b16 %v548
    %v1627 = vunpack.c.h.b16 %v548
    %v1628 = vunpack.c.l.b16 %v549
    %v1629 = vunpack.c.h.b16 %v549
    %v1630 = vunpack.c.l.b16 %v550
    %v1631 = vunpack.c.h.b16 %v550
    %v1632 = vunpack.c.l.b16 %v551
    %v1633 = vunpack.c.h.b16 %v551
    %v1634 = vunpack.c.l.b16 %v552
    %v1635 = vunpack.c.h.b16 %v552
    %v1636 = vunpack.c.l.b16 %v553
    %v1637 = vunpack.c.h.b16 %v553
    %v1638 = vunpack.c.l.b16 %v554
    %v1639 = vunpack.c.h.b16 %v554
    %v1640 = vunpack.c.l.b16 %v555
    %v1641 = vunpack.c.h.b16 %v555
    %v1642 = vunpack.c.l.b16 %v556
    %v1643 = vunpack.c.h.b16 %v556
    %v1644 = vunpack.c.l.b16 %v557
    %v1645 = vunpack.c.h.b16 %v557
    %v1646 = vunpack.c.l.b16 %v558
    %v1647 = vunpack.c.h.b16 %v558
    %v1648 = vunpack.c.l.b16 %v559
    %v1649 = vunpack.c.h.b16 %v559
    %v1650 = vunpack.c.l.b16 %v560
    %v1651 = vunpack.c.h.b16 %v560
    %v1652 = vunpack.c.l.b16 %v561
    %v1653 = vunpack.c.h.b16 %v561
    %v1654 = vunpack.c.l.b16 %v562
    %v1655 = vunpack.c.h.b16 %v562
    %v1656 = vunpack.c.l.b16 %v563
    %v1657 = vunpack.c.h.b16 %v563
    %v1658 = vunpack.c.l.b16 %v564
    %v1659 = vunpack.c.h.b16 %v564
    %v1660 = vunpack.c.l.b16 %v565
    %v1661 = vunpack.c.h.b16 %v565
    %v1662 = vunpack.c.l.b16 %v566
    %v1663 = vunpack.c.h.b16 %v566
    %v1664 = vunpack.c.l.b16 %v567
    %v1665 = vunpack.c.h.b16 %v567
    %v1666 = vunpack.c.l.b16 %v568
    %v1667 = vunpack.c.h.b16 %v568
    %v1668 = vunpack.c.l.b16 %v569
    %v1669 = vunpack.c.h.b16 %v569
    %v1670 = vunpack.c.l.b16 %v570
    %v1671 = vunpack.c.h.b16 %v570
    %v1672 = vunpack.c.l.b16 %v571
    %v1673 = vunpack.c.h.b16 %v571
    %v1674 = vunpack.c.l.b16 %v572
    %v1675 = vunpack.c.h.b16 %v572
    %v1676 = vunpack.c.l.b16 %v573
    %v1677 = vunpack.c.h.b16 %v573
    %v1678 = vunpack.c.l.b16 %v574
    %v1679 = vunpack.c.h.b16 %v574
    %v1680 = vunpack.c.l.b16 %v575
    %v1681 = vunpack.c.h.b16 %v575
    %v1682 = vunpack.c.l.b16 %v576
    %v1683 = vunpack.c.h.b16 %v576
    %v1684 = vunpack.c.l.b16 %v577
    %v1685 = vunpack.c.h.b16 %v577
    %v1686 = vunpack.c.l.b16 %v578
    %v1687 = vunpack.c.h.b16 %v578
    %v1688 = vunpack.c.l.b16 %v579
    %v1689 = vunpack.c.h.b16 %v579
    %v1690 = vunpack.c.l.b16 %v580
    %v1691 = vunpack.c.h.b16 %v580
    %v1692 = vunpack.c.l.b16 %v581
    %v1693 = vunpack.c.h.b16 %v581
    %v1694 = vunpack.c.l.b16 %v582
    %v1695 = vunpack.c.h.b16 %v582
    %v1696 = vunpack.c.l.b16 %v583
    %v1697 = vunpack.c.h.b16 %v583
    %v1698 = vunpack.c.l.b16 %v584
    %v1699 = vunpack.c.h.b16 %v584
    %v1700 = vunpack.c.l.b16 %v585
    %v1701 = vunpack.c.h.b16 %v585
    %v1702 = vunpack.c.l.b16 %v586
    %v1703 = vunpack.c.h.b16 %v586
    %v1704 = vunpack.c.l.b16 %v587
    %v1705 = vunpack.c.h.b16 %v587
    %v1706 = vunpack.c.l.b16 %v588
    %v1707 = vunpack.c.h.b16 %v588
    %v1708 = vunpack.c.l.b16 %v589
    %v1709 = vunpack.c.h.b16 %v589
    %v1710 = vunpack.c.l.b16 %v590
    %v1711 = vunpack.c.h.b16 %v590
    %v1712 = vunpack.c.l.b16 %v591
    %v1713 = vunpack.c.h.b16 %v591
    %v1714 = vunpack.c.l.b16 %v592
    %v1715 = vunpack.c.h.b16 %v592
    %v1716 = vunpack.c.l.b16 %v593
    %v1717 = vunpack.c.h.b16 %v593
    %v1718 = vunpack.c.l.b16 %v594
    %v1719 = vunpack.c.h.b16 %v594
    %v1720 = vunpack.c.l.b16 %v595
    %v1721 = vunpack.c.h.b16 %v595
    %v1722 = vunpack.c.l.b16 %v596
    %v1723 = vunpack.c.h.b16 %v596
    %v1724 = vunpack.c.l.b16 %v597
    %v1725 = vunpack.c.h.b16 %v597
    %v1726 = vunpack.c.l.b16 %v598
    %v1727 = vunpack.c.h.b16 %v598
    %v1728 = vunpack.c.l.b16 %v599
    %v1729 = vunpack.c.h.b16 %v599
    %v1730 = vunpack.c.l.b16 %v600
    %v1731 = vunpack.c.h.b16 %v600
    %v1732 = vunpack.c.l.b16 %v601
    %v1733 = vunpack.c.h.b16 %v601
    %v1734 = vunpack.c.l.b16 %v602
    %v1735 = vunpack.c.h.b16 %v602
    %v1736 = vunpack.c.l.b16 %v603
    %v1737 = vunpack.c.h.b16 %v603
    %v1738 = vunpack.c.l.b16 %v604
    %v1739 = vunpack.c.h.b16 %v604
    %v1740 = vunpack.c.l.b16 %v605
    %v1741 = vunpack.c.h.b16 %v605
    %v1742 = vunpack.c.l.b16 %v606
    %v1743 = vunpack.c.h.b16 %v606
    %v1744 = vunpack.c.l.b16 %v607
    %v1745 = vunpack.c.h.b16 %v607
    %v1746 = vunpack.c.l.b16 %v608
    %v1747 = vunpack.c.h.b16 %v608
    %v1748 = vunpack.c.l.b16 %v609
    %v1749 = vunpack.c.h.b16 %v609
    %v1750 = vunpack.c.l.b16 %v610
    %v1751 = vunpack.c.h.b16 %v610
    %v1752 = vunpack.c.l.b16 %v611
    %v1753 = vunpack.c.h.b16 %v611
    %v1754 = vunpack.c.l.b16 %v612
    %v1755 = vunpack.c.h.b16 %v612
    %v1756 = vunpack.c.l.b16 %v613
    %v1757 = vunpack.c.h.b16 %v613
    %v1758 = vunpack.c.l.b16 %v614
    %v1759 = vunpack.c.h.b16 %v614
    %v1760 = vunpack.c.l.b16 %v615
    %v1761 = vunpack.c.h.b16 %v615
    %v1762 = vunpack.c.l.b16 %v616
    %v1763 = vunpack.c.h.b16 %v616
    %v1764 = vunpack.c.l.b16 %v617
    %v1765 = vunpack.c.h.b16 %v617
    %v1766 = vunpack.c.l.b16 %v618
    %v1767 = vunpack.c.h.b16 %v618
    %v1768 = vunpack.c.l.b16 %v619
    %v1769 = vunpack.c.h.b16 %v619
    %v1770 = vunpack.c.l.b16 %v620
    %v1771 = vunpack.c.h.b16 %v620
    %v1772 = vunpack.c.l.b16 %v621
    %v1773 = vunpack.c.h.b16 %v621
    %v1774 = vunpack.c.l.b16 %v622
    %v1775 = vunpack.c.h.b16 %v622
    %v1776 = vunpack.c.l.b16 %v623
    %v1777 = vunpack.c.h.b16 %v623
    %v1778 = vunpack.c.l.b16 %v624
    %v1779 = vunpack.c.h.b16 %v624
    %v1780 = vunpack.c.l.b16 %v625
    %v1781 = vunpack.c.h.b16 %v625
    %v1782 = vunpack.c.l.b16 %v626
    %v1783 = vunpack.c.h.b16 %v626
    %v1784 = vunpack.c.l.b16 %v627
    %v1785 = vunpack.c.h.b16 %v627
    %v1786 = vunpack.c.l.b16 %v628
    %v1787 = vunpack.c.h.b16 %v628
    %v1788 = vunpack.c.l.b16 %v629
    %v1789 = vunpack.c.h.b16 %v629
    %v1790 = vunpack.c.l.b16 %v630
    %v1791 = vunpack.c.h.b16 %v630
    %v1792 = vunpack.c.l.b16 %v631
    %v1793 = vunpack.c.h.b16 %v631
    %v1794 = vunpack.c.l.b16 %v632
    %v1795 = vunpack.c.h.b16 %v632
    %v1796 = vunpack.c.l.b16 %v633
    %v1797 = vunpack.c.h.b16 %v633
    %v1798 = vunpack.c.l.b16 %v634
    %v1799 = vunpack.c.h.b16 %v634
    %v1800 = vunpack.c.l.b16 %v635
    %v1801 = vunpack.c.h.b16 %v635
    %v1802 = vunpack.c.l.b16 %v636
    %v1803 = vunpack.c.h.b16 %v636
    %v1804 = vunpack.c.l.b16 %v637
    %v1805 = vunpack.c.h.b16 %v637
    %v1806 = vunpack.c.l.b16 %v638
    %v1807 = vunpack.c.h.b16 %v638
    %v1808 = vunpack.c.l.b16 %v639
    %v1809 = vunpack.c.h.b16 %v639
    %v1810 = vunpack.c.l.b16 %v640
    %v1811 = vunpack.c.h.b16 %v640
    %v1812 = vunpack.c.l.b16 %v641
    %v1813 = vunpack.c.h.b16 %v641
    %v1814 = vunpack.c.l.b16 %v642
    %v1815 = vunpack.c.h.b16 %v642
    %v1816 = vunpack.c.l.b16 %v643
    %v1817 = vunpack.c.h.b16 %v643
    %v1818 = vunpack.c.l.b16 %v644
    %v1819 = vunpack.c.h.b16 %v644
    %v1820 = vunpack.c.l.b16 %v645
    %v1821 = vunpack.c.h.b16 %v645
    %v1822 = vunpack.c.l.b16 %v646
    %v1823 = vunpack.c.h.b16 %v646
    %v1824 = vunpack.c.l.b16 %v647
    %v1825 = vunpack.c.h.b16 %v647
    %v1826 = vunpack.c.l.b16 %v648
    %v1827 = vunpack.c.h.b16 %v648
    %v1828 = vunpack.c.l.b16 %v649
    %v1829 = vunpack.c.h.b16 %v649
    %v1830 = vunpack.c.l.b16 %v650
    %v1831 = vunpack.c.h.b16 %v650
    %v1832 = vunpack.c.l.b16 %v651
    %v1833 = vunpack.c.h.b16 %v651
    %v1834 = vunpack.c.l.b16 %v652
    %v1835 = vunpack.c.h.b16 %v652
    %v1836 = vunpack.c.l.b16 %v653
    %v1837 = vunpack.c.h.b16 %v653
    %v1838 = vunpack.c.l.b16 %v654
    %v1839 = vunpack.c.h.b16 %v654
    %v1840 = vunpack.c.l.b16 %v655
    %v1841 = vunpack.c.h.b16 %v655
    %v1842 = vunpack.c.l.b16 %v656
    %v1843 = vunpack.c.h.b16 %v656
    %v1844 = vunpack.c.l.b16 %v657
    %v1845 = vunpack.c.h.b16 %v657
    %v1846 = vunpack.c.l.b16 %v658
    %v1847 = vunpack.c.h.b16 %v658
    %v1848 = vunpack.c.l.b16 %v659
    %v1849 = vunpack.c.h.b16 %v659
    %v1850 = vunpack.c.l.b16 %v660
    %v1851 = vunpack.c.h.b16 %v660
    %v1852 = vunpack.c.l.b16 %v661
    %v1853 = vunpack.c.h.b16 %v661
    %v1854 = vunpack.c.l.b16 %v662
    %v1855 = vunpack.c.h.b16 %v662
    %v1856 = vunpack.c.l.b16 %v663
    %v1857 = vunpack.c.h.b16 %v663
    %v1858 = vunpack.c.l.b16 %v664
    %v1859 = vunpack.c.h.b16 %v664
    %v1860 = vunpack.c.l.b16 %v665
    %v1861 = vunpack.c.h.b16 %v665
    %v1862 = vunpack.c.l.b16 %v666
    %v1863 = vunpack.c.h.b16 %v666
    %v1864 = vunpack.c.l.b16 %v667
    %v1865 = vunpack.c.h.b16 %v667
    %v1866 = vunpack.c.l.b16 %v668
    %v1867 = vunpack.c.h.b16 %v668
    %v1868 = vunpack.c.l.b16 %v669
    %v1869 = vunpack.c.h.b16 %v669
    %v1870 = vunpack.c.l.b16 %v670
    %v1871 = vunpack.c.h.b16 %v670
    %v1872 = vunpack.c.l.b16 %v671
    %v1873 = vunpack.c.h.b16 %v671
    %v1874 = vunpack.c.l.b16 %v672
    %v1875 = vunpack.c.h.b16 %v672
    %v1876 = vunpack.c.l.b16 %v673
    %v1877 = vunpack.c.h.b16 %v673
    %v1878 = vunpack.c.l.b16 %v674
    %v1879 = vunpack.c.h.b16 %v674
    %v1880 = vunpack.c.l.b16 %v675
    %v1881 = vunpack.c.h.b16 %v675
    %v1882 = vunpack.c.l.b16 %v676
    %v1883 = vunpack.c.h.b16 %v676
    %v1884 = vunpack.c.l.b16 %v677
    %v1885 = vunpack.c.h.b16 %v677
    %v1886 = vunpack.c.l.b16 %v678
    %v1887 = vunpack.c.h.b16 %v678
    %v1888 = vunpack.c.l.b16 %v679
    %v1889 = vunpack.c.h.b16 %v679
    %v1890 = vunpack.c.l.b16 %v680
    %v1891 = vunpack.c.h.b16 %v680
    %v1892 = vunpack.c.l.b16 %v681
    %v1893 = vunpack.c.h.b16 %v681
    %v1894 = vunpack.c.l.b16 %v682
    %v1895 = vunpack.c.h.b16 %v682
    %v1896 = vunpack.c.l.b16 %v683
    %v1897 = vunpack.c.h.b16 %v683
    %v1898 = vunpack.c.l.b16 %v684
    %v1899 = vunpack.c.h.b16 %v684
    %v1900 = vunpack.c.l.b16 %v685
    %v1901 = vunpack.c.h.b16 %v685
    %v1902 = vunpack.c.l.b16 %v686
    %v1903 = vunpack.c.h.b16 %v686
    %v1904 = vunpack.c.l.b16 %v687
    %v1905 = vunpack.c.h.b16 %v687
    %v1906 = vunpack.c.l.b16 %v688
    %v1907 = vunpack.c.h.b16 %v688
    %v1908 = vunpack.c.l.b16 %v689
    %v1909 = vunpack.c.h.b16 %v689
    %v1910 = vunpack.c.l.b16 %v690
    %v1911 = vunpack.c.h.b16 %v690
    %v1912 = vunpack.c.l.b16 %v691
    %v1913 = vunpack.c.h.b16 %v691
    %v1914 = vunpack.c.l.b16 %v692
    %v1915 = vunpack.c.h.b16 %v692
    %v1916 = vunpack.c.l.b16 %v693
    %v1917 = vunpack.c.h.b16 %v693
    %v1918 = vunpack.c.l.b16 %v694
    %v1919 = vunpack.c.h.b16 %v694
    %v1920 = vunpack.c.l.b16 %v695
    %v1921 = vunpack.c.h.b16 %v695
    %v1922 = vunpack.c.l.b16 %v696
    %v1923 = vunpack.c.h.b16 %v696
    %v1924 = vunpack.c.l.b16 %v697
    %v1925 = vunpack.c.h.b16 %v697
    %v1926 = vunpack.c.l.b16 %v698
    %v1927 = vunpack.c.h.b16 %v698
    %v1928 = vunpack.c.l.b16 %v699
    %v1929 = vunpack.c.h.b16 %v699
    %v1930 = vunpack.c.l.b16 %v700
    %v1931 = vunpack.c.h.b16 %v700
    %v1932 = vunpack.c.l.b16 %v701
    %v1933 = vunpack.c.h.b16 %v701
    %v1934 = vunpack.c.l.b16 %v702
    %v1935 = vunpack.c.h.b16 %v702
    %v1936 = vunpack.c.l.b16 %v703
    %v1937 = vunpack.c.h.b16 %v703
    %v1938 = vunpack.c.l.b16 %v704
    %v1939 = vunpack.c.h.b16 %v704
    %v1940 = vunpack.c.l.b16 %v705
    %v1941 = vunpack.c.h.b16 %v705
    %v1942 = vunpack.c.l.b16 %v706
    %v1943 = vunpack.c.h.b16 %v706
    %v1944 = vunpack.c.l.b16 %v707
    %v1945 = vunpack.c.h.b16 %v707
    %v1946 = vunpack.c.l.b16 %v708
    %v1947 = vunpack.c.h.b16 %v708
    %v1948 = vunpack.c.l.b16 %v709
    %v1949 = vunpack.c.h.b16 %v709
    %v1950 = vunpack.c.l.b16 %v710
    %v1951 = vunpack.c.h.b16 %v710
    %v1952 = vunpack.c.l.b16 %v711
    %v1953 = vunpack.c.h.b16 %v711
    %v1954 = vunpack.c.l.b16 %v712
    %v1955 = vunpack.c.h.b16 %v712
    %v1956 = vunpack.c.l.b16 %v713
    %v1957 = vunpack.c.h.b16 %v713
    %v1958 = vunpack.c.l.b16 %v714
    %v1959 = vunpack.c.h.b16 %v714
    %v1960 = vunpack.c.l.b16 %v715
    %v1961 = vunpack.c.h.b16 %v715
    %v1962 = vunpack.c.l.b16 %v716
    %v1963 = vunpack.c.h.b16 %v716
    %v1964 = vunpack.c.l.b16 %v717
    %v1965 = vunpack.c.h.b16 %v717
    %v1966 = vunpack.c.l.b16 %v718
    %v1967 = vunpack.c.h.b16 %v718
    %v1968 = vunpack.c.l.b16 %v719
    %v1969 = vunpack.c.h.b16 %v719
    %v1970 = vunpack.c.l.b16 %v720
    %v1971 = vunpack.c.h.b16 %v720
    %v1972 = vunpack.c.l.b16 %v721
    %v1973 = vunpack.c.h.b16 %v721
    %v1974 = vunpack.c.l.b16 %v722
    %v1975 = vunpack.c.h.b16 %v722
    %v1976 = vunpack.c.l.b16 %v723
    %v1977 = vunpack.c.h.b16 %v723
    %v1978 = vunpack.c.l.b16 %v724
    %v1979 = vunpack.c.h.b16 %v724
    %v1980 = vunpack.c.l.b16 %v725
    %v1981 = vunpack.c.h.b16 %v725
    %v1982 = vunpack.c.l.b16 %v726
    %v1983 = vunpack.c.h.b16 %v726
    %v1984 = vunpack.c.l.b16 %v727
    %v1985 = vunpack.c.h.b16 %v727
    %v1986 = vunpack.c.l.b16 %v728
    %v1987 = vunpack.c.h.b16 %v728
    %v1988 = vunpack.c.l.b16 %v729
    %v1989 = vunpack.c.h.b16 %v729
    %v1990 = vunpack.c.l.b16 %v730
    %v1991 = vunpack.c.h.b16 %v730
    %v1992 = vunpack.c.l.b16 %v731
    %v1993 = vunpack.c.h.b16 %v731
    %v1994 = vunpack.c.l.b16 %v732
    %v1995 = vunpack.c.h.b16 %v732
    %v1996 = vunpack.c.l.b16 %v733
    %v1997 = vunpack.c.h.b16 %v733
    %v1998 = vunpack.c.l.b16 %v734
    %v1999 = vunpack.c.h.b16 %v734
    %v2000 = vunpack.c.l.b16 %v735
    %v2001 = vunpack.c.h.b16 %v735
    %v2002 = vunpack.c.l.b16 %v736
    %v2003 = vunpack.c.h.b16 %v736
    %v2004 = vunpack.c.l.b16 %v737
    %v2005 = vunpack.c.h.b16 %v737
    %v2006 = vunpack.c.l.b16 %v738
    %v2007 = vunpack.c.h.b16 %v738
    %v2008 = vunpack.c.l.b16 %v739
    %v2009 = vunpack.c.h.b16 %v739
    %v2010 = vunpack.c.l.b16 %v740
    %v2011 = vunpack.c.h.b16 %v740
    %v2012 = vunpack.c.l.b16 %v741
    %v2013 = vunpack.c.h.b16 %v741
    %v2014 = vunpack.c.l.b16 %v742
    %v2015 = vunpack.c.h.b16 %v742
    %v2016 = vunpack.c.l.b16 %v743
    %v2017 = vunpack.c.h.b16 %v743
    %v2018 = vunpack.c.l.b16 %v744
    %v2019 = vunpack.c.h.b16 %v744
    %v2020 = vunpack.c.l.b16 %v745
    %v2021 = vunpack.c.h.b16 %v745
    %v2022 = vunpack.c.l.b16 %v746
    %v2023 = vunpack.c.h.b16 %v746
    %v2024 = vunpack.c.l.b16 %v747
    %v2025 = vunpack.c.h.b16 %v747
    %v2026 = vunpack.c.l.b16 %v748
    %v2027 = vunpack.c.h.b16 %v748
    %v2028 = vunpack.c.l.b16 %v749
    %v2029 = vunpack.c.h.b16 %v749
    %v2030 = vunpack.c.l.b16 %v750
    %v2031 = vunpack.c.h.b16 %v750
    %v2032 = vunpack.c.l.b16 %v751
    %v2033 = vunpack.c.h.b16 %v751
    %v2034 = vunpack.c.l.b16 %v752
    %v2035 = vunpack.c.h.b16 %v752
    %v2036 = vunpack.c.l.b16 %v753
    %v2037 = vunpack.c.h.b16 %v753
    %v2038 = vunpack.c.l.b16 %v754
    %v2039 = vunpack.c.h.b16 %v754
    %v2040 = vunpack.c.l.b16 %v755
    %v2041 = vunpack.c.h.b16 %v755
    %v2042 = vunpack.c.l.b16 %v756
    %v2043 = vunpack.c.h.b16 %v756
    %v2044 = vunpack.c.l.b16 %v757
    %v2045 = vunpack.c.h.b16 %v757
    %v2046 = vunpack.c.l.b16 %v758
    %v2047 = vunpack.c.h.b16 %v758
    %v2048 = vunpack.c.l.b16 %v759
    %v2049 = vunpack.c.h.b16 %v759
    %v2050 = vunpack.c.l.b16 %v760
    %v2051 = vunpack.c.h.b16 %v760
    %v2052 = vunpack.c.l.b16 %v761
    %v2053 = vunpack.c.h.b16 %v761
    %v2054 = vunpack.c.l.b16 %v762
    %v2055 = vunpack.c.h.b16 %v762
    %v2056 = vunpack.c.l.b16 %v763
    %v2057 = vunpack.c.h.b16 %v763
    %v2058 = vunpack.c.l.b16 %v764
    %v2059 = vunpack.c.h.b16 %v764
    %v2060 = vunpack.c.l.b16 %v765
    %v2061 = vunpack.c.h.b16 %v765
    %v2062 = vunpack.c.l.b16 %v766
    %v2063 = vunpack.c.h.b16 %v766
    %v2064 = vunpack.c.l.b16 %v767
    %v2065 = vunpack.c.h.b16 %v767
    %v2066 = vunpack.c.l.b16 %v768
    %v2067 = vunpack.c.h.b16 %v768
    %v2068 = vunpack.c.l.b16 %v769
    %v2069 = vunpack.c.h.b16 %v769
    %v2070 = vunpack.c.l.b16 %v770
    %v2071 = vunpack.c.h.b16 %v770
    %v2072 = vunpack.c.l.b16 %v771
    %v2073 = vunpack.c.h.b16 %v771
    %v2074 = vunpack.c.l.b16 %v772
    %v2075 = vunpack.c.h.b16 %v772
    %v2076 = vunpack.c.l.b16 %v773
    %v2077 = vunpack.c.h.b16 %v773
    %v2078 = vunpack.c.l.b16 %v774
    %v2079 = vunpack.c.h.b16 %v774
    %v2080 = vunpack.c.l.b16 %v775
    %v2081 = vunpack.c.h.b16 %v775
    %v2082 = vunpack.c.l.b16 %v776
    %v2083 = vunpack.c.h.b16 %v776
    %v2084 = vunpack.c.l.b16 %v777
    %v2085 = vunpack.c.h.b16 %v777
    %v2086 = vunpack.c.l.b16 %v778
    %v2087 = vunpack.c.h.b16 %v778
    %v2088 = vunpack.c.l.b16 %v779
    %v2089 = vunpack.c.h.b16 %v779
    %v2090 = vunpack.c.l.b16 %v780
    %v2091 = vunpack.c.h.b16 %v780
    %v2092 = vunpack.c.l.b16 %v781
    %v2093 = vunpack.c.h.b16 %v781
    %v2094 = vunpack.c.l.b16 %v782
    %v2095 = vunpack.c.h.b16 %v782
    %v2096 = vunpack.c.l.b16 %v783
    %v2097 = vunpack.c.h.b16 %v783
    %v2098 = vunpack.c.l.b16 %v784
    %v2099 = vunpack.c.h.b16 %v784
    %v2100 = vunpack.c.l.b16 %v785
    %v2101 = vunpack.c.h.b16 %v785
    %v2102 = vunpack.c.l.b16 %v786
    %v2103 = vunpack.c.h.b16 %v786
    %v2104 = vunpack.c.l.b16 %v787
    %v2105 = vunpack.c.h.b16 %v787
    %v2106 = vunpack.c.l.b16 %v788
    %v2107 = vunpack.c.h.b16 %v788
    %v2108 = vunpack.c.l.b16 %v789
    %v2109 = vunpack.c.h.b16 %v789
    %v2110 = vunpack.c.l.b16 %v790
    %v2111 = vunpack.c.h.b16 %v790
    %v2112 = vunpack.c.l.b16 %v791
    %v2113 = vunpack.c.h.b16 %v791
    %v2114 = vunpack.c.l.b16 %v792
    %v2115 = vunpack.c.h.b16 %v792
    %v2116 = vunpack.c.l.b16 %v793
    %v2117 = vunpack.c.h.b16 %v793
    %v2118 = vunpack.c.l.b16 %v794
    %v2119 = vunpack.c.h.b16 %v794
    %v2120 = vunpack.c.l.b16 %v795
    %v2121 = vunpack.c.h.b16 %v795
    %v2122 = vunpack.c.l.b16 %v796
    %v2123 = vunpack.c.h.b16 %v796
    %v2124 = vunpack.c.l.b16 %v797
    %v2125 = vunpack.c.h.b16 %v797
    %v2126 = vunpack.c.l.b16 %v798
    %v2127 = vunpack.c.h.b16 %v798
    %v2128 = vunpack.c.l.b16 %v799
    %v2129 = vunpack.c.h.b16 %v799
    %v2130 = vunpack.c.l.b16 %v800
    %v2131 = vunpack.c.h.b16 %v800
    %v2132 = vunpack.c.l.b16 %v801
    %v2133 = vunpack.c.h.b16 %v801
    %v2134 = vunpack.c.l.b16 %v802
    %v2135 = vunpack.c.h.b16 %v802
    %v2136 = vunpack.c.l.b16 %v803
    %v2137 = vunpack.c.h.b16 %v803
    %v2138 = vunpack.c.l.b16 %v804
    %v2139 = vunpack.c.h.b16 %v804
    %v2140 = vunpack.c.l.b16 %v805
    %v2141 = vunpack.c.h.b16 %v805
    %v2142 = vunpack.c.l.b16 %v806
    %v2143 = vunpack.c.h.b16 %v806
    %v2144 = vunpack.c.l.b16 %v807
    %v2145 = vunpack.c.h.b16 %v807
    %v2146 = vunpack.c.l.b16 %v808
    %v2147 = vunpack.c.h.b16 %v808
    %v2148 = vunpack.c.l.b16 %v809
    %v2149 = vunpack.c.h.b16 %v809
    %v2150 = vunpack.c.l.b16 %v810
    %v2151 = vunpack.c.h.b16 %v810
    %v2152 = vunpack.c.l.b16 %v811
    %v2153 = vunpack.c.h.b16 %v811
    %v2154 = vunpack.c.l.b16 %v812
    %v2155 = vunpack.c.h.b16 %v812
    %v2156 = vunpack.c.l.b16 %v813
    %v2157 = vunpack.c.h.b16 %v813
    %v2158 = vpack.c.b16 %v1270, %v1262
    %v2159 = vpack.c.b16 %v1271, %v1263
    %v2160 = vpack.c.b16 %v1272, %v1264
    %v2161 = vpack.c.b16 %v1273, %v1265
    %v2162 = vpack.c.b16 %v1274, %v1266
    %v2163 = vpack.c.b16 %v1275, %v1267
    %v2164 = vpack.c.b16 %v1276, %v1268
    %v2165 = vpack.c.b16 %v1277, %v1269
    %v2166 = vpack.c.b16 %v1286, %v1278
    %v2167 = vpack.c.b16 %v1287, %v1279
    %v2168 = vpack.c.b16 %v1288, %v1280
    %v2169 = vpack.c.b16 %v1289, %v1281
    %v2170 = vpack.c.b16 %v1290, %v1282
    %v2171 = vpack.c.b16 %v1291, %v1283
    %v2172 = vpack.c.b16 %v1292, %v1284
    %v2173 = vpack.c.b16 %v1293, %v1285
    %v2174 = vpack.c.b16 %v1302, %v1294
    %v2175 = vpack.c.b16 %v1303, %v1295
    %v2176 = vpack.c.b16 %v1304, %v1296
    %v2177 = vpack.c.b16 %v1305, %v1297
    %v2178 = vpack.c.b16 %v1306, %v1298
    %v2179 = vpack.c.b16 %v1307, %v1299
    %v2180 = vpack.c.b16 %v1308, %v1300
    %v2181 = vpack.c.b16 %v1309, %v1301
    %v2182 = vpack.c.b16 %v1318, %v1310
    %v2183 = vpack.c.b16 %v1319, %v1311
    %v2184 = vpack.c.b16 %v1320, %v1312
    %v2185 = vpack.c.b16 %v1321, %v1313
    %v2186 = vpack.c.b16 %v1322, %v1314
    %v2187 = vpack.c.b16 %v1323, %v1315
    %v2188 = vpack.c.b16 %v1324, %v1316
    %v2189 = vpack.c.b16 %v1325, %v1317
    %v2190 = vpack.c.b16 %v1334, %v1326
    %v2191 = vpack.c.b16 %v1335, %v1327
    %v2192 = vpack.c.b16 %v1336, %v1328
    %v2193 = vpack.c.b16 %v1337, %v1329
    %v2194 = vpack.c.b16 %v1338, %v1330
    %v2195 = vpack.c.b16 %v1339, %v1331
    %v2196 = vpack.c.b16 %v1340, %v1332
    %v2197 = vpack.c.b16 %v1341, %v1333
    %v2198 = vpack.c.b16 %v1350, %v1342
    %v2199 = vpack.c.b16 %v1351, %v1343
    %v2200 = vpack.c.b16 %v1352, %v1344
    %v2201 = vpack.c.b16 %v1353, %v1345
    %v2202 = vpack.c.b16 %v1354, %v1346
    %v2203 = vpack.c.b16 %v1355, %v1347
    %v2204 = vpack.c.b16 %v1356, %v1348
    %v2205 = vpack.c.b16 %v1357, %v1349
    %v2206 = vpack.c.b16 %v1366, %v1358
    %v2207 = vpack.c.b16 %v1367, %v1359
    %v2208 = vpack.c.b16 %v1368, %v1360
    %v2209 = vpack.c.b16 %v1369, %v1361
    %v2210 = vpack.c.b16 %v1370, %v1362
    %v2211 = vpack.c.b16 %v1371, %v1363
    %v2212 = vpack.c.b16 %v1372, %v1364
    %v2213 = vpack.c.b16 %v1373, %v1365
    %v2214 = vpack.c.b16 %v1382, %v1374
    %v2215 = vpack.c.b16 %v1383, %v1375
    %v2216 = vpack.c.b16 %v1384, %v1376
    %v2217 = vpack.c.b16 %v1385, %v1377
    %v2218 = vpack.c.b16 %v1386, %v1378
    %v2219 = vpack.c.b16 %v1387, %v1379
    %v2220 = vpack.c.b16 %v1388, %v1380
    %v2221 = vpack.c.b16 %v1389, %v1381
    %v2222 = vpack.c.b16 %v1398, %v1390
    %v2223 = vpack.c.b16 %v1399, %v1391
    %v2224 = vpack.c.b16 %v1400, %v1392
    %v2225 = vpack.c.b16 %v1401, %v1393
    %v2226 = vpack.c.b16 %v1402, %v1394
    %v2227 = vpack.c.b16 %v1403, %v1395
    %v2228 = vpack.c.b16 %v1404, %v1396
    %v2229 = vpack.c.b16 %v1405, %v1397
    %v2230 = vpack.c.b16 %v1414, %v1406
    %v2231 = vpack.c.b16 %v1415, %v1407
    %v2232 = vpack.c.b16 %v1416, %v1408
    %v2233 = vpack.c.b16 %v1417, %v1409
    %v2234 = vpack.c.b16 %v1418, %v1410
    %v2235 = vpack.c.b16 %v1419, %v1411
    %v2236 = vpack.c.b16 %v1420, %v1412
    %v2237 = vpack.c.b16 %v1421, %v1413
    %v2238 = vpack.c.b16 %v1430, %v1422
    %v2239 = vpack.c.b16 %v1431, %v1423
    %v2240 = vpack.c.b16 %v1432, %v1424
    %v2241 = vpack.c.b16 %v1433, %v1425
    %v2242 = vpack.c.b16 %v1434, %v1426
    %v2243 = vpack.c.b16 %v1435, %v1427
    %v2244 = vpack.c.b16 %v1436, %v1428
    %v2245 = vpack.c.b16 %v1437, %v1429
    %v2246 = vpack.c.b16 %v1446, %v1438
    %v2247 = vpack.c.b16 %v1447, %v1439
    %v2248 = vpack.c.b16 %v1448, %v1440
    %v2249 = vpack.c.b16 %v1449, %v1441
    %v2250 = vpack.c.b16 %v1450, %v1442
    %v2251 = vpack.c.b16 %v1451, %v1443
    %v2252 = vpack.c.b16 %v1452, %v1444
    %v2253 = vpack.c.b16 %v1453, %v1445
    %v2254 = vpack.c.b16 %v1462, %v1454
    %v2255 = vpack.c.b16 %v1463, %v1455
    %v2256 = vpack.c.b16 %v1464, %v1456
    %v2257 = vpack.c.b16 %v1465, %v1457
    %v2258 = vpack.c.b16 %v1466, %v1458
    %v2259 = vpack.c.b16 %v1467, %v1459
    %v2260 = vpack.c.b16 %v1468, %v1460
    %v2261 = vpack.c.b16 %v1469, %v1461
    %v2262 = vpack.c.b16 %v1478, %v1470
    %v2263 = vpack.c.b16 %v1479, %v1471
    %v2264 = vpack.c.b16 %v1480, %v1472
    %v2265 = vpack.c.b16 %v1481, %v1473
    %v2266 = vpack.c.b16 %v1482, %v1474
    %v2267 = vpack.c.b16 %v1483, %v1475
    %v2268 = vpack.c.b16 %v1484, %v1476
    %v2269 = vpack.c.b16 %v1485, %v1477
    %v2270 = vpack.c.b16 %v1494, %v1486
    %v2271 = vpack.c.b16 %v1495, %v1487
    %v2272 = vpack.c.b16 %v1496, %v1488
    %v2273 = vpack.c.b16 %v1497, %v1489
    %v2274 = vpack.c.b16 %v1498, %v1490
    %v2275 = vpack.c.b16 %v1499, %v1491
    %v2276 = vpack.c.b16 %v1500, %v1492
    %v2277 = vpack.c.b16 %v1501, %v1493
    %v2278 = vpack.c.b16 %v1510, %v1502
    %v2279 = vpack.c.b16 %v1511, %v1503
    %v2280 = vpack.c.b16 %v1512, %v1504
    %v2281 = vpack.c.b16 %v1513, %v1505
    %v2282 = vpack.c.b16 %v1514, %v1506
    %v2283 = vpack.c.b16 %v1515, %v1507
    %v2284 = vpack.c.b16 %v1516, %v1508
    %v2285 = vpack.c.b16 %v1517, %v1509
    %v2286 = vpack.c.b16 %v1526, %v1518
    %v2287 = vpack.c.b16 %v1527, %v1519
    %v2288 = vpack.c.b16 %v1528, %v1520
    %v2289 = vpack.c.b16 %v1529, %v1521
    %v2290 = vpack.c.b16 %v1530, %v1522
    %v2291 = vpack.c.b16 %v1531, %v1523
    %v2292 = vpack.c.b16 %v1532, %v1524
    %v2293 = vpack.c.b16 %v1533, %v1525
    %v2294 = vpack.c.b16 %v1542, %v1534
    %v2295 = vpack.c.b16 %v1543, %v1535
    %v2296 = vpack.c.b16 %v1544, %v1536
    %v2297 = vpack.c.b16 %v1545, %v1537
    %v2298 = vpack.c.b16 %v1546, %v1538
    %v2299 = vpack.c.b16 %v1547, %v1539
    %v2300 = vpack.c.b16 %v1548, %v1540
    %v2301 = vpack.c.b16 %v1549, %v1541
    %v2302 = vpack.c.b16 %v1558, %v1550
    %v2303 = vpack.c.b16 %v1559, %v1551
    %v2304 = vpack.c.b16 %v1560, %v1552
    %v2305 = vpack.c.b16 %v1561, %v1553
    %v2306 = vpack.c.b16 %v1562, %v1554
    %v2307 = vpack.c.b16 %v1563, %v1555
    %v2308 = vpack.c.b16 %v1564, %v1556
    %v2309 = vpack.c.b16 %v1565, %v1557
    %v2310 = vpack.c.b16 %v1574, %v1566
    %v2311 = vpack.c.b16 %v1575, %v1567
    %v2312 = vpack.c.b16 %v1576, %v1568
    %v2313 = vpack.c.b16 %v1577, %v1569
    %v2314 = vpack.c.b16 %v1578, %v1570
    %v2315 = vpack.c.b16 %v1579, %v1571
    %v2316 = vpack.c.b16 %v1580, %v1572
    %v2317 = vpack.c.b16 %v1581, %v1573
    %v2318 = vpack.c.b16 %v1590, %v1582
    %v2319 = vpack.c.b16 %v1591, %v1583
    %v2320 = vpack.c.b16 %v1592, %v1584
    %v2321 = vpack.c.b16 %v1593, %v1585
    %v2322 = vpack.c.b16 %v1594, %v1586
    %v2323 = vpack.c.b16 %v1595, %v1587
    %v2324 = vpack.c.b16 %v1596, %v1588
    %v2325 = vpack.c.b16 %v1597, %v1589
    %v2326 = vpack.c.b16 %v1606, %v1598
    %v2327 = vpack.c.b16 %v1607, %v1599
    %v2328 = vpack.c.b16 %v1608, %v1600
    %v2329 = vpack.c.b16 %v1609, %v1601
    %v2330 = vpack.c.b16 %v1610, %v1602
    %v2331 = vpack.c.b16 %v1611, %v1603
    %v2332 = vpack.c.b16 %v1612, %v1604
    %v2333 = vpack.c.b16 %v1613, %v1605
    %v2334 = vpack.c.b16 %v1622, %v1614
    %v2335 = vpack.c.b16 %v1623, %v1615
    %v2336 = vpack.c.b16 %v1624, %v1616
    %v2337 = vpack.c.b16 %v1625, %v1617
    %v2338 = vpack.c.b16 %v1626, %v1618
    %v2339 = vpack.c.b16 %v1627, %v1619
    %v2340 = vpack.c.b16 %v1628, %v1620
    %v2341 = vpack.c.b16 %v1629, %v1621
    %v2342 = vpack.c.b16 %v1638, %v1630
    %v2343 = vpack.c.b16 %v1639, %v1631
    %v2344 = vpack.c.b16 %v1640, %v1632
    %v2345 = vpack.c.b16 %v1641, %v1633
    %v2346 = vpack.c.b16 %v1642, %v1634
    %v2347 = vpack.c.b16 %v1643, %v1635
    %v2348 = vpack.c.b16 %v1644, %v1636
    %v2349 = vpack.c.b16 %v1645, %v1637
    %v2350 = vpack.c.b16 %v1654, %v1646
    %v2351 = vpack.c.b16 %v1655, %v1647
    %v2352 = vpack.c.b16 %v1656, %v1648
    %v2353 = vpack.c.b16 %v1657, %v1649
    %v2354 = vpack.c.b16 %v1658, %v1650
    %v2355 = vpack.c.b16 %v1659, %v1651
    %v2356 = vpack.c.b16 %v1660, %v1652
    %v2357 = vpack.c.b16 %v1661, %v1653
    %v2358 = vpack.c.b16 %v1670, %v1662
    %v2359 = vpack.c.b16 %v1671, %v1663
    %v2360 = vpack.c.b16 %v1672, %v1664
    %v2361 = vpack.c.b16 %v1673, %v1665
    %v2362 = vpack.c.b16 %v1674, %v1666
    %v2363 = vpack.c.b16 %v1675, %v1667
    %v2364 = vpack.c.b16 %v1676, %v1668
    %v2365 = vpack.c.b16 %v1677, %v1669
    %v2366 = vpack.c.b16 %v1686, %v1678
    %v2367 = vpack.c.b16 %v1687, %v1679
    %v2368 = vpack.c.b16 %v1688, %v1680
    %v2369 = vpack.c.b16 %v1689, %v1681
    %v2370 = vpack.c.b16 %v1690, %v1682
    %v2371 = vpack.c.b16 %v1691, %v1683
    %v2372 = vpack.c.b16 %v1692, %v1684
    %v2373 = vpack.c.b16 %v1693, %v1685
    %v2374 = vpack.c.b16 %v1702, %v1694
    %v2375 = vpack.c.b16 %v1703, %v1695
    %v2376 = vpack.c.b16 %v1704, %v1696
    %v2377 = vpack.c.b16 %v1705, %v1697
    %v2378 = vpack.c.b16 %v1706, %v1698
    %v2379 = vpack.c.b16 %v1707, %v1699
    %v2380 = vpack.c.b16 %v1708, %v1700
    %v2381 = vpack.c.b16 %v1709, %v1701
    %v2382 = vpack.c.b16 %v1718, %v1710
    %v2383 = vpack.c.b16 %v1719, %v1711
    %v2384 = vpack.c.b16 %v1720, %v1712
    %v2385 = vpack.c.b16 %v1721, %v1713
    %v2386 = vpack.c.b16 %v1722, %v1714
    %v2387 = vpack.c.b16 %v1723, %v1715
    %v2388 = vpack.c.b16 %v1724, %v1716
    %v2389 = vpack.c.b16 %v1725, %v1717
    %v2390 = vpack.c.b16 %v1734, %v1726
    %v2391 = vpack.c.b16 %v1735, %v1727
    %v2392 = vpack.c.b16 %v1736, %v1728
    %v2393 = vpack.c.b16 %v1737, %v1729
    %v2394 = vpack.c.b16 %v1738, %v1730
    %v2395 = vpack.c.b16 %v1739, %v1731
    %v2396 = vpack.c.b16 %v1740, %v1732
    %v2397 = vpack.c.b16 %v1741, %v1733
    %v2398 = vpack.c.b16 %v1750, %v1742
    %v2399 = vpack.c.b16 %v1751, %v1743
    %v2400 = vpack.c.b16 %v1752, %v1744
    %v2401 = vpack.c.b16 %v1753, %v1745
    %v2402 = vpack.c.b16 %v1754, %v1746
    %v2403 = vpack.c.b16 %v1755, %v1747
    %v2404 = vpack.c.b16 %v1756, %v1748
    %v2405 = vpack.c.b16 %v1757, %v1749
    %v2406 = vpack.c.b16 %v1766, %v1758
    %v2407 = vpack.c.b16 %v1767, %v1759
    %v2408 = vpack.c.b16 %v1768, %v1760
    %v2409 = vpack.c.b16 %v1769, %v1761
    %v2410 = vpack.c.b16 %v1770, %v1762
    %v2411 = vpack.c.b16 %v1771, %v1763
    %v2412 = vpack.c.b16 %v1772, %v1764
    %v2413 = vpack.c.b16 %v1773, %v1765
    %v2414 = vpack.c.b16 %v1782, %v1774
    %v2415 = vpack.c.b16 %v1783, %v1775
    %v2416 = vpack.c.b16 %v1784, %v1776
    %v2417 = vpack.c.b16 %v1785, %v1777
    %v2418 = vpack.c.b16 %v1786, %v1778
    %v2419 = vpack.c.b16 %v1787, %v1779
    %v2420 = vpack.c.b16 %v1788, %v1780
    %v2421 = vpack.c.b16 %v1789, %v1781
    %v2422 = vpack.c.b16 %v1798, %v1790
    %v2423 = vpack.c.b16 %v1799, %v1791
    %v2424 = vpack.c.b16 %v1800, %v1792
    %v2425 = vpack.c.b16 %v1801, %v1793
    %v2426 = vpack.c.b16 %v1802, %v1794
    %v2427 = vpack.c.b16 %v1803, %v1795
    %v2428 = vpack.c.b16 %v1804, %v1796
    %v2429 = vpack.c.b16 %v1805, %v1797
    %v2430 = vpack.c.b16 %v1814, %v1806
    %v2431 = vpack.c.b16 %v1815, %v1807
    %v2432 = vpack.c.b16 %v1816, %v1808
    %v2433 = vpack.c.b16 %v1817, %v1809
    %v2434 = vpack.c.b16 %v1818, %v1810
    %v2435 = vpack.c.b16 %v1819, %v1811
    %v2436 = vpack.c.b16 %v1820, %v1812
    %v2437 = vpack.c.b16 %v1821, %v1813
    %v2438 = vpack.c.b16 %v1830, %v1822
    %v2439 = vpack.c.b16 %v1831, %v1823
    %v2440 = vpack.c.b16 %v1832, %v1824
    %v2441 = vpack.c.b16 %v1833, %v1825
    %v2442 = vpack.c.b16 %v1834, %v1826
    %v2443 = vpack.c.b16 %v1835, %v1827
    %v2444 = vpack.c.b16 %v1836, %v1828
    %v2445 = vpack.c.b16 %v1837, %v1829
    %v2446 = vpack.c.b16 %v1846, %v1838
    %v2447 = vpack.c.b16 %v1847, %v1839
    %v2448 = vpack.c.b16 %v1848, %v1840
    %v2449 = vpack.c.b16 %v1849, %v1841
    %v2450 = vpack.c.b16 %v1850, %v1842
    %v2451 = vpack.c.b16 %v1851, %v1843
    %v2452 = vpack.c.b16 %v1852, %v1844
    %v2453 = vpack.c.b16 %v1853, %v1845
    %v2454 = vpack.c.b16 %v1862, %v1854
    %v2455 = vpack.c.b16 %v1863, %v1855
    %v2456 = vpack.c.b16 %v1864, %v1856
    %v2457 = vpack.c.b16 %v1865, %v1857
    %v2458 = vpack.c.b16 %v1866, %v1858
    %v2459 = vpack.c.b16 %v1867, %v1859
    %v2460 = vpack.c.b16 %v1868, %v1860
    %v2461 = vpack.c.b16 %v1869, %v1861
    %v2462 = vpack.c.b16 %v1878, %v1870
    %v2463 = vpack.c.b16 %v1879, %v1871
    %v2464 = vpack.c.b16 %v1880, %v1872
    %v2465 = vpack.c.b16 %v1881, %v1873
    %v2466 = vpack.c.b16 %v1882, %v1874
    %v2467 = vpack.c.b16 %v1883, %v1875
    %v2468 = vpack.c.b16 %v1884, %v1876
    %v2469 = vpack.c.b16 %v1885, %v1877
    %v2470 = vpack.c.b16 %v1894, %v1886
    %v2471 = vpack.c.b16 %v1895, %v1887
    %v2472 = vpack.c.b16 %v1896, %v1888
    %v2473 = vpack.c.b16 %v1897, %v1889
    %v2474 = vpack.c.b16 %v1898, %v1890
    %v2475 = vpack.c.b16 %v1899, %v1891
    %v2476 = vpack.c.b16 %v1900, %v1892
    %v2477 = vpack.c.b16 %v1901, %v1893
    %v2478 = vpack.c.b16 %v1910, %v1902
    %v2479 = vpack.c.b16 %v1911, %v1903
    %v2480 = vpack.c.b16 %v1912, %v1904
    %v2481 = vpack.c.b16 %v1913, %v1905
    %v2482 = vpack.c.b16 %v1914, %v1906
    %v2483 = vpack.c.b16 %v1915, %v1907
    %v2484 = vpack.c.b16 %v1916, %v1908
    %v2485 = vpack.c.b16 %v1917, %v1909
    %v2486 = vpack.c.b16 %v1926, %v1918
    %v2487 = vpack.c.b16 %v1927, %v1919
    %v2488 = vpack.c.b16 %v1928, %v1920
    %v2489 = vpack.c.b16 %v1929, %v1921
    %v2490 = vpack.c.b16 %v1930, %v1922
    %v2491 = vpack.c.b16 %v1931, %v1923
    %v2492 = vpack.c.b16 %v1932, %v1924
    %v2493 = vpack.c.b16 %v1933, %v1925
    %v2494 = vpack.c.b16 %v1942, %v1934
    %v2495 = vpack.c.b16 %v1943, %v1935
    %v2496 = vpack.c.b16 %v1944, %v1936
    %v2497 = vpack.c.b16 %v1945, %v1937
    %v2498 = vpack.c.b16 %v1946, %v1938
    %v2499 = vpack.c.b16 %v1947, %v1939
    %v2500 = vpack.c.b16 %v1948, %v1940
    %v2501 = vpack.c.b16 %v1949, %v1941
    %v2502 = vpack.c.b16 %v1958, %v1950
    %v2503 = vpack.c.b16 %v1959, %v1951
    %v2504 = vpack.c.b16 %v1960, %v1952
    %v2505 = vpack.c.b16 %v1961, %v1953
    %v2506 = vpack.c.b16 %v1962, %v1954
    %v2507 = vpack.c.b16 %v1963, %v1955
    %v2508 = vpack.c.b16 %v1964, %v1956
    %v2509 = vpack.c.b16 %v1965, %v1957
    %v2510 = vpack.c.b16 %v1974, %v1966
    %v2511 = vpack.c.b16 %v1975, %v1967
    %v2512 = vpack.c.b16 %v1976, %v1968
    %v2513 = vpack.c.b16 %v1977, %v1969
    %v2514 = vpack.c.b16 %v1978, %v1970
    %v2515 = vpack.c.b16 %v1979, %v1971
    %v2516 = vpack.c.b16 %v1980, %v1972
    %v2517 = vpack.c.b16 %v1981, %v1973
    %v2518 = vpack.c.b16 %v1990, %v1982
    %v2519 = vpack.c.b16 %v1991, %v1983
    %v2520 = vpack.c.b16 %v1992, %v1984
    %v2521 = vpack.c.b16 %v1993, %v1985
    %v2522 = vpack.c.b16 %v1994, %v1986
    %v2523 = vpack.c.b16 %v1995, %v1987
    %v2524 = vpack.c.b16 %v1996, %v1988
    %v2525 = vpack.c.b16 %v1997, %v1989
    %v2526 = vpack.c.b16 %v2006, %v1998
    %v2527 = vpack.c.b16 %v2007, %v1999
    %v2528 = vpack.c.b16 %v2008, %v2000
    %v2529 = vpack.c.b16 %v2009, %v2001
    %v2530 = vpack.c.b16 %v2010, %v2002
    %v2531 = vpack.c.b16 %v2011, %v2003
    %v2532 = vpack.c.b16 %v2012, %v2004
    %v2533 = vpack.c.b16 %v2013, %v2005
    %v2534 = vpack.c.b16 %v2022, %v2014
    %v2535 = vpack.c.b16 %v2023, %v2015
    %v2536 = vpack.c.b16 %v2024, %v2016
    %v2537 = vpack.c.b16 %v2025, %v2017
    %v2538 = vpack.c.b16 %v2026, %v2018
    %v2539 = vpack.c.b16 %v2027, %v2019
    %v2540 = vpack.c.b16 %v2028, %v2020
    %v2541 = vpack.c.b16 %v2029, %v2021
    %v2542 = vpack.c.b16 %v2038, %v2030
    %v2543 = vpack.c.b16 %v2039, %v2031
    %v2544 = vpack.c.b16 %v2040, %v2032
    %v2545 = vpack.c.b16 %v2041, %v2033
    %v2546 = vpack.c.b16 %v2042, %v2034
    %v2547 = vpack.c.b16 %v2043, %v2035
    %v2548 = vpack.c.b16 %v2044, %v2036
    %v2549 = vpack.c.b16 %v2045, %v2037
    %v2550 = vpack.c.b16 %v2054, %v2046
    %v2551 = vpack.c.b16 %v2055, %v2047
    %v2552 = vpack.c.b16 %v2056, %v2048
    %v2553 = vpack.c.b16 %v2057, %v2049
    %v2554 = vpack.c.b16 %v2058, %v2050
    %v2555 = vpack.c.b16 %v2059, %v2051
    %v2556 = vpack.c.b16 %v2060, %v2052
    %v2557 = vpack.c.b16 %v2061, %v2053
    %v2558 = vpack.c.b16 %v2070, %v2062
    %v2559 = vpack.c.b16 %v2071, %v2063
    %v2560 = vpack.c.b16 %v2072, %v2064
    %v2561 = vpack.c.b16 %v2073, %v2065
    %v2562 = vpack.c.b16 %v2074, %v2066
    %v2563 = vpack.c.b16 %v2075, %v2067
    %v2564 = vpack.c.b16 %v2076, %v2068
    %v2565 = vpack.c.b16 %v2077, %v2069
    %v2566 = vpack.c.b16 %v2086, %v2078
    %v2567 = vpack.c.b16 %v2087, %v2079
    %v2568 = vpack.c.b16 %v2088, %v2080
    %v2569 = vpack.c.b16 %v2089, %v2081
    %v2570 = vpack.c.b16 %v2090, %v2082
    %v2571 = vpack.c.b16 %v2091, %v2083
    %v2572 = vpack.c.b16 %v2092, %v2084
    %v2573 = vpack.c.b16 %v2093, %v2085
    %v2574 = vpack.c.b16 %v2102, %v2094
    %v2575 = vpack.c.b16 %v2103, %v2095
    %v2576 = vpack.c.b16 %v2104, %v2096
    %v2577 = vpack.c.b16 %v2105, %v2097
    %v2578 = vpack.c.b16 %v2106, %v2098
    %v2579 = vpack.c.b16 %v2107, %v2099
    %v2580 = vpack.c.b16 %v2108, %v2100
    %v2581 = vpack.c.b16 %v2109, %v2101
    %v2582 = vpack.c.b16 %v2118, %v2110
    %v2583 = vpack.c.b16 %v2119, %v2111
    %v2584 = vpack.c.b16 %v2120, %v2112
    %v2585 = vpack.c.b16 %v2121, %v2113
    %v2586 = vpack.c.b16 %v2122, %v2114
    %v2587 = vpack.c.b16 %v2123, %v2115
    %v2588 = vpack.c.b16 %v2124, %v2116
    %v2589 = vpack.c.b16 %v2125, %v2117
    %v2590 = vpack.c.b16 %v2134, %v2126
    %v2591 = vpack.c.b16 %v2135, %v2127
    %v2592 = vpack.c.b16 %v2136, %v2128
    %v2593 = vpack.c.b16 %v2137, %v2129
    %v2594 = vpack.c.b16 %v2138, %v2130
    %v2595 = vpack.c.b16 %v2139, %v2131
    %v2596 = vpack.c.b16 %v2140, %v2132
    %v2597 = vpack.c.b16 %v2141, %v2133
    %v2598 = vpack.c.b16 %v2150, %v2142
    %v2599 = vpack.c.b16 %v2151, %v2143
    %v2600 = vpack.c.b16 %v2152, %v2144
    %v2601 = vpack.c.b16 %v2153, %v2145
    %v2602 = vpack.c.b16 %v2154, %v2146
    %v2603 = vpack.c.b16 %v2155, %v2147
    %v2604 = vpack.c.b16 %v2156, %v2148
    %v2605 = vpack.c.b16 %v2157, %v2149
    %3054 = vmatprep.subr.bf16.mxu0 %v2159
    %3055 = vmatpush1.bf16.msra.mxu0 %v2158
    %3056 = vmatprep.subr.bf16.mxu0 %v2167
    %3057 = vmatpush1.bf16.msra.mxu0 %v2166
    %3058 = vmatprep.subr.bf16.mxu0 %v2175
    %3059 = vmatpush1.bf16.msra.mxu0 %v2174
    %3060 = vmatprep.subr.bf16.mxu0 %v2183
    %3061 = vmatpush1.bf16.msra.mxu0 %v2182
    %3062 = vmatprep.subr.bf16.mxu0 %v2191
    %3063 = vmatpush1.bf16.msra.mxu0 %v2190
    %3064 = vmatprep.subr.bf16.mxu0 %v2199
    %3065 = vmatpush1.bf16.msra.mxu0 %v2198
    %3066 = vmatprep.subr.bf16.mxu0 %v2207
    %3067 = vmatpush1.bf16.msra.mxu0 %v2206
    %3068 = vmatprep.subr.bf16.mxu0 %v2215
    %3069 = vmatpush1.bf16.msra.mxu0 %v2214
    %3070 = vmatprep.subr.bf16.mxu0 %v2223
    %3071 = vmatpush1.bf16.msra.mxu0 %v2222
    %3072 = vmatprep.subr.bf16.mxu0 %v2231
    %3073 = vmatpush1.bf16.msra.mxu0 %v2230
    %3074 = vmatprep.subr.bf16.mxu0 %v2239
    %3075 = vmatpush1.bf16.msra.mxu0 %v2238
    %3076 = vmatprep.subr.bf16.mxu0 %v2247
    %3077 = vmatpush1.bf16.msra.mxu0 %v2246
    %3078 = vmatprep.subr.bf16.mxu0 %v2255
    %3079 = vmatpush1.bf16.msra.mxu0 %v2254
    %3080 = vmatprep.subr.bf16.mxu0 %v2263
    %3081 = vmatpush1.bf16.msra.mxu0 %v2262
    %3082 = vmatprep.subr.bf16.mxu0 %v2271
    %3083 = vmatpush1.bf16.msra.mxu0 %v2270
    %3084 = vmatprep.subr.bf16.mxu0 %v2279
    %3085 = vmatpush1.bf16.msra.mxu0 %v2278
    %3086 = vmatprep.mubr.bf16.mxu0 %v99
    %3087 = vmatmul.mubr.bf16.gmra.mrb[0].mxu0 %v49
    %v3088 = vpop.f32.mrb[0].mxu0
    %v3089 = vadd.f32 0.0, %v3088
    %v3090 = vpop.f32.mrb[0].mxu0
    %v3091 = vadd.f32 0.0, %v3090
    %v3092 = vpop.f32.mrb[0].mxu0
    %v3093 = vadd.f32 0.0, %v3092
    %v3094 = vpop.f32.mrb[0].mxu0
    %v3095 = vadd.f32 0.0, %v3094
    %3096 = vmatprep.mubr.bf16.mxu0 %v100
    %3097 = vmatmul.mubr.bf16.gmra.mrb[0].mxu0 %v50
    %v3098 = vpop.f32.mrb[0].mxu0
    %v3099 = vadd.f32 0.0, %v3098
    %v3100 = vpop.f32.mrb[0].mxu0
    %v3101 = vadd.f32 0.0, %v3100
    %v3102 = vpop.f32.mrb[0].mxu0
    %v3103 = vadd.f32 0.0, %v3102
    %v3104 = vpop.f32.mrb[0].mxu0
    %v3105 = vadd.f32 0.0, %v3104
    %3106 = vmatprep.mubr.bf16.mxu0 %v101
    %3107 = vmatmul.mubr.bf16.gmra.mrb[0].mxu0 %v51
    %v3108 = vpop.f32.mrb[0].mxu0
    %v3109 = vadd.f32 0.0, %v3108
    %v3110 = vpop.f32.mrb[0].mxu0
    %v3111 = vadd.f32 0.0, %v3110
    %v3112 = vpop.f32.mrb[0].mxu0
    %v3113 = vadd.f32 0.0, %v3112
    %v3114 = vpop.f32.mrb[0].mxu0
    %v3115 = vadd.f32 0.0, %v3114
    %3116 = vmatprep.mubr.bf16.mxu0 %v102
    %3117 = vmatmul.mubr.bf16.gmra.mrb[0].mxu0 %v52
    %v3118 = vpop.f32.mrb[0].mxu0
    %v3119 = vadd.f32 0.0, %v3118
    %v3120 = vpop.f32.mrb[0].mxu0
    %v3121 = vadd.f32 0.0, %v3120
    %v3122 = vpop.f32.mrb[0].mxu0
    %v3123 = vadd.f32 0.0, %v3122
    %v3124 = vpop.f32.mrb[0].mxu0
    %v3125 = vadd.f32 0.0, %v3124
    %3126 = vmatprep.mubr.bf16.mxu0 %v103
    %3127 = vmatmul.mubr.bf16.gmra.mrb[0].mxu0 %v53
    %v3128 = vpop.f32.mrb[0].mxu0
    %v3129 = vadd.f32 0.0, %v3128
    %v3130 = vpop.f32.mrb[0].mxu0
    %v3131 = vadd.f32 0.0, %v3130
    %v3132 = vpop.f32.mrb[0].mxu0
    %v3133 = vadd.f32 0.0, %v3132
    %v3134 = vpop.f32.mrb[0].mxu0
    %v3135 = vadd.f32 0.0, %v3134
    %3136 = vmatprep.mubr.bf16.mxu0 %v104
    %3137 = vmatmul.mubr.bf16.gmra.mrb[0].mxu0 %v54
    %v3138 = vpop.f32.mrb[0].mxu0
    %v3139 = vadd.f32 0.0, %v3138
    %v3140 = vpop.f32.mrb[0].mxu0
    %v3141 = vadd.f32 0.0, %v3140
    %v3142 = vpop.f32.mrb[0].mxu0
    %v3143 = vadd.f32 0.0, %v3142
    %v3144 = vpop.f32.mrb[0].mxu0
    %v3145 = vadd.f32 0.0, %v3144
    %3146 = vmatprep.mubr.bf16.mxu0 %v105
    %3147 = vmatmul.mubr.bf16.gmra.mrb[0].mxu0 %v55
    %v3148 = vpop.f32.mrb[0].mxu0
    %v3149 = vadd.f32 0.0, %v3148
    %v3150 = vpop.f32.mrb[0].mxu0
    %v3151 = vadd.f32 0.0, %v3150
    %v3152 = vpop.f32.mrb[0].mxu0
    %v3153 = vadd.f32 0.0, %v3152
    %v3154 = vpop.f32.mrb[0].mxu0
    %v3155 = vadd.f32 0.0, %v3154
    %3156 = vmatprep.mubr.bf16.mxu0 %v106
    %3157 = vmatmul.mubr.bf16.gmra.mrb[0].mxu0 %v56
    %v3158 = vpop.f32.mrb[0].mxu0
    %v3159 = vadd.f32 0.0, %v3158
    %v3160 = vpop.f32.mrb[0].mxu0
    %v3161 = vadd.f32 0.0, %v3160
    %v3162 = vpop.f32.mrb[0].mxu0
    %v3163 = vadd.f32 0.0, %v3162
    %v3164 = vpop.f32.mrb[0].mxu0
    %v3165 = vadd.f32 0.0, %v3164
    %3166 = vmatprep.mubr.bf16.mxu0 %v107
    %3167 = vmatmul.mubr.bf16.gmra.mrb[0].mxu0 %v57
    %v3168 = vpop.f32.mrb[0].mxu0
    %v3169 = vadd.f32 0.0, %v3168
    %v3170 = vpop.f32.mrb[0].mxu0
    %v3171 = vadd.f32 0.0, %v3170
    %v3172 = vpop.f32.mrb[0].mxu0
    %v3173 = vadd.f32 0.0, %v3172
    %v3174 = vpop.f32.mrb[0].mxu0
    %v3175 = vadd.f32 0.0, %v3174
    %3176 = vmatprep.mubr.bf16.mxu0 %v108
    %3177 = vmatmul.mubr.bf16.gmra.mrb[0].mxu0 %v58
    %v3178 = vpop.f32.mrb[0].mxu0
    %v3179 = vadd.f32 0.0, %v3178
    %v3180 = vpop.f32.mrb[0].mxu0
    %v3181 = vadd.f32 0.0, %v3180
    %v3182 = vpop.f32.mrb[0].mxu0
    %v3183 = vadd.f32 0.0, %v3182
    %v3184 = vpop.f32.mrb[0].mxu0
    %v3185 = vadd.f32 0.0, %v3184
    %3186 = vmatprep.mubr.bf16.mxu0 %v109
    %3187 = vmatmul.mubr.bf16.gmra.mrb[0].mxu0 %v59
    %v3188 = vpop.f32.mrb[0].mxu0
    %v3189 = vadd.f32 0.0, %v3188
    %v3190 = vpop.f32.mrb[0].mxu0
    %v3191 = vadd.f32 0.0, %v3190
    %v3192 = vpop.f32.mrb[0].mxu0
    %v3193 = vadd.f32 0.0, %v3192
    %v3194 = vpop.f32.mrb[0].mxu0
    %v3195 = vadd.f32 0.0, %v3194
    %3196 = vmatprep.mubr.bf16.mxu0 %v110
    %3197 = vmatmul.mubr.bf16.gmra.mrb[0].mxu0 %v60
    %v3198 = vpop.f32.mrb[0].mxu0
    %v3199 = vadd.f32 0.0, %v3198
    %v3200 = vpop.f32.mrb[0].mxu0
    %v3201 = vadd.f32 0.0, %v3200
    %v3202 = vpop.f32.mrb[0].mxu0
    %v3203 = vadd.f32 0.0, %v3202
    %v3204 = vpop.f32.mrb[0].mxu0
    %v3205 = vadd.f32 0.0, %v3204
    %3206 = vmatprep.mubr.bf16.mxu0 %v111
    %3207 = vmatmul.mubr.bf16.gmra.mrb[0].mxu0 %v61
    %v3208 = vpop.f32.mrb[0].mxu0
    %v3209 = vadd.f32 0.0, %v3208
    %v3210 = vpop.f32.mrb[0].mxu0
    %v3211 = vadd.f32 0.0, %v3210
    %v3212 = vpop.f32.mrb[0].mxu0
    %v3213 = vadd.f32 0.0, %v3212
    %v3214 = vpop.f32.mrb[0].mxu0
    %v3215 = vadd.f32 0.0, %v3214
    %3216 = vmatprep.mubr.bf16.mxu0 %v112
    %3217 = vmatmul.mubr.bf16.gmra.mrb[0].mxu0 %v62
    %v3218 = vpop.f32.mrb[0].mxu0
    %v3219 = vadd.f32 0.0, %v3218
    %v3220 = vpop.f32.mrb[0].mxu0
    %v3221 = vadd.f32 0.0, %v3220
    %v3222 = vpop.f32.mrb[0].mxu0
    %v3223 = vadd.f32 0.0, %v3222
    %v3224 = vpop.f32.mrb[0].mxu0
    %v3225 = vadd.f32 0.0, %v3224
    %3226 = vmatprep.mubr.bf16.mxu0 %v113
    %3227 = vmatmul.mubr.bf16.gmra.mrb[0].mxu0 %v63
    %v3228 = vpop.f32.mrb[0].mxu0
    %v3229 = vadd.f32 0.0, %v3228
    %v3230 = vpop.f32.mrb[0].mxu0
    %v3231 = vadd.f32 0.0, %v3230
    %v3232 = vpop.f32.mrb[0].mxu0
    %v3233 = vadd.f32 0.0, %v3232
    %v3234 = vpop.f32.mrb[0].mxu0
    %v3235 = vadd.f32 0.0, %v3234
    %3236 = vmatprep.mubr.bf16.mxu0 %v114
    %3237 = vmatmul.mubr.bf16.gmra.mrb[0].mxu0 %v64
    %v3238 = vpop.f32.mrb[0].mxu0
    %v3239 = vadd.f32 0.0, %v3238
    %v3240 = vpop.f32.mrb[0].mxu0
    %v3241 = vadd.f32 0.0, %v3240
    %v3242 = vpop.f32.mrb[0].mxu0
    %v3243 = vadd.f32 0.0, %v3242
    %v3244 = vpop.f32.mrb[0].mxu0
    %v3245 = vadd.f32 0.0, %v3244
    %3246 = vmatprep.mubr.bf16.mxu0 %v115
    %3247 = vmatmul.mubr.bf16.gmra.mrb[0].mxu0 %v65
    %v3248 = vpop.f32.mrb[0].mxu0
    %v3249 = vadd.f32 0.0, %v3248
    %v3250 = vpop.f32.mrb[0].mxu0
    %v3251 = vadd.f32 0.0, %v3250
    %v3252 = vpop.f32.mrb[0].mxu0
    %v3253 = vpop.f32.mrb[0].mxu0
    %3254 = vdwg.mxu0
    %3255 = vmatprep.subr.bf16.mxu0 %v2287
    %3256 = vmatpush1.bf16.msra.mxu0 %v2286
    %3257 = vmatprep.subr.bf16.mxu0 %v2295
    %3258 = vmatpush1.bf16.msra.mxu0 %v2294
    %3259 = vmatprep.subr.bf16.mxu0 %v2303
    %3260 = vmatpush1.bf16.msra.mxu0 %v2302
    %3261 = vmatprep.subr.bf16.mxu0 %v2311
    %3262 = vmatpush1.bf16.msra.mxu0 %v2310
    %3263 = vmatprep.subr.bf16.mxu0 %v2319
    %3264 = vmatpush1.bf16.msra.mxu0 %v2318
    %3265 = vmatprep.subr.bf16.mxu0 %v2327
    %3266 = vmatpush1.bf16.msra.mxu0 %v2326
    %3267 = vmatprep.subr.bf16.mxu0 %v2335
    %3268 = vmatpush1.bf16.msra.mxu0 %v2334
    %3269 = vmatprep.subr.bf16.mxu0 %v2343
    %3270 = vmatpush1.bf16.msra.mxu0 %v2342
    %3271 = vmatprep.subr.bf16.mxu0 %v2351
    %3272 = vmatpush1.bf16.msra.mxu0 %v2350
    %3273 = vmatprep.subr.bf16.mxu0 %v2359
    %3274 = vmatpush1.bf16.msra.mxu0 %v2358
    %3275 = vmatprep.subr.bf16.mxu0 %v2367
    %3276 = vmatpush1.bf16.msra.mxu0 %v2366
    %3277 = vmatprep.subr.bf16.mxu0 %v2375
    %3278 = vmatpush1.bf16.msra.mxu0 %v2374
    %3279 = vmatprep.subr.bf16.mxu0 %v2383
    %3280 = vmatpush1.bf16.msra.mxu0 %v2382
    %3281 = vmatprep.subr.bf16.mxu0 %v2391
    %3282 = vmatpush1.bf16.msra.mxu0 %v2390
    %3283 = vmatprep.subr.bf16.mxu0 %v2399
    %3284 = vmatpush1.bf16.msra.mxu0 %v2398
    %3285 = vmatprep.subr.bf16.mxu0 %v2407
    %3286 = vmatpush1.bf16.msra.mxu0 %v2406
    %3287 = vmatprep.mubr.bf16.mxu0 %v199
    %3288 = vmatmul.mubr.bf16.gmra.mrb[0].mxu0 %v149
    %v3289 = vpop.f32.mrb[0].mxu0
    %v3290 = vadd.f32 %v3089, %v3289
    %v3291 = vpop.f32.mrb[0].mxu0
    %v3292 = vadd.f32 %v3091, %v3291
    %v3293 = vpop.f32.mrb[0].mxu0
    %v3294 = vadd.f32 %v3093, %v3293
    %v3295 = vpop.f32.mrb[0].mxu0
    %v3296 = vadd.f32 %v3095, %v3295
    %3297 = vmatprep.mubr.bf16.mxu0 %v200
    %3298 = vmatmul.mubr.bf16.gmra.mrb[0].mxu0 %v150
    %v3299 = vpop.f32.mrb[0].mxu0
    %v3300 = vadd.f32 %v3099, %v3299
    %v3301 = vpop.f32.mrb[0].mxu0
    %v3302 = vadd.f32 %v3101, %v3301
    %v3303 = vpop.f32.mrb[0].mxu0
    %v3304 = vadd.f32 %v3103, %v3303
    %v3305 = vpop.f32.mrb[0].mxu0
    %v3306 = vadd.f32 %v3105, %v3305
    %3307 = vmatprep.mubr.bf16.mxu0 %v201
    %3308 = vmatmul.mubr.bf16.gmra.mrb[0].mxu0 %v151
    %v3309 = vpop.f32.mrb[0].mxu0
    %v3310 = vadd.f32 %v3109, %v3309
    %v3311 = vpop.f32.mrb[0].mxu0
    %v3312 = vadd.f32 %v3111, %v3311
    %v3313 = vpop.f32.mrb[0].mxu0
    %v3314 = vadd.f32 %v3113, %v3313
    %v3315 = vpop.f32.mrb[0].mxu0
    %v3316 = vadd.f32 %v3115, %v3315
    %3317 = vmatprep.mubr.bf16.mxu0 %v202
    %3318 = vmatmul.mubr.bf16.gmra.mrb[0].mxu0 %v152
    %v3319 = vpop.f32.mrb[0].mxu0
    %v3320 = vadd.f32 %v3119, %v3319
    %v3321 = vpop.f32.mrb[0].mxu0
    %v3322 = vadd.f32 %v3121, %v3321
    %v3323 = vpop.f32.mrb[0].mxu0
    %v3324 = vadd.f32 %v3123, %v3323
    %v3325 = vpop.f32.mrb[0].mxu0
    %v3326 = vadd.f32 %v3125, %v3325
    %3327 = vmatprep.mubr.bf16.mxu0 %v203
    %3328 = vmatmul.mubr.bf16.gmra.mrb[0].mxu0 %v153
    %v3329 = vpop.f32.mrb[0].mxu0
    %v3330 = vadd.f32 %v3129, %v3329
    %v3331 = vpop.f32.mrb[0].mxu0
    %v3332 = vadd.f32 %v3131, %v3331
    %v3333 = vpop.f32.mrb[0].mxu0
    %v3334 = vadd.f32 %v3133, %v3333
    %v3335 = vpop.f32.mrb[0].mxu0
    %v3336 = vadd.f32 %v3135, %v3335
    %3337 = vmatprep.mubr.bf16.mxu0 %v204
    %3338 = vmatmul.mubr.bf16.gmra.mrb[0].mxu0 %v154
    %v3339 = vpop.f32.mrb[0].mxu0
    %v3340 = vadd.f32 %v3139, %v3339
    %v3341 = vpop.f32.mrb[0].mxu0
    %v3342 = vadd.f32 %v3141, %v3341
    %v3343 = vpop.f32.mrb[0].mxu0
    %v3344 = vadd.f32 %v3143, %v3343
    %v3345 = vpop.f32.mrb[0].mxu0
    %v3346 = vadd.f32 %v3145, %v3345
    %3347 = vmatprep.mubr.bf16.mxu0 %v205
    %3348 = vmatmul.mubr.bf16.gmra.mrb[0].mxu0 %v155
    %v3349 = vpop.f32.mrb[0].mxu0
    %v3350 = vadd.f32 %v3149, %v3349
    %v3351 = vpop.f32.mrb[0].mxu0
    %v3352 = vadd.f32 %v3151, %v3351
    %v3353 = vpop.f32.mrb[0].mxu0
    %v3354 = vadd.f32 %v3153, %v3353
    %v3355 = vpop.f32.mrb[0].mxu0
    %v3356 = vadd.f32 %v3155, %v3355
    %3357 = vmatprep.mubr.bf16.mxu0 %v206
    %3358 = vmatmul.mubr.bf16.gmra.mrb[0].mxu0 %v156
    %v3359 = vpop.f32.mrb[0].mxu0
    %v3360 = vadd.f32 %v3159, %v3359
    %v3361 = vpop.f32.mrb[0].mxu0
    %v3362 = vadd.f32 %v3161, %v3361
    %v3363 = vpop.f32.mrb[0].mxu0
    %v3364 = vadd.f32 %v3163, %v3363
    %v3365 = vpop.f32.mrb[0].mxu0
    %v3366 = vadd.f32 %v3165, %v3365
    %3367 = vmatprep.mubr.bf16.mxu0 %v207
    %3368 = vmatmul.mubr.bf16.gmra.mrb[0].mxu0 %v157
    %v3369 = vpop.f32.mrb[0].mxu0
    %v3370 = vadd.f32 %v3169, %v3369
    %v3371 = vpop.f32.mrb[0].mxu0
    %v3372 = vadd.f32 %v3171, %v3371
    %v3373 = vpop.f32.mrb[0].mxu0
    %v3374 = vadd.f32 %v3173, %v3373
    %v3375 = vpop.f32.mrb[0].mxu0
    %v3376 = vadd.f32 %v3175, %v3375
    %3377 = vmatprep.mubr.bf16.mxu0 %v208
    %3378 = vmatmul.mubr.bf16.gmra.mrb[0].mxu0 %v158
    %v3379 = vpop.f32.mrb[0].mxu0
    %v3380 = vadd.f32 %v3179, %v3379
    %v3381 = vpop.f32.mrb[0].mxu0
    %v3382 = vadd.f32 %v3181, %v3381
    %v3383 = vpop.f32.mrb[0].mxu0
    %v3384 = vadd.f32 %v3183, %v3383
    %v3385 = vpop.f32.mrb[0].mxu0
    %v3386 = vadd.f32 %v3185, %v3385
    %3387 = vmatprep.mubr.bf16.mxu0 %v209
    %3388 = vmatmul.mubr.bf16.gmra.mrb[0].mxu0 %v159
    %v3389 = vpop.f32.mrb[0].mxu0
    %v3390 = vadd.f32 %v3189, %v3389
    %v3391 = vpop.f32.mrb[0].mxu0
    %v3392 = vadd.f32 %v3191, %v3391
    %v3393 = vpop.f32.mrb[0].mxu0
    %v3394 = vadd.f32 %v3193, %v3393
    %v3395 = vpop.f32.mrb[0].mxu0
    %v3396 = vadd.f32 %v3195, %v3395
    %3397 = vmatprep.mubr.bf16.mxu0 %v210
    %3398 = vmatmul.mubr.bf16.gmra.mrb[0].mxu0 %v160
    %v3399 = vpop.f32.mrb[0].mxu0
    %v3400 = vadd.f32 %v3199, %v3399
    %v3401 = vpop.f32.mrb[0].mxu0
    %v3402 = vadd.f32 %v3201, %v3401
    %v3403 = vpop.f32.mrb[0].mxu0
    %v3404 = vadd.f32 %v3203, %v3403
    %v3405 = vpop.f32.mrb[0].mxu0
    %v3406 = vadd.f32 %v3205, %v3405
    %3407 = vmatprep.mubr.bf16.mxu0 %v211
    %3408 = vmatmul.mubr.bf16.gmra.mrb[0].mxu0 %v161
    %v3409 = vpop.f32.mrb[0].mxu0
    %v3410 = vadd.f32 %v3209, %v3409
    %v3411 = vpop.f32.mrb[0].mxu0
    %v3412 = vadd.f32 %v3211, %v3411
    %v3413 = vpop.f32.mrb[0].mxu0
    %v3414 = vadd.f32 %v3213, %v3413
    %v3415 = vpop.f32.mrb[0].mxu0
    %v3416 = vadd.f32 %v3215, %v3415
    %3417 = vmatprep.mubr.bf16.mxu0 %v212
    %3418 = vmatmul.mubr.bf16.gmra.mrb[0].mxu0 %v162
    %v3419 = vpop.f32.mrb[0].mxu0
    %v3420 = vadd.f32 %v3219, %v3419
    %v3421 = vpop.f32.mrb[0].mxu0
    %v3422 = vadd.f32 %v3221, %v3421
    %v3423 = vpop.f32.mrb[0].mxu0
    %v3424 = vadd.f32 %v3223, %v3423
    %v3425 = vpop.f32.mrb[0].mxu0
    %v3426 = vadd.f32 %v3225, %v3425
    %3427 = vmatprep.mubr.bf16.mxu0 %v213
    %3428 = vmatmul.mubr.bf16.gmra.mrb[0].mxu0 %v163
    %v3429 = vpop.f32.mrb[0].mxu0
    %v3430 = vadd.f32 %v3229, %v3429
    %v3431 = vpop.f32.mrb[0].mxu0
    %v3432 = vadd.f32 %v3231, %v3431
    %v3433 = vpop.f32.mrb[0].mxu0
    %v3434 = vadd.f32 %v3233, %v3433
    %v3435 = vpop.f32.mrb[0].mxu0
    %v3436 = vadd.f32 %v3235, %v3435
    %3437 = vmatprep.mubr.bf16.mxu0 %v214
    %3438 = vmatmul.mubr.bf16.gmra.mrb[0].mxu0 %v164
    %v3439 = vpop.f32.mrb[0].mxu0
    %v3440 = vadd.f32 %v3239, %v3439
    %v3441 = vpop.f32.mrb[0].mxu0
    %v3442 = vadd.f32 %v3241, %v3441
    %v3443 = vpop.f32.mrb[0].mxu0
    %v3444 = vadd.f32 %v3243, %v3443
    %v3445 = vpop.f32.mrb[0].mxu0
    %v3446 = vadd.f32 %v3245, %v3445
    %3447 = vmatprep.mubr.bf16.mxu0 %v215
    %3448 = vmatmul.mubr.bf16.gmra.mrb[0].mxu0 %v165
    %v3449 = vpop.f32.mrb[0].mxu0
    %v3450 = vadd.f32 %v3249, %v3449
    %v3451 = vpop.f32.mrb[0].mxu0
    %v3452 = vadd.f32 %v3251, %v3451
    %v3453 = vpop.f32.mrb[0].mxu0
    %v3454 = vpop.f32.mrb[0].mxu0
    %3455 = vdwg.mxu0
    %3456 = vmatprep.subr.bf16.mxu0 %v2415
    %3457 = vmatpush1.bf16.msra.mxu0 %v2414
    %3458 = vmatprep.subr.bf16.mxu0 %v2423
    %3459 = vmatpush1.bf16.msra.mxu0 %v2422
    %3460 = vmatprep.subr.bf16.mxu0 %v2431
    %3461 = vmatpush1.bf16.msra.mxu0 %v2430
    %3462 = vmatprep.subr.bf16.mxu0 %v2439
    %3463 = vmatpush1.bf16.msra.mxu0 %v2438
    %3464 = vmatprep.subr.bf16.mxu0 %v2447
    %3465 = vmatpush1.bf16.msra.mxu0 %v2446
    %3466 = vmatprep.subr.bf16.mxu0 %v2455
    %3467 = vmatpush1.bf16.msra.mxu0 %v2454
    %3468 = vmatprep.subr.bf16.mxu0 %v2463
    %3469 = vmatpush1.bf16.msra.mxu0 %v2462
    %3470 = vmatprep.subr.bf16.mxu0 %v2471
    %3471 = vmatpush1.bf16.msra.mxu0 %v2470
    %3472 = vmatprep.subr.bf16.mxu0 %v2479
    %3473 = vmatpush1.bf16.msra.mxu0 %v2478
    %3474 = vmatprep.subr.bf16.mxu0 %v2487
    %3475 = vmatpush1.bf16.msra.mxu0 %v2486
    %3476 = vmatprep.subr.bf16.mxu0 %v2495
    %3477 = vmatpush1.bf16.msra.mxu0 %v2494
    %3478 = vmatprep.subr.bf16.mxu0 %v2503
    %3479 = vmatpush1.bf16.msra.mxu0 %v2502
    %3480 = vmatprep.subr.bf16.mxu0 %v2511
    %3481 = vmatpush1.bf16.msra.mxu0 %v2510
    %3482 = vmatprep.subr.bf16.mxu0 %v2519
    %3483 = vmatpush1.bf16.msra.mxu0 %v2518
    %3484 = vmatprep.subr.bf16.mxu0 %v2527
    %3485 = vmatpush1.bf16.msra.mxu0 %v2526
    %3486 = vmatprep.subr.bf16.mxu0 %v2535
    %3487 = vmatpush1.bf16.msra.mxu0 %v2534
    %3488 = vmatprep.mubr.bf16.mxu0 %v299
    %3489 = vmatmul.mubr.bf16.gmra.mrb[0].mxu0 %v249
    %v3490 = vpop.f32.mrb[0].mxu0
    %v3491 = vadd.f32 %v3290, %v3490
    %v3492 = vpop.f32.mrb[0].mxu0
    %v3493 = vadd.f32 %v3292, %v3492
    %v3494 = vpop.f32.mrb[0].mxu0
    %v3495 = vadd.f32 %v3294, %v3494
    %v3496 = vpop.f32.mrb[0].mxu0
    %v3497 = vadd.f32 %v3296, %v3496
    %3498 = vmatprep.mubr.bf16.mxu0 %v300
    %3499 = vmatmul.mubr.bf16.gmra.mrb[0].mxu0 %v250
    %v3500 = vpop.f32.mrb[0].mxu0
    %v3501 = vadd.f32 %v3300, %v3500
    %v3502 = vpop.f32.mrb[0].mxu0
    %v3503 = vadd.f32 %v3302, %v3502
    %v3504 = vpop.f32.mrb[0].mxu0
    %v3505 = vadd.f32 %v3304, %v3504
    %v3506 = vpop.f32.mrb[0].mxu0
    %v3507 = vadd.f32 %v3306, %v3506
    %3508 = vmatprep.mubr.bf16.mxu0 %v301
    %3509 = vmatmul.mubr.bf16.gmra.mrb[0].mxu0 %v251
    %v3510 = vpop.f32.mrb[0].mxu0
    %v3511 = vadd.f32 %v3310, %v3510
    %v3512 = vpop.f32.mrb[0].mxu0
    %v3513 = vadd.f32 %v3312, %v3512
    %v3514 = vpop.f32.mrb[0].mxu0
    %v3515 = vadd.f32 %v3314, %v3514
    %v3516 = vpop.f32.mrb[0].mxu0
    %v3517 = vadd.f32 %v3316, %v3516
    %3518 = vmatprep.mubr.bf16.mxu0 %v302
    %3519 = vmatmul.mubr.bf16.gmra.mrb[0].mxu0 %v252
    %v3520 = vpop.f32.mrb[0].mxu0
    %v3521 = vadd.f32 %v3320, %v3520
    %v3522 = vpop.f32.mrb[0].mxu0
    %v3523 = vadd.f32 %v3322, %v3522
    %v3524 = vpop.f32.mrb[0].mxu0
    %v3525 = vadd.f32 %v3324, %v3524
    %v3526 = vpop.f32.mrb[0].mxu0
    %v3527 = vadd.f32 %v3326, %v3526
    %3528 = vmatprep.mubr.bf16.mxu0 %v303
    %3529 = vmatmul.mubr.bf16.gmra.mrb[0].mxu0 %v253
    %v3530 = vpop.f32.mrb[0].mxu0
    %v3531 = vadd.f32 %v3330, %v3530
    %v3532 = vpop.f32.mrb[0].mxu0
    %v3533 = vadd.f32 %v3332, %v3532
    %v3534 = vpop.f32.mrb[0].mxu0
    %v3535 = vadd.f32 %v3334, %v3534
    %v3536 = vpop.f32.mrb[0].mxu0
    %v3537 = vadd.f32 %v3336, %v3536
    %3538 = vmatprep.mubr.bf16.mxu0 %v304
    %3539 = vmatmul.mubr.bf16.gmra.mrb[0].mxu0 %v254
    %v3540 = vpop.f32.mrb[0].mxu0
    %v3541 = vadd.f32 %v3340, %v3540
    %v3542 = vpop.f32.mrb[0].mxu0
    %v3543 = vadd.f32 %v3342, %v3542
    %v3544 = vpop.f32.mrb[0].mxu0
    %v3545 = vadd.f32 %v3344, %v3544
    %v3546 = vpop.f32.mrb[0].mxu0
    %v3547 = vadd.f32 %v3346, %v3546
    %3548 = vmatprep.mubr.bf16.mxu0 %v305
    %3549 = vmatmul.mubr.bf16.gmra.mrb[0].mxu0 %v255
    %v3550 = vpop.f32.mrb[0].mxu0
    %v3551 = vadd.f32 %v3350, %v3550
    %v3552 = vpop.f32.mrb[0].mxu0
    %v3553 = vadd.f32 %v3352, %v3552
    %v3554 = vpop.f32.mrb[0].mxu0
    %v3555 = vadd.f32 %v3354, %v3554
    %v3556 = vpop.f32.mrb[0].mxu0
    %v3557 = vadd.f32 %v3356, %v3556
    %3558 = vmatprep.mubr.bf16.mxu0 %v306
    %3559 = vmatmul.mubr.bf16.gmra.mrb[0].mxu0 %v256
    %v3560 = vpop.f32.mrb[0].mxu0
    %v3561 = vadd.f32 %v3360, %v3560
    %v3562 = vpop.f32.mrb[0].mxu0
    %v3563 = vadd.f32 %v3362, %v3562
    %v3564 = vpop.f32.mrb[0].mxu0
    %v3565 = vadd.f32 %v3364, %v3564
    %v3566 = vpop.f32.mrb[0].mxu0
    %v3567 = vadd.f32 %v3366, %v3566
    %3568 = vmatprep.mubr.bf16.mxu0 %v307
    %3569 = vmatmul.mubr.bf16.gmra.mrb[0].mxu0 %v257
    %v3570 = vpop.f32.mrb[0].mxu0
    %v3571 = vadd.f32 %v3370, %v3570
    %v3572 = vpop.f32.mrb[0].mxu0
    %v3573 = vadd.f32 %v3372, %v3572
    %v3574 = vpop.f32.mrb[0].mxu0
    %v3575 = vadd.f32 %v3374, %v3574
    %v3576 = vpop.f32.mrb[0].mxu0
    %v3577 = vadd.f32 %v3376, %v3576
    %3578 = vmatprep.mubr.bf16.mxu0 %v308
    %3579 = vmatmul.mubr.bf16.gmra.mrb[0].mxu0 %v258
    %v3580 = vpop.f32.mrb[0].mxu0
    %v3581 = vadd.f32 %v3380, %v3580
    %v3582 = vpop.f32.mrb[0].mxu0
    %v3583 = vadd.f32 %v3382, %v3582
    %v3584 = vpop.f32.mrb[0].mxu0
    %v3585 = vadd.f32 %v3384, %v3584
    %v3586 = vpop.f32.mrb[0].mxu0
    %v3587 = vadd.f32 %v3386, %v3586
    %3588 = vmatprep.mubr.bf16.mxu0 %v309
    %3589 = vmatmul.mubr.bf16.gmra.mrb[0].mxu0 %v259
    %v3590 = vpop.f32.mrb[0].mxu0
    %v3591 = vadd.f32 %v3390, %v3590
    %v3592 = vpop.f32.mrb[0].mxu0
    %v3593 = vadd.f32 %v3392, %v3592
    %v3594 = vpop.f32.mrb[0].mxu0
    %v3595 = vadd.f32 %v3394, %v3594
    %v3596 = vpop.f32.mrb[0].mxu0
    %v3597 = vadd.f32 %v3396, %v3596
    %3598 = vmatprep.mubr.bf16.mxu0 %v310
    %3599 = vmatmul.mubr.bf16.gmra.mrb[0].mxu0 %v260
    %v3600 = vpop.f32.mrb[0].mxu0
    %v3601 = vadd.f32 %v3400, %v3600
    %v3602 = vpop.f32.mrb[0].mxu0
    %v3603 = vadd.f32 %v3402, %v3602
    %v3604 = vpop.f32.mrb[0].mxu0
    %v3605 = vadd.f32 %v3404, %v3604
    %v3606 = vpop.f32.mrb[0].mxu0
    %v3607 = vadd.f32 %v3406, %v3606
    %3608 = vmatprep.mubr.bf16.mxu0 %v311
    %3609 = vmatmul.mubr.bf16.gmra.mrb[0].mxu0 %v261
    %v3610 = vpop.f32.mrb[0].mxu0
    %v3611 = vadd.f32 %v3410, %v3610
    %v3612 = vpop.f32.mrb[0].mxu0
    %v3613 = vadd.f32 %v3412, %v3612
    %v3614 = vpop.f32.mrb[0].mxu0
    %v3615 = vadd.f32 %v3414, %v3614
    %v3616 = vpop.f32.mrb[0].mxu0
    %v3617 = vadd.f32 %v3416, %v3616
    %3618 = vmatprep.mubr.bf16.mxu0 %v312
    %3619 = vmatmul.mubr.bf16.gmra.mrb[0].mxu0 %v262
    %v3620 = vpop.f32.mrb[0].mxu0
    %v3621 = vadd.f32 %v3420, %v3620
    %v3622 = vpop.f32.mrb[0].mxu0
    %v3623 = vadd.f32 %v3422, %v3622
    %v3624 = vpop.f32.mrb[0].mxu0
    %v3625 = vadd.f32 %v3424, %v3624
    %v3626 = vpop.f32.mrb[0].mxu0
    %v3627 = vadd.f32 %v3426, %v3626
    %3628 = vmatprep.mubr.bf16.mxu0 %v313
    %3629 = vmatmul.mubr.bf16.gmra.mrb[0].mxu0 %v263
    %v3630 = vpop.f32.mrb[0].mxu0
    %v3631 = vadd.f32 %v3430, %v3630
    %v3632 = vpop.f32.mrb[0].mxu0
    %v3633 = vadd.f32 %v3432, %v3632
    %v3634 = vpop.f32.mrb[0].mxu0
    %v3635 = vadd.f32 %v3434, %v3634
    %v3636 = vpop.f32.mrb[0].mxu0
    %v3637 = vadd.f32 %v3436, %v3636
    %3638 = vmatprep.mubr.bf16.mxu0 %v314
    %3639 = vmatmul.mubr.bf16.gmra.mrb[0].mxu0 %v264
    %v3640 = vpop.f32.mrb[0].mxu0
    %v3641 = vadd.f32 %v3440, %v3640
    %v3642 = vpop.f32.mrb[0].mxu0
    %v3643 = vadd.f32 %v3442, %v3642
    %v3644 = vpop.f32.mrb[0].mxu0
    %v3645 = vadd.f32 %v3444, %v3644
    %v3646 = vpop.f32.mrb[0].mxu0
    %v3647 = vadd.f32 %v3446, %v3646
    %3648 = vmatprep.mubr.bf16.mxu0 %v315
    %3649 = vmatmul.mubr.bf16.gmra.mrb[0].mxu0 %v265
    %v3650 = vpop.f32.mrb[0].mxu0
    %v3651 = vadd.f32 %v3450, %v3650
    %v3652 = vpop.f32.mrb[0].mxu0
    %v3653 = vadd.f32 %v3452, %v3652
    %v3654 = vpop.f32.mrb[0].mxu0
    %v3655 = vpop.f32.mrb[0].mxu0
    %3656 = vdwg.mxu0
    %3657 = vmatprep.subr.bf16.mxu0 %v2543
    %3658 = vmatpush1.bf16.msra.mxu0 %v2542
    %3659 = vmatprep.subr.bf16.mxu0 %v2551
    %3660 = vmatpush1.bf16.msra.mxu0 %v2550
    %3661 = vmatprep.subr.bf16.mxu0 %v2559
    %3662 = vmatpush1.bf16.msra.mxu0 %v2558
    %3663 = vmatprep.subr.bf16.mxu0 %v2567
    %3664 = vmatpush1.bf16.msra.mxu0 %v2566
    %3665 = vmatprep.subr.bf16.mxu0 %v2575
    %3666 = vmatpush1.bf16.msra.mxu0 %v2574
    %3667 = vmatprep.subr.bf16.mxu0 %v2583
    %3668 = vmatpush1.bf16.msra.mxu0 %v2582
    %3669 = vmatprep.subr.bf16.mxu0 %v2591
    %3670 = vmatpush1.bf16.msra.mxu0 %v2590
    %3671 = vmatprep.subr.bf16.mxu0 %v2599
    %3672 = vmatpush1.bf16.msra.mxu0 %v2598
    %3673 = vmatprep.subr.bf16.mxu0 0
    %3674 = vmatpush1.bf16.msra.mxu0 0
    %3675 = vmatprep.subr.bf16.mxu0 0
    %3676 = vmatpush1.bf16.msra.mxu0 0
    %3677 = vmatprep.subr.bf16.mxu0 0
    %3678 = vmatpush1.bf16.msra.mxu0 0
    %3679 = vmatprep.subr.bf16.mxu0 0
    %3680 = vmatpush1.bf16.msra.mxu0 0
    %3681 = vmatprep.subr.bf16.mxu0 0
    %3682 = vmatpush1.bf16.msra.mxu0 0
    %3683 = vmatprep.subr.bf16.mxu0 0
    %3684 = vmatpush1.bf16.msra.mxu0 0
    %3685 = vmatprep.subr.bf16.mxu0 0
    %3686 = vmatpush1.bf16.msra.mxu0 0
    %3687 = vmatprep.subr.bf16.mxu0 0
    %3688 = vmatpush1.bf16.msra.mxu0 0
    %3689 = vmatprep.mubr.bf16.mxu0 0
    %3690 = vmatmul.mubr.bf16.gmra.mrb[0].mxu0 %v349
    %v3691 = vpop.f32.mrb[0].mxu0
    %v3692 = vadd.f32 %v3491, %v3691
    %v3693 = vpop.f32.mrb[0].mxu0
    %v3694 = vadd.f32 %v3493, %v3693
    %v3695 = vpop.f32.mrb[0].mxu0
    %v3696 = vadd.f32 %v3495, %v3695
    %v3697 = vpop.f32.mrb[0].mxu0
    %v3698 = vadd.f32 %v3497, %v3697
    %3699 = vmatprep.mubr.bf16.mxu0 0
    %3700 = vmatmul.mubr.bf16.gmra.mrb[0].mxu0 %v350
    %v3701 = vpop.f32.mrb[0].mxu0
    %v3702 = vadd.f32 %v3501, %v3701
    %v3703 = vpop.f32.mrb[0].mxu0
    %v3704 = vadd.f32 %v3503, %v3703
    %v3705 = vpop.f32.mrb[0].mxu0
    %v3706 = vadd.f32 %v3505, %v3705
    %v3707 = vpop.f32.mrb[0].mxu0
    %v3708 = vadd.f32 %v3507, %v3707
    %3709 = vmatprep.mubr.bf16.mxu0 0
    %3710 = vmatmul.mubr.bf16.gmra.mrb[0].mxu0 %v351
    %v3711 = vpop.f32.mrb[0].mxu0
    %v3712 = vadd.f32 %v3511, %v3711
    %v3713 = vpop.f32.mrb[0].mxu0
    %v3714 = vadd.f32 %v3513, %v3713
    %v3715 = vpop.f32.mrb[0].mxu0
    %v3716 = vadd.f32 %v3515, %v3715
    %v3717 = vpop.f32.mrb[0].mxu0
    %v3718 = vadd.f32 %v3517, %v3717
    %3719 = vmatprep.mubr.bf16.mxu0 0
    %3720 = vmatmul.mubr.bf16.gmra.mrb[0].mxu0 %v352
    %v3721 = vpop.f32.mrb[0].mxu0
    %v3722 = vadd.f32 %v3521, %v3721
    %v3723 = vpop.f32.mrb[0].mxu0
    %v3724 = vadd.f32 %v3523, %v3723
    %v3725 = vpop.f32.mrb[0].mxu0
    %v3726 = vadd.f32 %v3525, %v3725
    %v3727 = vpop.f32.mrb[0].mxu0
    %v3728 = vadd.f32 %v3527, %v3727
    %3729 = vmatprep.mubr.bf16.mxu0 0
    %3730 = vmatmul.mubr.bf16.gmra.mrb[0].mxu0 %v353
    %v3731 = vpop.f32.mrb[0].mxu0
    %v3732 = vadd.f32 %v3531, %v3731
    %v3733 = vpop.f32.mrb[0].mxu0
    %v3734 = vadd.f32 %v3533, %v3733
    %v3735 = vpop.f32.mrb[0].mxu0
    %v3736 = vadd.f32 %v3535, %v3735
    %v3737 = vpop.f32.mrb[0].mxu0
    %v3738 = vadd.f32 %v3537, %v3737
    %3739 = vmatprep.mubr.bf16.mxu0 0
    %3740 = vmatmul.mubr.bf16.gmra.mrb[0].mxu0 %v354
    %v3741 = vpop.f32.mrb[0].mxu0
    %v3742 = vadd.f32 %v3541, %v3741
    %v3743 = vpop.f32.mrb[0].mxu0
    %v3744 = vadd.f32 %v3543, %v3743
    %v3745 = vpop.f32.mrb[0].mxu0
    %v3746 = vadd.f32 %v3545, %v3745
    %v3747 = vpop.f32.mrb[0].mxu0
    %v3748 = vadd.f32 %v3547, %v3747
    %3749 = vmatprep.mubr.bf16.mxu0 0
    %3750 = vmatmul.mubr.bf16.gmra.mrb[0].mxu0 %v355
    %v3751 = vpop.f32.mrb[0].mxu0
    %v3752 = vadd.f32 %v3551, %v3751
    %v3753 = vpop.f32.mrb[0].mxu0
    %v3754 = vadd.f32 %v3553, %v3753
    %v3755 = vpop.f32.mrb[0].mxu0
    %v3756 = vadd.f32 %v3555, %v3755
    %v3757 = vpop.f32.mrb[0].mxu0
    %v3758 = vadd.f32 %v3557, %v3757
    %3759 = vmatprep.mubr.bf16.mxu0 0
    %3760 = vmatmul.mubr.bf16.gmra.mrb[0].mxu0 %v356
    %v3761 = vpop.f32.mrb[0].mxu0
    %v3762 = vadd.f32 %v3561, %v3761
    %v3763 = vpop.f32.mrb[0].mxu0
    %v3764 = vadd.f32 %v3563, %v3763
    %v3765 = vpop.f32.mrb[0].mxu0
    %v3766 = vadd.f32 %v3565, %v3765
    %v3767 = vpop.f32.mrb[0].mxu0
    %v3768 = vadd.f32 %v3567, %v3767
    %3769 = vmatprep.mubr.bf16.mxu0 0
    %3770 = vmatmul.mubr.bf16.gmra.mrb[0].mxu0 %v357
    %v3771 = vpop.f32.mrb[0].mxu0
    %v3772 = vadd.f32 %v3571, %v3771
    %v3773 = vpop.f32.mrb[0].mxu0
    %v3774 = vadd.f32 %v3573, %v3773
    %v3775 = vpop.f32.mrb[0].mxu0
    %v3776 = vadd.f32 %v3575, %v3775
    %v3777 = vpop.f32.mrb[0].mxu0
    %v3778 = vadd.f32 %v3577, %v3777
    %3779 = vmatprep.mubr.bf16.mxu0 0
    %3780 = vmatmul.mubr.bf16.gmra.mrb[0].mxu0 %v358
    %v3781 = vpop.f32.mrb[0].mxu0
    %v3782 = vadd.f32 %v3581, %v3781
    %v3783 = vpop.f32.mrb[0].mxu0
    %v3784 = vadd.f32 %v3583, %v3783
    %v3785 = vpop.f32.mrb[0].mxu0
    %v3786 = vadd.f32 %v3585, %v3785
    %v3787 = vpop.f32.mrb[0].mxu0
    %v3788 = vadd.f32 %v3587, %v3787
    %3789 = vmatprep.mubr.bf16.mxu0 0
    %3790 = vmatmul.mubr.bf16.gmra.mrb[0].mxu0 %v359
    %v3791 = vpop.f32.mrb[0].mxu0
    %v3792 = vadd.f32 %v3591, %v3791
    %v3793 = vpop.f32.mrb[0].mxu0
    %v3794 = vadd.f32 %v3593, %v3793
    %v3795 = vpop.f32.mrb[0].mxu0
    %v3796 = vadd.f32 %v3595, %v3795
    %v3797 = vpop.f32.mrb[0].mxu0
    %v3798 = vadd.f32 %v3597, %v3797
    %3799 = vmatprep.mubr.bf16.mxu0 0
    %3800 = vmatmul.mubr.bf16.gmra.mrb[0].mxu0 %v360
    %v3801 = vpop.f32.mrb[0].mxu0
    %v3802 = vadd.f32 %v3601, %v3801
    %v3803 = vpop.f32.mrb[0].mxu0
    %v3804 = vadd.f32 %v3603, %v3803
    %v3805 = vpop.f32.mrb[0].mxu0
    %v3806 = vadd.f32 %v3605, %v3805
    %v3807 = vpop.f32.mrb[0].mxu0
    %v3808 = vadd.f32 %v3607, %v3807
    %3809 = vmatprep.mubr.bf16.mxu0 0
    %3810 = vmatmul.mubr.bf16.gmra.mrb[0].mxu0 %v361
    %v3811 = vpop.f32.mrb[0].mxu0
    %v3812 = vadd.f32 %v3611, %v3811
    %v3813 = vpop.f32.mrb[0].mxu0
    %v3814 = vadd.f32 %v3613, %v3813
    %v3815 = vpop.f32.mrb[0].mxu0
    %v3816 = vadd.f32 %v3615, %v3815
    %v3817 = vpop.f32.mrb[0].mxu0
    %v3818 = vadd.f32 %v3617, %v3817
    %3819 = vmatprep.mubr.bf16.mxu0 0
    %3820 = vmatmul.mubr.bf16.gmra.mrb[0].mxu0 %v362
    %v3821 = vpop.f32.mrb[0].mxu0
    %v3822 = vadd.f32 %v3621, %v3821
    %v3823 = vpop.f32.mrb[0].mxu0
    %v3824 = vadd.f32 %v3623, %v3823
    %v3825 = vpop.f32.mrb[0].mxu0
    %v3826 = vadd.f32 %v3625, %v3825
    %v3827 = vpop.f32.mrb[0].mxu0
    %v3828 = vadd.f32 %v3627, %v3827
    %3829 = vmatprep.mubr.bf16.mxu0 0
    %3830 = vmatmul.mubr.bf16.gmra.mrb[0].mxu0 %v363
    %v3831 = vpop.f32.mrb[0].mxu0
    %v3832 = vadd.f32 %v3631, %v3831
    %v3833 = vpop.f32.mrb[0].mxu0
    %v3834 = vadd.f32 %v3633, %v3833
    %v3835 = vpop.f32.mrb[0].mxu0
    %v3836 = vadd.f32 %v3635, %v3835
    %v3837 = vpop.f32.mrb[0].mxu0
    %v3838 = vadd.f32 %v3637, %v3837
    %3839 = vmatprep.mubr.bf16.mxu0 0
    %3840 = vmatmul.mubr.bf16.gmra.mrb[0].mxu0 %v364
    %v3841 = vpop.f32.mrb[0].mxu0
    %v3842 = vadd.f32 %v3641, %v3841
    %v3843 = vpop.f32.mrb[0].mxu0
    %v3844 = vadd.f32 %v3643, %v3843
    %v3845 = vpop.f32.mrb[0].mxu0
    %v3846 = vadd.f32 %v3645, %v3845
    %v3847 = vpop.f32.mrb[0].mxu0
    %v3848 = vadd.f32 %v3647, %v3847
    %3849 = vmatprep.mubr.bf16.mxu0 0
    %3850 = vmatmul.mubr.bf16.gmra.mrb[0].mxu0 %v365
    %v3851 = vpop.f32.mrb[0].mxu0
    %v3852 = vadd.f32 %v3651, %v3851
    %v3853 = vpop.f32.mrb[0].mxu0
    %v3854 = vadd.f32 %v3653, %v3853
    %v3855 = vpop.f32.mrb[0].mxu0
    %v3856 = vpop.f32.mrb[0].mxu0
    %3857 = vdwg.mxu0
    %3858 = vmatprep.subr.bf16.mxu0 %v2161
    %3859 = vmatpush1.bf16.msra.mxu0 %v2160
    %3860 = vmatprep.subr.bf16.mxu0 %v2169
    %3861 = vmatpush1.bf16.msra.mxu0 %v2168
    %3862 = vmatprep.subr.bf16.mxu0 %v2177
    %3863 = vmatpush1.bf16.msra.mxu0 %v2176
    %3864 = vmatprep.subr.bf16.mxu0 %v2185
    %3865 = vmatpush1.bf16.msra.mxu0 %v2184
    %3866 = vmatprep.subr.bf16.mxu0 %v2193
    %3867 = vmatpush1.bf16.msra.mxu0 %v2192
    %3868 = vmatprep.subr.bf16.mxu0 %v2201
    %3869 = vmatpush1.bf16.msra.mxu0 %v2200
    %3870 = vmatprep.subr.bf16.mxu0 %v2209
    %3871 = vmatpush1.bf16.msra.mxu0 %v2208
    %3872 = vmatprep.subr.bf16.mxu0 %v2217
    %3873 = vmatpush1.bf16.msra.mxu0 %v2216
    %3874 = vmatprep.subr.bf16.mxu0 %v2225
    %3875 = vmatpush1.bf16.msra.mxu0 %v2224
    %3876 = vmatprep.subr.bf16.mxu0 %v2233
    %3877 = vmatpush1.bf16.msra.mxu0 %v2232
    %3878 = vmatprep.subr.bf16.mxu0 %v2241
    %3879 = vmatpush1.bf16.msra.mxu0 %v2240
    %3880 = vmatprep.subr.bf16.mxu0 %v2249
    %3881 = vmatpush1.bf16.msra.mxu0 %v2248
    %3882 = vmatprep.subr.bf16.mxu0 %v2257
    %3883 = vmatpush1.bf16.msra.mxu0 %v2256
    %3884 = vmatprep.subr.bf16.mxu0 %v2265
    %3885 = vmatpush1.bf16.msra.mxu0 %v2264
    %3886 = vmatprep.subr.bf16.mxu0 %v2273
    %3887 = vmatpush1.bf16.msra.mxu0 %v2272
    %3888 = vmatprep.subr.bf16.mxu0 %v2281
    %3889 = vmatpush1.bf16.msra.mxu0 %v2280
    %3890 = vmatprep.mubr.bf16.mxu0 %v99
    %3891 = vmatmul.mubr.bf16.gmra.mrb[0].mxu0 %v49
    %v3892 = vpop.f32.mrb[0].mxu0
    %v3893 = vadd.f32 0.0, %v3892
    %v3894 = vpop.f32.mrb[0].mxu0
    %v3895 = vadd.f32 0.0, %v3894
    %v3896 = vpop.f32.mrb[0].mxu0
    %v3897 = vadd.f32 0.0, %v3896
    %v3898 = vpop.f32.mrb[0].mxu0
    %v3899 = vadd.f32 0.0, %v3898
    %3900 = vmatprep.mubr.bf16.mxu0 %v100
    %3901 = vmatmul.mubr.bf16.gmra.mrb[0].mxu0 %v50
    %v3902 = vpop.f32.mrb[0].mxu0
    %v3903 = vadd.f32 0.0, %v3902
    %v3904 = vpop.f32.mrb[0].mxu0
    %v3905 = vadd.f32 0.0, %v3904
    %v3906 = vpop.f32.mrb[0].mxu0
    %v3907 = vadd.f32 0.0, %v3906
    %v3908 = vpop.f32.mrb[0].mxu0
    %v3909 = vadd.f32 0.0, %v3908
    %3910 = vmatprep.mubr.bf16.mxu0 %v101
    %3911 = vmatmul.mubr.bf16.gmra.mrb[0].mxu0 %v51
    %v3912 = vpop.f32.mrb[0].mxu0
    %v3913 = vadd.f32 0.0, %v3912
    %v3914 = vpop.f32.mrb[0].mxu0
    %v3915 = vadd.f32 0.0, %v3914
    %v3916 = vpop.f32.mrb[0].mxu0
    %v3917 = vadd.f32 0.0, %v3916
    %v3918 = vpop.f32.mrb[0].mxu0
    %v3919 = vadd.f32 0.0, %v3918
    %3920 = vmatprep.mubr.bf16.mxu0 %v102
    %3921 = vmatmul.mubr.bf16.gmra.mrb[0].mxu0 %v52
    %v3922 = vpop.f32.mrb[0].mxu0
    %v3923 = vadd.f32 0.0, %v3922
    %v3924 = vpop.f32.mrb[0].mxu0
    %v3925 = vadd.f32 0.0, %v3924
    %v3926 = vpop.f32.mrb[0].mxu0
    %v3927 = vadd.f32 0.0, %v3926
    %v3928 = vpop.f32.mrb[0].mxu0
    %v3929 = vadd.f32 0.0, %v3928
    %3930 = vmatprep.mubr.bf16.mxu0 %v103
    %3931 = vmatmul.mubr.bf16.gmra.mrb[0].mxu0 %v53
    %v3932 = vpop.f32.mrb[0].mxu0
    %v3933 = vadd.f32 0.0, %v3932
    %v3934 = vpop.f32.mrb[0].mxu0
    %v3935 = vadd.f32 0.0, %v3934
    %v3936 = vpop.f32.mrb[0].mxu0
    %v3937 = vadd.f32 0.0, %v3936
    %v3938 = vpop.f32.mrb[0].mxu0
    %v3939 = vadd.f32 0.0, %v3938
    %3940 = vmatprep.mubr.bf16.mxu0 %v104
    %3941 = vmatmul.mubr.bf16.gmra.mrb[0].mxu0 %v54
    %v3942 = vpop.f32.mrb[0].mxu0
    %v3943 = vadd.f32 0.0, %v3942
    %v3944 = vpop.f32.mrb[0].mxu0
    %v3945 = vadd.f32 0.0, %v3944
    %v3946 = vpop.f32.mrb[0].mxu0
    %v3947 = vadd.f32 0.0, %v3946
    %v3948 = vpop.f32.mrb[0].mxu0
    %v3949 = vadd.f32 0.0, %v3948
    %3950 = vmatprep.mubr.bf16.mxu0 %v105
    %3951 = vmatmul.mubr.bf16.gmra.mrb[0].mxu0 %v55
    %v3952 = vpop.f32.mrb[0].mxu0
    %v3953 = vadd.f32 0.0, %v3952
    %v3954 = vpop.f32.mrb[0].mxu0
    %v3955 = vadd.f32 0.0, %v3954
    %v3956 = vpop.f32.mrb[0].mxu0
    %v3957 = vadd.f32 0.0, %v3956
    %v3958 = vpop.f32.mrb[0].mxu0
    %v3959 = vadd.f32 0.0, %v3958
    %3960 = vmatprep.mubr.bf16.mxu0 %v106
    %3961 = vmatmul.mubr.bf16.gmra.mrb[0].mxu0 %v56
    %v3962 = vpop.f32.mrb[0].mxu0
    %v3963 = vadd.f32 0.0, %v3962
    %v3964 = vpop.f32.mrb[0].mxu0
    %v3965 = vadd.f32 0.0, %v3964
    %v3966 = vpop.f32.mrb[0].mxu0
    %v3967 = vadd.f32 0.0, %v3966
    %v3968 = vpop.f32.mrb[0].mxu0
    %v3969 = vadd.f32 0.0, %v3968
    %3970 = vmatprep.mubr.bf16.mxu0 %v107
    %3971 = vmatmul.mubr.bf16.gmra.mrb[0].mxu0 %v57
    %v3972 = vpop.f32.mrb[0].mxu0
    %v3973 = vadd.f32 0.0, %v3972
    %v3974 = vpop.f32.mrb[0].mxu0
    %v3975 = vadd.f32 0.0, %v3974
    %v3976 = vpop.f32.mrb[0].mxu0
    %v3977 = vadd.f32 0.0, %v3976
    %v3978 = vpop.f32.mrb[0].mxu0
    %v3979 = vadd.f32 0.0, %v3978
    %3980 = vmatprep.mubr.bf16.mxu0 %v108
    %3981 = vmatmul.mubr.bf16.gmra.mrb[0].mxu0 %v58
    %v3982 = vpop.f32.mrb[0].mxu0
    %v3983 = vadd.f32 0.0, %v3982
    %v3984 = vpop.f32.mrb[0].mxu0
    %v3985 = vadd.f32 0.0, %v3984
    %v3986 = vpop.f32.mrb[0].mxu0
    %v3987 = vadd.f32 0.0, %v3986
    %v3988 = vpop.f32.mrb[0].mxu0
    %v3989 = vadd.f32 0.0, %v3988
    %3990 = vmatprep.mubr.bf16.mxu0 %v109
    %3991 = vmatmul.mubr.bf16.gmra.mrb[0].mxu0 %v59
    %v3992 = vpop.f32.mrb[0].mxu0
    %v3993 = vadd.f32 0.0, %v3992
    %v3994 = vpop.f32.mrb[0].mxu0
    %v3995 = vadd.f32 0.0, %v3994
    %v3996 = vpop.f32.mrb[0].mxu0
    %v3997 = vadd.f32 0.0, %v3996
    %v3998 = vpop.f32.mrb[0].mxu0
    %v3999 = vadd.f32 0.0, %v3998
    %4000 = vmatprep.mubr.bf16.mxu0 %v110
    %4001 = vmatmul.mubr.bf16.gmra.mrb[0].mxu0 %v60
    %v4002 = vpop.f32.mrb[0].mxu0
    %v4003 = vadd.f32 0.0, %v4002
    %v4004 = vpop.f32.mrb[0].mxu0
    %v4005 = vadd.f32 0.0, %v4004
    %v4006 = vpop.f32.mrb[0].mxu0
    %v4007 = vadd.f32 0.0, %v4006
    %v4008 = vpop.f32.mrb[0].mxu0
    %v4009 = vadd.f32 0.0, %v4008
    %4010 = vmatprep.mubr.bf16.mxu0 %v111
    %4011 = vmatmul.mubr.bf16.gmra.mrb[0].mxu0 %v61
    %v4012 = vpop.f32.mrb[0].mxu0
    %v4013 = vadd.f32 0.0, %v4012
    %v4014 = vpop.f32.mrb[0].mxu0
    %v4015 = vadd.f32 0.0, %v4014
    %v4016 = vpop.f32.mrb[0].mxu0
    %v4017 = vadd.f32 0.0, %v4016
    %v4018 = vpop.f32.mrb[0].mxu0
    %v4019 = vadd.f32 0.0, %v4018
    %4020 = vmatprep.mubr.bf16.mxu0 %v112
    %4021 = vmatmul.mubr.bf16.gmra.mrb[0].mxu0 %v62
    %v4022 = vpop.f32.mrb[0].mxu0
    %v4023 = vadd.f32 0.0, %v4022
    %v4024 = vpop.f32.mrb[0].mxu0
    %v4025 = vadd.f32 0.0, %v4024
    %v4026 = vpop.f32.mrb[0].mxu0
    %v4027 = vadd.f32 0.0, %v4026
    %v4028 = vpop.f32.mrb[0].mxu0
    %v4029 = vadd.f32 0.0, %v4028
    %4030 = vmatprep.mubr.bf16.mxu0 %v113
    %4031 = vmatmul.mubr.bf16.gmra.mrb[0].mxu0 %v63
    %v4032 = vpop.f32.mrb[0].mxu0
    %v4033 = vadd.f32 0.0, %v4032
    %v4034 = vpop.f32.mrb[0].mxu0
    %v4035 = vadd.f32 0.0, %v4034
    %v4036 = vpop.f32.mrb[0].mxu0
    %v4037 = vadd.f32 0.0, %v4036
    %v4038 = vpop.f32.mrb[0].mxu0
    %v4039 = vadd.f32 0.0, %v4038
    %4040 = vmatprep.mubr.bf16.mxu0 %v114
    %4041 = vmatmul.mubr.bf16.gmra.mrb[0].mxu0 %v64
    %v4042 = vpop.f32.mrb[0].mxu0
    %v4043 = vadd.f32 0.0, %v4042
    %v4044 = vpop.f32.mrb[0].mxu0
    %v4045 = vadd.f32 0.0, %v4044
    %v4046 = vpop.f32.mrb[0].mxu0
    %v4047 = vadd.f32 0.0, %v4046
    %v4048 = vpop.f32.mrb[0].mxu0
    %v4049 = vadd.f32 0.0, %v4048
    %4050 = vmatprep.mubr.bf16.mxu0 %v115
    %4051 = vmatmul.mubr.bf16.gmra.mrb[0].mxu0 %v65
    %v4052 = vpop.f32.mrb[0].mxu0
    %v4053 = vadd.f32 0.0, %v4052
    %v4054 = vpop.f32.mrb[0].mxu0
    %v4055 = vadd.f32 0.0, %v4054
    %v4056 = vpop.f32.mrb[0].mxu0
    %v4057 = vpop.f32.mrb[0].mxu0
    %4058 = vdwg.mxu0
    %4059 = vmatprep.subr.bf16.mxu0 %v2289
    %4060 = vmatpush1.bf16.msra.mxu0 %v2288
    %4061 = vmatprep.subr.bf16.mxu0 %v2297
    %4062 = vmatpush1.bf16.msra.mxu0 %v2296
    %4063 = vmatprep.subr.bf16.mxu0 %v2305
    %4064 = vmatpush1.bf16.msra.mxu0 %v2304
    %4065 = vmatprep.subr.bf16.mxu0 %v2313
    %4066 = vmatpush1.bf16.msra.mxu0 %v2312
    %4067 = vmatprep.subr.bf16.mxu0 %v2321
    %4068 = vmatpush1.bf16.msra.mxu0 %v2320
    %4069 = vmatprep.subr.bf16.mxu0 %v2329
    %4070 = vmatpush1.bf16.msra.mxu0 %v2328
    %4071 = vmatprep.subr.bf16.mxu0 %v2337
    %4072 = vmatpush1.bf16.msra.mxu0 %v2336
    %4073 = vmatprep.subr.bf16.mxu0 %v2345
    %4074 = vmatpush1.bf16.msra.mxu0 %v2344
    %4075 = vmatprep.subr.bf16.mxu0 %v2353
    %4076 = vmatpush1.bf16.msra.mxu0 %v2352
    %4077 = vmatprep.subr.bf16.mxu0 %v2361
    %4078 = vmatpush1.bf16.msra.mxu0 %v2360
    %4079 = vmatprep.subr.bf16.mxu0 %v2369
    %4080 = vmatpush1.bf16.msra.mxu0 %v2368
    %4081 = vmatprep.subr.bf16.mxu0 %v2377
    %4082 = vmatpush1.bf16.msra.mxu0 %v2376
    %4083 = vmatprep.subr.bf16.mxu0 %v2385
    %4084 = vmatpush1.bf16.msra.mxu0 %v2384
    %4085 = vmatprep.subr.bf16.mxu0 %v2393
    %4086 = vmatpush1.bf16.msra.mxu0 %v2392
    %4087 = vmatprep.subr.bf16.mxu0 %v2401
    %4088 = vmatpush1.bf16.msra.mxu0 %v2400
    %4089 = vmatprep.subr.bf16.mxu0 %v2409
    %4090 = vmatpush1.bf16.msra.mxu0 %v2408
    %4091 = vmatprep.mubr.bf16.mxu0 %v199
    %4092 = vmatmul.mubr.bf16.gmra.mrb[0].mxu0 %v149
    %v4093 = vpop.f32.mrb[0].mxu0
    %v4094 = vadd.f32 %v3893, %v4093
    %v4095 = vpop.f32.mrb[0].mxu0
    %v4096 = vadd.f32 %v3895, %v4095
    %v4097 = vpop.f32.mrb[0].mxu0
    %v4098 = vadd.f32 %v3897, %v4097
    %v4099 = vpop.f32.mrb[0].mxu0
    %v4100 = vadd.f32 %v3899, %v4099
    %4101 = vmatprep.mubr.bf16.mxu0 %v200
    %4102 = vmatmul.mubr.bf16.gmra.mrb[0].mxu0 %v150
    %v4103 = vpop.f32.mrb[0].mxu0
    %v4104 = vadd.f32 %v3903, %v4103
    %v4105 = vpop.f32.mrb[0].mxu0
    %v4106 = vadd.f32 %v3905, %v4105
    %v4107 = vpop.f32.mrb[0].mxu0
    %v4108 = vadd.f32 %v3907, %v4107
    %v4109 = vpop.f32.mrb[0].mxu0
    %v4110 = vadd.f32 %v3909, %v4109
    %4111 = vmatprep.mubr.bf16.mxu0 %v201
    %4112 = vmatmul.mubr.bf16.gmra.mrb[0].mxu0 %v151
    %v4113 = vpop.f32.mrb[0].mxu0
    %v4114 = vadd.f32 %v3913, %v4113
    %v4115 = vpop.f32.mrb[0].mxu0
    %v4116 = vadd.f32 %v3915, %v4115
    %v4117 = vpop.f32.mrb[0].mxu0
    %v4118 = vadd.f32 %v3917, %v4117
    %v4119 = vpop.f32.mrb[0].mxu0
    %v4120 = vadd.f32 %v3919, %v4119
    %4121 = vmatprep.mubr.bf16.mxu0 %v202
    %4122 = vmatmul.mubr.bf16.gmra.mrb[0].mxu0 %v152
    %v4123 = vpop.f32.mrb[0].mxu0
    %v4124 = vadd.f32 %v3923, %v4123
    %v4125 = vpop.f32.mrb[0].mxu0
    %v4126 = vadd.f32 %v3925, %v4125
    %v4127 = vpop.f32.mrb[0].mxu0
    %v4128 = vadd.f32 %v3927, %v4127
    %v4129 = vpop.f32.mrb[0].mxu0
    %v4130 = vadd.f32 %v3929, %v4129
    %4131 = vmatprep.mubr.bf16.mxu0 %v203
    %4132 = vmatmul.mubr.bf16.gmra.mrb[0].mxu0 %v153
    %v4133 = vpop.f32.mrb[0].mxu0
    %v4134 = vadd.f32 %v3933, %v4133
    %v4135 = vpop.f32.mrb[0].mxu0
    %v4136 = vadd.f32 %v3935, %v4135
    %v4137 = vpop.f32.mrb[0].mxu0
    %v4138 = vadd.f32 %v3937, %v4137
    %v4139 = vpop.f32.mrb[0].mxu0
    %v4140 = vadd.f32 %v3939, %v4139
    %4141 = vmatprep.mubr.bf16.mxu0 %v204
    %4142 = vmatmul.mubr.bf16.gmra.mrb[0].mxu0 %v154
    %v4143 = vpop.f32.mrb[0].mxu0
    %v4144 = vadd.f32 %v3943, %v4143
    %v4145 = vpop.f32.mrb[0].mxu0
    %v4146 = vadd.f32 %v3945, %v4145
    %v4147 = vpop.f32.mrb[0].mxu0
    %v4148 = vadd.f32 %v3947, %v4147
    %v4149 = vpop.f32.mrb[0].mxu0
    %v4150 = vadd.f32 %v3949, %v4149
    %4151 = vmatprep.mubr.bf16.mxu0 %v205
    %4152 = vmatmul.mubr.bf16.gmra.mrb[0].mxu0 %v155
    %v4153 = vpop.f32.mrb[0].mxu0
    %v4154 = vadd.f32 %v3953, %v4153
    %v4155 = vpop.f32.mrb[0].mxu0
    %v4156 = vadd.f32 %v3955, %v4155
    %v4157 = vpop.f32.mrb[0].mxu0
    %v4158 = vadd.f32 %v3957, %v4157
    %v4159 = vpop.f32.mrb[0].mxu0
    %v4160 = vadd.f32 %v3959, %v4159
    %4161 = vmatprep.mubr.bf16.mxu0 %v206
    %4162 = vmatmul.mubr.bf16.gmra.mrb[0].mxu0 %v156
    %v4163 = vpop.f32.mrb[0].mxu0
    %v4164 = vadd.f32 %v3963, %v4163
    %v4165 = vpop.f32.mrb[0].mxu0
    %v4166 = vadd.f32 %v3965, %v4165
    %v4167 = vpop.f32.mrb[0].mxu0
    %v4168 = vadd.f32 %v3967, %v4167
    %v4169 = vpop.f32.mrb[0].mxu0
    %v4170 = vadd.f32 %v3969, %v4169
    %4171 = vmatprep.mubr.bf16.mxu0 %v207
    %4172 = vmatmul.mubr.bf16.gmra.mrb[0].mxu0 %v157
    %v4173 = vpop.f32.mrb[0].mxu0
    %v4174 = vadd.f32 %v3973, %v4173
    %v4175 = vpop.f32.mrb[0].mxu0
    %v4176 = vadd.f32 %v3975, %v4175
    %v4177 = vpop.f32.mrb[0].mxu0
    %v4178 = vadd.f32 %v3977, %v4177
    %v4179 = vpop.f32.mrb[0].mxu0
    %v4180 = vadd.f32 %v3979, %v4179
    %4181 = vmatprep.mubr.bf16.mxu0 %v208
    %4182 = vmatmul.mubr.bf16.gmra.mrb[0].mxu0 %v158
    %v4183 = vpop.f32.mrb[0].mxu0
    %v4184 = vadd.f32 %v3983, %v4183
    %v4185 = vpop.f32.mrb[0].mxu0
    %v4186 = vadd.f32 %v3985, %v4185
    %v4187 = vpop.f32.mrb[0].mxu0
    %v4188 = vadd.f32 %v3987, %v4187
    %v4189 = vpop.f32.mrb[0].mxu0
    %v4190 = vadd.f32 %v3989, %v4189
    %4191 = vmatprep.mubr.bf16.mxu0 %v209
    %4192 = vmatmul.mubr.bf16.gmra.mrb[0].mxu0 %v159
    %v4193 = vpop.f32.mrb[0].mxu0
    %v4194 = vadd.f32 %v3993, %v4193
    %v4195 = vpop.f32.mrb[0].mxu0
    %v4196 = vadd.f32 %v3995, %v4195
    %v4197 = vpop.f32.mrb[0].mxu0
    %v4198 = vadd.f32 %v3997, %v4197
    %v4199 = vpop.f32.mrb[0].mxu0
    %v4200 = vadd.f32 %v3999, %v4199
    %4201 = vmatprep.mubr.bf16.mxu0 %v210
    %4202 = vmatmul.mubr.bf16.gmra.mrb[0].mxu0 %v160
    %v4203 = vpop.f32.mrb[0].mxu0
    %v4204 = vadd.f32 %v4003, %v4203
    %v4205 = vpop.f32.mrb[0].mxu0
    %v4206 = vadd.f32 %v4005, %v4205
    %v4207 = vpop.f32.mrb[0].mxu0
    %v4208 = vadd.f32 %v4007, %v4207
    %v4209 = vpop.f32.mrb[0].mxu0
    %v4210 = vadd.f32 %v4009, %v4209
    %4211 = vmatprep.mubr.bf16.mxu0 %v211
    %4212 = vmatmul.mubr.bf16.gmra.mrb[0].mxu0 %v161
    %v4213 = vpop.f32.mrb[0].mxu0
    %v4214 = vadd.f32 %v4013, %v4213
    %v4215 = vpop.f32.mrb[0].mxu0
    %v4216 = vadd.f32 %v4015, %v4215
    %v4217 = vpop.f32.mrb[0].mxu0
    %v4218 = vadd.f32 %v4017, %v4217
    %v4219 = vpop.f32.mrb[0].mxu0
    %v4220 = vadd.f32 %v4019, %v4219
    %4221 = vmatprep.mubr.bf16.mxu0 %v212
    %4222 = vmatmul.mubr.bf16.gmra.mrb[0].mxu0 %v162
    %v4223 = vpop.f32.mrb[0].mxu0
    %v4224 = vadd.f32 %v4023, %v4223
    %v4225 = vpop.f32.mrb[0].mxu0
    %v4226 = vadd.f32 %v4025, %v4225
    %v4227 = vpop.f32.mrb[0].mxu0
    %v4228 = vadd.f32 %v4027, %v4227
    %v4229 = vpop.f32.mrb[0].mxu0
    %v4230 = vadd.f32 %v4029, %v4229
    %4231 = vmatprep.mubr.bf16.mxu0 %v213
    %4232 = vmatmul.mubr.bf16.gmra.mrb[0].mxu0 %v163
    %v4233 = vpop.f32.mrb[0].mxu0
    %v4234 = vadd.f32 %v4033, %v4233
    %v4235 = vpop.f32.mrb[0].mxu0
    %v4236 = vadd.f32 %v4035, %v4235
    %v4237 = vpop.f32.mrb[0].mxu0
    %v4238 = vadd.f32 %v4037, %v4237
    %v4239 = vpop.f32.mrb[0].mxu0
    %v4240 = vadd.f32 %v4039, %v4239
    %4241 = vmatprep.mubr.bf16.mxu0 %v214
    %4242 = vmatmul.mubr.bf16.gmra.mrb[0].mxu0 %v164
    %v4243 = vpop.f32.mrb[0].mxu0
    %v4244 = vadd.f32 %v4043, %v4243
    %v4245 = vpop.f32.mrb[0].mxu0
    %v4246 = vadd.f32 %v4045, %v4245
    %v4247 = vpop.f32.mrb[0].mxu0
    %v4248 = vadd.f32 %v4047, %v4247
    %v4249 = vpop.f32.mrb[0].mxu0
    %v4250 = vadd.f32 %v4049, %v4249
    %4251 = vmatprep.mubr.bf16.mxu0 %v215
    %4252 = vmatmul.mubr.bf16.gmra.mrb[0].mxu0 %v165
    %v4253 = vpop.f32.mrb[0].mxu0
    %v4254 = vadd.f32 %v4053, %v4253
    %v4255 = vpop.f32.mrb[0].mxu0
    %v4256 = vadd.f32 %v4055, %v4255
    %v4257 = vpop.f32.mrb[0].mxu0
    %v4258 = vpop.f32.mrb[0].mxu0
    %4259 = vdwg.mxu0
    %4260 = vmatprep.subr.bf16.mxu0 %v2417
    %4261 = vmatpush1.bf16.msra.mxu0 %v2416
    %4262 = vmatprep.subr.bf16.mxu0 %v2425
    %4263 = vmatpush1.bf16.msra.mxu0 %v2424
    %4264 = vmatprep.subr.bf16.mxu0 %v2433
    %4265 = vmatpush1.bf16.msra.mxu0 %v2432
    %4266 = vmatprep.subr.bf16.mxu0 %v2441
    %4267 = vmatpush1.bf16.msra.mxu0 %v2440
    %4268 = vmatprep.subr.bf16.mxu0 %v2449
    %4269 = vmatpush1.bf16.msra.mxu0 %v2448
    %4270 = vmatprep.subr.bf16.mxu0 %v2457
    %4271 = vmatpush1.bf16.msra.mxu0 %v2456
    %4272 = vmatprep.subr.bf16.mxu0 %v2465
    %4273 = vmatpush1.bf16.msra.mxu0 %v2464
    %4274 = vmatprep.subr.bf16.mxu0 %v2473
    %4275 = vmatpush1.bf16.msra.mxu0 %v2472
    %4276 = vmatprep.subr.bf16.mxu0 %v2481
    %4277 = vmatpush1.bf16.msra.mxu0 %v2480
    %4278 = vmatprep.subr.bf16.mxu0 %v2489
    %4279 = vmatpush1.bf16.msra.mxu0 %v2488
    %4280 = vmatprep.subr.bf16.mxu0 %v2497
    %4281 = vmatpush1.bf16.msra.mxu0 %v2496
    %4282 = vmatprep.subr.bf16.mxu0 %v2505
    %4283 = vmatpush1.bf16.msra.mxu0 %v2504
    %4284 = vmatprep.subr.bf16.mxu0 %v2513
    %4285 = vmatpush1.bf16.msra.mxu0 %v2512
    %4286 = vmatprep.subr.bf16.mxu0 %v2521
    %4287 = vmatpush1.bf16.msra.mxu0 %v2520
    %4288 = vmatprep.subr.bf16.mxu0 %v2529
    %4289 = vmatpush1.bf16.msra.mxu0 %v2528
    %4290 = vmatprep.subr.bf16.mxu0 %v2537
    %4291 = vmatpush1.bf16.msra.mxu0 %v2536
    %4292 = vmatprep.mubr.bf16.mxu0 %v299
    %4293 = vmatmul.mubr.bf16.gmra.mrb[0].mxu0 %v249
    %v4294 = vpop.f32.mrb[0].mxu0
    %v4295 = vadd.f32 %v4094, %v4294
    %v4296 = vpop.f32.mrb[0].mxu0
    %v4297 = vadd.f32 %v4096, %v4296
    %v4298 = vpop.f32.mrb[0].mxu0
    %v4299 = vadd.f32 %v4098, %v4298
    %v4300 = vpop.f32.mrb[0].mxu0
    %v4301 = vadd.f32 %v4100, %v4300
    %4302 = vmatprep.mubr.bf16.mxu0 %v300
    %4303 = vmatmul.mubr.bf16.gmra.mrb[0].mxu0 %v250
    %v4304 = vpop.f32.mrb[0].mxu0
    %v4305 = vadd.f32 %v4104, %v4304
    %v4306 = vpop.f32.mrb[0].mxu0
    %v4307 = vadd.f32 %v4106, %v4306
    %v4308 = vpop.f32.mrb[0].mxu0
    %v4309 = vadd.f32 %v4108, %v4308
    %v4310 = vpop.f32.mrb[0].mxu0
    %v4311 = vadd.f32 %v4110, %v4310
    %4312 = vmatprep.mubr.bf16.mxu0 %v301
    %4313 = vmatmul.mubr.bf16.gmra.mrb[0].mxu0 %v251
    %v4314 = vpop.f32.mrb[0].mxu0
    %v4315 = vadd.f32 %v4114, %v4314
    %v4316 = vpop.f32.mrb[0].mxu0
    %v4317 = vadd.f32 %v4116, %v4316
    %v4318 = vpop.f32.mrb[0].mxu0
    %v4319 = vadd.f32 %v4118, %v4318
    %v4320 = vpop.f32.mrb[0].mxu0
    %v4321 = vadd.f32 %v4120, %v4320
    %4322 = vmatprep.mubr.bf16.mxu0 %v302
    %4323 = vmatmul.mubr.bf16.gmra.mrb[0].mxu0 %v252
    %v4324 = vpop.f32.mrb[0].mxu0
    %v4325 = vadd.f32 %v4124, %v4324
    %v4326 = vpop.f32.mrb[0].mxu0
    %v4327 = vadd.f32 %v4126, %v4326
    %v4328 = vpop.f32.mrb[0].mxu0
    %v4329 = vadd.f32 %v4128, %v4328
    %v4330 = vpop.f32.mrb[0].mxu0
    %v4331 = vadd.f32 %v4130, %v4330
    %4332 = vmatprep.mubr.bf16.mxu0 %v303
    %4333 = vmatmul.mubr.bf16.gmra.mrb[0].mxu0 %v253
    %v4334 = vpop.f32.mrb[0].mxu0
    %v4335 = vadd.f32 %v4134, %v4334
    %v4336 = vpop.f32.mrb[0].mxu0
    %v4337 = vadd.f32 %v4136, %v4336
    %v4338 = vpop.f32.mrb[0].mxu0
    %v4339 = vadd.f32 %v4138, %v4338
    %v4340 = vpop.f32.mrb[0].mxu0
    %v4341 = vadd.f32 %v4140, %v4340
    %4342 = vmatprep.mubr.bf16.mxu0 %v304
    %4343 = vmatmul.mubr.bf16.gmra.mrb[0].mxu0 %v254
    %v4344 = vpop.f32.mrb[0].mxu0
    %v4345 = vadd.f32 %v4144, %v4344
    %v4346 = vpop.f32.mrb[0].mxu0
    %v4347 = vadd.f32 %v4146, %v4346
    %v4348 = vpop.f32.mrb[0].mxu0
    %v4349 = vadd.f32 %v4148, %v4348
    %v4350 = vpop.f32.mrb[0].mxu0
    %v4351 = vadd.f32 %v4150, %v4350
    %4352 = vmatprep.mubr.bf16.mxu0 %v305
    %4353 = vmatmul.mubr.bf16.gmra.mrb[0].mxu0 %v255
    %v4354 = vpop.f32.mrb[0].mxu0
    %v4355 = vadd.f32 %v4154, %v4354
    %v4356 = vpop.f32.mrb[0].mxu0
    %v4357 = vadd.f32 %v4156, %v4356
    %v4358 = vpop.f32.mrb[0].mxu0
    %v4359 = vadd.f32 %v4158, %v4358
    %v4360 = vpop.f32.mrb[0].mxu0
    %v4361 = vadd.f32 %v4160, %v4360
    %4362 = vmatprep.mubr.bf16.mxu0 %v306
    %4363 = vmatmul.mubr.bf16.gmra.mrb[0].mxu0 %v256
    %v4364 = vpop.f32.mrb[0].mxu0
    %v4365 = vadd.f32 %v4164, %v4364
    %v4366 = vpop.f32.mrb[0].mxu0
    %v4367 = vadd.f32 %v4166, %v4366
    %v4368 = vpop.f32.mrb[0].mxu0
    %v4369 = vadd.f32 %v4168, %v4368
    %v4370 = vpop.f32.mrb[0].mxu0
    %v4371 = vadd.f32 %v4170, %v4370
    %4372 = vmatprep.mubr.bf16.mxu0 %v307
    %4373 = vmatmul.mubr.bf16.gmra.mrb[0].mxu0 %v257
    %v4374 = vpop.f32.mrb[0].mxu0
    %v4375 = vadd.f32 %v4174, %v4374
    %v4376 = vpop.f32.mrb[0].mxu0
    %v4377 = vadd.f32 %v4176, %v4376
    %v4378 = vpop.f32.mrb[0].mxu0
    %v4379 = vadd.f32 %v4178, %v4378
    %v4380 = vpop.f32.mrb[0].mxu0
    %v4381 = vadd.f32 %v4180, %v4380
    %4382 = vmatprep.mubr.bf16.mxu0 %v308
    %4383 = vmatmul.mubr.bf16.gmra.mrb[0].mxu0 %v258
    %v4384 = vpop.f32.mrb[0].mxu0
    %v4385 = vadd.f32 %v4184, %v4384
    %v4386 = vpop.f32.mrb[0].mxu0
    %v4387 = vadd.f32 %v4186, %v4386
    %v4388 = vpop.f32.mrb[0].mxu0
    %v4389 = vadd.f32 %v4188, %v4388
    %v4390 = vpop.f32.mrb[0].mxu0
    %v4391 = vadd.f32 %v4190, %v4390
    %4392 = vmatprep.mubr.bf16.mxu0 %v309
    %4393 = vmatmul.mubr.bf16.gmra.mrb[0].mxu0 %v259
    %v4394 = vpop.f32.mrb[0].mxu0
    %v4395 = vadd.f32 %v4194, %v4394
    %v4396 = vpop.f32.mrb[0].mxu0
    %v4397 = vadd.f32 %v4196, %v4396
    %v4398 = vpop.f32.mrb[0].mxu0
    %v4399 = vadd.f32 %v4198, %v4398
    %v4400 = vpop.f32.mrb[0].mxu0
    %v4401 = vadd.f32 %v4200, %v4400
    %4402 = vmatprep.mubr.bf16.mxu0 %v310
    %4403 = vmatmul.mubr.bf16.gmra.mrb[0].mxu0 %v260
    %v4404 = vpop.f32.mrb[0].mxu0
    %v4405 = vadd.f32 %v4204, %v4404
    %v4406 = vpop.f32.mrb[0].mxu0
    %v4407 = vadd.f32 %v4206, %v4406
    %v4408 = vpop.f32.mrb[0].mxu0
    %v4409 = vadd.f32 %v4208, %v4408
    %v4410 = vpop.f32.mrb[0].mxu0
    %v4411 = vadd.f32 %v4210, %v4410
    %4412 = vmatprep.mubr.bf16.mxu0 %v311
    %4413 = vmatmul.mubr.bf16.gmra.mrb[0].mxu0 %v261
    %v4414 = vpop.f32.mrb[0].mxu0
    %v4415 = vadd.f32 %v4214, %v4414
    %v4416 = vpop.f32.mrb[0].mxu0
    %v4417 = vadd.f32 %v4216, %v4416
    %v4418 = vpop.f32.mrb[0].mxu0
    %v4419 = vadd.f32 %v4218, %v4418
    %v4420 = vpop.f32.mrb[0].mxu0
    %v4421 = vadd.f32 %v4220, %v4420
    %4422 = vmatprep.mubr.bf16.mxu0 %v312
    %4423 = vmatmul.mubr.bf16.gmra.mrb[0].mxu0 %v262
    %v4424 = vpop.f32.mrb[0].mxu0
    %v4425 = vadd.f32 %v4224, %v4424
    %v4426 = vpop.f32.mrb[0].mxu0
    %v4427 = vadd.f32 %v4226, %v4426
    %v4428 = vpop.f32.mrb[0].mxu0
    %v4429 = vadd.f32 %v4228, %v4428
    %v4430 = vpop.f32.mrb[0].mxu0
    %v4431 = vadd.f32 %v4230, %v4430
    %4432 = vmatprep.mubr.bf16.mxu0 %v313
    %4433 = vmatmul.mubr.bf16.gmra.mrb[0].mxu0 %v263
    %v4434 = vpop.f32.mrb[0].mxu0
    %v4435 = vadd.f32 %v4234, %v4434
    %v4436 = vpop.f32.mrb[0].mxu0
    %v4437 = vadd.f32 %v4236, %v4436
    %v4438 = vpop.f32.mrb[0].mxu0
    %v4439 = vadd.f32 %v4238, %v4438
    %v4440 = vpop.f32.mrb[0].mxu0
    %v4441 = vadd.f32 %v4240, %v4440
    %4442 = vmatprep.mubr.bf16.mxu0 %v314
    %4443 = vmatmul.mubr.bf16.gmra.mrb[0].mxu0 %v264
    %v4444 = vpop.f32.mrb[0].mxu0
    %v4445 = vadd.f32 %v4244, %v4444
    %v4446 = vpop.f32.mrb[0].mxu0
    %v4447 = vadd.f32 %v4246, %v4446
    %v4448 = vpop.f32.mrb[0].mxu0
    %v4449 = vadd.f32 %v4248, %v4448
    %v4450 = vpop.f32.mrb[0].mxu0
    %v4451 = vadd.f32 %v4250, %v4450
    %4452 = vmatprep.mubr.bf16.mxu0 %v315
    %4453 = vmatmul.mubr.bf16.gmra.mrb[0].mxu0 %v265
    %v4454 = vpop.f32.mrb[0].mxu0
    %v4455 = vadd.f32 %v4254, %v4454
    %v4456 = vpop.f32.mrb[0].mxu0
    %v4457 = vadd.f32 %v4256, %v4456
    %v4458 = vpop.f32.mrb[0].mxu0
    %v4459 = vpop.f32.mrb[0].mxu0
    %4460 = vdwg.mxu0
    %4461 = vmatprep.subr.bf16.mxu0 %v2545
    %4462 = vmatpush1.bf16.msra.mxu0 %v2544
    %4463 = vmatprep.subr.bf16.mxu0 %v2553
    %4464 = vmatpush1.bf16.msra.mxu0 %v2552
    %4465 = vmatprep.subr.bf16.mxu0 %v2561
    %4466 = vmatpush1.bf16.msra.mxu0 %v2560
    %4467 = vmatprep.subr.bf16.mxu0 %v2569
    %4468 = vmatpush1.bf16.msra.mxu0 %v2568
    %4469 = vmatprep.subr.bf16.mxu0 %v2577
    %4470 = vmatpush1.bf16.msra.mxu0 %v2576
    %4471 = vmatprep.subr.bf16.mxu0 %v2585
    %4472 = vmatpush1.bf16.msra.mxu0 %v2584
    %4473 = vmatprep.subr.bf16.mxu0 %v2593
    %4474 = vmatpush1.bf16.msra.mxu0 %v2592
    %4475 = vmatprep.subr.bf16.mxu0 %v2601
    %4476 = vmatpush1.bf16.msra.mxu0 %v2600
    %4477 = vmatprep.subr.bf16.mxu0 0
    %4478 = vmatpush1.bf16.msra.mxu0 0
    %4479 = vmatprep.subr.bf16.mxu0 0
    %4480 = vmatpush1.bf16.msra.mxu0 0
    %4481 = vmatprep.subr.bf16.mxu0 0
    %4482 = vmatpush1.bf16.msra.mxu0 0
    %4483 = vmatprep.subr.bf16.mxu0 0
    %4484 = vmatpush1.bf16.msra.mxu0 0
    %4485 = vmatprep.subr.bf16.mxu0 0
    %4486 = vmatpush1.bf16.msra.mxu0 0
    %4487 = vmatprep.subr.bf16.mxu0 0
    %4488 = vmatpush1.bf16.msra.mxu0 0
    %4489 = vmatprep.subr.bf16.mxu0 0
    %4490 = vmatpush1.bf16.msra.mxu0 0
    %4491 = vmatprep.subr.bf16.mxu0 0
    %4492 = vmatpush1.bf16.msra.mxu0 0
    %4493 = vmatprep.mubr.bf16.mxu0 0
    %4494 = vmatmul.mubr.bf16.gmra.mrb[0].mxu0 %v349
    %v4495 = vpop.f32.mrb[0].mxu0
    %v4496 = vadd.f32 %v4295, %v4495
    %v4497 = vpop.f32.mrb[0].mxu0
    %v4498 = vadd.f32 %v4297, %v4497
    %v4499 = vpop.f32.mrb[0].mxu0
    %v4500 = vadd.f32 %v4299, %v4499
    %v4501 = vpop.f32.mrb[0].mxu0
    %v4502 = vadd.f32 %v4301, %v4501
    %4503 = vmatprep.mubr.bf16.mxu0 0
    %4504 = vmatmul.mubr.bf16.gmra.mrb[0].mxu0 %v350
    %v4505 = vpop.f32.mrb[0].mxu0
    %v4506 = vadd.f32 %v4305, %v4505
    %v4507 = vpop.f32.mrb[0].mxu0
    %v4508 = vadd.f32 %v4307, %v4507
    %v4509 = vpop.f32.mrb[0].mxu0
    %v4510 = vadd.f32 %v4309, %v4509
    %v4511 = vpop.f32.mrb[0].mxu0
    %v4512 = vadd.f32 %v4311, %v4511
    %4513 = vmatprep.mubr.bf16.mxu0 0
    %4514 = vmatmul.mubr.bf16.gmra.mrb[0].mxu0 %v351
    %v4515 = vpop.f32.mrb[0].mxu0
    %v4516 = vadd.f32 %v4315, %v4515
    %v4517 = vpop.f32.mrb[0].mxu0
    %v4518 = vadd.f32 %v4317, %v4517
    %v4519 = vpop.f32.mrb[0].mxu0
    %v4520 = vadd.f32 %v4319, %v4519
    %v4521 = vpop.f32.mrb[0].mxu0
    %v4522 = vadd.f32 %v4321, %v4521
    %4523 = vmatprep.mubr.bf16.mxu0 0
    %4524 = vmatmul.mubr.bf16.gmra.mrb[0].mxu0 %v352
    %v4525 = vpop.f32.mrb[0].mxu0
    %v4526 = vadd.f32 %v4325, %v4525
    %v4527 = vpop.f32.mrb[0].mxu0
    %v4528 = vadd.f32 %v4327, %v4527
    %v4529 = vpop.f32.mrb[0].mxu0
    %v4530 = vadd.f32 %v4329, %v4529
    %v4531 = vpop.f32.mrb[0].mxu0
    %v4532 = vadd.f32 %v4331, %v4531
    %4533 = vmatprep.mubr.bf16.mxu0 0
    %4534 = vmatmul.mubr.bf16.gmra.mrb[0].mxu0 %v353
    %v4535 = vpop.f32.mrb[0].mxu0
    %v4536 = vadd.f32 %v4335, %v4535
    %v4537 = vpop.f32.mrb[0].mxu0
    %v4538 = vadd.f32 %v4337, %v4537
    %v4539 = vpop.f32.mrb[0].mxu0
    %v4540 = vadd.f32 %v4339, %v4539
    %v4541 = vpop.f32.mrb[0].mxu0
    %v4542 = vadd.f32 %v4341, %v4541
    %4543 = vmatprep.mubr.bf16.mxu0 0
    %4544 = vmatmul.mubr.bf16.gmra.mrb[0].mxu0 %v354
    %v4545 = vpop.f32.mrb[0].mxu0
    %v4546 = vadd.f32 %v4345, %v4545
    %v4547 = vpop.f32.mrb[0].mxu0
    %v4548 = vadd.f32 %v4347, %v4547
    %v4549 = vpop.f32.mrb[0].mxu0
    %v4550 = vadd.f32 %v4349, %v4549
    %v4551 = vpop.f32.mrb[0].mxu0
    %v4552 = vadd.f32 %v4351, %v4551
    %4553 = vmatprep.mubr.bf16.mxu0 0
    %4554 = vmatmul.mubr.bf16.gmra.mrb[0].mxu0 %v355
    %v4555 = vpop.f32.mrb[0].mxu0
    %v4556 = vadd.f32 %v4355, %v4555
    %v4557 = vpop.f32.mrb[0].mxu0
    %v4558 = vadd.f32 %v4357, %v4557
    %v4559 = vpop.f32.mrb[0].mxu0
    %v4560 = vadd.f32 %v4359, %v4559
    %v4561 = vpop.f32.mrb[0].mxu0
    %v4562 = vadd.f32 %v4361, %v4561
    %4563 = vmatprep.mubr.bf16.mxu0 0
    %4564 = vmatmul.mubr.bf16.gmra.mrb[0].mxu0 %v356
    %v4565 = vpop.f32.mrb[0].mxu0
    %v4566 = vadd.f32 %v4365, %v4565
    %v4567 = vpop.f32.mrb[0].mxu0
    %v4568 = vadd.f32 %v4367, %v4567
    %v4569 = vpop.f32.mrb[0].mxu0
    %v4570 = vadd.f32 %v4369, %v4569
    %v4571 = vpop.f32.mrb[0].mxu0
    %v4572 = vadd.f32 %v4371, %v4571
    %4573 = vmatprep.mubr.bf16.mxu0 0
    %4574 = vmatmul.mubr.bf16.gmra.mrb[0].mxu0 %v357
    %v4575 = vpop.f32.mrb[0].mxu0
    %v4576 = vadd.f32 %v4375, %v4575
    %v4577 = vpop.f32.mrb[0].mxu0
    %v4578 = vadd.f32 %v4377, %v4577
    %v4579 = vpop.f32.mrb[0].mxu0
    %v4580 = vadd.f32 %v4379, %v4579
    %v4581 = vpop.f32.mrb[0].mxu0
    %v4582 = vadd.f32 %v4381, %v4581
    %4583 = vmatprep.mubr.bf16.mxu0 0
    %4584 = vmatmul.mubr.bf16.gmra.mrb[0].mxu0 %v358
    %v4585 = vpop.f32.mrb[0].mxu0
    %v4586 = vadd.f32 %v4385, %v4585
    %v4587 = vpop.f32.mrb[0].mxu0
    %v4588 = vadd.f32 %v4387, %v4587
    %v4589 = vpop.f32.mrb[0].mxu0
    %v4590 = vadd.f32 %v4389, %v4589
    %v4591 = vpop.f32.mrb[0].mxu0
    %v4592 = vadd.f32 %v4391, %v4591
    %4593 = vmatprep.mubr.bf16.mxu0 0
    %4594 = vmatmul.mubr.bf16.gmra.mrb[0].mxu0 %v359
    %v4595 = vpop.f32.mrb[0].mxu0
    %v4596 = vadd.f32 %v4395, %v4595
    %v4597 = vpop.f32.mrb[0].mxu0
    %v4598 = vadd.f32 %v4397, %v4597
    %v4599 = vpop.f32.mrb[0].mxu0
    %v4600 = vadd.f32 %v4399, %v4599
    %v4601 = vpop.f32.mrb[0].mxu0
    %v4602 = vadd.f32 %v4401, %v4601
    %4603 = vmatprep.mubr.bf16.mxu0 0
    %4604 = vmatmul.mubr.bf16.gmra.mrb[0].mxu0 %v360
    %v4605 = vpop.f32.mrb[0].mxu0
    %v4606 = vadd.f32 %v4405, %v4605
    %v4607 = vpop.f32.mrb[0].mxu0
    %v4608 = vadd.f32 %v4407, %v4607
    %v4609 = vpop.f32.mrb[0].mxu0
    %v4610 = vadd.f32 %v4409, %v4609
    %v4611 = vpop.f32.mrb[0].mxu0
    %v4612 = vadd.f32 %v4411, %v4611
    %4613 = vmatprep.mubr.bf16.mxu0 0
    %4614 = vmatmul.mubr.bf16.gmra.mrb[0].mxu0 %v361
    %v4615 = vpop.f32.mrb[0].mxu0
    %v4616 = vadd.f32 %v4415, %v4615
    %v4617 = vpop.f32.mrb[0].mxu0
    %v4618 = vadd.f32 %v4417, %v4617
    %v4619 = vpop.f32.mrb[0].mxu0
    %v4620 = vadd.f32 %v4419, %v4619
    %v4621 = vpop.f32.mrb[0].mxu0
    %v4622 = vadd.f32 %v4421, %v4621
    %4623 = vmatprep.mubr.bf16.mxu0 0
    %4624 = vmatmul.mubr.bf16.gmra.mrb[0].mxu0 %v362
    %v4625 = vpop.f32.mrb[0].mxu0
    %v4626 = vadd.f32 %v4425, %v4625
    %v4627 = vpop.f32.mrb[0].mxu0
    %v4628 = vadd.f32 %v4427, %v4627
    %v4629 = vpop.f32.mrb[0].mxu0
    %v4630 = vadd.f32 %v4429, %v4629
    %v4631 = vpop.f32.mrb[0].mxu0
    %v4632 = vadd.f32 %v4431, %v4631
    %4633 = vmatprep.mubr.bf16.mxu0 0
    %4634 = vmatmul.mubr.bf16.gmra.mrb[0].mxu0 %v363
    %v4635 = vpop.f32.mrb[0].mxu0
    %v4636 = vadd.f32 %v4435, %v4635
    %v4637 = vpop.f32.mrb[0].mxu0
    %v4638 = vadd.f32 %v4437, %v4637
    %v4639 = vpop.f32.mrb[0].mxu0
    %v4640 = vadd.f32 %v4439, %v4639
    %v4641 = vpop.f32.mrb[0].mxu0
    %v4642 = vadd.f32 %v4441, %v4641
    %4643 = vmatprep.mubr.bf16.mxu0 0
    %4644 = vmatmul.mubr.bf16.gmra.mrb[0].mxu0 %v364
    %v4645 = vpop.f32.mrb[0].mxu0
    %v4646 = vadd.f32 %v4445, %v4645
    %v4647 = vpop.f32.mrb[0].mxu0
    %v4648 = vadd.f32 %v4447, %v4647
    %v4649 = vpop.f32.mrb[0].mxu0
    %v4650 = vadd.f32 %v4449, %v4649
    %v4651 = vpop.f32.mrb[0].mxu0
    %v4652 = vadd.f32 %v4451, %v4651
    %4653 = vmatprep.mubr.bf16.mxu0 0
    %4654 = vmatmul.mubr.bf16.gmra.mrb[0].mxu0 %v365
    %v4655 = vpop.f32.mrb[0].mxu0
    %v4656 = vadd.f32 %v4455, %v4655
    %v4657 = vpop.f32.mrb[0].mxu0
    %v4658 = vadd.f32 %v4457, %v4657
    %v4659 = vpop.f32.mrb[0].mxu0
    %v4660 = vpop.f32.mrb[0].mxu0
    %4661 = vdwg.mxu0
    %4662 = vmatprep.subr.bf16.mxu0 %v2163
    %4663 = vmatpush1.bf16.msra.mxu0 %v2162
    %4664 = vmatprep.subr.bf16.mxu0 %v2171
    %4665 = vmatpush1.bf16.msra.mxu0 %v2170
    %4666 = vmatprep.subr.bf16.mxu0 %v2179
    %4667 = vmatpush1.bf16.msra.mxu0 %v2178
    %4668 = vmatprep.subr.bf16.mxu0 %v2187
    %4669 = vmatpush1.bf16.msra.mxu0 %v2186
    %4670 = vmatprep.subr.bf16.mxu0 %v2195
    %4671 = vmatpush1.bf16.msra.mxu0 %v2194
    %4672 = vmatprep.subr.bf16.mxu0 %v2203
    %4673 = vmatpush1.bf16.msra.mxu0 %v2202
    %4674 = vmatprep.subr.bf16.mxu0 %v2211
    %4675 = vmatpush1.bf16.msra.mxu0 %v2210
    %4676 = vmatprep.subr.bf16.mxu0 %v2219
    %4677 = vmatpush1.bf16.msra.mxu0 %v2218
    %4678 = vmatprep.subr.bf16.mxu0 %v2227
    %4679 = vmatpush1.bf16.msra.mxu0 %v2226
    %4680 = vmatprep.subr.bf16.mxu0 %v2235
    %4681 = vmatpush1.bf16.msra.mxu0 %v2234
    %4682 = vmatprep.subr.bf16.mxu0 %v2243
    %4683 = vmatpush1.bf16.msra.mxu0 %v2242
    %4684 = vmatprep.subr.bf16.mxu0 %v2251
    %4685 = vmatpush1.bf16.msra.mxu0 %v2250
    %4686 = vmatprep.subr.bf16.mxu0 %v2259
    %4687 = vmatpush1.bf16.msra.mxu0 %v2258
    %4688 = vmatprep.subr.bf16.mxu0 %v2267
    %4689 = vmatpush1.bf16.msra.mxu0 %v2266
    %4690 = vmatprep.subr.bf16.mxu0 %v2275
    %4691 = vmatpush1.bf16.msra.mxu0 %v2274
    %4692 = vmatprep.subr.bf16.mxu0 %v2283
    %4693 = vmatpush1.bf16.msra.mxu0 %v2282
    %4694 = vmatprep.mubr.bf16.mxu0 %v99
    %4695 = vmatmul.mubr.bf16.gmra.mrb[0].mxu0 %v49
    %v4696 = vpop.f32.mrb[0].mxu0
    %v4697 = vadd.f32 0.0, %v4696
    %v4698 = vpop.f32.mrb[0].mxu0
    %v4699 = vadd.f32 0.0, %v4698
    %v4700 = vpop.f32.mrb[0].mxu0
    %v4701 = vadd.f32 0.0, %v4700
    %v4702 = vpop.f32.mrb[0].mxu0
    %v4703 = vadd.f32 0.0, %v4702
    %4704 = vmatprep.mubr.bf16.mxu0 %v100
    %4705 = vmatmul.mubr.bf16.gmra.mrb[0].mxu0 %v50
    %v4706 = vpop.f32.mrb[0].mxu0
    %v4707 = vadd.f32 0.0, %v4706
    %v4708 = vpop.f32.mrb[0].mxu0
    %v4709 = vadd.f32 0.0, %v4708
    %v4710 = vpop.f32.mrb[0].mxu0
    %v4711 = vadd.f32 0.0, %v4710
    %v4712 = vpop.f32.mrb[0].mxu0
    %v4713 = vadd.f32 0.0, %v4712
    %4714 = vmatprep.mubr.bf16.mxu0 %v101
    %4715 = vmatmul.mubr.bf16.gmra.mrb[0].mxu0 %v51
    %v4716 = vpop.f32.mrb[0].mxu0
    %v4717 = vadd.f32 0.0, %v4716
    %v4718 = vpop.f32.mrb[0].mxu0
    %v4719 = vadd.f32 0.0, %v4718
    %v4720 = vpop.f32.mrb[0].mxu0
    %v4721 = vadd.f32 0.0, %v4720
    %v4722 = vpop.f32.mrb[0].mxu0
    %v4723 = vadd.f32 0.0, %v4722
    %4724 = vmatprep.mubr.bf16.mxu0 %v102
    %4725 = vmatmul.mubr.bf16.gmra.mrb[0].mxu0 %v52
    %v4726 = vpop.f32.mrb[0].mxu0
    %v4727 = vadd.f32 0.0, %v4726
    %v4728 = vpop.f32.mrb[0].mxu0
    %v4729 = vadd.f32 0.0, %v4728
    %v4730 = vpop.f32.mrb[0].mxu0
    %v4731 = vadd.f32 0.0, %v4730
    %v4732 = vpop.f32.mrb[0].mxu0
    %v4733 = vadd.f32 0.0, %v4732
    %4734 = vmatprep.mubr.bf16.mxu0 %v103
    %4735 = vmatmul.mubr.bf16.gmra.mrb[0].mxu0 %v53
    %v4736 = vpop.f32.mrb[0].mxu0
    %v4737 = vadd.f32 0.0, %v4736
    %v4738 = vpop.f32.mrb[0].mxu0
    %v4739 = vadd.f32 0.0, %v4738
    %v4740 = vpop.f32.mrb[0].mxu0
    %v4741 = vadd.f32 0.0, %v4740
    %v4742 = vpop.f32.mrb[0].mxu0
    %v4743 = vadd.f32 0.0, %v4742
    %4744 = vmatprep.mubr.bf16.mxu0 %v104
    %4745 = vmatmul.mubr.bf16.gmra.mrb[0].mxu0 %v54
    %v4746 = vpop.f32.mrb[0].mxu0
    %v4747 = vadd.f32 0.0, %v4746
    %v4748 = vpop.f32.mrb[0].mxu0
    %v4749 = vadd.f32 0.0, %v4748
    %v4750 = vpop.f32.mrb[0].mxu0
    %v4751 = vadd.f32 0.0, %v4750
    %v4752 = vpop.f32.mrb[0].mxu0
    %v4753 = vadd.f32 0.0, %v4752
    %4754 = vmatprep.mubr.bf16.mxu0 %v105
    %4755 = vmatmul.mubr.bf16.gmra.mrb[0].mxu0 %v55
    %v4756 = vpop.f32.mrb[0].mxu0
    %v4757 = vadd.f32 0.0, %v4756
    %v4758 = vpop.f32.mrb[0].mxu0
    %v4759 = vadd.f32 0.0, %v4758
    %v4760 = vpop.f32.mrb[0].mxu0
    %v4761 = vadd.f32 0.0, %v4760
    %v4762 = vpop.f32.mrb[0].mxu0
    %v4763 = vadd.f32 0.0, %v4762
    %4764 = vmatprep.mubr.bf16.mxu0 %v106
    %4765 = vmatmul.mubr.bf16.gmra.mrb[0].mxu0 %v56
    %v4766 = vpop.f32.mrb[0].mxu0
    %v4767 = vadd.f32 0.0, %v4766
    %v4768 = vpop.f32.mrb[0].mxu0
    %v4769 = vadd.f32 0.0, %v4768
    %v4770 = vpop.f32.mrb[0].mxu0
    %v4771 = vadd.f32 0.0, %v4770
    %v4772 = vpop.f32.mrb[0].mxu0
    %v4773 = vadd.f32 0.0, %v4772
    %4774 = vmatprep.mubr.bf16.mxu0 %v107
    %4775 = vmatmul.mubr.bf16.gmra.mrb[0].mxu0 %v57
    %v4776 = vpop.f32.mrb[0].mxu0
    %v4777 = vadd.f32 0.0, %v4776
    %v4778 = vpop.f32.mrb[0].mxu0
    %v4779 = vadd.f32 0.0, %v4778
    %v4780 = vpop.f32.mrb[0].mxu0
    %v4781 = vadd.f32 0.0, %v4780
    %v4782 = vpop.f32.mrb[0].mxu0
    %v4783 = vadd.f32 0.0, %v4782
    %4784 = vmatprep.mubr.bf16.mxu0 %v108
    %4785 = vmatmul.mubr.bf16.gmra.mrb[0].mxu0 %v58
    %v4786 = vpop.f32.mrb[0].mxu0
    %v4787 = vadd.f32 0.0, %v4786
    %v4788 = vpop.f32.mrb[0].mxu0
    %v4789 = vadd.f32 0.0, %v4788
    %v4790 = vpop.f32.mrb[0].mxu0
    %v4791 = vadd.f32 0.0, %v4790
    %v4792 = vpop.f32.mrb[0].mxu0
    %v4793 = vadd.f32 0.0, %v4792
    %4794 = vmatprep.mubr.bf16.mxu0 %v109
    %4795 = vmatmul.mubr.bf16.gmra.mrb[0].mxu0 %v59
    %v4796 = vpop.f32.mrb[0].mxu0
    %v4797 = vadd.f32 0.0, %v4796
    %v4798 = vpop.f32.mrb[0].mxu0
    %v4799 = vadd.f32 0.0, %v4798
    %v4800 = vpop.f32.mrb[0].mxu0
    %v4801 = vadd.f32 0.0, %v4800
    %v4802 = vpop.f32.mrb[0].mxu0
    %v4803 = vadd.f32 0.0, %v4802
    %4804 = vmatprep.mubr.bf16.mxu0 %v110
    %4805 = vmatmul.mubr.bf16.gmra.mrb[0].mxu0 %v60
    %v4806 = vpop.f32.mrb[0].mxu0
    %v4807 = vadd.f32 0.0, %v4806
    %v4808 = vpop.f32.mrb[0].mxu0
    %v4809 = vadd.f32 0.0, %v4808
    %v4810 = vpop.f32.mrb[0].mxu0
    %v4811 = vadd.f32 0.0, %v4810
    %v4812 = vpop.f32.mrb[0].mxu0
    %v4813 = vadd.f32 0.0, %v4812
    %4814 = vmatprep.mubr.bf16.mxu0 %v111
    %4815 = vmatmul.mubr.bf16.gmra.mrb[0].mxu0 %v61
    %v4816 = vpop.f32.mrb[0].mxu0
    %v4817 = vadd.f32 0.0, %v4816
    %v4818 = vpop.f32.mrb[0].mxu0
    %v4819 = vadd.f32 0.0, %v4818
    %v4820 = vpop.f32.mrb[0].mxu0
    %v4821 = vadd.f32 0.0, %v4820
    %v4822 = vpop.f32.mrb[0].mxu0
    %v4823 = vadd.f32 0.0, %v4822
    %4824 = vmatprep.mubr.bf16.mxu0 %v112
    %4825 = vmatmul.mubr.bf16.gmra.mrb[0].mxu0 %v62
    %v4826 = vpop.f32.mrb[0].mxu0
    %v4827 = vadd.f32 0.0, %v4826
    %v4828 = vpop.f32.mrb[0].mxu0
    %v4829 = vadd.f32 0.0, %v4828
    %v4830 = vpop.f32.mrb[0].mxu0
    %v4831 = vadd.f32 0.0, %v4830
    %v4832 = vpop.f32.mrb[0].mxu0
    %v4833 = vadd.f32 0.0, %v4832
    %4834 = vmatprep.mubr.bf16.mxu0 %v113
    %4835 = vmatmul.mubr.bf16.gmra.mrb[0].mxu0 %v63
    %v4836 = vpop.f32.mrb[0].mxu0
    %v4837 = vadd.f32 0.0, %v4836
    %v4838 = vpop.f32.mrb[0].mxu0
    %v4839 = vadd.f32 0.0, %v4838
    %v4840 = vpop.f32.mrb[0].mxu0
    %v4841 = vadd.f32 0.0, %v4840
    %v4842 = vpop.f32.mrb[0].mxu0
    %v4843 = vadd.f32 0.0, %v4842
    %4844 = vmatprep.mubr.bf16.mxu0 %v114
    %4845 = vmatmul.mubr.bf16.gmra.mrb[0].mxu0 %v64
    %v4846 = vpop.f32.mrb[0].mxu0
    %v4847 = vadd.f32 0.0, %v4846
    %v4848 = vpop.f32.mrb[0].mxu0
    %v4849 = vadd.f32 0.0, %v4848
    %v4850 = vpop.f32.mrb[0].mxu0
    %v4851 = vadd.f32 0.0, %v4850
    %v4852 = vpop.f32.mrb[0].mxu0
    %v4853 = vadd.f32 0.0, %v4852
    %4854 = vmatprep.mubr.bf16.mxu0 %v115
    %4855 = vmatmul.mubr.bf16.gmra.mrb[0].mxu0 %v65
    %v4856 = vpop.f32.mrb[0].mxu0
    %v4857 = vadd.f32 0.0, %v4856
    %v4858 = vpop.f32.mrb[0].mxu0
    %v4859 = vadd.f32 0.0, %v4858
    %v4860 = vpop.f32.mrb[0].mxu0
    %v4861 = vpop.f32.mrb[0].mxu0
    %4862 = vdwg.mxu0
    %4863 = vmatprep.subr.bf16.mxu0 %v2291
    %4864 = vmatpush1.bf16.msra.mxu0 %v2290
    %4865 = vmatprep.subr.bf16.mxu0 %v2299
    %4866 = vmatpush1.bf16.msra.mxu0 %v2298
    %4867 = vmatprep.subr.bf16.mxu0 %v2307
    %4868 = vmatpush1.bf16.msra.mxu0 %v2306
    %4869 = vmatprep.subr.bf16.mxu0 %v2315
    %4870 = vmatpush1.bf16.msra.mxu0 %v2314
    %4871 = vmatprep.subr.bf16.mxu0 %v2323
    %4872 = vmatpush1.bf16.msra.mxu0 %v2322
    %4873 = vmatprep.subr.bf16.mxu0 %v2331
    %4874 = vmatpush1.bf16.msra.mxu0 %v2330
    %4875 = vmatprep.subr.bf16.mxu0 %v2339
    %4876 = vmatpush1.bf16.msra.mxu0 %v2338
    %4877 = vmatprep.subr.bf16.mxu0 %v2347
    %4878 = vmatpush1.bf16.msra.mxu0 %v2346
    %4879 = vmatprep.subr.bf16.mxu0 %v2355
    %4880 = vmatpush1.bf16.msra.mxu0 %v2354
    %4881 = vmatprep.subr.bf16.mxu0 %v2363
    %4882 = vmatpush1.bf16.msra.mxu0 %v2362
    %4883 = vmatprep.subr.bf16.mxu0 %v2371
    %4884 = vmatpush1.bf16.msra.mxu0 %v2370
    %4885 = vmatprep.subr.bf16.mxu0 %v2379
    %4886 = vmatpush1.bf16.msra.mxu0 %v2378
    %4887 = vmatprep.subr.bf16.mxu0 %v2387
    %4888 = vmatpush1.bf16.msra.mxu0 %v2386
    %4889 = vmatprep.subr.bf16.mxu0 %v2395
    %4890 = vmatpush1.bf16.msra.mxu0 %v2394
    %4891 = vmatprep.subr.bf16.mxu0 %v2403
    %4892 = vmatpush1.bf16.msra.mxu0 %v2402
    %4893 = vmatprep.subr.bf16.mxu0 %v2411
    %4894 = vmatpush1.bf16.msra.mxu0 %v2410
    %4895 = vmatprep.mubr.bf16.mxu0 %v199
    %4896 = vmatmul.mubr.bf16.gmra.mrb[0].mxu0 %v149
    %v4897 = vpop.f32.mrb[0].mxu0
    %v4898 = vadd.f32 %v4697, %v4897
    %v4899 = vpop.f32.mrb[0].mxu0
    %v4900 = vadd.f32 %v4699, %v4899
    %v4901 = vpop.f32.mrb[0].mxu0
    %v4902 = vadd.f32 %v4701, %v4901
    %v4903 = vpop.f32.mrb[0].mxu0
    %v4904 = vadd.f32 %v4703, %v4903
    %4905 = vmatprep.mubr.bf16.mxu0 %v200
    %4906 = vmatmul.mubr.bf16.gmra.mrb[0].mxu0 %v150
    %v4907 = vpop.f32.mrb[0].mxu0
    %v4908 = vadd.f32 %v4707, %v4907
    %v4909 = vpop.f32.mrb[0].mxu0
    %v4910 = vadd.f32 %v4709, %v4909
    %v4911 = vpop.f32.mrb[0].mxu0
    %v4912 = vadd.f32 %v4711, %v4911
    %v4913 = vpop.f32.mrb[0].mxu0
    %v4914 = vadd.f32 %v4713, %v4913
    %4915 = vmatprep.mubr.bf16.mxu0 %v201
    %4916 = vmatmul.mubr.bf16.gmra.mrb[0].mxu0 %v151
    %v4917 = vpop.f32.mrb[0].mxu0
    %v4918 = vadd.f32 %v4717, %v4917
    %v4919 = vpop.f32.mrb[0].mxu0
    %v4920 = vadd.f32 %v4719, %v4919
    %v4921 = vpop.f32.mrb[0].mxu0
    %v4922 = vadd.f32 %v4721, %v4921
    %v4923 = vpop.f32.mrb[0].mxu0
    %v4924 = vadd.f32 %v4723, %v4923
    %4925 = vmatprep.mubr.bf16.mxu0 %v202
    %4926 = vmatmul.mubr.bf16.gmra.mrb[0].mxu0 %v152
    %v4927 = vpop.f32.mrb[0].mxu0
    %v4928 = vadd.f32 %v4727, %v4927
    %v4929 = vpop.f32.mrb[0].mxu0
    %v4930 = vadd.f32 %v4729, %v4929
    %v4931 = vpop.f32.mrb[0].mxu0
    %v4932 = vadd.f32 %v4731, %v4931
    %v4933 = vpop.f32.mrb[0].mxu0
    %v4934 = vadd.f32 %v4733, %v4933
    %4935 = vmatprep.mubr.bf16.mxu0 %v203
    %4936 = vmatmul.mubr.bf16.gmra.mrb[0].mxu0 %v153
    %v4937 = vpop.f32.mrb[0].mxu0
    %v4938 = vadd.f32 %v4737, %v4937
    %v4939 = vpop.f32.mrb[0].mxu0
    %v4940 = vadd.f32 %v4739, %v4939
    %v4941 = vpop.f32.mrb[0].mxu0
    %v4942 = vadd.f32 %v4741, %v4941
    %v4943 = vpop.f32.mrb[0].mxu0
    %v4944 = vadd.f32 %v4743, %v4943
    %4945 = vmatprep.mubr.bf16.mxu0 %v204
    %4946 = vmatmul.mubr.bf16.gmra.mrb[0].mxu0 %v154
    %v4947 = vpop.f32.mrb[0].mxu0
    %v4948 = vadd.f32 %v4747, %v4947
    %v4949 = vpop.f32.mrb[0].mxu0
    %v4950 = vadd.f32 %v4749, %v4949
    %v4951 = vpop.f32.mrb[0].mxu0
    %v4952 = vadd.f32 %v4751, %v4951
    %v4953 = vpop.f32.mrb[0].mxu0
    %v4954 = vadd.f32 %v4753, %v4953
    %4955 = vmatprep.mubr.bf16.mxu0 %v205
    %4956 = vmatmul.mubr.bf16.gmra.mrb[0].mxu0 %v155
    %v4957 = vpop.f32.mrb[0].mxu0
    %v4958 = vadd.f32 %v4757, %v4957
    %v4959 = vpop.f32.mrb[0].mxu0
    %v4960 = vadd.f32 %v4759, %v4959
    %v4961 = vpop.f32.mrb[0].mxu0
    %v4962 = vadd.f32 %v4761, %v4961
    %v4963 = vpop.f32.mrb[0].mxu0
    %v4964 = vadd.f32 %v4763, %v4963
    %4965 = vmatprep.mubr.bf16.mxu0 %v206
    %4966 = vmatmul.mubr.bf16.gmra.mrb[0].mxu0 %v156
    %v4967 = vpop.f32.mrb[0].mxu0
    %v4968 = vadd.f32 %v4767, %v4967
    %v4969 = vpop.f32.mrb[0].mxu0
    %v4970 = vadd.f32 %v4769, %v4969
    %v4971 = vpop.f32.mrb[0].mxu0
    %v4972 = vadd.f32 %v4771, %v4971
    %v4973 = vpop.f32.mrb[0].mxu0
    %v4974 = vadd.f32 %v4773, %v4973
    %4975 = vmatprep.mubr.bf16.mxu0 %v207
    %4976 = vmatmul.mubr.bf16.gmra.mrb[0].mxu0 %v157
    %v4977 = vpop.f32.mrb[0].mxu0
    %v4978 = vadd.f32 %v4777, %v4977
    %v4979 = vpop.f32.mrb[0].mxu0
    %v4980 = vadd.f32 %v4779, %v4979
    %v4981 = vpop.f32.mrb[0].mxu0
    %v4982 = vadd.f32 %v4781, %v4981
    %v4983 = vpop.f32.mrb[0].mxu0
    %v4984 = vadd.f32 %v4783, %v4983
    %4985 = vmatprep.mubr.bf16.mxu0 %v208
    %4986 = vmatmul.mubr.bf16.gmra.mrb[0].mxu0 %v158
    %v4987 = vpop.f32.mrb[0].mxu0
    %v4988 = vadd.f32 %v4787, %v4987
    %v4989 = vpop.f32.mrb[0].mxu0
    %v4990 = vadd.f32 %v4789, %v4989
    %v4991 = vpop.f32.mrb[0].mxu0
    %v4992 = vadd.f32 %v4791, %v4991
    %v4993 = vpop.f32.mrb[0].mxu0
    %v4994 = vadd.f32 %v4793, %v4993
    %4995 = vmatprep.mubr.bf16.mxu0 %v209
    %4996 = vmatmul.mubr.bf16.gmra.mrb[0].mxu0 %v159
    %v4997 = vpop.f32.mrb[0].mxu0
    %v4998 = vadd.f32 %v4797, %v4997
    %v4999 = vpop.f32.mrb[0].mxu0
    %v5000 = vadd.f32 %v4799, %v4999
    %v5001 = vpop.f32.mrb[0].mxu0
    %v5002 = vadd.f32 %v4801, %v5001
    %v5003 = vpop.f32.mrb[0].mxu0
    %v5004 = vadd.f32 %v4803, %v5003
    %5005 = vmatprep.mubr.bf16.mxu0 %v210
    %5006 = vmatmul.mubr.bf16.gmra.mrb[0].mxu0 %v160
    %v5007 = vpop.f32.mrb[0].mxu0
    %v5008 = vadd.f32 %v4807, %v5007
    %v5009 = vpop.f32.mrb[0].mxu0
    %v5010 = vadd.f32 %v4809, %v5009
    %v5011 = vpop.f32.mrb[0].mxu0
    %v5012 = vadd.f32 %v4811, %v5011
    %v5013 = vpop.f32.mrb[0].mxu0
    %v5014 = vadd.f32 %v4813, %v5013
    %5015 = vmatprep.mubr.bf16.mxu0 %v211
    %5016 = vmatmul.mubr.bf16.gmra.mrb[0].mxu0 %v161
    %v5017 = vpop.f32.mrb[0].mxu0
    %v5018 = vadd.f32 %v4817, %v5017
    %v5019 = vpop.f32.mrb[0].mxu0
    %v5020 = vadd.f32 %v4819, %v5019
    %v5021 = vpop.f32.mrb[0].mxu0
    %v5022 = vadd.f32 %v4821, %v5021
    %v5023 = vpop.f32.mrb[0].mxu0
    %v5024 = vadd.f32 %v4823, %v5023
    %5025 = vmatprep.mubr.bf16.mxu0 %v212
    %5026 = vmatmul.mubr.bf16.gmra.mrb[0].mxu0 %v162
    %v5027 = vpop.f32.mrb[0].mxu0
    %v5028 = vadd.f32 %v4827, %v5027
    %v5029 = vpop.f32.mrb[0].mxu0
    %v5030 = vadd.f32 %v4829, %v5029
    %v5031 = vpop.f32.mrb[0].mxu0
    %v5032 = vadd.f32 %v4831, %v5031
    %v5033 = vpop.f32.mrb[0].mxu0
    %v5034 = vadd.f32 %v4833, %v5033
    %5035 = vmatprep.mubr.bf16.mxu0 %v213
    %5036 = vmatmul.mubr.bf16.gmra.mrb[0].mxu0 %v163
    %v5037 = vpop.f32.mrb[0].mxu0
    %v5038 = vadd.f32 %v4837, %v5037
    %v5039 = vpop.f32.mrb[0].mxu0
    %v5040 = vadd.f32 %v4839, %v5039
    %v5041 = vpop.f32.mrb[0].mxu0
    %v5042 = vadd.f32 %v4841, %v5041
    %v5043 = vpop.f32.mrb[0].mxu0
    %v5044 = vadd.f32 %v4843, %v5043
    %5045 = vmatprep.mubr.bf16.mxu0 %v214
    %5046 = vmatmul.mubr.bf16.gmra.mrb[0].mxu0 %v164
    %v5047 = vpop.f32.mrb[0].mxu0
    %v5048 = vadd.f32 %v4847, %v5047
    %v5049 = vpop.f32.mrb[0].mxu0
    %v5050 = vadd.f32 %v4849, %v5049
    %v5051 = vpop.f32.mrb[0].mxu0
    %v5052 = vadd.f32 %v4851, %v5051
    %v5053 = vpop.f32.mrb[0].mxu0
    %v5054 = vadd.f32 %v4853, %v5053
    %5055 = vmatprep.mubr.bf16.mxu0 %v215
    %5056 = vmatmul.mubr.bf16.gmra.mrb[0].mxu0 %v165
    %v5057 = vpop.f32.mrb[0].mxu0
    %v5058 = vadd.f32 %v4857, %v5057
    %v5059 = vpop.f32.mrb[0].mxu0
    %v5060 = vadd.f32 %v4859, %v5059
    %v5061 = vpop.f32.mrb[0].mxu0
    %v5062 = vpop.f32.mrb[0].mxu0
    %5063 = vdwg.mxu0
    %5064 = vmatprep.subr.bf16.mxu0 %v2419
    %5065 = vmatpush1.bf16.msra.mxu0 %v2418
    %5066 = vmatprep.subr.bf16.mxu0 %v2427
    %5067 = vmatpush1.bf16.msra.mxu0 %v2426
    %5068 = vmatprep.subr.bf16.mxu0 %v2435
    %5069 = vmatpush1.bf16.msra.mxu0 %v2434
    %5070 = vmatprep.subr.bf16.mxu0 %v2443
    %5071 = vmatpush1.bf16.msra.mxu0 %v2442
    %5072 = vmatprep.subr.bf16.mxu0 %v2451
    %5073 = vmatpush1.bf16.msra.mxu0 %v2450
    %5074 = vmatprep.subr.bf16.mxu0 %v2459
    %5075 = vmatpush1.bf16.msra.mxu0 %v2458
    %5076 = vmatprep.subr.bf16.mxu0 %v2467
    %5077 = vmatpush1.bf16.msra.mxu0 %v2466
    %5078 = vmatprep.subr.bf16.mxu0 %v2475
    %5079 = vmatpush1.bf16.msra.mxu0 %v2474
    %5080 = vmatprep.subr.bf16.mxu0 %v2483
    %5081 = vmatpush1.bf16.msra.mxu0 %v2482
    %5082 = vmatprep.subr.bf16.mxu0 %v2491
    %5083 = vmatpush1.bf16.msra.mxu0 %v2490
    %5084 = vmatprep.subr.bf16.mxu0 %v2499
    %5085 = vmatpush1.bf16.msra.mxu0 %v2498
    %5086 = vmatprep.subr.bf16.mxu0 %v2507
    %5087 = vmatpush1.bf16.msra.mxu0 %v2506
    %5088 = vmatprep.subr.bf16.mxu0 %v2515
    %5089 = vmatpush1.bf16.msra.mxu0 %v2514
    %5090 = vmatprep.subr.bf16.mxu0 %v2523
    %5091 = vmatpush1.bf16.msra.mxu0 %v2522
    %5092 = vmatprep.subr.bf16.mxu0 %v2531
    %5093 = vmatpush1.bf16.msra.mxu0 %v2530
    %5094 = vmatprep.subr.bf16.mxu0 %v2539
    %5095 = vmatpush1.bf16.msra.mxu0 %v2538
    %5096 = vmatprep.mubr.bf16.mxu0 %v299
    %5097 = vmatmul.mubr.bf16.gmra.mrb[0].mxu0 %v249
    %v5098 = vpop.f32.mrb[0].mxu0
    %v5099 = vadd.f32 %v4898, %v5098
    %v5100 = vpop.f32.mrb[0].mxu0
    %v5101 = vadd.f32 %v4900, %v5100
    %v5102 = vpop.f32.mrb[0].mxu0
    %v5103 = vadd.f32 %v4902, %v5102
    %v5104 = vpop.f32.mrb[0].mxu0
    %v5105 = vadd.f32 %v4904, %v5104
    %5106 = vmatprep.mubr.bf16.mxu0 %v300
    %5107 = vmatmul.mubr.bf16.gmra.mrb[0].mxu0 %v250
    %v5108 = vpop.f32.mrb[0].mxu0
    %v5109 = vadd.f32 %v4908, %v5108
    %v5110 = vpop.f32.mrb[0].mxu0
    %v5111 = vadd.f32 %v4910, %v5110
    %v5112 = vpop.f32.mrb[0].mxu0
    %v5113 = vadd.f32 %v4912, %v5112
    %v5114 = vpop.f32.mrb[0].mxu0
    %v5115 = vadd.f32 %v4914, %v5114
    %5116 = vmatprep.mubr.bf16.mxu0 %v301
    %5117 = vmatmul.mubr.bf16.gmra.mrb[0].mxu0 %v251
    %v5118 = vpop.f32.mrb[0].mxu0
    %v5119 = vadd.f32 %v4918, %v5118
    %v5120 = vpop.f32.mrb[0].mxu0
    %v5121 = vadd.f32 %v4920, %v5120
    %v5122 = vpop.f32.mrb[0].mxu0
    %v5123 = vadd.f32 %v4922, %v5122
    %v5124 = vpop.f32.mrb[0].mxu0
    %v5125 = vadd.f32 %v4924, %v5124
    %5126 = vmatprep.mubr.bf16.mxu0 %v302
    %5127 = vmatmul.mubr.bf16.gmra.mrb[0].mxu0 %v252
    %v5128 = vpop.f32.mrb[0].mxu0
    %v5129 = vadd.f32 %v4928, %v5128
    %v5130 = vpop.f32.mrb[0].mxu0
    %v5131 = vadd.f32 %v4930, %v5130
    %v5132 = vpop.f32.mrb[0].mxu0
    %v5133 = vadd.f32 %v4932, %v5132
    %v5134 = vpop.f32.mrb[0].mxu0
    %v5135 = vadd.f32 %v4934, %v5134
    %5136 = vmatprep.mubr.bf16.mxu0 %v303
    %5137 = vmatmul.mubr.bf16.gmra.mrb[0].mxu0 %v253
    %v5138 = vpop.f32.mrb[0].mxu0
    %v5139 = vadd.f32 %v4938, %v5138
    %v5140 = vpop.f32.mrb[0].mxu0
    %v5141 = vadd.f32 %v4940, %v5140
    %v5142 = vpop.f32.mrb[0].mxu0
    %v5143 = vadd.f32 %v4942, %v5142
    %v5144 = vpop.f32.mrb[0].mxu0
    %v5145 = vadd.f32 %v4944, %v5144
    %5146 = vmatprep.mubr.bf16.mxu0 %v304
    %5147 = vmatmul.mubr.bf16.gmra.mrb[0].mxu0 %v254
    %v5148 = vpop.f32.mrb[0].mxu0
    %v5149 = vadd.f32 %v4948, %v5148
    %v5150 = vpop.f32.mrb[0].mxu0
    %v5151 = vadd.f32 %v4950, %v5150
    %v5152 = vpop.f32.mrb[0].mxu0
    %v5153 = vadd.f32 %v4952, %v5152
    %v5154 = vpop.f32.mrb[0].mxu0
    %v5155 = vadd.f32 %v4954, %v5154
    %5156 = vmatprep.mubr.bf16.mxu0 %v305
    %5157 = vmatmul.mubr.bf16.gmra.mrb[0].mxu0 %v255
    %v5158 = vpop.f32.mrb[0].mxu0
    %v5159 = vadd.f32 %v4958, %v5158
    %v5160 = vpop.f32.mrb[0].mxu0
    %v5161 = vadd.f32 %v4960, %v5160
    %v5162 = vpop.f32.mrb[0].mxu0
    %v5163 = vadd.f32 %v4962, %v5162
    %v5164 = vpop.f32.mrb[0].mxu0
    %v5165 = vadd.f32 %v4964, %v5164
    %5166 = vmatprep.mubr.bf16.mxu0 %v306
    %5167 = vmatmul.mubr.bf16.gmra.mrb[0].mxu0 %v256
    %v5168 = vpop.f32.mrb[0].mxu0
    %v5169 = vadd.f32 %v4968, %v5168
    %v5170 = vpop.f32.mrb[0].mxu0
    %v5171 = vadd.f32 %v4970, %v5170
    %v5172 = vpop.f32.mrb[0].mxu0
    %v5173 = vadd.f32 %v4972, %v5172
    %v5174 = vpop.f32.mrb[0].mxu0
    %v5175 = vadd.f32 %v4974, %v5174
    %5176 = vmatprep.mubr.bf16.mxu0 %v307
    %5177 = vmatmul.mubr.bf16.gmra.mrb[0].mxu0 %v257
    %v5178 = vpop.f32.mrb[0].mxu0
    %v5179 = vadd.f32 %v4978, %v5178
    %v5180 = vpop.f32.mrb[0].mxu0
    %v5181 = vadd.f32 %v4980, %v5180
    %v5182 = vpop.f32.mrb[0].mxu0
    %v5183 = vadd.f32 %v4982, %v5182
    %v5184 = vpop.f32.mrb[0].mxu0
    %v5185 = vadd.f32 %v4984, %v5184
    %5186 = vmatprep.mubr.bf16.mxu0 %v308
    %5187 = vmatmul.mubr.bf16.gmra.mrb[0].mxu0 %v258
    %v5188 = vpop.f32.mrb[0].mxu0
    %v5189 = vadd.f32 %v4988, %v5188
    %v5190 = vpop.f32.mrb[0].mxu0
    %v5191 = vadd.f32 %v4990, %v5190
    %v5192 = vpop.f32.mrb[0].mxu0
    %v5193 = vadd.f32 %v4992, %v5192
    %v5194 = vpop.f32.mrb[0].mxu0
    %v5195 = vadd.f32 %v4994, %v5194
    %5196 = vmatprep.mubr.bf16.mxu0 %v309
    %5197 = vmatmul.mubr.bf16.gmra.mrb[0].mxu0 %v259
    %v5198 = vpop.f32.mrb[0].mxu0
    %v5199 = vadd.f32 %v4998, %v5198
    %v5200 = vpop.f32.mrb[0].mxu0
    %v5201 = vadd.f32 %v5000, %v5200
    %v5202 = vpop.f32.mrb[0].mxu0
    %v5203 = vadd.f32 %v5002, %v5202
    %v5204 = vpop.f32.mrb[0].mxu0
    %v5205 = vadd.f32 %v5004, %v5204
    %5206 = vmatprep.mubr.bf16.mxu0 %v310
    %5207 = vmatmul.mubr.bf16.gmra.mrb[0].mxu0 %v260
    %v5208 = vpop.f32.mrb[0].mxu0
    %v5209 = vadd.f32 %v5008, %v5208
    %v5210 = vpop.f32.mrb[0].mxu0
    %v5211 = vadd.f32 %v5010, %v5210
    %v5212 = vpop.f32.mrb[0].mxu0
    %v5213 = vadd.f32 %v5012, %v5212
    %v5214 = vpop.f32.mrb[0].mxu0
    %v5215 = vadd.f32 %v5014, %v5214
    %5216 = vmatprep.mubr.bf16.mxu0 %v311
    %5217 = vmatmul.mubr.bf16.gmra.mrb[0].mxu0 %v261
    %v5218 = vpop.f32.mrb[0].mxu0
    %v5219 = vadd.f32 %v5018, %v5218
    %v5220 = vpop.f32.mrb[0].mxu0
    %v5221 = vadd.f32 %v5020, %v5220
    %v5222 = vpop.f32.mrb[0].mxu0
    %v5223 = vadd.f32 %v5022, %v5222
    %v5224 = vpop.f32.mrb[0].mxu0
    %v5225 = vadd.f32 %v5024, %v5224
    %5226 = vmatprep.mubr.bf16.mxu0 %v312
    %5227 = vmatmul.mubr.bf16.gmra.mrb[0].mxu0 %v262
    %v5228 = vpop.f32.mrb[0].mxu0
    %v5229 = vadd.f32 %v5028, %v5228
    %v5230 = vpop.f32.mrb[0].mxu0
    %v5231 = vadd.f32 %v5030, %v5230
    %v5232 = vpop.f32.mrb[0].mxu0
    %v5233 = vadd.f32 %v5032, %v5232
    %v5234 = vpop.f32.mrb[0].mxu0
    %v5235 = vadd.f32 %v5034, %v5234
    %5236 = vmatprep.mubr.bf16.mxu0 %v313
    %5237 = vmatmul.mubr.bf16.gmra.mrb[0].mxu0 %v263
    %v5238 = vpop.f32.mrb[0].mxu0
    %v5239 = vadd.f32 %v5038, %v5238
    %v5240 = vpop.f32.mrb[0].mxu0
    %v5241 = vadd.f32 %v5040, %v5240
    %v5242 = vpop.f32.mrb[0].mxu0
    %v5243 = vadd.f32 %v5042, %v5242
    %v5244 = vpop.f32.mrb[0].mxu0
    %v5245 = vadd.f32 %v5044, %v5244
    %5246 = vmatprep.mubr.bf16.mxu0 %v314
    %5247 = vmatmul.mubr.bf16.gmra.mrb[0].mxu0 %v264
    %v5248 = vpop.f32.mrb[0].mxu0
    %v5249 = vadd.f32 %v5048, %v5248
    %v5250 = vpop.f32.mrb[0].mxu0
    %v5251 = vadd.f32 %v5050, %v5250
    %v5252 = vpop.f32.mrb[0].mxu0
    %v5253 = vadd.f32 %v5052, %v5252
    %v5254 = vpop.f32.mrb[0].mxu0
    %v5255 = vadd.f32 %v5054, %v5254
    %5256 = vmatprep.mubr.bf16.mxu0 %v315
    %5257 = vmatmul.mubr.bf16.gmra.mrb[0].mxu0 %v265
    %v5258 = vpop.f32.mrb[0].mxu0
    %v5259 = vadd.f32 %v5058, %v5258
    %v5260 = vpop.f32.mrb[0].mxu0
    %v5261 = vadd.f32 %v5060, %v5260
    %v5262 = vpop.f32.mrb[0].mxu0
    %v5263 = vpop.f32.mrb[0].mxu0
    %5264 = vdwg.mxu0
    %5265 = vmatprep.subr.bf16.mxu0 %v2547
    %5266 = vmatpush1.bf16.msra.mxu0 %v2546
    %5267 = vmatprep.subr.bf16.mxu0 %v2555
    %5268 = vmatpush1.bf16.msra.mxu0 %v2554
    %5269 = vmatprep.subr.bf16.mxu0 %v2563
    %5270 = vmatpush1.bf16.msra.mxu0 %v2562
    %5271 = vmatprep.subr.bf16.mxu0 %v2571
    %5272 = vmatpush1.bf16.msra.mxu0 %v2570
    %5273 = vmatprep.subr.bf16.mxu0 %v2579
    %5274 = vmatpush1.bf16.msra.mxu0 %v2578
    %5275 = vmatprep.subr.bf16.mxu0 %v2587
    %5276 = vmatpush1.bf16.msra.mxu0 %v2586
    %5277 = vmatprep.subr.bf16.mxu0 %v2595
    %5278 = vmatpush1.bf16.msra.mxu0 %v2594
    %5279 = vmatprep.subr.bf16.mxu0 %v2603
    %5280 = vmatpush1.bf16.msra.mxu0 %v2602
    %5281 = vmatprep.subr.bf16.mxu0 0
    %5282 = vmatpush1.bf16.msra.mxu0 0
    %5283 = vmatprep.subr.bf16.mxu0 0
    %5284 = vmatpush1.bf16.msra.mxu0 0
    %5285 = vmatprep.subr.bf16.mxu0 0
    %5286 = vmatpush1.bf16.msra.mxu0 0
    %5287 = vmatprep.subr.bf16.mxu0 0
    %5288 = vmatpush1.bf16.msra.mxu0 0
    %5289 = vmatprep.subr.bf16.mxu0 0
    %5290 = vmatpush1.bf16.msra.mxu0 0
    %5291 = vmatprep.subr.bf16.mxu0 0
    %5292 = vmatpush1.bf16.msra.mxu0 0
    %5293 = vmatprep.subr.bf16.mxu0 0
    %5294 = vmatpush1.bf16.msra.mxu0 0
    %5295 = vmatprep.subr.bf16.mxu0 0
    %5296 = vmatpush1.bf16.msra.mxu0 0
    %5297 = vmatprep.mubr.bf16.mxu0 0
    %5298 = vmatmul.mubr.bf16.gmra.mrb[0].mxu0 %v349
    %v5299 = vpop.f32.mrb[0].mxu0
    %v5300 = vadd.f32 %v5099, %v5299
    %v5301 = vpop.f32.mrb[0].mxu0
    %v5302 = vadd.f32 %v5101, %v5301
    %v5303 = vpop.f32.mrb[0].mxu0
    %v5304 = vadd.f32 %v5103, %v5303
    %v5305 = vpop.f32.mrb[0].mxu0
    %v5306 = vadd.f32 %v5105, %v5305
    %5307 = vmatprep.mubr.bf16.mxu0 0
    %5308 = vmatmul.mubr.bf16.gmra.mrb[0].mxu0 %v350
    %v5309 = vpop.f32.mrb[0].mxu0
    %v5310 = vadd.f32 %v5109, %v5309
    %v5311 = vpop.f32.mrb[0].mxu0
    %v5312 = vadd.f32 %v5111, %v5311
    %v5313 = vpop.f32.mrb[0].mxu0
    %v5314 = vadd.f32 %v5113, %v5313
    %v5315 = vpop.f32.mrb[0].mxu0
    %v5316 = vadd.f32 %v5115, %v5315
    %5317 = vmatprep.mubr.bf16.mxu0 0
    %5318 = vmatmul.mubr.bf16.gmra.mrb[0].mxu0 %v351
    %v5319 = vpop.f32.mrb[0].mxu0
    %v5320 = vadd.f32 %v5119, %v5319
    %v5321 = vpop.f32.mrb[0].mxu0
    %v5322 = vadd.f32 %v5121, %v5321
    %v5323 = vpop.f32.mrb[0].mxu0
    %v5324 = vadd.f32 %v5123, %v5323
    %v5325 = vpop.f32.mrb[0].mxu0
    %v5326 = vadd.f32 %v5125, %v5325
    %5327 = vmatprep.mubr.bf16.mxu0 0
    %5328 = vmatmul.mubr.bf16.gmra.mrb[0].mxu0 %v352
    %v5329 = vpop.f32.mrb[0].mxu0
    %v5330 = vadd.f32 %v5129, %v5329
    %v5331 = vpop.f32.mrb[0].mxu0
    %v5332 = vadd.f32 %v5131, %v5331
    %v5333 = vpop.f32.mrb[0].mxu0
    %v5334 = vadd.f32 %v5133, %v5333
    %v5335 = vpop.f32.mrb[0].mxu0
    %v5336 = vadd.f32 %v5135, %v5335
    %5337 = vmatprep.mubr.bf16.mxu0 0
    %5338 = vmatmul.mubr.bf16.gmra.mrb[0].mxu0 %v353
    %v5339 = vpop.f32.mrb[0].mxu0
    %v5340 = vadd.f32 %v5139, %v5339
    %v5341 = vpop.f32.mrb[0].mxu0
    %v5342 = vadd.f32 %v5141, %v5341
    %v5343 = vpop.f32.mrb[0].mxu0
    %v5344 = vadd.f32 %v5143, %v5343
    %v5345 = vpop.f32.mrb[0].mxu0
    %v5346 = vadd.f32 %v5145, %v5345
    %5347 = vmatprep.mubr.bf16.mxu0 0
    %5348 = vmatmul.mubr.bf16.gmra.mrb[0].mxu0 %v354
    %v5349 = vpop.f32.mrb[0].mxu0
    %v5350 = vadd.f32 %v5149, %v5349
    %v5351 = vpop.f32.mrb[0].mxu0
    %v5352 = vadd.f32 %v5151, %v5351
    %v5353 = vpop.f32.mrb[0].mxu0
    %v5354 = vadd.f32 %v5153, %v5353
    %v5355 = vpop.f32.mrb[0].mxu0
    %v5356 = vadd.f32 %v5155, %v5355
    %5357 = vmatprep.mubr.bf16.mxu0 0
    %5358 = vmatmul.mubr.bf16.gmra.mrb[0].mxu0 %v355
    %v5359 = vpop.f32.mrb[0].mxu0
    %v5360 = vadd.f32 %v5159, %v5359
    %v5361 = vpop.f32.mrb[0].mxu0
    %v5362 = vadd.f32 %v5161, %v5361
    %v5363 = vpop.f32.mrb[0].mxu0
    %v5364 = vadd.f32 %v5163, %v5363
    %v5365 = vpop.f32.mrb[0].mxu0
    %v5366 = vadd.f32 %v5165, %v5365
    %5367 = vmatprep.mubr.bf16.mxu0 0
    %5368 = vmatmul.mubr.bf16.gmra.mrb[0].mxu0 %v356
    %v5369 = vpop.f32.mrb[0].mxu0
    %v5370 = vadd.f32 %v5169, %v5369
    %v5371 = vpop.f32.mrb[0].mxu0
    %v5372 = vadd.f32 %v5171, %v5371
    %v5373 = vpop.f32.mrb[0].mxu0
    %v5374 = vadd.f32 %v5173, %v5373
    %v5375 = vpop.f32.mrb[0].mxu0
    %v5376 = vadd.f32 %v5175, %v5375
    %5377 = vmatprep.mubr.bf16.mxu0 0
    %5378 = vmatmul.mubr.bf16.gmra.mrb[0].mxu0 %v357
    %v5379 = vpop.f32.mrb[0].mxu0
    %v5380 = vadd.f32 %v5179, %v5379
    %v5381 = vpop.f32.mrb[0].mxu0
    %v5382 = vadd.f32 %v5181, %v5381
    %v5383 = vpop.f32.mrb[0].mxu0
    %v5384 = vadd.f32 %v5183, %v5383
    %v5385 = vpop.f32.mrb[0].mxu0
    %v5386 = vadd.f32 %v5185, %v5385
    %5387 = vmatprep.mubr.bf16.mxu0 0
    %5388 = vmatmul.mubr.bf16.gmra.mrb[0].mxu0 %v358
    %v5389 = vpop.f32.mrb[0].mxu0
    %v5390 = vadd.f32 %v5189, %v5389
    %v5391 = vpop.f32.mrb[0].mxu0
    %v5392 = vadd.f32 %v5191, %v5391
    %v5393 = vpop.f32.mrb[0].mxu0
    %v5394 = vadd.f32 %v5193, %v5393
    %v5395 = vpop.f32.mrb[0].mxu0
    %v5396 = vadd.f32 %v5195, %v5395
    %5397 = vmatprep.mubr.bf16.mxu0 0
    %5398 = vmatmul.mubr.bf16.gmra.mrb[0].mxu0 %v359
    %v5399 = vpop.f32.mrb[0].mxu0
    %v5400 = vadd.f32 %v5199, %v5399
    %v5401 = vpop.f32.mrb[0].mxu0
    %v5402 = vadd.f32 %v5201, %v5401
    %v5403 = vpop.f32.mrb[0].mxu0
    %v5404 = vadd.f32 %v5203, %v5403
    %v5405 = vpop.f32.mrb[0].mxu0
    %v5406 = vadd.f32 %v5205, %v5405
    %5407 = vmatprep.mubr.bf16.mxu0 0
    %5408 = vmatmul.mubr.bf16.gmra.mrb[0].mxu0 %v360
    %v5409 = vpop.f32.mrb[0].mxu0
    %v5410 = vadd.f32 %v5209, %v5409
    %v5411 = vpop.f32.mrb[0].mxu0
    %v5412 = vadd.f32 %v5211, %v5411
    %v5413 = vpop.f32.mrb[0].mxu0
    %v5414 = vadd.f32 %v5213, %v5413
    %v5415 = vpop.f32.mrb[0].mxu0
    %v5416 = vadd.f32 %v5215, %v5415
    %5417 = vmatprep.mubr.bf16.mxu0 0
    %5418 = vmatmul.mubr.bf16.gmra.mrb[0].mxu0 %v361
    %v5419 = vpop.f32.mrb[0].mxu0
    %v5420 = vadd.f32 %v5219, %v5419
    %v5421 = vpop.f32.mrb[0].mxu0
    %v5422 = vadd.f32 %v5221, %v5421
    %v5423 = vpop.f32.mrb[0].mxu0
    %v5424 = vadd.f32 %v5223, %v5423
    %v5425 = vpop.f32.mrb[0].mxu0
    %v5426 = vadd.f32 %v5225, %v5425
    %5427 = vmatprep.mubr.bf16.mxu0 0
    %5428 = vmatmul.mubr.bf16.gmra.mrb[0].mxu0 %v362
    %v5429 = vpop.f32.mrb[0].mxu0
    %v5430 = vadd.f32 %v5229, %v5429
    %v5431 = vpop.f32.mrb[0].mxu0
    %v5432 = vadd.f32 %v5231, %v5431
    %v5433 = vpop.f32.mrb[0].mxu0
    %v5434 = vadd.f32 %v5233, %v5433
    %v5435 = vpop.f32.mrb[0].mxu0
    %v5436 = vadd.f32 %v5235, %v5435
    %5437 = vmatprep.mubr.bf16.mxu0 0
    %5438 = vmatmul.mubr.bf16.gmra.mrb[0].mxu0 %v363
    %v5439 = vpop.f32.mrb[0].mxu0
    %v5440 = vadd.f32 %v5239, %v5439
    %v5441 = vpop.f32.mrb[0].mxu0
    %v5442 = vadd.f32 %v5241, %v5441
    %v5443 = vpop.f32.mrb[0].mxu0
    %v5444 = vadd.f32 %v5243, %v5443
    %v5445 = vpop.f32.mrb[0].mxu0
    %v5446 = vadd.f32 %v5245, %v5445
    %5447 = vmatprep.mubr.bf16.mxu0 0
    %5448 = vmatmul.mubr.bf16.gmra.mrb[0].mxu0 %v364
    %v5449 = vpop.f32.mrb[0].mxu0
    %v5450 = vadd.f32 %v5249, %v5449
    %v5451 = vpop.f32.mrb[0].mxu0
    %v5452 = vadd.f32 %v5251, %v5451
    %v5453 = vpop.f32.mrb[0].mxu0
    %v5454 = vadd.f32 %v5253, %v5453
    %v5455 = vpop.f32.mrb[0].mxu0
    %v5456 = vadd.f32 %v5255, %v5455
    %5457 = vmatprep.mubr.bf16.mxu0 0
    %5458 = vmatmul.mubr.bf16.gmra.mrb[0].mxu0 %v365
    %v5459 = vpop.f32.mrb[0].mxu0
    %v5460 = vadd.f32 %v5259, %v5459
    %v5461 = vpop.f32.mrb[0].mxu0
    %v5462 = vadd.f32 %v5261, %v5461
    %v5463 = vpop.f32.mrb[0].mxu0
    %v5464 = vpop.f32.mrb[0].mxu0
    %5465 = vdwg.mxu0
    %5466 = vmatprep.subr.bf16.mxu0 %v2165
    %5467 = vmatpush1.bf16.msra.mxu0 %v2164
    %5468 = vmatprep.subr.bf16.mxu0 %v2173
    %5469 = vmatpush1.bf16.msra.mxu0 %v2172
    %5470 = vmatprep.subr.bf16.mxu0 %v2181
    %5471 = vmatpush1.bf16.msra.mxu0 %v2180
    %5472 = vmatprep.subr.bf16.mxu0 %v2189
    %5473 = vmatpush1.bf16.msra.mxu0 %v2188
    %5474 = vmatprep.subr.bf16.mxu0 %v2197
    %5475 = vmatpush1.bf16.msra.mxu0 %v2196
    %5476 = vmatprep.subr.bf16.mxu0 %v2205
    %5477 = vmatpush1.bf16.msra.mxu0 %v2204
    %5478 = vmatprep.subr.bf16.mxu0 %v2213
    %5479 = vmatpush1.bf16.msra.mxu0 %v2212
    %5480 = vmatprep.subr.bf16.mxu0 %v2221
    %5481 = vmatpush1.bf16.msra.mxu0 %v2220
    %5482 = vmatprep.subr.bf16.mxu0 %v2229
    %5483 = vmatpush1.bf16.msra.mxu0 %v2228
    %5484 = vmatprep.subr.bf16.mxu0 %v2237
    %5485 = vmatpush1.bf16.msra.mxu0 %v2236
    %5486 = vmatprep.subr.bf16.mxu0 %v2245
    %5487 = vmatpush1.bf16.msra.mxu0 %v2244
    %5488 = vmatprep.subr.bf16.mxu0 %v2253
    %5489 = vmatpush1.bf16.msra.mxu0 %v2252
    %5490 = vmatprep.subr.bf16.mxu0 %v2261
    %5491 = vmatpush1.bf16.msra.mxu0 %v2260
    %5492 = vmatprep.subr.bf16.mxu0 %v2269
    %5493 = vmatpush1.bf16.msra.mxu0 %v2268
    %5494 = vmatprep.subr.bf16.mxu0 %v2277
    %5495 = vmatpush1.bf16.msra.mxu0 %v2276
    %5496 = vmatprep.subr.bf16.mxu0 %v2285
    %5497 = vmatpush1.bf16.msra.mxu0 %v2284
    %5498 = vmatprep.mubr.bf16.mxu0 %v99
    %5499 = vmatmul.mubr.bf16.gmra.mrb[0].mxu0 %v49
    %v5500 = vpop.f32.mrb[0].mxu0
    %v5501 = vadd.f32 0.0, %v5500
    %v5502 = vpop.f32.mrb[0].mxu0
    %v5503 = vadd.f32 0.0, %v5502
    %v5504 = vpop.f32.mrb[0].mxu0
    %v5505 = vadd.f32 0.0, %v5504
    %v5506 = vpop.f32.mrb[0].mxu0
    %v5507 = vadd.f32 0.0, %v5506
    %5508 = vmatprep.mubr.bf16.mxu0 %v100
    %5509 = vmatmul.mubr.bf16.gmra.mrb[0].mxu0 %v50
    %v5510 = vpop.f32.mrb[0].mxu0
    %v5511 = vadd.f32 0.0, %v5510
    %v5512 = vpop.f32.mrb[0].mxu0
    %v5513 = vadd.f32 0.0, %v5512
    %v5514 = vpop.f32.mrb[0].mxu0
    %v5515 = vadd.f32 0.0, %v5514
    %v5516 = vpop.f32.mrb[0].mxu0
    %v5517 = vadd.f32 0.0, %v5516
    %5518 = vmatprep.mubr.bf16.mxu0 %v101
    %5519 = vmatmul.mubr.bf16.gmra.mrb[0].mxu0 %v51
    %v5520 = vpop.f32.mrb[0].mxu0
    %v5521 = vadd.f32 0.0, %v5520
    %v5522 = vpop.f32.mrb[0].mxu0
    %v5523 = vadd.f32 0.0, %v5522
    %v5524 = vpop.f32.mrb[0].mxu0
    %v5525 = vadd.f32 0.0, %v5524
    %v5526 = vpop.f32.mrb[0].mxu0
    %v5527 = vadd.f32 0.0, %v5526
    %5528 = vmatprep.mubr.bf16.mxu0 %v102
    %5529 = vmatmul.mubr.bf16.gmra.mrb[0].mxu0 %v52
    %v5530 = vpop.f32.mrb[0].mxu0
    %v5531 = vadd.f32 0.0, %v5530
    %v5532 = vpop.f32.mrb[0].mxu0
    %v5533 = vadd.f32 0.0, %v5532
    %v5534 = vpop.f32.mrb[0].mxu0
    %v5535 = vadd.f32 0.0, %v5534
    %v5536 = vpop.f32.mrb[0].mxu0
    %v5537 = vadd.f32 0.0, %v5536
    %5538 = vmatprep.mubr.bf16.mxu0 %v103
    %5539 = vmatmul.mubr.bf16.gmra.mrb[0].mxu0 %v53
    %v5540 = vpop.f32.mrb[0].mxu0
    %v5541 = vadd.f32 0.0, %v5540
    %v5542 = vpop.f32.mrb[0].mxu0
    %v5543 = vadd.f32 0.0, %v5542
    %v5544 = vpop.f32.mrb[0].mxu0
    %v5545 = vadd.f32 0.0, %v5544
    %v5546 = vpop.f32.mrb[0].mxu0
    %v5547 = vadd.f32 0.0, %v5546
    %5548 = vmatprep.mubr.bf16.mxu0 %v104
    %5549 = vmatmul.mubr.bf16.gmra.mrb[0].mxu0 %v54
    %v5550 = vpop.f32.mrb[0].mxu0
    %v5551 = vadd.f32 0.0, %v5550
    %v5552 = vpop.f32.mrb[0].mxu0
    %v5553 = vadd.f32 0.0, %v5552
    %v5554 = vpop.f32.mrb[0].mxu0
    %v5555 = vadd.f32 0.0, %v5554
    %v5556 = vpop.f32.mrb[0].mxu0
    %v5557 = vadd.f32 0.0, %v5556
    %5558 = vmatprep.mubr.bf16.mxu0 %v105
    %5559 = vmatmul.mubr.bf16.gmra.mrb[0].mxu0 %v55
    %v5560 = vpop.f32.mrb[0].mxu0
    %v5561 = vadd.f32 0.0, %v5560
    %v5562 = vpop.f32.mrb[0].mxu0
    %v5563 = vadd.f32 0.0, %v5562
    %v5564 = vpop.f32.mrb[0].mxu0
    %v5565 = vadd.f32 0.0, %v5564
    %v5566 = vpop.f32.mrb[0].mxu0
    %v5567 = vadd.f32 0.0, %v5566
    %5568 = vmatprep.mubr.bf16.mxu0 %v106
    %5569 = vmatmul.mubr.bf16.gmra.mrb[0].mxu0 %v56
    %v5570 = vpop.f32.mrb[0].mxu0
    %v5571 = vadd.f32 0.0, %v5570
    %v5572 = vpop.f32.mrb[0].mxu0
    %v5573 = vadd.f32 0.0, %v5572
    %v5574 = vpop.f32.mrb[0].mxu0
    %v5575 = vadd.f32 0.0, %v5574
    %v5576 = vpop.f32.mrb[0].mxu0
    %v5577 = vadd.f32 0.0, %v5576
    %5578 = vmatprep.mubr.bf16.mxu0 %v107
    %5579 = vmatmul.mubr.bf16.gmra.mrb[0].mxu0 %v57
    %v5580 = vpop.f32.mrb[0].mxu0
    %v5581 = vadd.f32 0.0, %v5580
    %v5582 = vpop.f32.mrb[0].mxu0
    %v5583 = vadd.f32 0.0, %v5582
    %v5584 = vpop.f32.mrb[0].mxu0
    %v5585 = vadd.f32 0.0, %v5584
    %v5586 = vpop.f32.mrb[0].mxu0
    %v5587 = vadd.f32 0.0, %v5586
    %5588 = vmatprep.mubr.bf16.mxu0 %v108
    %5589 = vmatmul.mubr.bf16.gmra.mrb[0].mxu0 %v58
    %v5590 = vpop.f32.mrb[0].mxu0
    %v5591 = vadd.f32 0.0, %v5590
    %v5592 = vpop.f32.mrb[0].mxu0
    %v5593 = vadd.f32 0.0, %v5592
    %v5594 = vpop.f32.mrb[0].mxu0
    %v5595 = vadd.f32 0.0, %v5594
    %v5596 = vpop.f32.mrb[0].mxu0
    %v5597 = vadd.f32 0.0, %v5596
    %5598 = vmatprep.mubr.bf16.mxu0 %v109
    %5599 = vmatmul.mubr.bf16.gmra.mrb[0].mxu0 %v59
    %v5600 = vpop.f32.mrb[0].mxu0
    %v5601 = vadd.f32 0.0, %v5600
    %v5602 = vpop.f32.mrb[0].mxu0
    %v5603 = vadd.f32 0.0, %v5602
    %v5604 = vpop.f32.mrb[0].mxu0
    %v5605 = vadd.f32 0.0, %v5604
    %v5606 = vpop.f32.mrb[0].mxu0
    %v5607 = vadd.f32 0.0, %v5606
    %5608 = vmatprep.mubr.bf16.mxu0 %v110
    %5609 = vmatmul.mubr.bf16.gmra.mrb[0].mxu0 %v60
    %v5610 = vpop.f32.mrb[0].mxu0
    %v5611 = vadd.f32 0.0, %v5610
    %v5612 = vpop.f32.mrb[0].mxu0
    %v5613 = vadd.f32 0.0, %v5612
    %v5614 = vpop.f32.mrb[0].mxu0
    %v5615 = vadd.f32 0.0, %v5614
    %v5616 = vpop.f32.mrb[0].mxu0
    %v5617 = vadd.f32 0.0, %v5616
    %5618 = vmatprep.mubr.bf16.mxu0 %v111
    %5619 = vmatmul.mubr.bf16.gmra.mrb[0].mxu0 %v61
    %v5620 = vpop.f32.mrb[0].mxu0
    %v5621 = vadd.f32 0.0, %v5620
    %v5622 = vpop.f32.mrb[0].mxu0
    %v5623 = vadd.f32 0.0, %v5622
    %v5624 = vpop.f32.mrb[0].mxu0
    %v5625 = vadd.f32 0.0, %v5624
    %v5626 = vpop.f32.mrb[0].mxu0
    %v5627 = vadd.f32 0.0, %v5626
    %5628 = vmatprep.mubr.bf16.mxu0 %v112
    %5629 = vmatmul.mubr.bf16.gmra.mrb[0].mxu0 %v62
    %v5630 = vpop.f32.mrb[0].mxu0
    %v5631 = vadd.f32 0.0, %v5630
    %v5632 = vpop.f32.mrb[0].mxu0
    %v5633 = vadd.f32 0.0, %v5632
    %v5634 = vpop.f32.mrb[0].mxu0
    %v5635 = vadd.f32 0.0, %v5634
    %v5636 = vpop.f32.mrb[0].mxu0
    %v5637 = vadd.f32 0.0, %v5636
    %5638 = vmatprep.mubr.bf16.mxu0 %v113
    %5639 = vmatmul.mubr.bf16.gmra.mrb[0].mxu0 %v63
    %v5640 = vpop.f32.mrb[0].mxu0
    %v5641 = vadd.f32 0.0, %v5640
    %v5642 = vpop.f32.mrb[0].mxu0
    %v5643 = vadd.f32 0.0, %v5642
    %v5644 = vpop.f32.mrb[0].mxu0
    %v5645 = vadd.f32 0.0, %v5644
    %v5646 = vpop.f32.mrb[0].mxu0
    %v5647 = vadd.f32 0.0, %v5646
    %5648 = vmatprep.mubr.bf16.mxu0 %v114
    %5649 = vmatmul.mubr.bf16.gmra.mrb[0].mxu0 %v64
    %v5650 = vpop.f32.mrb[0].mxu0
    %v5651 = vadd.f32 0.0, %v5650
    %v5652 = vpop.f32.mrb[0].mxu0
    %v5653 = vadd.f32 0.0, %v5652
    %v5654 = vpop.f32.mrb[0].mxu0
    %v5655 = vadd.f32 0.0, %v5654
    %v5656 = vpop.f32.mrb[0].mxu0
    %v5657 = vadd.f32 0.0, %v5656
    %5658 = vmatprep.mubr.bf16.mxu0 %v115
    %5659 = vmatmul.mubr.bf16.gmra.mrb[0].mxu0 %v65
    %v5660 = vpop.f32.mrb[0].mxu0
    %v5661 = vadd.f32 0.0, %v5660
    %v5662 = vpop.f32.mrb[0].mxu0
    %v5663 = vadd.f32 0.0, %v5662
    %v5664 = vpop.f32.mrb[0].mxu0
    %v5665 = vpop.f32.mrb[0].mxu0
    %5666 = vdwg.mxu0
    %5667 = vmatprep.subr.bf16.mxu0 %v2293
    %5668 = vmatpush1.bf16.msra.mxu0 %v2292
    %5669 = vmatprep.subr.bf16.mxu0 %v2301
    %5670 = vmatpush1.bf16.msra.mxu0 %v2300
    %5671 = vmatprep.subr.bf16.mxu0 %v2309
    %5672 = vmatpush1.bf16.msra.mxu0 %v2308
    %5673 = vmatprep.subr.bf16.mxu0 %v2317
    %5674 = vmatpush1.bf16.msra.mxu0 %v2316
    %5675 = vmatprep.subr.bf16.mxu0 %v2325
    %5676 = vmatpush1.bf16.msra.mxu0 %v2324
    %5677 = vmatprep.subr.bf16.mxu0 %v2333
    %5678 = vmatpush1.bf16.msra.mxu0 %v2332
    %5679 = vmatprep.subr.bf16.mxu0 %v2341
    %5680 = vmatpush1.bf16.msra.mxu0 %v2340
    %5681 = vmatprep.subr.bf16.mxu0 %v2349
    %5682 = vmatpush1.bf16.msra.mxu0 %v2348
    %5683 = vmatprep.subr.bf16.mxu0 %v2357
    %5684 = vmatpush1.bf16.msra.mxu0 %v2356
    %5685 = vmatprep.subr.bf16.mxu0 %v2365
    %5686 = vmatpush1.bf16.msra.mxu0 %v2364
    %5687 = vmatprep.subr.bf16.mxu0 %v2373
    %5688 = vmatpush1.bf16.msra.mxu0 %v2372
    %5689 = vmatprep.subr.bf16.mxu0 %v2381
    %5690 = vmatpush1.bf16.msra.mxu0 %v2380
    %5691 = vmatprep.subr.bf16.mxu0 %v2389
    %5692 = vmatpush1.bf16.msra.mxu0 %v2388
    %5693 = vmatprep.subr.bf16.mxu0 %v2397
    %5694 = vmatpush1.bf16.msra.mxu0 %v2396
    %5695 = vmatprep.subr.bf16.mxu0 %v2405
    %5696 = vmatpush1.bf16.msra.mxu0 %v2404
    %5697 = vmatprep.subr.bf16.mxu0 %v2413
    %5698 = vmatpush1.bf16.msra.mxu0 %v2412
    %5699 = vmatprep.mubr.bf16.mxu0 %v199
    %5700 = vmatmul.mubr.bf16.gmra.mrb[0].mxu0 %v149
    %v5701 = vpop.f32.mrb[0].mxu0
    %v5702 = vadd.f32 %v5501, %v5701
    %v5703 = vpop.f32.mrb[0].mxu0
    %v5704 = vadd.f32 %v5503, %v5703
    %v5705 = vpop.f32.mrb[0].mxu0
    %v5706 = vadd.f32 %v5505, %v5705
    %v5707 = vpop.f32.mrb[0].mxu0
    %v5708 = vadd.f32 %v5507, %v5707
    %5709 = vmatprep.mubr.bf16.mxu0 %v200
    %5710 = vmatmul.mubr.bf16.gmra.mrb[0].mxu0 %v150
    %v5711 = vpop.f32.mrb[0].mxu0
    %v5712 = vadd.f32 %v5511, %v5711
    %v5713 = vpop.f32.mrb[0].mxu0
    %v5714 = vadd.f32 %v5513, %v5713
    %v5715 = vpop.f32.mrb[0].mxu0
    %v5716 = vadd.f32 %v5515, %v5715
    %v5717 = vpop.f32.mrb[0].mxu0
    %v5718 = vadd.f32 %v5517, %v5717
    %5719 = vmatprep.mubr.bf16.mxu0 %v201
    %5720 = vmatmul.mubr.bf16.gmra.mrb[0].mxu0 %v151
    %v5721 = vpop.f32.mrb[0].mxu0
    %v5722 = vadd.f32 %v5521, %v5721
    %v5723 = vpop.f32.mrb[0].mxu0
    %v5724 = vadd.f32 %v5523, %v5723
    %v5725 = vpop.f32.mrb[0].mxu0
    %v5726 = vadd.f32 %v5525, %v5725
    %v5727 = vpop.f32.mrb[0].mxu0
    %v5728 = vadd.f32 %v5527, %v5727
    %5729 = vmatprep.mubr.bf16.mxu0 %v202
    %5730 = vmatmul.mubr.bf16.gmra.mrb[0].mxu0 %v152
    %v5731 = vpop.f32.mrb[0].mxu0
    %v5732 = vadd.f32 %v5531, %v5731
    %v5733 = vpop.f32.mrb[0].mxu0
    %v5734 = vadd.f32 %v5533, %v5733
    %v5735 = vpop.f32.mrb[0].mxu0
    %v5736 = vadd.f32 %v5535, %v5735
    %v5737 = vpop.f32.mrb[0].mxu0
    %v5738 = vadd.f32 %v5537, %v5737
    %5739 = vmatprep.mubr.bf16.mxu0 %v203
    %5740 = vmatmul.mubr.bf16.gmra.mrb[0].mxu0 %v153
    %v5741 = vpop.f32.mrb[0].mxu0
    %v5742 = vadd.f32 %v5541, %v5741
    %v5743 = vpop.f32.mrb[0].mxu0
    %v5744 = vadd.f32 %v5543, %v5743
    %v5745 = vpop.f32.mrb[0].mxu0
    %v5746 = vadd.f32 %v5545, %v5745
    %v5747 = vpop.f32.mrb[0].mxu0
    %v5748 = vadd.f32 %v5547, %v5747
    %5749 = vmatprep.mubr.bf16.mxu0 %v204
    %5750 = vmatmul.mubr.bf16.gmra.mrb[0].mxu0 %v154
    %v5751 = vpop.f32.mrb[0].mxu0
    %v5752 = vadd.f32 %v5551, %v5751
    %v5753 = vpop.f32.mrb[0].mxu0
    %v5754 = vadd.f32 %v5553, %v5753
    %v5755 = vpop.f32.mrb[0].mxu0
    %v5756 = vadd.f32 %v5555, %v5755
    %v5757 = vpop.f32.mrb[0].mxu0
    %v5758 = vadd.f32 %v5557, %v5757
    %5759 = vmatprep.mubr.bf16.mxu0 %v205
    %5760 = vmatmul.mubr.bf16.gmra.mrb[0].mxu0 %v155
    %v5761 = vpop.f32.mrb[0].mxu0
    %v5762 = vadd.f32 %v5561, %v5761
    %v5763 = vpop.f32.mrb[0].mxu0
    %v5764 = vadd.f32 %v5563, %v5763
    %v5765 = vpop.f32.mrb[0].mxu0
    %v5766 = vadd.f32 %v5565, %v5765
    %v5767 = vpop.f32.mrb[0].mxu0
    %v5768 = vadd.f32 %v5567, %v5767
    %5769 = vmatprep.mubr.bf16.mxu0 %v206
    %5770 = vmatmul.mubr.bf16.gmra.mrb[0].mxu0 %v156
    %v5771 = vpop.f32.mrb[0].mxu0
    %v5772 = vadd.f32 %v5571, %v5771
    %v5773 = vpop.f32.mrb[0].mxu0
    %v5774 = vadd.f32 %v5573, %v5773
    %v5775 = vpop.f32.mrb[0].mxu0
    %v5776 = vadd.f32 %v5575, %v5775
    %v5777 = vpop.f32.mrb[0].mxu0
    %v5778 = vadd.f32 %v5577, %v5777
    %5779 = vmatprep.mubr.bf16.mxu0 %v207
    %5780 = vmatmul.mubr.bf16.gmra.mrb[0].mxu0 %v157
    %v5781 = vpop.f32.mrb[0].mxu0
    %v5782 = vadd.f32 %v5581, %v5781
    %v5783 = vpop.f32.mrb[0].mxu0
    %v5784 = vadd.f32 %v5583, %v5783
    %v5785 = vpop.f32.mrb[0].mxu0
    %v5786 = vadd.f32 %v5585, %v5785
    %v5787 = vpop.f32.mrb[0].mxu0
    %v5788 = vadd.f32 %v5587, %v5787
    %5789 = vmatprep.mubr.bf16.mxu0 %v208
    %5790 = vmatmul.mubr.bf16.gmra.mrb[0].mxu0 %v158
    %v5791 = vpop.f32.mrb[0].mxu0
    %v5792 = vadd.f32 %v5591, %v5791
    %v5793 = vpop.f32.mrb[0].mxu0
    %v5794 = vadd.f32 %v5593, %v5793
    %v5795 = vpop.f32.mrb[0].mxu0
    %v5796 = vadd.f32 %v5595, %v5795
    %v5797 = vpop.f32.mrb[0].mxu0
    %v5798 = vadd.f32 %v5597, %v5797
    %5799 = vmatprep.mubr.bf16.mxu0 %v209
    %5800 = vmatmul.mubr.bf16.gmra.mrb[0].mxu0 %v159
    %v5801 = vpop.f32.mrb[0].mxu0
    %v5802 = vadd.f32 %v5601, %v5801
    %v5803 = vpop.f32.mrb[0].mxu0
    %v5804 = vadd.f32 %v5603, %v5803
    %v5805 = vpop.f32.mrb[0].mxu0
    %v5806 = vadd.f32 %v5605, %v5805
    %v5807 = vpop.f32.mrb[0].mxu0
    %v5808 = vadd.f32 %v5607, %v5807
    %5809 = vmatprep.mubr.bf16.mxu0 %v210
    %5810 = vmatmul.mubr.bf16.gmra.mrb[0].mxu0 %v160
    %v5811 = vpop.f32.mrb[0].mxu0
    %v5812 = vadd.f32 %v5611, %v5811
    %v5813 = vpop.f32.mrb[0].mxu0
    %v5814 = vadd.f32 %v5613, %v5813
    %v5815 = vpop.f32.mrb[0].mxu0
    %v5816 = vadd.f32 %v5615, %v5815
    %v5817 = vpop.f32.mrb[0].mxu0
    %v5818 = vadd.f32 %v5617, %v5817
    %5819 = vmatprep.mubr.bf16.mxu0 %v211
    %5820 = vmatmul.mubr.bf16.gmra.mrb[0].mxu0 %v161
    %v5821 = vpop.f32.mrb[0].mxu0
    %v5822 = vadd.f32 %v5621, %v5821
    %v5823 = vpop.f32.mrb[0].mxu0
    %v5824 = vadd.f32 %v5623, %v5823
    %v5825 = vpop.f32.mrb[0].mxu0
    %v5826 = vadd.f32 %v5625, %v5825
    %v5827 = vpop.f32.mrb[0].mxu0
    %v5828 = vadd.f32 %v5627, %v5827
    %5829 = vmatprep.mubr.bf16.mxu0 %v212
    %5830 = vmatmul.mubr.bf16.gmra.mrb[0].mxu0 %v162
    %v5831 = vpop.f32.mrb[0].mxu0
    %v5832 = vadd.f32 %v5631, %v5831
    %v5833 = vpop.f32.mrb[0].mxu0
    %v5834 = vadd.f32 %v5633, %v5833
    %v5835 = vpop.f32.mrb[0].mxu0
    %v5836 = vadd.f32 %v5635, %v5835
    %v5837 = vpop.f32.mrb[0].mxu0
    %v5838 = vadd.f32 %v5637, %v5837
    %5839 = vmatprep.mubr.bf16.mxu0 %v213
    %5840 = vmatmul.mubr.bf16.gmra.mrb[0].mxu0 %v163
    %v5841 = vpop.f32.mrb[0].mxu0
    %v5842 = vadd.f32 %v5641, %v5841
    %v5843 = vpop.f32.mrb[0].mxu0
    %v5844 = vadd.f32 %v5643, %v5843
    %v5845 = vpop.f32.mrb[0].mxu0
    %v5846 = vadd.f32 %v5645, %v5845
    %v5847 = vpop.f32.mrb[0].mxu0
    %v5848 = vadd.f32 %v5647, %v5847
    %5849 = vmatprep.mubr.bf16.mxu0 %v214
    %5850 = vmatmul.mubr.bf16.gmra.mrb[0].mxu0 %v164
    %v5851 = vpop.f32.mrb[0].mxu0
    %v5852 = vadd.f32 %v5651, %v5851
    %v5853 = vpop.f32.mrb[0].mxu0
    %v5854 = vadd.f32 %v5653, %v5853
    %v5855 = vpop.f32.mrb[0].mxu0
    %v5856 = vadd.f32 %v5655, %v5855
    %v5857 = vpop.f32.mrb[0].mxu0
    %v5858 = vadd.f32 %v5657, %v5857
    %5859 = vmatprep.mubr.bf16.mxu0 %v215
    %5860 = vmatmul.mubr.bf16.gmra.mrb[0].mxu0 %v165
    %v5861 = vpop.f32.mrb[0].mxu0
    %v5862 = vadd.f32 %v5661, %v5861
    %v5863 = vpop.f32.mrb[0].mxu0
    %v5864 = vadd.f32 %v5663, %v5863
    %v5865 = vpop.f32.mrb[0].mxu0
    %v5866 = vpop.f32.mrb[0].mxu0
    %5867 = vdwg.mxu0
    %5868 = vmatprep.subr.bf16.mxu0 %v2421
    %5869 = vmatpush1.bf16.msra.mxu0 %v2420
    %5870 = vmatprep.subr.bf16.mxu0 %v2429
    %5871 = vmatpush1.bf16.msra.mxu0 %v2428
    %5872 = vmatprep.subr.bf16.mxu0 %v2437
    %5873 = vmatpush1.bf16.msra.mxu0 %v2436
    %5874 = vmatprep.subr.bf16.mxu0 %v2445
    %5875 = vmatpush1.bf16.msra.mxu0 %v2444
    %5876 = vmatprep.subr.bf16.mxu0 %v2453
    %5877 = vmatpush1.bf16.msra.mxu0 %v2452
    %5878 = vmatprep.subr.bf16.mxu0 %v2461
    %5879 = vmatpush1.bf16.msra.mxu0 %v2460
    %5880 = vmatprep.subr.bf16.mxu0 %v2469
    %5881 = vmatpush1.bf16.msra.mxu0 %v2468
    %5882 = vmatprep.subr.bf16.mxu0 %v2477
    %5883 = vmatpush1.bf16.msra.mxu0 %v2476
    %5884 = vmatprep.subr.bf16.mxu0 %v2485
    %5885 = vmatpush1.bf16.msra.mxu0 %v2484
    %5886 = vmatprep.subr.bf16.mxu0 %v2493
    %5887 = vmatpush1.bf16.msra.mxu0 %v2492
    %5888 = vmatprep.subr.bf16.mxu0 %v2501
    %5889 = vmatpush1.bf16.msra.mxu0 %v2500
    %5890 = vmatprep.subr.bf16.mxu0 %v2509
    %5891 = vmatpush1.bf16.msra.mxu0 %v2508
    %5892 = vmatprep.subr.bf16.mxu0 %v2517
    %5893 = vmatpush1.bf16.msra.mxu0 %v2516
    %5894 = vmatprep.subr.bf16.mxu0 %v2525
    %5895 = vmatpush1.bf16.msra.mxu0 %v2524
    %5896 = vmatprep.subr.bf16.mxu0 %v2533
    %5897 = vmatpush1.bf16.msra.mxu0 %v2532
    %5898 = vmatprep.subr.bf16.mxu0 %v2541
    %5899 = vmatpush1.bf16.msra.mxu0 %v2540
    %5900 = vmatprep.mubr.bf16.mxu0 %v299
    %5901 = vmatmul.mubr.bf16.gmra.mrb[0].mxu0 %v249
    %v5902 = vpop.f32.mrb[0].mxu0
    %v5903 = vadd.f32 %v5702, %v5902
    %v5904 = vpop.f32.mrb[0].mxu0
    %v5905 = vadd.f32 %v5704, %v5904
    %v5906 = vpop.f32.mrb[0].mxu0
    %v5907 = vadd.f32 %v5706, %v5906
    %v5908 = vpop.f32.mrb[0].mxu0
    %v5909 = vadd.f32 %v5708, %v5908
    %5910 = vmatprep.mubr.bf16.mxu0 %v300
    %5911 = vmatmul.mubr.bf16.gmra.mrb[0].mxu0 %v250
    %v5912 = vpop.f32.mrb[0].mxu0
    %v5913 = vadd.f32 %v5712, %v5912
    %v5914 = vpop.f32.mrb[0].mxu0
    %v5915 = vadd.f32 %v5714, %v5914
    %v5916 = vpop.f32.mrb[0].mxu0
    %v5917 = vadd.f32 %v5716, %v5916
    %v5918 = vpop.f32.mrb[0].mxu0
    %v5919 = vadd.f32 %v5718, %v5918
    %5920 = vmatprep.mubr.bf16.mxu0 %v301
    %5921 = vmatmul.mubr.bf16.gmra.mrb[0].mxu0 %v251
    %v5922 = vpop.f32.mrb[0].mxu0
    %v5923 = vadd.f32 %v5722, %v5922
    %v5924 = vpop.f32.mrb[0].mxu0
    %v5925 = vadd.f32 %v5724, %v5924
    %v5926 = vpop.f32.mrb[0].mxu0
    %v5927 = vadd.f32 %v5726, %v5926
    %v5928 = vpop.f32.mrb[0].mxu0
    %v5929 = vadd.f32 %v5728, %v5928
    %5930 = vmatprep.mubr.bf16.mxu0 %v302
    %5931 = vmatmul.mubr.bf16.gmra.mrb[0].mxu0 %v252
    %v5932 = vpop.f32.mrb[0].mxu0
    %v5933 = vadd.f32 %v5732, %v5932
    %v5934 = vpop.f32.mrb[0].mxu0
    %v5935 = vadd.f32 %v5734, %v5934
    %v5936 = vpop.f32.mrb[0].mxu0
    %v5937 = vadd.f32 %v5736, %v5936
    %v5938 = vpop.f32.mrb[0].mxu0
    %v5939 = vadd.f32 %v5738, %v5938
    %5940 = vmatprep.mubr.bf16.mxu0 %v303
    %5941 = vmatmul.mubr.bf16.gmra.mrb[0].mxu0 %v253
    %v5942 = vpop.f32.mrb[0].mxu0
    %v5943 = vadd.f32 %v5742, %v5942
    %v5944 = vpop.f32.mrb[0].mxu0
    %v5945 = vadd.f32 %v5744, %v5944
    %v5946 = vpop.f32.mrb[0].mxu0
    %v5947 = vadd.f32 %v5746, %v5946
    %v5948 = vpop.f32.mrb[0].mxu0
    %v5949 = vadd.f32 %v5748, %v5948
    %5950 = vmatprep.mubr.bf16.mxu0 %v304
    %5951 = vmatmul.mubr.bf16.gmra.mrb[0].mxu0 %v254
    %v5952 = vpop.f32.mrb[0].mxu0
    %v5953 = vadd.f32 %v5752, %v5952
    %v5954 = vpop.f32.mrb[0].mxu0
    %v5955 = vadd.f32 %v5754, %v5954
    %v5956 = vpop.f32.mrb[0].mxu0
    %v5957 = vadd.f32 %v5756, %v5956
    %v5958 = vpop.f32.mrb[0].mxu0
    %v5959 = vadd.f32 %v5758, %v5958
    %5960 = vmatprep.mubr.bf16.mxu0 %v305
    %5961 = vmatmul.mubr.bf16.gmra.mrb[0].mxu0 %v255
    %v5962 = vpop.f32.mrb[0].mxu0
    %v5963 = vadd.f32 %v5762, %v5962
    %v5964 = vpop.f32.mrb[0].mxu0
    %v5965 = vadd.f32 %v5764, %v5964
    %v5966 = vpop.f32.mrb[0].mxu0
    %v5967 = vadd.f32 %v5766, %v5966
    %v5968 = vpop.f32.mrb[0].mxu0
    %v5969 = vadd.f32 %v5768, %v5968
    %5970 = vmatprep.mubr.bf16.mxu0 %v306
    %5971 = vmatmul.mubr.bf16.gmra.mrb[0].mxu0 %v256
    %v5972 = vpop.f32.mrb[0].mxu0
    %v5973 = vadd.f32 %v5772, %v5972
    %v5974 = vpop.f32.mrb[0].mxu0
    %v5975 = vadd.f32 %v5774, %v5974
    %v5976 = vpop.f32.mrb[0].mxu0
    %v5977 = vadd.f32 %v5776, %v5976
    %v5978 = vpop.f32.mrb[0].mxu0
    %v5979 = vadd.f32 %v5778, %v5978
    %5980 = vmatprep.mubr.bf16.mxu0 %v307
    %5981 = vmatmul.mubr.bf16.gmra.mrb[0].mxu0 %v257
    %v5982 = vpop.f32.mrb[0].mxu0
    %v5983 = vadd.f32 %v5782, %v5982
    %v5984 = vpop.f32.mrb[0].mxu0
    %v5985 = vadd.f32 %v5784, %v5984
    %v5986 = vpop.f32.mrb[0].mxu0
    %v5987 = vadd.f32 %v5786, %v5986
    %v5988 = vpop.f32.mrb[0].mxu0
    %v5989 = vadd.f32 %v5788, %v5988
    %5990 = vmatprep.mubr.bf16.mxu0 %v308
    %5991 = vmatmul.mubr.bf16.gmra.mrb[0].mxu0 %v258
    %v5992 = vpop.f32.mrb[0].mxu0
    %v5993 = vadd.f32 %v5792, %v5992
    %v5994 = vpop.f32.mrb[0].mxu0
    %v5995 = vadd.f32 %v5794, %v5994
    %v5996 = vpop.f32.mrb[0].mxu0
    %v5997 = vadd.f32 %v5796, %v5996
    %v5998 = vpop.f32.mrb[0].mxu0
    %v5999 = vadd.f32 %v5798, %v5998
    %6000 = vmatprep.mubr.bf16.mxu0 %v309
    %6001 = vmatmul.mubr.bf16.gmra.mrb[0].mxu0 %v259
    %v6002 = vpop.f32.mrb[0].mxu0
    %v6003 = vadd.f32 %v5802, %v6002
    %v6004 = vpop.f32.mrb[0].mxu0
    %v6005 = vadd.f32 %v5804, %v6004
    %v6006 = vpop.f32.mrb[0].mxu0
    %v6007 = vadd.f32 %v5806, %v6006
    %v6008 = vpop.f32.mrb[0].mxu0
    %v6009 = vadd.f32 %v5808, %v6008
    %6010 = vmatprep.mubr.bf16.mxu0 %v310
    %6011 = vmatmul.mubr.bf16.gmra.mrb[0].mxu0 %v260
    %v6012 = vpop.f32.mrb[0].mxu0
    %v6013 = vadd.f32 %v5812, %v6012
    %v6014 = vpop.f32.mrb[0].mxu0
    %v6015 = vadd.f32 %v5814, %v6014
    %v6016 = vpop.f32.mrb[0].mxu0
    %v6017 = vadd.f32 %v5816, %v6016
    %v6018 = vpop.f32.mrb[0].mxu0
    %v6019 = vadd.f32 %v5818, %v6018
    %6020 = vmatprep.mubr.bf16.mxu0 %v311
    %6021 = vmatmul.mubr.bf16.gmra.mrb[0].mxu0 %v261
    %v6022 = vpop.f32.mrb[0].mxu0
    %v6023 = vadd.f32 %v5822, %v6022
    %v6024 = vpop.f32.mrb[0].mxu0
    %v6025 = vadd.f32 %v5824, %v6024
    %v6026 = vpop.f32.mrb[0].mxu0
    %v6027 = vadd.f32 %v5826, %v6026
    %v6028 = vpop.f32.mrb[0].mxu0
    %v6029 = vadd.f32 %v5828, %v6028
    %6030 = vmatprep.mubr.bf16.mxu0 %v312
    %6031 = vmatmul.mubr.bf16.gmra.mrb[0].mxu0 %v262
    %v6032 = vpop.f32.mrb[0].mxu0
    %v6033 = vadd.f32 %v5832, %v6032
    %v6034 = vpop.f32.mrb[0].mxu0
    %v6035 = vadd.f32 %v5834, %v6034
    %v6036 = vpop.f32.mrb[0].mxu0
    %v6037 = vadd.f32 %v5836, %v6036
    %v6038 = vpop.f32.mrb[0].mxu0
    %v6039 = vadd.f32 %v5838, %v6038
    %6040 = vmatprep.mubr.bf16.mxu0 %v313
    %6041 = vmatmul.mubr.bf16.gmra.mrb[0].mxu0 %v263
    %v6042 = vpop.f32.mrb[0].mxu0
    %v6043 = vadd.f32 %v5842, %v6042
    %v6044 = vpop.f32.mrb[0].mxu0
    %v6045 = vadd.f32 %v5844, %v6044
    %v6046 = vpop.f32.mrb[0].mxu0
    %v6047 = vadd.f32 %v5846, %v6046
    %v6048 = vpop.f32.mrb[0].mxu0
    %v6049 = vadd.f32 %v5848, %v6048
    %6050 = vmatprep.mubr.bf16.mxu0 %v314
    %6051 = vmatmul.mubr.bf16.gmra.mrb[0].mxu0 %v264
    %v6052 = vpop.f32.mrb[0].mxu0
    %v6053 = vadd.f32 %v5852, %v6052
    %v6054 = vpop.f32.mrb[0].mxu0
    %v6055 = vadd.f32 %v5854, %v6054
    %v6056 = vpop.f32.mrb[0].mxu0
    %v6057 = vadd.f32 %v5856, %v6056
    %v6058 = vpop.f32.mrb[0].mxu0
    %v6059 = vadd.f32 %v5858, %v6058
    %6060 = vmatprep.mubr.bf16.mxu0 %v315
    %6061 = vmatmul.mubr.bf16.gmra.mrb[0].mxu0 %v265
    %v6062 = vpop.f32.mrb[0].mxu0
    %v6063 = vadd.f32 %v5862, %v6062
    %v6064 = vpop.f32.mrb[0].mxu0
    %v6065 = vadd.f32 %v5864, %v6064
    %v6066 = vpop.f32.mrb[0].mxu0
    %v6067 = vpop.f32.mrb[0].mxu0
    %6068 = vdwg.mxu0
    %6069 = vmatprep.subr.bf16.mxu0 %v2549
    %6070 = vmatpush1.bf16.msra.mxu0 %v2548
    %6071 = vmatprep.subr.bf16.mxu0 %v2557
    %6072 = vmatpush1.bf16.msra.mxu0 %v2556
    %6073 = vmatprep.subr.bf16.mxu0 %v2565
    %6074 = vmatpush1.bf16.msra.mxu0 %v2564
    %6075 = vmatprep.subr.bf16.mxu0 %v2573
    %6076 = vmatpush1.bf16.msra.mxu0 %v2572
    %6077 = vmatprep.subr.bf16.mxu0 %v2581
    %6078 = vmatpush1.bf16.msra.mxu0 %v2580
    %6079 = vmatprep.subr.bf16.mxu0 %v2589
    %6080 = vmatpush1.bf16.msra.mxu0 %v2588
    %6081 = vmatprep.subr.bf16.mxu0 %v2597
    %6082 = vmatpush1.bf16.msra.mxu0 %v2596
    %6083 = vmatprep.subr.bf16.mxu0 %v2605
    %6084 = vmatpush1.bf16.msra.mxu0 %v2604
    %6085 = vmatprep.subr.bf16.mxu0 0
    %6086 = vmatpush1.bf16.msra.mxu0 0
    %6087 = vmatprep.subr.bf16.mxu0 0
    %6088 = vmatpush1.bf16.msra.mxu0 0
    %6089 = vmatprep.subr.bf16.mxu0 0
    %6090 = vmatpush1.bf16.msra.mxu0 0
    %6091 = vmatprep.subr.bf16.mxu0 0
    %6092 = vmatpush1.bf16.msra.mxu0 0
    %6093 = vmatprep.subr.bf16.mxu0 0
    %6094 = vmatpush1.bf16.msra.mxu0 0
    %6095 = vmatprep.subr.bf16.mxu0 0
    %6096 = vmatpush1.bf16.msra.mxu0 0
    %6097 = vmatprep.subr.bf16.mxu0 0
    %6098 = vmatpush1.bf16.msra.mxu0 0
    %6099 = vmatprep.subr.bf16.mxu0 0
    %6100 = vmatpush1.bf16.msra.mxu0 0
    %6101 = vmatprep.mubr.bf16.mxu0 0
    %6102 = vmatmul.mubr.bf16.gmra.mrb[0].mxu0 %v349
    %v6103 = vpop.f32.mrb[0].mxu0
    %v6104 = vadd.f32 %v5903, %v6103
    %v6105 = vpop.f32.mrb[0].mxu0
    %v6106 = vadd.f32 %v5905, %v6105
    %v6107 = vpop.f32.mrb[0].mxu0
    %v6108 = vadd.f32 %v5907, %v6107
    %v6109 = vpop.f32.mrb[0].mxu0
    %v6110 = vadd.f32 %v5909, %v6109
    %6111 = vmatprep.mubr.bf16.mxu0 0
    %6112 = vmatmul.mubr.bf16.gmra.mrb[0].mxu0 %v350
    %v6113 = vpop.f32.mrb[0].mxu0
    %v6114 = vadd.f32 %v5913, %v6113
    %v6115 = vpop.f32.mrb[0].mxu0
    %v6116 = vadd.f32 %v5915, %v6115
    %v6117 = vpop.f32.mrb[0].mxu0
    %v6118 = vadd.f32 %v5917, %v6117
    %v6119 = vpop.f32.mrb[0].mxu0
    %v6120 = vadd.f32 %v5919, %v6119
    %6121 = vmatprep.mubr.bf16.mxu0 0
    %6122 = vmatmul.mubr.bf16.gmra.mrb[0].mxu0 %v351
    %v6123 = vpop.f32.mrb[0].mxu0
    %v6124 = vadd.f32 %v5923, %v6123
    %v6125 = vpop.f32.mrb[0].mxu0
    %v6126 = vadd.f32 %v5925, %v6125
    %v6127 = vpop.f32.mrb[0].mxu0
    %v6128 = vadd.f32 %v5927, %v6127
    %v6129 = vpop.f32.mrb[0].mxu0
    %v6130 = vadd.f32 %v5929, %v6129
    %6131 = vmatprep.mubr.bf16.mxu0 0
    %6132 = vmatmul.mubr.bf16.gmra.mrb[0].mxu0 %v352
    %v6133 = vpop.f32.mrb[0].mxu0
    %v6134 = vadd.f32 %v5933, %v6133
    %v6135 = vpop.f32.mrb[0].mxu0
    %v6136 = vadd.f32 %v5935, %v6135
    %v6137 = vpop.f32.mrb[0].mxu0
    %v6138 = vadd.f32 %v5937, %v6137
    %v6139 = vpop.f32.mrb[0].mxu0
    %v6140 = vadd.f32 %v5939, %v6139
    %6141 = vmatprep.mubr.bf16.mxu0 0
    %6142 = vmatmul.mubr.bf16.gmra.mrb[0].mxu0 %v353
    %v6143 = vpop.f32.mrb[0].mxu0
    %v6144 = vadd.f32 %v5943, %v6143
    %v6145 = vpop.f32.mrb[0].mxu0
    %v6146 = vadd.f32 %v5945, %v6145
    %v6147 = vpop.f32.mrb[0].mxu0
    %v6148 = vadd.f32 %v5947, %v6147
    %v6149 = vpop.f32.mrb[0].mxu0
    %v6150 = vadd.f32 %v5949, %v6149
    %6151 = vmatprep.mubr.bf16.mxu0 0
    %6152 = vmatmul.mubr.bf16.gmra.mrb[0].mxu0 %v354
    %v6153 = vpop.f32.mrb[0].mxu0
    %v6154 = vadd.f32 %v5953, %v6153
    %v6155 = vpop.f32.mrb[0].mxu0
    %v6156 = vadd.f32 %v5955, %v6155
    %v6157 = vpop.f32.mrb[0].mxu0
    %v6158 = vadd.f32 %v5957, %v6157
    %v6159 = vpop.f32.mrb[0].mxu0
    %v6160 = vadd.f32 %v5959, %v6159
    %6161 = vmatprep.mubr.bf16.mxu0 0
    %6162 = vmatmul.mubr.bf16.gmra.mrb[0].mxu0 %v355
    %v6163 = vpop.f32.mrb[0].mxu0
    %v6164 = vadd.f32 %v5963, %v6163
    %v6165 = vpop.f32.mrb[0].mxu0
    %v6166 = vadd.f32 %v5965, %v6165
    %v6167 = vpop.f32.mrb[0].mxu0
    %v6168 = vadd.f32 %v5967, %v6167
    %v6169 = vpop.f32.mrb[0].mxu0
    %v6170 = vadd.f32 %v5969, %v6169
    %6171 = vmatprep.mubr.bf16.mxu0 0
    %6172 = vmatmul.mubr.bf16.gmra.mrb[0].mxu0 %v356
    %v6173 = vpop.f32.mrb[0].mxu0
    %v6174 = vadd.f32 %v5973, %v6173
    %v6175 = vpop.f32.mrb[0].mxu0
    %v6176 = vadd.f32 %v5975, %v6175
    %v6177 = vpop.f32.mrb[0].mxu0
    %v6178 = vadd.f32 %v5977, %v6177
    %v6179 = vpop.f32.mrb[0].mxu0
    %v6180 = vadd.f32 %v5979, %v6179
    %6181 = vmatprep.mubr.bf16.mxu0 0
    %6182 = vmatmul.mubr.bf16.gmra.mrb[0].mxu0 %v357
    %v6183 = vpop.f32.mrb[0].mxu0
    %v6184 = vadd.f32 %v5983, %v6183
    %v6185 = vpop.f32.mrb[0].mxu0
    %v6186 = vadd.f32 %v5985, %v6185
    %v6187 = vpop.f32.mrb[0].mxu0
    %v6188 = vadd.f32 %v5987, %v6187
    %v6189 = vpop.f32.mrb[0].mxu0
    %v6190 = vadd.f32 %v5989, %v6189
    %6191 = vmatprep.mubr.bf16.mxu0 0
    %6192 = vmatmul.mubr.bf16.gmra.mrb[0].mxu0 %v358
    %v6193 = vpop.f32.mrb[0].mxu0
    %v6194 = vadd.f32 %v5993, %v6193
    %v6195 = vpop.f32.mrb[0].mxu0
    %v6196 = vadd.f32 %v5995, %v6195
    %v6197 = vpop.f32.mrb[0].mxu0
    %v6198 = vadd.f32 %v5997, %v6197
    %v6199 = vpop.f32.mrb[0].mxu0
    %v6200 = vadd.f32 %v5999, %v6199
    %6201 = vmatprep.mubr.bf16.mxu0 0
    %6202 = vmatmul.mubr.bf16.gmra.mrb[0].mxu0 %v359
    %v6203 = vpop.f32.mrb[0].mxu0
    %v6204 = vadd.f32 %v6003, %v6203
    %v6205 = vpop.f32.mrb[0].mxu0
    %v6206 = vadd.f32 %v6005, %v6205
    %v6207 = vpop.f32.mrb[0].mxu0
    %v6208 = vadd.f32 %v6007, %v6207
    %v6209 = vpop.f32.mrb[0].mxu0
    %v6210 = vadd.f32 %v6009, %v6209
    %6211 = vmatprep.mubr.bf16.mxu0 0
    %6212 = vmatmul.mubr.bf16.gmra.mrb[0].mxu0 %v360
    %v6213 = vpop.f32.mrb[0].mxu0
    %v6214 = vadd.f32 %v6013, %v6213
    %v6215 = vpop.f32.mrb[0].mxu0
    %v6216 = vadd.f32 %v6015, %v6215
    %v6217 = vpop.f32.mrb[0].mxu0
    %v6218 = vadd.f32 %v6017, %v6217
    %v6219 = vpop.f32.mrb[0].mxu0
    %v6220 = vadd.f32 %v6019, %v6219
    %6221 = vmatprep.mubr.bf16.mxu0 0
    %6222 = vmatmul.mubr.bf16.gmra.mrb[0].mxu0 %v361
    %v6223 = vpop.f32.mrb[0].mxu0
    %v6224 = vadd.f32 %v6023, %v6223
    %v6225 = vpop.f32.mrb[0].mxu0
    %v6226 = vadd.f32 %v6025, %v6225
    %v6227 = vpop.f32.mrb[0].mxu0
    %v6228 = vadd.f32 %v6027, %v6227
    %v6229 = vpop.f32.mrb[0].mxu0
    %v6230 = vadd.f32 %v6029, %v6229
    %6231 = vmatprep.mubr.bf16.mxu0 0
    %6232 = vmatmul.mubr.bf16.gmra.mrb[0].mxu0 %v362
    %v6233 = vpop.f32.mrb[0].mxu0
    %v6234 = vadd.f32 %v6033, %v6233
    %v6235 = vpop.f32.mrb[0].mxu0
    %v6236 = vadd.f32 %v6035, %v6235
    %v6237 = vpop.f32.mrb[0].mxu0
    %v6238 = vadd.f32 %v6037, %v6237
    %v6239 = vpop.f32.mrb[0].mxu0
    %v6240 = vadd.f32 %v6039, %v6239
    %6241 = vmatprep.mubr.bf16.mxu0 0
    %6242 = vmatmul.mubr.bf16.gmra.mrb[0].mxu0 %v363
    %v6243 = vpop.f32.mrb[0].mxu0
    %v6244 = vadd.f32 %v6043, %v6243
    %v6245 = vpop.f32.mrb[0].mxu0
    %v6246 = vadd.f32 %v6045, %v6245
    %v6247 = vpop.f32.mrb[0].mxu0
    %v6248 = vadd.f32 %v6047, %v6247
    %v6249 = vpop.f32.mrb[0].mxu0
    %v6250 = vadd.f32 %v6049, %v6249
    %6251 = vmatprep.mubr.bf16.mxu0 0
    %6252 = vmatmul.mubr.bf16.gmra.mrb[0].mxu0 %v364
    %v6253 = vpop.f32.mrb[0].mxu0
    %v6254 = vadd.f32 %v6053, %v6253
    %v6255 = vpop.f32.mrb[0].mxu0
    %v6256 = vadd.f32 %v6055, %v6255
    %v6257 = vpop.f32.mrb[0].mxu0
    %v6258 = vadd.f32 %v6057, %v6257
    %v6259 = vpop.f32.mrb[0].mxu0
    %v6260 = vadd.f32 %v6059, %v6259
    %6261 = vmatprep.mubr.bf16.mxu0 0
    %6262 = vmatmul.mubr.bf16.gmra.mrb[0].mxu0 %v365
    %v6263 = vpop.f32.mrb[0].mxu0
    %v6264 = vadd.f32 %v6063, %v6263
    %v6265 = vpop.f32.mrb[0].mxu0
    %v6266 = vadd.f32 %v6065, %v6265
    %v6267 = vpop.f32.mrb[0].mxu0
    %v6268 = vpop.f32.mrb[0].mxu0
    %6269 = vdwg.mxu0
    %v6270 = vmul.f32 %v3692, %v3692
    %v6271 = vmul.f32 %v3694, %v3694
    %v6272 = vmul.f32 %v4496, %v4496
    %v6273 = vmul.f32 %v4498, %v4498
    %v6274 = vmul.f32 %v3696, %v3696
    %v6275 = vmul.f32 %v3698, %v3698
    %v6276 = vmul.f32 %v4500, %v4500
    %v6277 = vmul.f32 %v4502, %v4502
    %v6278 = vmul.f32 %v3702, %v3702
    %v6279 = vmul.f32 %v3704, %v3704
    %v6280 = vmul.f32 %v4506, %v4506
    %v6281 = vmul.f32 %v4508, %v4508
    %v6282 = vmul.f32 %v3706, %v3706
    %v6283 = vmul.f32 %v3708, %v3708
    %v6284 = vmul.f32 %v4510, %v4510
    %v6285 = vmul.f32 %v4512, %v4512
    %v6286 = vmul.f32 %v3712, %v3712
    %v6287 = vmul.f32 %v3714, %v3714
    %v6288 = vmul.f32 %v4516, %v4516
    %v6289 = vmul.f32 %v4518, %v4518
    %v6290 = vmul.f32 %v3716, %v3716
    %v6291 = vmul.f32 %v3718, %v3718
    %v6292 = vmul.f32 %v4520, %v4520
    %v6293 = vmul.f32 %v4522, %v4522
    %v6294 = vmul.f32 %v3722, %v3722
    %v6295 = vmul.f32 %v3724, %v3724
    %v6296 = vmul.f32 %v4526, %v4526
    %v6297 = vmul.f32 %v4528, %v4528
    %v6298 = vmul.f32 %v3726, %v3726
    %v6299 = vmul.f32 %v3728, %v3728
    %v6300 = vmul.f32 %v4530, %v4530
    %v6301 = vmul.f32 %v4532, %v4532
    %v6302 = vmul.f32 %v3732, %v3732
    %v6303 = vmul.f32 %v3734, %v3734
    %v6304 = vmul.f32 %v4536, %v4536
    %v6305 = vmul.f32 %v4538, %v4538
    %v6306 = vmul.f32 %v3736, %v3736
    %v6307 = vmul.f32 %v3738, %v3738
    %v6308 = vmul.f32 %v4540, %v4540
    %v6309 = vmul.f32 %v4542, %v4542
    %v6310 = vmul.f32 %v3742, %v3742
    %v6311 = vmul.f32 %v3744, %v3744
    %v6312 = vmul.f32 %v4546, %v4546
    %v6313 = vmul.f32 %v4548, %v4548
    %v6314 = vmul.f32 %v3746, %v3746
    %v6315 = vmul.f32 %v3748, %v3748
    %v6316 = vmul.f32 %v4550, %v4550
    %v6317 = vmul.f32 %v4552, %v4552
    %v6318 = vmul.f32 %v3752, %v3752
    %v6319 = vmul.f32 %v3754, %v3754
    %v6320 = vmul.f32 %v4556, %v4556
    %v6321 = vmul.f32 %v4558, %v4558
    %v6322 = vmul.f32 %v3756, %v3756
    %v6323 = vmul.f32 %v3758, %v3758
    %v6324 = vmul.f32 %v4560, %v4560
    %v6325 = vmul.f32 %v4562, %v4562
    %v6326 = vmul.f32 %v3762, %v3762
    %v6327 = vmul.f32 %v3764, %v3764
    %v6328 = vmul.f32 %v4566, %v4566
    %v6329 = vmul.f32 %v4568, %v4568
    %v6330 = vmul.f32 %v3766, %v3766
    %v6331 = vmul.f32 %v3768, %v3768
    %v6332 = vmul.f32 %v4570, %v4570
    %v6333 = vmul.f32 %v4572, %v4572
    %v6334 = vmul.f32 %v3772, %v3772
    %v6335 = vmul.f32 %v3774, %v3774
    %v6336 = vmul.f32 %v4576, %v4576
    %v6337 = vmul.f32 %v4578, %v4578
    %v6338 = vmul.f32 %v3776, %v3776
    %v6339 = vmul.f32 %v3778, %v3778
    %v6340 = vmul.f32 %v4580, %v4580
    %v6341 = vmul.f32 %v4582, %v4582
    %v6342 = vmul.f32 %v3782, %v3782
    %v6343 = vmul.f32 %v3784, %v3784
    %v6344 = vmul.f32 %v4586, %v4586
    %v6345 = vmul.f32 %v4588, %v4588
    %v6346 = vmul.f32 %v3786, %v3786
    %v6347 = vmul.f32 %v3788, %v3788
    %v6348 = vmul.f32 %v4590, %v4590
    %v6349 = vmul.f32 %v4592, %v4592
    %v6350 = vmul.f32 %v3792, %v3792
    %v6351 = vmul.f32 %v3794, %v3794
    %v6352 = vmul.f32 %v4596, %v4596
    %v6353 = vmul.f32 %v4598, %v4598
    %v6354 = vmul.f32 %v3796, %v3796
    %v6355 = vmul.f32 %v3798, %v3798
    %v6356 = vmul.f32 %v4600, %v4600
    %v6357 = vmul.f32 %v4602, %v4602
    %v6358 = vmul.f32 %v3802, %v3802
    %v6359 = vmul.f32 %v3804, %v3804
    %v6360 = vmul.f32 %v4606, %v4606
    %v6361 = vmul.f32 %v4608, %v4608
    %v6362 = vmul.f32 %v3806, %v3806
    %v6363 = vmul.f32 %v3808, %v3808
    %v6364 = vmul.f32 %v4610, %v4610
    %v6365 = vmul.f32 %v4612, %v4612
    %v6366 = vmul.f32 %v3812, %v3812
    %v6367 = vmul.f32 %v3814, %v3814
    %v6368 = vmul.f32 %v4616, %v4616
    %v6369 = vmul.f32 %v4618, %v4618
    %v6370 = vmul.f32 %v3816, %v3816
    %v6371 = vmul.f32 %v3818, %v3818
    %v6372 = vmul.f32 %v4620, %v4620
    %v6373 = vmul.f32 %v4622, %v4622
    %v6374 = vmul.f32 %v3822, %v3822
    %v6375 = vmul.f32 %v3824, %v3824
    %v6376 = vmul.f32 %v4626, %v4626
    %v6377 = vmul.f32 %v4628, %v4628
    %v6378 = vmul.f32 %v3826, %v3826
    %v6379 = vmul.f32 %v3828, %v3828
    %v6380 = vmul.f32 %v4630, %v4630
    %v6381 = vmul.f32 %v4632, %v4632
    %v6382 = vmul.f32 %v3832, %v3832
    %v6383 = vmul.f32 %v3834, %v3834
    %v6384 = vmul.f32 %v4636, %v4636
    %v6385 = vmul.f32 %v4638, %v4638
    %v6386 = vmul.f32 %v3836, %v3836
    %v6387 = vmul.f32 %v3838, %v3838
    %v6388 = vmul.f32 %v4640, %v4640
    %v6389 = vmul.f32 %v4642, %v4642
    %v6390 = vmul.f32 %v3842, %v3842
    %v6391 = vmul.f32 %v3844, %v3844
    %v6392 = vmul.f32 %v4646, %v4646
    %v6393 = vmul.f32 %v4648, %v4648
    %v6394 = vmul.f32 %v3846, %v3846
    %v6395 = vmul.f32 %v3848, %v3848
    %v6396 = vmul.f32 %v4650, %v4650
    %v6397 = vmul.f32 %v4652, %v4652
    %v6398 = vmul.f32 %v3852, %v3852
    %v6399 = vmul.f32 %v3854, %v3854
    %v6400 = vmul.f32 %v4656, %v4656
    %v6401 = vmul.f32 %v4658, %v4658
    %v6402 = vmul.f32 %v5300, %v5300
    %v6403 = vmul.f32 %v5302, %v5302
    %v6404 = vmul.f32 %v6104, %v6104
    %v6405 = vmul.f32 %v6106, %v6106
    %v6406 = vmul.f32 %v5304, %v5304
    %v6407 = vmul.f32 %v5306, %v5306
    %v6408 = vmul.f32 %v6108, %v6108
    %v6409 = vmul.f32 %v6110, %v6110
    %v6410 = vmul.f32 %v5310, %v5310
    %v6411 = vmul.f32 %v5312, %v5312
    %v6412 = vmul.f32 %v6114, %v6114
    %v6413 = vmul.f32 %v6116, %v6116
    %v6414 = vmul.f32 %v5314, %v5314
    %v6415 = vmul.f32 %v5316, %v5316
    %v6416 = vmul.f32 %v6118, %v6118
    %v6417 = vmul.f32 %v6120, %v6120
    %v6418 = vmul.f32 %v5320, %v5320
    %v6419 = vmul.f32 %v5322, %v5322
    %v6420 = vmul.f32 %v6124, %v6124
    %v6421 = vmul.f32 %v6126, %v6126
    %v6422 = vmul.f32 %v5324, %v5324
    %v6423 = vmul.f32 %v5326, %v5326
    %v6424 = vmul.f32 %v6128, %v6128
    %v6425 = vmul.f32 %v6130, %v6130
    %v6426 = vmul.f32 %v5330, %v5330
    %v6427 = vmul.f32 %v5332, %v5332
    %v6428 = vmul.f32 %v6134, %v6134
    %v6429 = vmul.f32 %v6136, %v6136
    %v6430 = vmul.f32 %v5334, %v5334
    %v6431 = vmul.f32 %v5336, %v5336
    %v6432 = vmul.f32 %v6138, %v6138
    %v6433 = vmul.f32 %v6140, %v6140
    %v6434 = vmul.f32 %v5340, %v5340
    %v6435 = vmul.f32 %v5342, %v5342
    %v6436 = vmul.f32 %v6144, %v6144
    %v6437 = vmul.f32 %v6146, %v6146
    %v6438 = vmul.f32 %v5344, %v5344
    %v6439 = vmul.f32 %v5346, %v5346
    %v6440 = vmul.f32 %v6148, %v6148
    %v6441 = vmul.f32 %v6150, %v6150
    %v6442 = vmul.f32 %v5350, %v5350
    %v6443 = vmul.f32 %v5352, %v5352
    %v6444 = vmul.f32 %v6154, %v6154
    %v6445 = vmul.f32 %v6156, %v6156
    %v6446 = vmul.f32 %v5354, %v5354
    %v6447 = vmul.f32 %v5356, %v5356
    %v6448 = vmul.f32 %v6158, %v6158
    %v6449 = vmul.f32 %v6160, %v6160
    %v6450 = vmul.f32 %v5360, %v5360
    %v6451 = vmul.f32 %v5362, %v5362
    %v6452 = vmul.f32 %v6164, %v6164
    %v6453 = vmul.f32 %v6166, %v6166
    %v6454 = vmul.f32 %v5364, %v5364
    %v6455 = vmul.f32 %v5366, %v5366
    %v6456 = vmul.f32 %v6168, %v6168
    %v6457 = vmul.f32 %v6170, %v6170
    %v6458 = vmul.f32 %v5370, %v5370
    %v6459 = vmul.f32 %v5372, %v5372
    %v6460 = vmul.f32 %v6174, %v6174
    %v6461 = vmul.f32 %v6176, %v6176
    %v6462 = vmul.f32 %v5374, %v5374
    %v6463 = vmul.f32 %v5376, %v5376
    %v6464 = vmul.f32 %v6178, %v6178
    %v6465 = vmul.f32 %v6180, %v6180
    %v6466 = vmul.f32 %v5380, %v5380
    %v6467 = vmul.f32 %v5382, %v5382
    %v6468 = vmul.f32 %v6184, %v6184
    %v6469 = vmul.f32 %v6186, %v6186
    %v6470 = vmul.f32 %v5384, %v5384
    %v6471 = vmul.f32 %v5386, %v5386
    %v6472 = vmul.f32 %v6188, %v6188
    %v6473 = vmul.f32 %v6190, %v6190
    %v6474 = vmul.f32 %v5390, %v5390
    %v6475 = vmul.f32 %v5392, %v5392
    %v6476 = vmul.f32 %v6194, %v6194
    %v6477 = vmul.f32 %v6196, %v6196
    %v6478 = vmul.f32 %v5394, %v5394
    %v6479 = vmul.f32 %v5396, %v5396
    %v6480 = vmul.f32 %v6198, %v6198
    %v6481 = vmul.f32 %v6200, %v6200
    %v6482 = vmul.f32 %v5400, %v5400
    %v6483 = vmul.f32 %v5402, %v5402
    %v6484 = vmul.f32 %v6204, %v6204
    %v6485 = vmul.f32 %v6206, %v6206
    %v6486 = vmul.f32 %v5404, %v5404
    %v6487 = vmul.f32 %v5406, %v5406
    %v6488 = vmul.f32 %v6208, %v6208
    %v6489 = vmul.f32 %v6210, %v6210
    %v6490 = vmul.f32 %v5410, %v5410
    %v6491 = vmul.f32 %v5412, %v5412
    %v6492 = vmul.f32 %v6214, %v6214
    %v6493 = vmul.f32 %v6216, %v6216
    %v6494 = vmul.f32 %v5414, %v5414
    %v6495 = vmul.f32 %v5416, %v5416
    %v6496 = vmul.f32 %v6218, %v6218
    %v6497 = vmul.f32 %v6220, %v6220
    %v6498 = vmul.f32 %v5420, %v5420
    %v6499 = vmul.f32 %v5422, %v5422
    %v6500 = vmul.f32 %v6224, %v6224
    %v6501 = vmul.f32 %v6226, %v6226
    %v6502 = vmul.f32 %v5424, %v5424
    %v6503 = vmul.f32 %v5426, %v5426
    %v6504 = vmul.f32 %v6228, %v6228
    %v6505 = vmul.f32 %v6230, %v6230
    %v6506 = vmul.f32 %v5430, %v5430
    %v6507 = vmul.f32 %v5432, %v5432
    %v6508 = vmul.f32 %v6234, %v6234
    %v6509 = vmul.f32 %v6236, %v6236
    %v6510 = vmul.f32 %v5434, %v5434
    %v6511 = vmul.f32 %v5436, %v5436
    %v6512 = vmul.f32 %v6238, %v6238
    %v6513 = vmul.f32 %v6240, %v6240
    %v6514 = vmul.f32 %v5440, %v5440
    %v6515 = vmul.f32 %v5442, %v5442
    %v6516 = vmul.f32 %v6244, %v6244
    %v6517 = vmul.f32 %v6246, %v6246
    %v6518 = vmul.f32 %v5444, %v5444
    %v6519 = vmul.f32 %v5446, %v5446
    %v6520 = vmul.f32 %v6248, %v6248
    %v6521 = vmul.f32 %v6250, %v6250
    %v6522 = vmul.f32 %v5450, %v5450
    %v6523 = vmul.f32 %v5452, %v5452
    %v6524 = vmul.f32 %v6254, %v6254
    %v6525 = vmul.f32 %v6256, %v6256
    %v6526 = vmul.f32 %v5454, %v5454
    %v6527 = vmul.f32 %v5456, %v5456
    %v6528 = vmul.f32 %v6258, %v6258
    %v6529 = vmul.f32 %v6260, %v6260
    %v6530 = vmul.f32 %v5460, %v5460
    %v6531 = vmul.f32 %v5462, %v5462
    %v6532 = vmul.f32 %v6264, %v6264
    %v6533 = vmul.f32 %v6266, %v6266
    %v6534 = vadd.f32 %v6270, %v6402
    %v6535 = vadd.f32 %v6271, %v6403
    %v6536 = vadd.f32 %v6272, %v6404
    %v6537 = vadd.f32 %v6273, %v6405
    %v6538 = vadd.f32 %v6274, %v6406
    %v6539 = vadd.f32 %v6275, %v6407
    %v6540 = vadd.f32 %v6276, %v6408
    %v6541 = vadd.f32 %v6277, %v6409
    %v6542 = vadd.f32 %v6278, %v6410
    %v6543 = vadd.f32 %v6279, %v6411
    %v6544 = vadd.f32 %v6280, %v6412
    %v6545 = vadd.f32 %v6281, %v6413
    %v6546 = vadd.f32 %v6282, %v6414
    %v6547 = vadd.f32 %v6283, %v6415
    %v6548 = vadd.f32 %v6284, %v6416
    %v6549 = vadd.f32 %v6285, %v6417
    %v6550 = vadd.f32 %v6286, %v6418
    %v6551 = vadd.f32 %v6287, %v6419
    %v6552 = vadd.f32 %v6288, %v6420
    %v6553 = vadd.f32 %v6289, %v6421
    %v6554 = vadd.f32 %v6290, %v6422
    %v6555 = vadd.f32 %v6291, %v6423
    %v6556 = vadd.f32 %v6292, %v6424
    %v6557 = vadd.f32 %v6293, %v6425
    %v6558 = vadd.f32 %v6294, %v6426
    %v6559 = vadd.f32 %v6295, %v6427
    %v6560 = vadd.f32 %v6296, %v6428
    %v6561 = vadd.f32 %v6297, %v6429
    %v6562 = vadd.f32 %v6298, %v6430
    %v6563 = vadd.f32 %v6299, %v6431
    %v6564 = vadd.f32 %v6300, %v6432
    %v6565 = vadd.f32 %v6301, %v6433
    %v6566 = vadd.f32 %v6302, %v6434
    %v6567 = vadd.f32 %v6303, %v6435
    %v6568 = vadd.f32 %v6304, %v6436
    %v6569 = vadd.f32 %v6305, %v6437
    %v6570 = vadd.f32 %v6306, %v6438
    %v6571 = vadd.f32 %v6307, %v6439
    %v6572 = vadd.f32 %v6308, %v6440
    %v6573 = vadd.f32 %v6309, %v6441
    %v6574 = vadd.f32 %v6310, %v6442
    %v6575 = vadd.f32 %v6311, %v6443
    %v6576 = vadd.f32 %v6312, %v6444
    %v6577 = vadd.f32 %v6313, %v6445
    %v6578 = vadd.f32 %v6314, %v6446
    %v6579 = vadd.f32 %v6315, %v6447
    %v6580 = vadd.f32 %v6316, %v6448
    %v6581 = vadd.f32 %v6317, %v6449
    %v6582 = vadd.f32 %v6318, %v6450
    %v6583 = vadd.f32 %v6319, %v6451
    %v6584 = vadd.f32 %v6320, %v6452
    %v6585 = vadd.f32 %v6321, %v6453
    %v6586 = vadd.f32 %v6322, %v6454
    %v6587 = vadd.f32 %v6323, %v6455
    %v6588 = vadd.f32 %v6324, %v6456
    %v6589 = vadd.f32 %v6325, %v6457
    %v6590 = vadd.f32 %v6326, %v6458
    %v6591 = vadd.f32 %v6327, %v6459
    %v6592 = vadd.f32 %v6328, %v6460
    %v6593 = vadd.f32 %v6329, %v6461
    %v6594 = vadd.f32 %v6330, %v6462
    %v6595 = vadd.f32 %v6331, %v6463
    %v6596 = vadd.f32 %v6332, %v6464
    %v6597 = vadd.f32 %v6333, %v6465
    %v6598 = vadd.f32 %v6334, %v6466
    %v6599 = vadd.f32 %v6335, %v6467
    %v6600 = vadd.f32 %v6336, %v6468
    %v6601 = vadd.f32 %v6337, %v6469
    %v6602 = vadd.f32 %v6338, %v6470
    %v6603 = vadd.f32 %v6339, %v6471
    %v6604 = vadd.f32 %v6340, %v6472
    %v6605 = vadd.f32 %v6341, %v6473
    %v6606 = vadd.f32 %v6342, %v6474
    %v6607 = vadd.f32 %v6343, %v6475
    %v6608 = vadd.f32 %v6344, %v6476
    %v6609 = vadd.f32 %v6345, %v6477
    %v6610 = vadd.f32 %v6346, %v6478
    %v6611 = vadd.f32 %v6347, %v6479
    %v6612 = vadd.f32 %v6348, %v6480
    %v6613 = vadd.f32 %v6349, %v6481
    %v6614 = vadd.f32 %v6350, %v6482
    %v6615 = vadd.f32 %v6351, %v6483
    %v6616 = vadd.f32 %v6352, %v6484
    %v6617 = vadd.f32 %v6353, %v6485
    %v6618 = vadd.f32 %v6354, %v6486
    %v6619 = vadd.f32 %v6355, %v6487
    %v6620 = vadd.f32 %v6356, %v6488
    %v6621 = vadd.f32 %v6357, %v6489
    %v6622 = vadd.f32 %v6358, %v6490
    %v6623 = vadd.f32 %v6359, %v6491
    %v6624 = vadd.f32 %v6360, %v6492
    %v6625 = vadd.f32 %v6361, %v6493
    %v6626 = vadd.f32 %v6362, %v6494
    %v6627 = vadd.f32 %v6363, %v6495
    %v6628 = vadd.f32 %v6364, %v6496
    %v6629 = vadd.f32 %v6365, %v6497
    %v6630 = vadd.f32 %v6366, %v6498
    %v6631 = vadd.f32 %v6367, %v6499
    %v6632 = vadd.f32 %v6368, %v6500
    %v6633 = vadd.f32 %v6369, %v6501
    %v6634 = vadd.f32 %v6370, %v6502
    %v6635 = vadd.f32 %v6371, %v6503
    %v6636 = vadd.f32 %v6372, %v6504
    %v6637 = vadd.f32 %v6373, %v6505
    %v6638 = vadd.f32 %v6374, %v6506
    %v6639 = vadd.f32 %v6375, %v6507
    %v6640 = vadd.f32 %v6376, %v6508
    %v6641 = vadd.f32 %v6377, %v6509
    %v6642 = vadd.f32 %v6378, %v6510
    %v6643 = vadd.f32 %v6379, %v6511
    %v6644 = vadd.f32 %v6380, %v6512
    %v6645 = vadd.f32 %v6381, %v6513
    %v6646 = vadd.f32 %v6382, %v6514
    %v6647 = vadd.f32 %v6383, %v6515
    %v6648 = vadd.f32 %v6384, %v6516
    %v6649 = vadd.f32 %v6385, %v6517
    %v6650 = vadd.f32 %v6386, %v6518
    %v6651 = vadd.f32 %v6387, %v6519
    %v6652 = vadd.f32 %v6388, %v6520
    %v6653 = vadd.f32 %v6389, %v6521
    %v6654 = vadd.f32 %v6390, %v6522
    %v6655 = vadd.f32 %v6391, %v6523
    %v6656 = vadd.f32 %v6392, %v6524
    %v6657 = vadd.f32 %v6393, %v6525
    %v6658 = vadd.f32 %v6394, %v6526
    %v6659 = vadd.f32 %v6395, %v6527
    %v6660 = vadd.f32 %v6396, %v6528
    %v6661 = vadd.f32 %v6397, %v6529
    %v6662 = vadd.f32 %v6398, %v6530
    %v6663 = vadd.f32 %v6399, %v6531
    %v6664 = vadd.f32 %v6400, %v6532
    %v6665 = vadd.f32 %v6401, %v6533
    %v6666 = vld [vmem:[%s2] sm:$0xff]
    %v6667 = vld [vmem:[%s2 + $0x8] sm:$0xff]
    %v6668 = vld [vmem:[%s2 + $0x10] sm:$0xff]
    %v6669 = vld [vmem:[%s2 + $0x18] sm:$0xff]
    %v6670 = vld [vmem:[%s2 + $0x20] sm:$0xff]
    %v6671 = vld [vmem:[%s2 + $0x28] sm:$0xff]
    %v6672 = vld [vmem:[%s2 + $0x30] sm:$0xff]
    %v6673 = vld [vmem:[%s2 + $0x38] sm:$0xff]
    %v6674 = vld [vmem:[%s2 + $0x40] sm:$0xff]
    %v6675 = vld [vmem:[%s2 + $0x48] sm:$0xff]
    %v6676 = vld [vmem:[%s2 + $0x50] sm:$0xff]
    %v6677 = vld [vmem:[%s2 + $0x58] sm:$0xff]
    %v6678 = vld [vmem:[%s2 + $0x60] sm:$0xff]
    %v6679 = vld [vmem:[%s2 + $0x68] sm:$0xff]
    %v6680 = vld [vmem:[%s2 + $0x70] sm:$0xff]
    %v6681 = vld [vmem:[%s2 + $0x78] sm:$0xff]
    %v6682 = vld [vmem:[%s2 + $0x80] sm:$0xff]
    %v6683 = vld [vmem:[%s2 + $0x88] sm:$0xff]
    %v6684 = vld [vmem:[%s2 + $0x90] sm:$0xff]
    %v6685 = vld [vmem:[%s2 + $0x98] sm:$0xff]
    %v6686 = vld [vmem:[%s2 + $0xa0] sm:$0xff]
    %v6687 = vld [vmem:[%s2 + $0xa8] sm:$0xff]
    %v6688 = vld [vmem:[%s2 + $0xb0] sm:$0xff]
    %v6689 = vld [vmem:[%s2 + $0xb8] sm:$0xff]
    %v6690 = vld [vmem:[%s2 + $0xc0] sm:$0xff]
    %v6691 = vld [vmem:[%s2 + $0xc8] sm:$0xff]
    %v6692 = vld [vmem:[%s2 + $0xd0] sm:$0xff]
    %v6693 = vld [vmem:[%s2 + $0xd8] sm:$0xff]
    %v6694 = vld [vmem:[%s2 + $0xe0] sm:$0xff]
    %v6695 = vld [vmem:[%s2 + $0xe8] sm:$0xff]
    %v6696 = vld [vmem:[%s2 + $0xf0] sm:$0xff]
    %v6697 = vld [vmem:[%s2 + $0xf8] sm:$0xff]
    %v6698 = vld [vmem:[%s2 + $0x100] sm:$0xff]
    %v6699 = vld [vmem:[%s2 + $0x108] sm:$0xff]
    %v6700 = vld [vmem:[%s2 + $0x110] sm:$0xff]
    %v6701 = vld [vmem:[%s2 + $0x118] sm:$0xff]
    %v6702 = vld [vmem:[%s2 + $0x120] sm:$0xff]
    %v6703 = vld [vmem:[%s2 + $0x128] sm:$0xff]
    %v6704 = vld [vmem:[%s2 + $0x130] sm:$0xff]
    %v6705 = vld [vmem:[%s2 + $0x138] sm:$0xff]
    %v6706 = vld [vmem:[%s2 + $0x140] sm:$0xff]
    %v6707 = vld [vmem:[%s2 + $0x148] sm:$0xff]
    %v6708 = vld [vmem:[%s2 + $0x150] sm:$0xff]
    %v6709 = vld [vmem:[%s2 + $0x158] sm:$0xff]
    %v6710 = vld [vmem:[%s2 + $0x160] sm:$0xff]
    %v6711 = vld [vmem:[%s2 + $0x168] sm:$0xff]
    %v6712 = vld [vmem:[%s2 + $0x170] sm:$0xff]
    %v6713 = vld [vmem:[%s2 + $0x178] sm:$0xff]
    %v6714 = vld [vmem:[%s2 + $0x180] sm:$0xff]
    %v6715 = vld [vmem:[%s2 + $0x188] sm:$0xff]
    %v6716 = vld [vmem:[%s2 + $0x190] sm:$0xff]
    %v6717 = vld [vmem:[%s2 + $0x198] sm:$0xff]
    %v6718 = vld [vmem:[%s2 + $0x1a0] sm:$0xff]
    %v6719 = vld [vmem:[%s2 + $0x1a8] sm:$0xff]
    %v6720 = vld [vmem:[%s2 + $0x1b0] sm:$0xff]
    %v6721 = vld [vmem:[%s2 + $0x1b8] sm:$0xff]
    %v6722 = vld [vmem:[%s2 + $0x1c0] sm:$0xff]
    %v6723 = vld [vmem:[%s2 + $0x1c8] sm:$0xff]
    %v6724 = vld [vmem:[%s2 + $0x1d0] sm:$0xff]
    %v6725 = vld [vmem:[%s2 + $0x1d8] sm:$0xff]
    %v6726 = vld [vmem:[%s2 + $0x1e0] sm:$0xff]
    %v6727 = vld [vmem:[%s2 + $0x1e8] sm:$0xff]
    %v6728 = vld [vmem:[%s2 + $0x1f0] sm:$0xff]
    %v6729 = vld [vmem:[%s2 + $0x1f8] sm:$0xff]
    %6730 = vmatprep.subr.mxu0 0.0
    %6731 = vmatpush1.msra.mxu0 %v6666
    %6732 = vmatprep.subr.mxu0 0.0
    %6733 = vmatpush1.msra.mxu0 %v6667
    %6734 = vmatprep.subr.mxu0 0.0
    %6735 = vmatpush1.msra.mxu0 %v6668
    %6736 = vmatprep.subr.mxu0 0.0
    %6737 = vmatpush1.msra.mxu0 %v6669
    %6738 = vmatprep.subr.mxu0 0.0
    %6739 = vmatpush1.msra.mxu0 %v6670
    %6740 = vmatprep.subr.mxu0 0.0
    %6741 = vmatpush1.msra.mxu0 %v6671
    %6742 = vmatprep.subr.mxu0 0.0
    %6743 = vmatpush1.msra.mxu0 %v6672
    %6744 = vmatprep.subr.mxu0 0.0
    %6745 = vmatpush1.msra.mxu0 %v6673
    %6746 = vmatprep.subr.mxu0 0.0
    %6747 = vmatpush1.msra.mxu0 %v6674
    %6748 = vmatprep.subr.mxu0 0.0
    %6749 = vmatpush1.msra.mxu0 %v6675
    %6750 = vmatprep.subr.mxu0 0.0
    %6751 = vmatpush1.msra.mxu0 %v6676
    %6752 = vmatprep.subr.mxu0 0.0
    %6753 = vmatpush1.msra.mxu0 %v6677
    %6754 = vmatprep.subr.mxu0 0.0
    %6755 = vmatpush1.msra.mxu0 %v6678
    %6756 = vmatprep.subr.mxu0 0.0
    %6757 = vmatpush1.msra.mxu0 %v6679
    %6758 = vmatprep.subr.mxu0 0.0
    %6759 = vmatpush1.msra.mxu0 %v6680
    %6760 = vmatprep.subr.mxu0 0.0
    %6761 = vmatpush1.msra.mxu0 %v6681
    %6762 = vmatprep.subr.mxu0 0.0
    %6763 = vmatpush1.msra.mxu0 %v6682
    %6764 = vmatprep.subr.mxu0 0.0
    %6765 = vmatpush1.msra.mxu0 %v6683
    %6766 = vmatprep.subr.mxu0 0.0
    %6767 = vmatpush1.msra.mxu0 %v6684
    %6768 = vmatprep.subr.mxu0 0.0
    %6769 = vmatpush1.msra.mxu0 %v6685
    %6770 = vmatprep.subr.mxu0 0.0
    %6771 = vmatpush1.msra.mxu0 %v6686
    %6772 = vmatprep.subr.mxu0 0.0
    %6773 = vmatpush1.msra.mxu0 %v6687
    %6774 = vmatprep.subr.mxu0 0.0
    %6775 = vmatpush1.msra.mxu0 %v6688
    %6776 = vmatprep.subr.mxu0 0.0
    %6777 = vmatpush1.msra.mxu0 %v6689
    %6778 = vmatprep.subr.mxu0 0.0
    %6779 = vmatpush1.msra.mxu0 %v6690
    %6780 = vmatprep.subr.mxu0 0.0
    %6781 = vmatpush1.msra.mxu0 %v6691
    %6782 = vmatprep.subr.mxu0 0.0
    %6783 = vmatpush1.msra.mxu0 %v6692
    %6784 = vmatprep.subr.mxu0 0.0
    %6785 = vmatpush1.msra.mxu0 %v6693
    %6786 = vmatprep.subr.mxu0 0.0
    %6787 = vmatpush1.msra.mxu0 %v6694
    %6788 = vmatprep.subr.mxu0 0.0
    %6789 = vmatpush1.msra.mxu0 %v6695
    %6790 = vmatprep.subr.mxu0 0.0
    %6791 = vmatpush1.msra.mxu0 %v6696
    %6792 = vmatprep.subr.mxu0 0.0
    %6793 = vmatpush1.msra.mxu0 %v6697
    %6794 = vmatprep.mubr.f32.mxu0 %v6535
    %6795 = vmatmul.mubr.f32.gmra.mrb[0].mxu0 %v6534
    %v6796 = vpop.f32.mrb[0].mxu0
    %v6797 = vadd.f32 0.0, %v6796
    %v6798 = vpop.f32.mrb[0].mxu0
    %6799 = vmatprep.mubr.f32.mxu0 %v6539
    %6800 = vmatmul.mubr.f32.gmra.mrb[0].mxu0 %v6538
    %v6801 = vpop.f32.mrb[0].mxu0
    %v6802 = vadd.f32 0.0, %v6801
    %v6803 = vpop.f32.mrb[0].mxu0
    %6804 = vmatprep.mubr.f32.mxu0 %v6543
    %6805 = vmatmul.mubr.f32.gmra.mrb[0].mxu0 %v6542
    %v6806 = vpop.f32.mrb[0].mxu0
    %v6807 = vadd.f32 0.0, %v6806
    %v6808 = vpop.f32.mrb[0].mxu0
    %6809 = vmatprep.mubr.f32.mxu0 %v6547
    %6810 = vmatmul.mubr.f32.gmra.mrb[0].mxu0 %v6546
    %v6811 = vpop.f32.mrb[0].mxu0
    %v6812 = vadd.f32 0.0, %v6811
    %v6813 = vpop.f32.mrb[0].mxu0
    %6814 = vmatprep.mubr.f32.mxu0 %v6551
    %6815 = vmatmul.mubr.f32.gmra.mrb[0].mxu0 %v6550
    %v6816 = vpop.f32.mrb[0].mxu0
    %v6817 = vadd.f32 0.0, %v6816
    %v6818 = vpop.f32.mrb[0].mxu0
    %6819 = vmatprep.mubr.f32.mxu0 %v6555
    %6820 = vmatmul.mubr.f32.gmra.mrb[0].mxu0 %v6554
    %v6821 = vpop.f32.mrb[0].mxu0
    %v6822 = vadd.f32 0.0, %v6821
    %v6823 = vpop.f32.mrb[0].mxu0
    %6824 = vmatprep.mubr.f32.mxu0 %v6559
    %6825 = vmatmul.mubr.f32.gmra.mrb[0].mxu0 %v6558
    %v6826 = vpop.f32.mrb[0].mxu0
    %v6827 = vadd.f32 0.0, %v6826
    %v6828 = vpop.f32.mrb[0].mxu0
    %6829 = vmatprep.mubr.f32.mxu0 %v6563
    %6830 = vmatmul.mubr.f32.gmra.mrb[0].mxu0 %v6562
    %v6831 = vpop.f32.mrb[0].mxu0
    %v6832 = vadd.f32 0.0, %v6831
    %v6833 = vpop.f32.mrb[0].mxu0
    %6834 = vmatprep.mubr.f32.mxu0 %v6567
    %6835 = vmatmul.mubr.f32.gmra.mrb[0].mxu0 %v6566
    %v6836 = vpop.f32.mrb[0].mxu0
    %v6837 = vadd.f32 0.0, %v6836
    %v6838 = vpop.f32.mrb[0].mxu0
    %6839 = vmatprep.mubr.f32.mxu0 %v6571
    %6840 = vmatmul.mubr.f32.gmra.mrb[0].mxu0 %v6570
    %v6841 = vpop.f32.mrb[0].mxu0
    %v6842 = vadd.f32 0.0, %v6841
    %v6843 = vpop.f32.mrb[0].mxu0
    %6844 = vmatprep.mubr.f32.mxu0 %v6575
    %6845 = vmatmul.mubr.f32.gmra.mrb[0].mxu0 %v6574
    %v6846 = vpop.f32.mrb[0].mxu0
    %v6847 = vadd.f32 0.0, %v6846
    %v6848 = vpop.f32.mrb[0].mxu0
    %6849 = vmatprep.mubr.f32.mxu0 %v6579
    %6850 = vmatmul.mubr.f32.gmra.mrb[0].mxu0 %v6578
    %v6851 = vpop.f32.mrb[0].mxu0
    %v6852 = vadd.f32 0.0, %v6851
    %v6853 = vpop.f32.mrb[0].mxu0
    %6854 = vmatprep.mubr.f32.mxu0 %v6583
    %6855 = vmatmul.mubr.f32.gmra.mrb[0].mxu0 %v6582
    %v6856 = vpop.f32.mrb[0].mxu0
    %v6857 = vadd.f32 0.0, %v6856
    %v6858 = vpop.f32.mrb[0].mxu0
    %6859 = vmatprep.mubr.f32.mxu0 %v6587
    %6860 = vmatmul.mubr.f32.gmra.mrb[0].mxu0 %v6586
    %v6861 = vpop.f32.mrb[0].mxu0
    %v6862 = vadd.f32 0.0, %v6861
    %v6863 = vpop.f32.mrb[0].mxu0
    %6864 = vmatprep.mubr.f32.mxu0 %v6591
    %6865 = vmatmul.mubr.f32.gmra.mrb[0].mxu0 %v6590
    %v6866 = vpop.f32.mrb[0].mxu0
    %v6867 = vadd.f32 0.0, %v6866
    %v6868 = vpop.f32.mrb[0].mxu0
    %6869 = vmatprep.mubr.f32.mxu0 %v6595
    %6870 = vmatmul.mubr.f32.gmra.mrb[0].mxu0 %v6594
    %v6871 = vpop.f32.mrb[0].mxu0
    %v6872 = vadd.f32 0.0, %v6871
    %v6873 = vpop.f32.mrb[0].mxu0
    %6874 = vmatprep.mubr.f32.mxu0 %v6599
    %6875 = vmatmul.mubr.f32.gmra.mrb[0].mxu0 %v6598
    %v6876 = vpop.f32.mrb[0].mxu0
    %v6877 = vadd.f32 0.0, %v6876
    %v6878 = vpop.f32.mrb[0].mxu0
    %6879 = vmatprep.mubr.f32.mxu0 %v6603
    %6880 = vmatmul.mubr.f32.gmra.mrb[0].mxu0 %v6602
    %v6881 = vpop.f32.mrb[0].mxu0
    %v6882 = vadd.f32 0.0, %v6881
    %v6883 = vpop.f32.mrb[0].mxu0
    %6884 = vmatprep.mubr.f32.mxu0 %v6607
    %6885 = vmatmul.mubr.f32.gmra.mrb[0].mxu0 %v6606
    %v6886 = vpop.f32.mrb[0].mxu0
    %v6887 = vadd.f32 0.0, %v6886
    %v6888 = vpop.f32.mrb[0].mxu0
    %6889 = vmatprep.mubr.f32.mxu0 %v6611
    %6890 = vmatmul.mubr.f32.gmra.mrb[0].mxu0 %v6610
    %v6891 = vpop.f32.mrb[0].mxu0
    %v6892 = vadd.f32 0.0, %v6891
    %v6893 = vpop.f32.mrb[0].mxu0
    %6894 = vmatprep.mubr.f32.mxu0 %v6615
    %6895 = vmatmul.mubr.f32.gmra.mrb[0].mxu0 %v6614
    %v6896 = vpop.f32.mrb[0].mxu0
    %v6897 = vadd.f32 0.0, %v6896
    %v6898 = vpop.f32.mrb[0].mxu0
    %6899 = vmatprep.mubr.f32.mxu0 %v6619
    %6900 = vmatmul.mubr.f32.gmra.mrb[0].mxu0 %v6618
    %v6901 = vpop.f32.mrb[0].mxu0
    %v6902 = vadd.f32 0.0, %v6901
    %v6903 = vpop.f32.mrb[0].mxu0
    %6904 = vmatprep.mubr.f32.mxu0 %v6623
    %6905 = vmatmul.mubr.f32.gmra.mrb[0].mxu0 %v6622
    %v6906 = vpop.f32.mrb[0].mxu0
    %v6907 = vadd.f32 0.0, %v6906
    %v6908 = vpop.f32.mrb[0].mxu0
    %6909 = vmatprep.mubr.f32.mxu0 %v6627
    %6910 = vmatmul.mubr.f32.gmra.mrb[0].mxu0 %v6626
    %v6911 = vpop.f32.mrb[0].mxu0
    %v6912 = vadd.f32 0.0, %v6911
    %v6913 = vpop.f32.mrb[0].mxu0
    %6914 = vmatprep.mubr.f32.mxu0 %v6631
    %6915 = vmatmul.mubr.f32.gmra.mrb[0].mxu0 %v6630
    %v6916 = vpop.f32.mrb[0].mxu0
    %v6917 = vadd.f32 0.0, %v6916
    %v6918 = vpop.f32.mrb[0].mxu0
    %6919 = vmatprep.mubr.f32.mxu0 %v6635
    %6920 = vmatmul.mubr.f32.gmra.mrb[0].mxu0 %v6634
    %v6921 = vpop.f32.mrb[0].mxu0
    %v6922 = vadd.f32 0.0, %v6921
    %v6923 = vpop.f32.mrb[0].mxu0
    %6924 = vmatprep.mubr.f32.mxu0 %v6639
    %6925 = vmatmul.mubr.f32.gmra.mrb[0].mxu0 %v6638
    %v6926 = vpop.f32.mrb[0].mxu0
    %v6927 = vadd.f32 0.0, %v6926
    %v6928 = vpop.f32.mrb[0].mxu0
    %6929 = vmatprep.mubr.f32.mxu0 %v6643
    %6930 = vmatmul.mubr.f32.gmra.mrb[0].mxu0 %v6642
    %v6931 = vpop.f32.mrb[0].mxu0
    %v6932 = vadd.f32 0.0, %v6931
    %v6933 = vpop.f32.mrb[0].mxu0
    %6934 = vmatprep.mubr.f32.mxu0 %v6647
    %6935 = vmatmul.mubr.f32.gmra.mrb[0].mxu0 %v6646
    %v6936 = vpop.f32.mrb[0].mxu0
    %v6937 = vadd.f32 0.0, %v6936
    %v6938 = vpop.f32.mrb[0].mxu0
    %6939 = vmatprep.mubr.f32.mxu0 %v6651
    %6940 = vmatmul.mubr.f32.gmra.mrb[0].mxu0 %v6650
    %v6941 = vpop.f32.mrb[0].mxu0
    %v6942 = vadd.f32 0.0, %v6941
    %v6943 = vpop.f32.mrb[0].mxu0
    %6944 = vmatprep.mubr.f32.mxu0 %v6655
    %6945 = vmatmul.mubr.f32.gmra.mrb[0].mxu0 %v6654
    %v6946 = vpop.f32.mrb[0].mxu0
    %v6947 = vadd.f32 0.0, %v6946
    %v6948 = vpop.f32.mrb[0].mxu0
    %6949 = vmatprep.mubr.f32.mxu0 %v6659
    %6950 = vmatmul.mubr.f32.gmra.mrb[0].mxu0 %v6658
    %v6951 = vpop.f32.mrb[0].mxu0
    %v6952 = vadd.f32 0.0, %v6951
    %v6953 = vpop.f32.mrb[0].mxu0
    %6954 = vmatprep.mubr.f32.mxu0 %v6663
    %6955 = vmatmul.mubr.f32.gmra.mrb[0].mxu0 %v6662
    %v6956 = vpop.f32.mrb[0].mxu0
    %v6957 = vadd.f32 0.0, %v6956
    %v6958 = vpop.f32.mrb[0].mxu0
    %6959 = vdwg.mxu0
    %6960 = vmatprep.subr.mxu0 0.0
    %6961 = vmatpush1.msra.mxu0 %v6698
    %6962 = vmatprep.subr.mxu0 0.0
    %6963 = vmatpush1.msra.mxu0 %v6699
    %6964 = vmatprep.subr.mxu0 0.0
    %6965 = vmatpush1.msra.mxu0 %v6700
    %6966 = vmatprep.subr.mxu0 0.0
    %6967 = vmatpush1.msra.mxu0 %v6701
    %6968 = vmatprep.subr.mxu0 0.0
    %6969 = vmatpush1.msra.mxu0 %v6702
    %6970 = vmatprep.subr.mxu0 0.0
    %6971 = vmatpush1.msra.mxu0 %v6703
    %6972 = vmatprep.subr.mxu0 0.0
    %6973 = vmatpush1.msra.mxu0 %v6704
    %6974 = vmatprep.subr.mxu0 0.0
    %6975 = vmatpush1.msra.mxu0 %v6705
    %6976 = vmatprep.subr.mxu0 0.0
    %6977 = vmatpush1.msra.mxu0 %v6706
    %6978 = vmatprep.subr.mxu0 0.0
    %6979 = vmatpush1.msra.mxu0 %v6707
    %6980 = vmatprep.subr.mxu0 0.0
    %6981 = vmatpush1.msra.mxu0 %v6708
    %6982 = vmatprep.subr.mxu0 0.0
    %6983 = vmatpush1.msra.mxu0 %v6709
    %6984 = vmatprep.subr.mxu0 0.0
    %6985 = vmatpush1.msra.mxu0 %v6710
    %6986 = vmatprep.subr.mxu0 0.0
    %6987 = vmatpush1.msra.mxu0 %v6711
    %6988 = vmatprep.subr.mxu0 0.0
    %6989 = vmatpush1.msra.mxu0 %v6712
    %6990 = vmatprep.subr.mxu0 0.0
    %6991 = vmatpush1.msra.mxu0 %v6713
    %6992 = vmatprep.subr.mxu0 0.0
    %6993 = vmatpush1.msra.mxu0 %v6714
    %6994 = vmatprep.subr.mxu0 0.0
    %6995 = vmatpush1.msra.mxu0 %v6715
    %6996 = vmatprep.subr.mxu0 0.0
    %6997 = vmatpush1.msra.mxu0 %v6716
    %6998 = vmatprep.subr.mxu0 0.0
    %6999 = vmatpush1.msra.mxu0 %v6717
    %7000 = vmatprep.subr.mxu0 0.0
    %7001 = vmatpush1.msra.mxu0 %v6718
    %7002 = vmatprep.subr.mxu0 0.0
    %7003 = vmatpush1.msra.mxu0 %v6719
    %7004 = vmatprep.subr.mxu0 0.0
    %7005 = vmatpush1.msra.mxu0 %v6720
    %7006 = vmatprep.subr.mxu0 0.0
    %7007 = vmatpush1.msra.mxu0 %v6721
    %7008 = vmatprep.subr.mxu0 0.0
    %7009 = vmatpush1.msra.mxu0 %v6722
    %7010 = vmatprep.subr.mxu0 0.0
    %7011 = vmatpush1.msra.mxu0 %v6723
    %7012 = vmatprep.subr.mxu0 0.0
    %7013 = vmatpush1.msra.mxu0 %v6724
    %7014 = vmatprep.subr.mxu0 0.0
    %7015 = vmatpush1.msra.mxu0 %v6725
    %7016 = vmatprep.subr.mxu0 0.0
    %7017 = vmatpush1.msra.mxu0 %v6726
    %7018 = vmatprep.subr.mxu0 0.0
    %7019 = vmatpush1.msra.mxu0 %v6727
    %7020 = vmatprep.subr.mxu0 0.0
    %7021 = vmatpush1.msra.mxu0 %v6728
    %7022 = vmatprep.subr.mxu0 0.0
    %7023 = vmatpush1.msra.mxu0 %v6729
    %7024 = vmatprep.mubr.f32.mxu0 %v6537
    %7025 = vmatmul.mubr.f32.gmra.mrb[0].mxu0 %v6536
    %v7026 = vpop.f32.mrb[0].mxu0
    %v7027 = vadd.f32 %v6797, %v7026
    %v7028 = vpop.f32.mrb[0].mxu0
    %7029 = vmatprep.mubr.f32.mxu0 %v6541
    %7030 = vmatmul.mubr.f32.gmra.mrb[0].mxu0 %v6540
    %v7031 = vpop.f32.mrb[0].mxu0
    %v7032 = vadd.f32 %v6802, %v7031
    %v7033 = vpop.f32.mrb[0].mxu0
    %7034 = vmatprep.mubr.f32.mxu0 %v6545
    %7035 = vmatmul.mubr.f32.gmra.mrb[0].mxu0 %v6544
    %v7036 = vpop.f32.mrb[0].mxu0
    %v7037 = vadd.f32 %v6807, %v7036
    %v7038 = vpop.f32.mrb[0].mxu0
    %7039 = vmatprep.mubr.f32.mxu0 %v6549
    %7040 = vmatmul.mubr.f32.gmra.mrb[0].mxu0 %v6548
    %v7041 = vpop.f32.mrb[0].mxu0
    %v7042 = vadd.f32 %v6812, %v7041
    %v7043 = vpop.f32.mrb[0].mxu0
    %7044 = vmatprep.mubr.f32.mxu0 %v6553
    %7045 = vmatmul.mubr.f32.gmra.mrb[0].mxu0 %v6552
    %v7046 = vpop.f32.mrb[0].mxu0
    %v7047 = vadd.f32 %v6817, %v7046
    %v7048 = vpop.f32.mrb[0].mxu0
    %7049 = vmatprep.mubr.f32.mxu0 %v6557
    %7050 = vmatmul.mubr.f32.gmra.mrb[0].mxu0 %v6556
    %v7051 = vpop.f32.mrb[0].mxu0
    %v7052 = vadd.f32 %v6822, %v7051
    %v7053 = vpop.f32.mrb[0].mxu0
    %7054 = vmatprep.mubr.f32.mxu0 %v6561
    %7055 = vmatmul.mubr.f32.gmra.mrb[0].mxu0 %v6560
    %v7056 = vpop.f32.mrb[0].mxu0
    %v7057 = vadd.f32 %v6827, %v7056
    %v7058 = vpop.f32.mrb[0].mxu0
    %7059 = vmatprep.mubr.f32.mxu0 %v6565
    %7060 = vmatmul.mubr.f32.gmra.mrb[0].mxu0 %v6564
    %v7061 = vpop.f32.mrb[0].mxu0
    %v7062 = vadd.f32 %v6832, %v7061
    %v7063 = vpop.f32.mrb[0].mxu0
    %7064 = vmatprep.mubr.f32.mxu0 %v6569
    %7065 = vmatmul.mubr.f32.gmra.mrb[0].mxu0 %v6568
    %v7066 = vpop.f32.mrb[0].mxu0
    %v7067 = vadd.f32 %v6837, %v7066
    %v7068 = vpop.f32.mrb[0].mxu0
    %7069 = vmatprep.mubr.f32.mxu0 %v6573
    %7070 = vmatmul.mubr.f32.gmra.mrb[0].mxu0 %v6572
    %v7071 = vpop.f32.mrb[0].mxu0
    %v7072 = vadd.f32 %v6842, %v7071
    %v7073 = vpop.f32.mrb[0].mxu0
    %7074 = vmatprep.mubr.f32.mxu0 %v6577
    %7075 = vmatmul.mubr.f32.gmra.mrb[0].mxu0 %v6576
    %v7076 = vpop.f32.mrb[0].mxu0
    %v7077 = vadd.f32 %v6847, %v7076
    %v7078 = vpop.f32.mrb[0].mxu0
    %7079 = vmatprep.mubr.f32.mxu0 %v6581
    %7080 = vmatmul.mubr.f32.gmra.mrb[0].mxu0 %v6580
    %v7081 = vpop.f32.mrb[0].mxu0
    %v7082 = vadd.f32 %v6852, %v7081
    %v7083 = vpop.f32.mrb[0].mxu0
    %7084 = vmatprep.mubr.f32.mxu0 %v6585
    %7085 = vmatmul.mubr.f32.gmra.mrb[0].mxu0 %v6584
    %v7086 = vpop.f32.mrb[0].mxu0
    %v7087 = vadd.f32 %v6857, %v7086
    %v7088 = vpop.f32.mrb[0].mxu0
    %7089 = vmatprep.mubr.f32.mxu0 %v6589
    %7090 = vmatmul.mubr.f32.gmra.mrb[0].mxu0 %v6588
    %v7091 = vpop.f32.mrb[0].mxu0
    %v7092 = vadd.f32 %v6862, %v7091
    %v7093 = vpop.f32.mrb[0].mxu0
    %7094 = vmatprep.mubr.f32.mxu0 %v6593
    %7095 = vmatmul.mubr.f32.gmra.mrb[0].mxu0 %v6592
    %v7096 = vpop.f32.mrb[0].mxu0
    %v7097 = vadd.f32 %v6867, %v7096
    %v7098 = vpop.f32.mrb[0].mxu0
    %7099 = vmatprep.mubr.f32.mxu0 %v6597
    %7100 = vmatmul.mubr.f32.gmra.mrb[0].mxu0 %v6596
    %v7101 = vpop.f32.mrb[0].mxu0
    %v7102 = vadd.f32 %v6872, %v7101
    %v7103 = vpop.f32.mrb[0].mxu0
    %7104 = vmatprep.mubr.f32.mxu0 %v6601
    %7105 = vmatmul.mubr.f32.gmra.mrb[0].mxu0 %v6600
    %v7106 = vpop.f32.mrb[0].mxu0
    %v7107 = vadd.f32 %v6877, %v7106
    %v7108 = vpop.f32.mrb[0].mxu0
    %7109 = vmatprep.mubr.f32.mxu0 %v6605
    %7110 = vmatmul.mubr.f32.gmra.mrb[0].mxu0 %v6604
    %v7111 = vpop.f32.mrb[0].mxu0
    %v7112 = vadd.f32 %v6882, %v7111
    %v7113 = vpop.f32.mrb[0].mxu0
    %7114 = vmatprep.mubr.f32.mxu0 %v6609
    %7115 = vmatmul.mubr.f32.gmra.mrb[0].mxu0 %v6608
    %v7116 = vpop.f32.mrb[0].mxu0
    %v7117 = vadd.f32 %v6887, %v7116
    %v7118 = vpop.f32.mrb[0].mxu0
    %7119 = vmatprep.mubr.f32.mxu0 %v6613
    %7120 = vmatmul.mubr.f32.gmra.mrb[0].mxu0 %v6612
    %v7121 = vpop.f32.mrb[0].mxu0
    %v7122 = vadd.f32 %v6892, %v7121
    %v7123 = vpop.f32.mrb[0].mxu0
    %7124 = vmatprep.mubr.f32.mxu0 %v6617
    %7125 = vmatmul.mubr.f32.gmra.mrb[0].mxu0 %v6616
    %v7126 = vpop.f32.mrb[0].mxu0
    %v7127 = vadd.f32 %v6897, %v7126
    %v7128 = vpop.f32.mrb[0].mxu0
    %7129 = vmatprep.mubr.f32.mxu0 %v6621
    %7130 = vmatmul.mubr.f32.gmra.mrb[0].mxu0 %v6620
    %v7131 = vpop.f32.mrb[0].mxu0
    %v7132 = vadd.f32 %v6902, %v7131
    %v7133 = vpop.f32.mrb[0].mxu0
    %7134 = vmatprep.mubr.f32.mxu0 %v6625
    %7135 = vmatmul.mubr.f32.gmra.mrb[0].mxu0 %v6624
    %v7136 = vpop.f32.mrb[0].mxu0
    %v7137 = vadd.f32 %v6907, %v7136
    %v7138 = vpop.f32.mrb[0].mxu0
    %7139 = vmatprep.mubr.f32.mxu0 %v6629
    %7140 = vmatmul.mubr.f32.gmra.mrb[0].mxu0 %v6628
    %v7141 = vpop.f32.mrb[0].mxu0
    %v7142 = vadd.f32 %v6912, %v7141
    %v7143 = vpop.f32.mrb[0].mxu0
    %7144 = vmatprep.mubr.f32.mxu0 %v6633
    %7145 = vmatmul.mubr.f32.gmra.mrb[0].mxu0 %v6632
    %v7146 = vpop.f32.mrb[0].mxu0
    %v7147 = vadd.f32 %v6917, %v7146
    %v7148 = vpop.f32.mrb[0].mxu0
    %7149 = vmatprep.mubr.f32.mxu0 %v6637
    %7150 = vmatmul.mubr.f32.gmra.mrb[0].mxu0 %v6636
    %v7151 = vpop.f32.mrb[0].mxu0
    %v7152 = vadd.f32 %v6922, %v7151
    %v7153 = vpop.f32.mrb[0].mxu0
    %7154 = vmatprep.mubr.f32.mxu0 %v6641
    %7155 = vmatmul.mubr.f32.gmra.mrb[0].mxu0 %v6640
    %v7156 = vpop.f32.mrb[0].mxu0
    %v7157 = vadd.f32 %v6927, %v7156
    %v7158 = vpop.f32.mrb[0].mxu0
    %7159 = vmatprep.mubr.f32.mxu0 %v6645
    %7160 = vmatmul.mubr.f32.gmra.mrb[0].mxu0 %v6644
    %v7161 = vpop.f32.mrb[0].mxu0
    %v7162 = vadd.f32 %v6932, %v7161
    %v7163 = vpop.f32.mrb[0].mxu0
    %7164 = vmatprep.mubr.f32.mxu0 %v6649
    %7165 = vmatmul.mubr.f32.gmra.mrb[0].mxu0 %v6648
    %v7166 = vpop.f32.mrb[0].mxu0
    %v7167 = vadd.f32 %v6937, %v7166
    %v7168 = vpop.f32.mrb[0].mxu0
    %7169 = vmatprep.mubr.f32.mxu0 %v6653
    %7170 = vmatmul.mubr.f32.gmra.mrb[0].mxu0 %v6652
    %v7171 = vpop.f32.mrb[0].mxu0
    %v7172 = vadd.f32 %v6942, %v7171
    %v7173 = vpop.f32.mrb[0].mxu0
    %7174 = vmatprep.mubr.f32.mxu0 %v6657
    %7175 = vmatmul.mubr.f32.gmra.mrb[0].mxu0 %v6656
    %v7176 = vpop.f32.mrb[0].mxu0
    %v7177 = vadd.f32 %v6947, %v7176
    %v7178 = vpop.f32.mrb[0].mxu0
    %7179 = vmatprep.mubr.f32.mxu0 %v6661
    %7180 = vmatmul.mubr.f32.gmra.mrb[0].mxu0 %v6660
    %v7181 = vpop.f32.mrb[0].mxu0
    %v7182 = vadd.f32 %v6952, %v7181
    %v7183 = vpop.f32.mrb[0].mxu0
    %7184 = vmatprep.mubr.f32.mxu0 %v6665
    %7185 = vmatmul.mubr.f32.gmra.mrb[0].mxu0 %v6664
    %v7186 = vpop.f32.mrb[0].mxu0
    %v7187 = vadd.f32 %v6957, %v7186
    %v7188 = vpop.f32.mrb[0].mxu0
    %7189 = vdwg.mxu0
    %v7190 = vmax.f32 %v7027, 1e-10
    %v7191 = vmax.f32 %v7032, 1e-10
    %v7192 = vmax.f32 %v7037, 1e-10
    %v7193 = vmax.f32 %v7042, 1e-10
    %v7194 = vmax.f32 %v7047, 1e-10
    %v7195 = vmax.f32 %v7052, 1e-10
    %v7196 = vmax.f32 %v7057, 1e-10
    %v7197 = vmax.f32 %v7062, 1e-10
    %v7198 = vmax.f32 %v7067, 1e-10
    %v7199 = vmax.f32 %v7072, 1e-10
    %v7200 = vmax.f32 %v7077, 1e-10
    %v7201 = vmax.f32 %v7082, 1e-10
    %v7202 = vmax.f32 %v7087, 1e-10
    %v7203 = vmax.f32 %v7092, 1e-10
    %v7204 = vmax.f32 %v7097, 1e-10
    %v7205 = vmax.f32 %v7102, 1e-10
    %v7206 = vmax.f32 %v7107, 1e-10
    %v7207 = vmax.f32 %v7112, 1e-10
    %v7208 = vmax.f32 %v7117, 1e-10
    %v7209 = vmax.f32 %v7122, 1e-10
    %v7210 = vmax.f32 %v7127, 1e-10
    %v7211 = vmax.f32 %v7132, 1e-10
    %v7212 = vmax.f32 %v7137, 1e-10
    %v7213 = vmax.f32 %v7142, 1e-10
    %v7214 = vmax.f32 %v7147, 1e-10
    %v7215 = vmax.f32 %v7152, 1e-10
    %v7216 = vmax.f32 %v7157, 1e-10
    %v7217 = vmax.f32 %v7162, 1e-10
    %v7218 = vmax.f32 %v7167, 1e-10
    %v7219 = vmax.f32 %v7172, 1e-10
    %v7220 = vmax.f32 %v7177, 1e-10
    %v7221 = vmax.f32 %v7182, 1e-10
    %v7222 = vmax.f32 %v7187, 1e-10
    %v7223 = vlog2.pop %v7190
    %v7224 = vmul.f32 %v7223, 0.6931472
    %v7225 = vlog2.pop %v7191
    %v7226 = vmul.f32 %v7225, 0.6931472
    %v7227 = vlog2.pop %v7192
    %v7228 = vmul.f32 %v7227, 0.6931472
    %v7229 = vlog2.pop %v7193
    %v7230 = vmul.f32 %v7229, 0.6931472
    %v7231 = vlog2.pop %v7194
    %v7232 = vmul.f32 %v7231, 0.6931472
    %v7233 = vlog2.pop %v7195
    %v7234 = vmul.f32 %v7233, 0.6931472
    %v7235 = vlog2.pop %v7196
    %v7236 = vmul.f32 %v7235, 0.6931472
    %v7237 = vlog2.pop %v7197
    %v7238 = vmul.f32 %v7237, 0.6931472
    %v7239 = vlog2.pop %v7198
    %v7240 = vmul.f32 %v7239, 0.6931472
    %v7241 = vlog2.pop %v7199
    %v7242 = vmul.f32 %v7241, 0.6931472
    %v7243 = vlog2.pop %v7200
    %v7244 = vmul.f32 %v7243, 0.6931472
    %v7245 = vlog2.pop %v7201
    %v7246 = vmul.f32 %v7245, 0.6931472
    %v7247 = vlog2.pop %v7202
    %v7248 = vmul.f32 %v7247, 0.6931472
    %v7249 = vlog2.pop %v7203
    %v7250 = vmul.f32 %v7249, 0.6931472
    %v7251 = vlog2.pop %v7204
    %v7252 = vmul.f32 %v7251, 0.6931472
    %v7253 = vlog2.pop %v7205
    %v7254 = vmul.f32 %v7253, 0.6931472
    %v7255 = vlog2.pop %v7206
    %v7256 = vmul.f32 %v7255, 0.6931472
    %v7257 = vlog2.pop %v7207
    %v7258 = vmul.f32 %v7257, 0.6931472
    %v7259 = vlog2.pop %v7208
    %v7260 = vmul.f32 %v7259, 0.6931472
    %v7261 = vlog2.pop %v7209
    %v7262 = vmul.f32 %v7261, 0.6931472
    %v7263 = vlog2.pop %v7210
    %v7264 = vmul.f32 %v7263, 0.6931472
    %v7265 = vlog2.pop %v7211
    %v7266 = vmul.f32 %v7265, 0.6931472
    %v7267 = vlog2.pop %v7212
    %v7268 = vmul.f32 %v7267, 0.6931472
    %v7269 = vlog2.pop %v7213
    %v7270 = vmul.f32 %v7269, 0.6931472
    %v7271 = vlog2.pop %v7214
    %v7272 = vmul.f32 %v7271, 0.6931472
    %v7273 = vlog2.pop %v7215
    %v7274 = vmul.f32 %v7273, 0.6931472
    %v7275 = vlog2.pop %v7216
    %v7276 = vmul.f32 %v7275, 0.6931472
    %v7277 = vlog2.pop %v7217
    %v7278 = vmul.f32 %v7277, 0.6931472
    %v7279 = vlog2.pop %v7218
    %v7280 = vmul.f32 %v7279, 0.6931472
    %v7281 = vlog2.pop %v7219
    %v7282 = vmul.f32 %v7281, 0.6931472
    %v7283 = vlog2.pop %v7220
    %v7284 = vmul.f32 %v7283, 0.6931472
    %v7285 = vlog2.pop %v7221
    %v7286 = vmul.f32 %v7285, 0.6931472
    %v7287 = vlog2.pop %v7222
    %v7288 = vmul.f32 %v7287, 0.6931472
    %v7289 = vmul.f32 %v7224, 4.3429446
    %v7290 = vmul.f32 %v7226, 4.3429446
    %v7291 = vmul.f32 %v7228, 4.3429446
    %v7292 = vmul.f32 %v7230, 4.3429446
    %v7293 = vmul.f32 %v7232, 4.3429446
    %v7294 = vmul.f32 %v7234, 4.3429446
    %v7295 = vmul.f32 %v7236, 4.3429446
    %v7296 = vmul.f32 %v7238, 4.3429446
    %v7297 = vmul.f32 %v7240, 4.3429446
    %v7298 = vmul.f32 %v7242, 4.3429446
    %v7299 = vmul.f32 %v7244, 4.3429446
    %v7300 = vmul.f32 %v7246, 4.3429446
    %v7301 = vmul.f32 %v7248, 4.3429446
    %v7302 = vmul.f32 %v7250, 4.3429446
    %v7303 = vmul.f32 %v7252, 4.3429446
    %v7304 = vmul.f32 %v7254, 4.3429446
    %v7305 = vmul.f32 %v7256, 4.3429446
    %v7306 = vmul.f32 %v7258, 4.3429446
    %v7307 = vmul.f32 %v7260, 4.3429446
    %v7308 = vmul.f32 %v7262, 4.3429446
    %v7309 = vmul.f32 %v7264, 4.3429446
    %v7310 = vmul.f32 %v7266, 4.3429446
    %v7311 = vmul.f32 %v7268, 4.3429446
    %v7312 = vmul.f32 %v7270, 4.3429446
    %v7313 = vmul.f32 %v7272, 4.3429446
    %v7314 = vmul.f32 %v7274, 4.3429446
    %v7315 = vmul.f32 %v7276, 4.3429446
    %v7316 = vmul.f32 %v7278, 4.3429446
    %v7317 = vmul.f32 %v7280, 4.3429446
    %v7318 = vmul.f32 %v7282, 4.3429446
    %v7319 = vmul.f32 %v7284, 4.3429446
    %v7320 = vmul.f32 %v7286, 4.3429446
    %v7321 = vmul.f32 %v7288, 4.3429446
    %v7322 = vlaneseq
    %v7323 = vshrl.u32 %v7322, 7
    %v7324 = vadd.s32 %v7323, 8
    %v7325 = vadd.s32 %v7323, 16
    %v7326 = vadd.s32 %v7323, 24
    %v7327 = vadd.s32 %v7323, 32
    %v7328 = vadd.s32 %v7323, 40
    %v7329 = vadd.s32 %v7323, 48
    %v7330 = vadd.s32 %v7323, 56
    %v7331 = vadd.s32 %v7323, 64
    %v7332 = vadd.s32 %v7323, 72
    %v7333 = vadd.s32 %v7323, 80
    %v7334 = vadd.s32 %v7323, 88
    %v7335 = vadd.s32 %v7323, 96
    %v7336 = vadd.s32 %v7323, 104
    %v7337 = vadd.s32 %v7323, 112
    %v7338 = vadd.s32 %v7323, 120
    %v7339 = vadd.s32 %v7323, 128
    %v7340 = vadd.s32 %v7323, 136
    %v7341 = vadd.s32 %v7323, 144
    %v7342 = vadd.s32 %v7323, 152
    %v7343 = vadd.s32 %v7323, 160
    %v7344 = vadd.s32 %v7323, 168
    %v7345 = vadd.s32 %v7323, 176
    %v7346 = vadd.s32 %v7323, 184
    %v7347 = vadd.s32 %v7323, 192
    %v7348 = vadd.s32 %v7323, 200
    %v7349 = vadd.s32 %v7323, 208
    %v7350 = vadd.s32 %v7323, 216
    %v7351 = vadd.s32 %v7323, 224
    %v7352 = vadd.s32 %v7323, 232
    %v7353 = vadd.s32 %v7323, 240
    %v7354 = vadd.s32 %v7323, 248
    %v7355 = vadd.s32 %v7323, 256
    %vm7356 = vcmp.lt.s32.totalorder %v7323, 263
    %vm7357 = vcmp.lt.s32.totalorder %v7324, 263
    %vm7358 = vcmp.lt.s32.totalorder %v7325, 263
    %vm7359 = vcmp.lt.s32.totalorder %v7326, 263
    %vm7360 = vcmp.lt.s32.totalorder %v7327, 263
    %vm7361 = vcmp.lt.s32.totalorder %v7328, 263
    %vm7362 = vcmp.lt.s32.totalorder %v7329, 263
    %vm7363 = vcmp.lt.s32.totalorder %v7330, 263
    %vm7364 = vcmp.lt.s32.totalorder %v7331, 263
    %vm7365 = vcmp.lt.s32.totalorder %v7332, 263
    %vm7366 = vcmp.lt.s32.totalorder %v7333, 263
    %vm7367 = vcmp.lt.s32.totalorder %v7334, 263
    %vm7368 = vcmp.lt.s32.totalorder %v7335, 263
    %vm7369 = vcmp.lt.s32.totalorder %v7336, 263
    %vm7370 = vcmp.lt.s32.totalorder %v7337, 263
    %vm7371 = vcmp.lt.s32.totalorder %v7338, 263
    %vm7372 = vcmp.lt.s32.totalorder %v7339, 263
    %vm7373 = vcmp.lt.s32.totalorder %v7340, 263
    %vm7374 = vcmp.lt.s32.totalorder %v7341, 263
    %vm7375 = vcmp.lt.s32.totalorder %v7342, 263
    %vm7376 = vcmp.lt.s32.totalorder %v7343, 263
    %vm7377 = vcmp.lt.s32.totalorder %v7344, 263
    %vm7378 = vcmp.lt.s32.totalorder %v7345, 263
    %vm7379 = vcmp.lt.s32.totalorder %v7346, 263
    %vm7380 = vcmp.lt.s32.totalorder %v7347, 263
    %vm7381 = vcmp.lt.s32.totalorder %v7348, 263
    %vm7382 = vcmp.lt.s32.totalorder %v7349, 263
    %vm7383 = vcmp.lt.s32.totalorder %v7350, 263
    %vm7384 = vcmp.lt.s32.totalorder %v7351, 263
    %vm7385 = vcmp.lt.s32.totalorder %v7352, 263
    %vm7386 = vcmp.lt.s32.totalorder %v7353, 263
    %vm7387 = vcmp.lt.s32.totalorder %v7354, 263
    %vm7388 = vcmp.lt.s32.totalorder %v7355, 263
    %v7389 = vsel %vm7356, %v7289, -inf
    %v7390 = vsel %vm7357, %v7290, -inf
    %v7391 = vsel %vm7358, %v7291, -inf
    %v7392 = vsel %vm7359, %v7292, -inf
    %v7393 = vsel %vm7360, %v7293, -inf
    %v7394 = vsel %vm7361, %v7294, -inf
    %v7395 = vsel %vm7362, %v7295, -inf
    %v7396 = vsel %vm7363, %v7296, -inf
    %v7397 = vsel %vm7364, %v7297, -inf
    %v7398 = vsel %vm7365, %v7298, -inf
    %v7399 = vsel %vm7366, %v7299, -inf
    %v7400 = vsel %vm7367, %v7300, -inf
    %v7401 = vsel %vm7368, %v7301, -inf
    %v7402 = vsel %vm7369, %v7302, -inf
    %v7403 = vsel %vm7370, %v7303, -inf
    %v7404 = vsel %vm7371, %v7304, -inf
    %v7405 = vsel %vm7372, %v7305, -inf
    %v7406 = vsel %vm7373, %v7306, -inf
    %v7407 = vsel %vm7374, %v7307, -inf
    %v7408 = vsel %vm7375, %v7308, -inf
    %v7409 = vsel %vm7376, %v7309, -inf
    %v7410 = vsel %vm7377, %v7310, -inf
    %v7411 = vsel %vm7378, %v7311, -inf
    %v7412 = vsel %vm7379, %v7312, -inf
    %v7413 = vsel %vm7380, %v7313, -inf
    %v7414 = vsel %vm7381, %v7314, -inf
    %v7415 = vsel %vm7382, %v7315, -inf
    %v7416 = vsel %vm7383, %v7316, -inf
    %v7417 = vsel %vm7384, %v7317, -inf
    %v7418 = vsel %vm7385, %v7318, -inf
    %v7419 = vsel %vm7386, %v7319, -inf
    %v7420 = vsel %vm7387, %v7320, -inf
    %v7421 = vsel %vm7388, %v7321, -inf
    %v7422 = vmax.f32 %v7389, %v7393
    %v7423 = vmax.f32 %v7390, %v7394
    %v7424 = vmax.f32 %v7391, %v7395
    %v7425 = vmax.f32 %v7392, %v7396
    %v7426 = vmax.f32 %v7422, %v7397
    %v7427 = vmax.f32 %v7423, %v7398
    %v7428 = vmax.f32 %v7424, %v7399
    %v7429 = vmax.f32 %v7425, %v7400
    %v7430 = vmax.f32 %v7426, %v7401
    %v7431 = vmax.f32 %v7427, %v7402
    %v7432 = vmax.f32 %v7428, %v7403
    %v7433 = vmax.f32 %v7429, %v7404
    %v7434 = vmax.f32 %v7430, %v7405
    %v7435 = vmax.f32 %v7431, %v7406
    %v7436 = vmax.f32 %v7432, %v7407
    %v7437 = vmax.f32 %v7433, %v7408
    %v7438 = vmax.f32 %v7434, %v7409
    %v7439 = vmax.f32 %v7435, %v7410
    %v7440 = vmax.f32 %v7436, %v7411
    %v7441 = vmax.f32 %v7437, %v7412
    %v7442 = vmax.f32 %v7438, %v7413
    %v7443 = vmax.f32 %v7439, %v7414
    %v7444 = vmax.f32 %v7440, %v7415
    %v7445 = vmax.f32 %v7441, %v7416
    %v7446 = vmax.f32 %v7442, %v7417
    %v7447 = vmax.f32 %v7443, %v7418
    %v7448 = vmax.f32 %v7444, %v7419
    %v7449 = vmax.f32 %v7445, %v7420
    %v7450 = vmax.f32 %v7446, %v7421
    %v7451 = vmax.f32 %v7450, %v7447
    %v7452 = vmax.f32 %v7448, %v7449
    %v7453 = vmax.f32 %v7451, %v7452
    %7454 = vmax.xlane.f32.xlu0 %v7453
    %v7455 = vpop.xlane.xlu0 %7454
    %v7456 = vrot.slane %v7455, 4
    %v7457 = vmax.f32 %v7455, %v7456
    %v7458 = vrot.slane %v7457, 2
    %v7459 = vmax.f32 %v7457, %v7458
    %v7460 = vrot.slane %v7459, 1
    %v7461 = vmax.f32 %v7459, %v7460
    %s7462 = vtos %v7461
    %s7463 = ssub.f32 %s7462, 80.0
    %v7464 = vstv %s7463
    %v7465 = vmax.f32 %v7289, %v7464
    %v7466 = vmax.f32 %v7290, %v7464
    %v7467 = vmax.f32 %v7291, %v7464
    %v7468 = vmax.f32 %v7292, %v7464
    %v7469 = vmax.f32 %v7293, %v7464
    %v7470 = vmax.f32 %v7294, %v7464
    %v7471 = vmax.f32 %v7295, %v7464
    %v7472 = vmax.f32 %v7296, %v7464
    %v7473 = vmax.f32 %v7297, %v7464
    %v7474 = vmax.f32 %v7298, %v7464
    %v7475 = vmax.f32 %v7299, %v7464
    %v7476 = vmax.f32 %v7300, %v7464
    %v7477 = vmax.f32 %v7301, %v7464
    %v7478 = vmax.f32 %v7302, %v7464
    %v7479 = vmax.f32 %v7303, %v7464
    %v7480 = vmax.f32 %v7304, %v7464
    %v7481 = vmax.f32 %v7305, %v7464
    %v7482 = vmax.f32 %v7306, %v7464
    %v7483 = vmax.f32 %v7307, %v7464
    %v7484 = vmax.f32 %v7308, %v7464
    %v7485 = vmax.f32 %v7309, %v7464
    %v7486 = vmax.f32 %v7310, %v7464
    %v7487 = vmax.f32 %v7311, %v7464
    %v7488 = vmax.f32 %v7312, %v7464
    %v7489 = vmax.f32 %v7313, %v7464
    %v7490 = vmax.f32 %v7314, %v7464
    %v7491 = vmax.f32 %v7315, %v7464
    %v7492 = vmax.f32 %v7316, %v7464
    %v7493 = vmax.f32 %v7317, %v7464
    %v7494 = vmax.f32 %v7318, %v7464
    %v7495 = vmax.f32 %v7319, %v7464
    %v7496 = vmax.f32 %v7320, %v7464
    %v7497 = vmax.f32 %v7321, %v7464
    %v7498 = vsel %vm7356, %v7465, inf
    %v7499 = vsel %vm7357, %v7466, inf
    %v7500 = vsel %vm7358, %v7467, inf
    %v7501 = vsel %vm7359, %v7468, inf
    %v7502 = vsel %vm7360, %v7469, inf
    %v7503 = vsel %vm7361, %v7470, inf
    %v7504 = vsel %vm7362, %v7471, inf
    %v7505 = vsel %vm7363, %v7472, inf
    %v7506 = vsel %vm7364, %v7473, inf
    %v7507 = vsel %vm7365, %v7474, inf
    %v7508 = vsel %vm7366, %v7475, inf
    %v7509 = vsel %vm7367, %v7476, inf
    %v7510 = vsel %vm7368, %v7477, inf
    %v7511 = vsel %vm7369, %v7478, inf
    %v7512 = vsel %vm7370, %v7479, inf
    %v7513 = vsel %vm7371, %v7480, inf
    %v7514 = vsel %vm7372, %v7481, inf
    %v7515 = vsel %vm7373, %v7482, inf
    %v7516 = vsel %vm7374, %v7483, inf
    %v7517 = vsel %vm7375, %v7484, inf
    %v7518 = vsel %vm7376, %v7485, inf
    %v7519 = vsel %vm7377, %v7486, inf
    %v7520 = vsel %vm7378, %v7487, inf
    %v7521 = vsel %vm7379, %v7488, inf
    %v7522 = vsel %vm7380, %v7489, inf
    %v7523 = vsel %vm7381, %v7490, inf
    %v7524 = vsel %vm7382, %v7491, inf
    %v7525 = vsel %vm7383, %v7492, inf
    %v7526 = vsel %vm7384, %v7493, inf
    %v7527 = vsel %vm7385, %v7494, inf
    %v7528 = vsel %vm7386, %v7495, inf
    %v7529 = vsel %vm7387, %v7496, inf
    %v7530 = vsel %vm7388, %v7497, inf
    %v7531 = vmin.f32 %v7498, %v7502
    %v7532 = vmin.f32 %v7499, %v7503
    %v7533 = vmin.f32 %v7500, %v7504
    %v7534 = vmin.f32 %v7501, %v7505
    %v7535 = vmin.f32 %v7531, %v7506
    %v7536 = vmin.f32 %v7532, %v7507
    %v7537 = vmin.f32 %v7533, %v7508
    %v7538 = vmin.f32 %v7534, %v7509
    %v7539 = vmin.f32 %v7535, %v7510
    %v7540 = vmin.f32 %v7536, %v7511
    %v7541 = vmin.f32 %v7537, %v7512
    %v7542 = vmin.f32 %v7538, %v7513
    %v7543 = vmin.f32 %v7539, %v7514
    %v7544 = vmin.f32 %v7540, %v7515
    %v7545 = vmin.f32 %v7541, %v7516
    %v7546 = vmin.f32 %v7542, %v7517
    %v7547 = vmin.f32 %v7543, %v7518
    %v7548 = vmin.f32 %v7544, %v7519
    %v7549 = vmin.f32 %v7545, %v7520
    %v7550 = vmin.f32 %v7546, %v7521
    %v7551 = vmin.f32 %v7547, %v7522
    %v7552 = vmin.f32 %v7548, %v7523
    %v7553 = vmin.f32 %v7549, %v7524
    %v7554 = vmin.f32 %v7550, %v7525
    %v7555 = vmin.f32 %v7551, %v7526
    %v7556 = vmin.f32 %v7552, %v7527
    %v7557 = vmin.f32 %v7553, %v7528
    %v7558 = vmin.f32 %v7554, %v7529
    %v7559 = vmin.f32 %v7555, %v7530
    %v7560 = vmin.f32 %v7559, %v7556
    %v7561 = vmin.f32 %v7557, %v7558
    %v7562 = vmin.f32 %v7560, %v7561
    %7563 = vmin.xlane.f32.xlu0 %v7562
    %v7564 = vpop.xlane.xlu0 %7563
    %v7565 = vrot.slane %v7564, 4
    %v7566 = vmin.f32 %v7564, %v7565
    %v7567 = vrot.slane %v7566, 2
    %v7568 = vmin.f32 %v7566, %v7567
    %v7569 = vrot.slane %v7568, 1
    %v7570 = vmin.f32 %v7568, %v7569
    %s7571 = vtos %v7570
    %v7572 = vstv %s7571
    %v7573 = vsub.f32 %v7465, %v7572
    %v7574 = vsub.f32 %v7466, %v7572
    %v7575 = vsub.f32 %v7467, %v7572
    %v7576 = vsub.f32 %v7468, %v7572
    %v7577 = vsub.f32 %v7469, %v7572
    %v7578 = vsub.f32 %v7470, %v7572
    %v7579 = vsub.f32 %v7471, %v7572
    %v7580 = vsub.f32 %v7472, %v7572
    %v7581 = vsub.f32 %v7473, %v7572
    %v7582 = vsub.f32 %v7474, %v7572
    %v7583 = vsub.f32 %v7475, %v7572
    %v7584 = vsub.f32 %v7476, %v7572
    %v7585 = vsub.f32 %v7477, %v7572
    %v7586 = vsub.f32 %v7478, %v7572
    %v7587 = vsub.f32 %v7479, %v7572
    %v7588 = vsub.f32 %v7480, %v7572
    %v7589 = vsub.f32 %v7481, %v7572
    %v7590 = vsub.f32 %v7482, %v7572
    %v7591 = vsub.f32 %v7483, %v7572
    %v7592 = vsub.f32 %v7484, %v7572
    %v7593 = vsub.f32 %v7485, %v7572
    %v7594 = vsub.f32 %v7486, %v7572
    %v7595 = vsub.f32 %v7487, %v7572
    %v7596 = vsub.f32 %v7488, %v7572
    %v7597 = vsub.f32 %v7489, %v7572
    %v7598 = vsub.f32 %v7490, %v7572
    %v7599 = vsub.f32 %v7491, %v7572
    %v7600 = vsub.f32 %v7492, %v7572
    %v7601 = vsub.f32 %v7493, %v7572
    %v7602 = vsub.f32 %v7494, %v7572
    %v7603 = vsub.f32 %v7495, %v7572
    %v7604 = vsub.f32 %v7496, %v7572
    %s7605 = ssub.f32 %s7462, %s7571
    %s7606 = sadd.f32 %s7605, 1e-10
    %v7607 = vstv %s7606
    %v7608 = vrcp.pop %v7607
    %v7609 = vmul.f32 %v7573, %v7608
    %v7610 = vmul.f32 %v7574, %v7608
    %v7611 = vmul.f32 %v7575, %v7608
    %v7612 = vmul.f32 %v7576, %v7608
    %v7613 = vmul.f32 %v7577, %v7608
    %v7614 = vmul.f32 %v7578, %v7608
    %v7615 = vmul.f32 %v7579, %v7608
    %v7616 = vmul.f32 %v7580, %v7608
    %v7617 = vmul.f32 %v7581, %v7608
    %v7618 = vmul.f32 %v7582, %v7608
    %v7619 = vmul.f32 %v7583, %v7608
    %v7620 = vmul.f32 %v7584, %v7608
    %v7621 = vmul.f32 %v7585, %v7608
    %v7622 = vmul.f32 %v7586, %v7608
    %v7623 = vmul.f32 %v7587, %v7608
    %v7624 = vmul.f32 %v7588, %v7608
    %v7625 = vmul.f32 %v7589, %v7608
    %v7626 = vmul.f32 %v7590, %v7608
    %v7627 = vmul.f32 %v7591, %v7608
    %v7628 = vmul.f32 %v7592, %v7608
    %v7629 = vmul.f32 %v7593, %v7608
    %v7630 = vmul.f32 %v7594, %v7608
    %v7631 = vmul.f32 %v7595, %v7608
    %v7632 = vmul.f32 %v7596, %v7608
    %v7633 = vmul.f32 %v7597, %v7608
    %v7634 = vmul.f32 %v7598, %v7608
    %v7635 = vmul.f32 %v7599, %v7608
    %v7636 = vmul.f32 %v7600, %v7608
    %v7637 = vmul.f32 %v7601, %v7608
    %v7638 = vmul.f32 %v7602, %v7608
    %v7639 = vmul.f32 %v7603, %v7608
    %v7640 = vmul.f32 %v7604, %v7608
    %7641 = vxpose.xlu0.b32.start [1/16] %v7609, 128
    %7642 = vxpose.xlu0.b32.cont [2/16] %v7610, 128
    %7643 = vxpose.xlu0.b32.cont [3/16] %v7611, 128
    %7644 = vxpose.xlu0.b32.cont [4/16] %v7612, 128
    %7645 = vxpose.xlu0.b32.cont [5/16] %v7613, 128
    %7646 = vxpose.xlu0.b32.cont [6/16] %v7614, 128
    %7647 = vxpose.xlu0.b32.cont [7/16] %v7615, 128
    %7648 = vxpose.xlu0.b32.cont [8/16] %v7616, 128
    %7649 = vxpose.xlu0.b32.cont [9/16] %v7617, 128
    %7650 = vxpose.xlu0.b32.cont [10/16] %v7618, 128
    %7651 = vxpose.xlu0.b32.cont [11/16] %v7619, 128
    %7652 = vxpose.xlu0.b32.cont [12/16] %v7620, 128
    %7653 = vxpose.xlu0.b32.cont [13/16] %v7621, 128
    %7654 = vxpose.xlu0.b32.cont [14/16] %v7622, 128
    %7655 = vxpose.xlu0.b32.cont [15/16] %v7623, 128
    %7656 = vxpose.xlu0.b32.end [16/16] %v7624, 128
    %v7657 = vpop.trf.xlu0
    %v7658 = vpop.trf.xlu0
    %v7659 = vpop.trf.xlu0
    %v7660 = vpop.trf.xlu0
    %v7661 = vpop.trf.xlu0
    %v7662 = vpop.trf.xlu0
    %v7663 = vpop.trf.xlu0
    %v7664 = vpop.trf.xlu0
    %v7665 = vpop.trf.xlu0
    %v7666 = vpop.trf.xlu0
    %v7667 = vpop.trf.xlu0
    %v7668 = vpop.trf.xlu0
    %v7669 = vpop.trf.xlu0
    %v7670 = vpop.trf.xlu0
    %v7671 = vpop.trf.xlu0
    %v7672 = vpop.trf.xlu0
    %7673 = vxpose.xlu0.b32.start [1/16] %v7625, 128
    %7674 = vxpose.xlu0.b32.cont [2/16] %v7626, 128
    %7675 = vxpose.xlu0.b32.cont [3/16] %v7627, 128
    %7676 = vxpose.xlu0.b32.cont [4/16] %v7628, 128
    %7677 = vxpose.xlu0.b32.cont [5/16] %v7629, 128
    %7678 = vxpose.xlu0.b32.cont [6/16] %v7630, 128
    %7679 = vxpose.xlu0.b32.cont [7/16] %v7631, 128
    %7680 = vxpose.xlu0.b32.cont [8/16] %v7632, 128
    %7681 = vxpose.xlu0.b32.cont [9/16] %v7633, 128
    %7682 = vxpose.xlu0.b32.cont [10/16] %v7634, 128
    %7683 = vxpose.xlu0.b32.cont [11/16] %v7635, 128
    %7684 = vxpose.xlu0.b32.cont [12/16] %v7636, 128
    %7685 = vxpose.xlu0.b32.cont [13/16] %v7637, 128
    %7686 = vxpose.xlu0.b32.cont [14/16] %v7638, 128
    %7687 = vxpose.xlu0.b32.cont [15/16] %v7639, 128
    %7688 = vxpose.xlu0.b32.end [16/16] %v7640, 128
    %v7689 = vpop.trf.xlu0
    %v7690 = vpop.trf.xlu0
    %v7691 = vpop.trf.xlu0
    %v7692 = vpop.trf.xlu0
    %v7693 = vpop.trf.xlu0
    %v7694 = vpop.trf.xlu0
    %v7695 = vpop.trf.xlu0
    %v7696 = vpop.trf.xlu0
    %v7697 = vpop.trf.xlu0
    %v7698 = vpop.trf.xlu0
    %v7699 = vpop.trf.xlu0
    %v7700 = vpop.trf.xlu0
    %v7701 = vpop.trf.xlu0
    %v7702 = vpop.trf.xlu0
    %v7703 = vpop.trf.xlu0
    %v7704 = vpop.trf.xlu0
    %7705 = vst [vmem:[#allocation2] sm:$0xff] %v7657
    %7706 = vst [vmem:[#allocation2 + $0x8] sm:$0xff] %v7689
    %7707 = vst [vmem:[#allocation2 + $0x10] sm:$0xff] %v7658
    %7708 = vst [vmem:[#allocation2 + $0x18] sm:$0xff] %v7690
    %7709 = vst [vmem:[#allocation2 + $0x20] sm:$0xff] %v7659
    %7710 = vst [vmem:[#allocation2 + $0x28] sm:$0xff] %v7691
    %7711 = vst [vmem:[#allocation2 + $0x30] sm:$0xff] %v7660
    %7712 = vst [vmem:[#allocation2 + $0x38] sm:$0xff] %v7692
    %7713 = vst [vmem:[#allocation2 + $0x40] sm:$0xff] %v7661
    %7714 = vst [vmem:[#allocation2 + $0x48] sm:$0xff] %v7693
    %7715 = vst [vmem:[#allocation2 + $0x50] sm:$0xff] %v7662
    %7716 = vst [vmem:[#allocation2 + $0x58] sm:$0xff] %v7694
    %7717 = vst [vmem:[#allocation2 + $0x60] sm:$0xff] %v7663
    %7718 = vst [vmem:[#allocation2 + $0x68] sm:$0xff] %v7695
    %7719 = vst [vmem:[#allocation2 + $0x70] sm:$0xff] %v7664
    %7720 = vst [vmem:[#allocation2 + $0x78] sm:$0xff] %v7696
    %7721 = vst [vmem:[#allocation2 + $0x80] sm:$0xff] %v7665
    %7722 = vst [vmem:[#allocation2 + $0x88] sm:$0xff] %v7697
    %7723 = vst [vmem:[#allocation2 + $0x90] sm:$0xff] %v7666
    %7724 = vst [vmem:[#allocation2 + $0x98] sm:$0xff] %v7698
    %7725 = vst [vmem:[#allocation2 + $0xa0] sm:$0xff] %v7667
    %7726 = vst [vmem:[#allocation2 + $0xa8] sm:$0xff] %v7699
    %7727 = vst [vmem:[#allocation2 + $0xb0] sm:$0xff] %v7668
    %7728 = vst [vmem:[#allocation2 + $0xb8] sm:$0xff] %v7700
    %7729 = vst [vmem:[#allocation2 + $0xc0] sm:$0xff] %v7669
    %7730 = vst [vmem:[#allocation2 + $0xc8] sm:$0xff] %v7701
    %7731 = vst [vmem:[#allocation2 + $0xd0] sm:$0xff] %v7670
    %7732 = vst [vmem:[#allocation2 + $0xd8] sm:$0xff] %v7702
    %7733 = vst [vmem:[#allocation2 + $0xe0] sm:$0xff] %v7671
    %7734 = vst [vmem:[#allocation2 + $0xe8] sm:$0xff] %v7703
    %7735 = vst [vmem:[#allocation2 + $0xf0] sm:$0xff] %v7672
    %7736 = vst [vmem:[#allocation2 + $0xf8] sm:$0xff] %v7704
    // Predicated region
    $region14: #{audio_to_spectrogram.1} parent=1 // pred_check
      _
    $region15: #{audio_to_spectrogram.1} parent=1 // pred_check_branch
      %7738 = sbr.rel (0) target = $region17
    $region16: #{audio_to_spectrogram.1} parent=1 // pred_region
      %s7740 = ssub.s32 4096, 4096
      %7741 = vsyncadd [#allocation3], %s7740
      %s7742 = sshll.u32 [#allocation2], 4
      %s7743 = int_to_ptr.vmem [resolvable:$true] %s7742
      %7748 = dma.vmem_to_hbm [thread:$0]  %s7743, 4096, %s3, [#allocation3], 256, 256, 16
    $region17: #{audio_to_spectrogram.1} parent=1 // pred_fallthru
      _
    // Predicated region
    $region18: #{audio_to_spectrogram.1} parent=1 // pred_check
      _
    $region19: #{audio_to_spectrogram.1} parent=1 // pred_check_branch
      %7750 = sbr.rel (0) target = $region21
    $region20: #{audio_to_spectrogram.1} parent=1 // pred_region
      %7751 = dma.done [#allocation3], 4096
    $region21: #{audio_to_spectrogram.1} parent=1 // pred_fallthru
      _
    %7752 = vsyncpa [#allocation3], 1

</llo_original>
